<compile_context>
chip_gen: v5e
topology: v5e:2x2
jax: 0.10.0
libtpu: 0.0.40
codegen_flags: <defaults>
</compile_context>

<pallas_src>
import jax
import jax.numpy as jnp
from jax import lax
from jax.experimental import pallas as pl
from jax.experimental.pallas import tpu as pltpu

LATENT_DIM = 64
BN_EPS = 1e-5
C1, C2 = 32, 64        # conv1 / conv2 output channels
H1, W1 = 14, 14        # conv1 output spatial (28 -> 14, k3 s2 p1)
H2, W2 = 7, 7          # conv2 output spatial (14 -> 7,  k3 s2 p1)
KK = 9                 # 3x3 taps


# ---------------------------------------------------------------------------
# Fused encoder kernel
# ---------------------------------------------------------------------------
def _encoder_kernel(p1_ref, w1_ref, g1_ref, b1_ref,
                    w2_ref, g2_ref, b2_ref,
                    wl_ref, bl_ref,
                    o_ref,
                    y1raw_ref, y1q_ref, flat_ref):
    n = o_ref.shape[0]
    m2 = H2 * W2 * n          # conv2 rows  (= n*7*7), also one conv1 phase block
    m1 = 4 * m2               # conv1 rows  (= n*14*14, phase-reordered)

    # ---- conv1: (m1, 9) @ (9, 32) on the MXU, chunked per phase block.
    # Single-pass BN stats (sum & sum-of-squares) accumulated alongside.
    s1 = jnp.zeros((1, C1), jnp.float32)
    q1 = jnp.zeros((1, C1), jnp.float32)
    for g in range(4):
        chunk = jnp.dot(p1_ref[g * m2:(g + 1) * m2, :], w1_ref[...],
                        preferred_element_type=jnp.float32)
        y1raw_ref[g * m2:(g + 1) * m2, :] = chunk
        s1 = s1 + jnp.sum(chunk, axis=0, keepdims=True)
        q1 = q1 + jnp.sum(chunk * chunk, axis=0, keepdims=True)
    mean1 = s1 / m1
    var1 = q1 / m1 - mean1 * mean1            # biased variance (training-mode BN)
    a1 = g1_ref[...] * lax.rsqrt(var1 + BN_EPS)
    c1 = b1_ref[...] - mean1 * a1

    # ---- scatter conv1 rows (BN + ReLU fused into the copy) into the padded
    # phase / column-window buffers used by conv2's 9 shifted matmuls:
    #   y1q[pr, pc, w, r*7n + slot*n + img, ch] == relu(bn(y1))_pad[img, 2r+pr, 2(slot+w)+pc, ch]
    # All source/destination slices are unit-stride; pad positions stay zero.
    y1q_ref[...] = jnp.zeros(y1q_ref.shape, y1q_ref.dtype)
    for pr in range(2):
        r0 = 1 - pr                                   # first valid padded-row index
        for pc in range(2):
            base = (pr * 2 + pc) * m2                 # first conv1 row of this phase block
            for w in range(2):                        # column window covers c in [w, w+7)
                lo = max(0, w - (1 - pc))             # first data column landing in window
                hi = min(7, w + 7 - (1 - pc))         # one past the last
                slot0 = lo + (1 - pc) - w
                if hi - lo == 7:
                    # whole phase block is contiguous in both source and destination
                    src = y1raw_ref[base:base + m2, :]
                    dst = r0 * 7 * n
                    y1q_ref[pr, pc, w, dst:dst + m2, :] = (
                        jnp.maximum(src * a1 + c1, 0.0).astype(jnp.bfloat16))
                else:
                    for rr in range(7):
                        src = y1raw_ref[base + (rr * 7 + lo) * n:
                                        base + (rr * 7 + hi) * n, :]
                        dst = (r0 + rr) * 7 * n + slot0 * n
                        y1q_ref[pr, pc, w, dst:dst + (hi - lo) * n, :] = (
                            jnp.maximum(src * a1 + c1, 0.0).astype(jnp.bfloat16))

    # ---- conv2 as 9 shifted matmuls: (49n, 32) @ (32, 64), f32 accumulation.
    acc = jnp.zeros((m2, C2), jnp.float32)
    for di in range(3):
        for dj in range(3):
            lhs = y1q_ref[di % 2, dj % 2, dj // 2,
                          (di // 2) * 7 * n:(di // 2) * 7 * n + m2, :]
            acc = acc + jnp.dot(lhs, w2_ref[di * 3 + dj],
                                preferred_element_type=jnp.float32)

    mean2 = jnp.sum(acc, axis=0, keepdims=True) / m2
    var2 = jnp.sum(acc * acc, axis=0, keepdims=True) / m2 - mean2 * mean2
    a2 = g2_ref[...] * lax.rsqrt(var2 + BN_EPS)
    c2 = b2_ref[...] - mean2 * a2
    y2 = jnp.maximum(acc * a2 + c2, 0.0).astype(jnp.bfloat16)   # rows ordered (i2, j2, img)

    # ---- flatten to (n, 7*7*64) in (H, W, C) order (wl was pre-permuted to match).
    for q in range(H2 * W2):
        flat_ref[:, q * C2:(q + 1) * C2] = y2[q * n:(q + 1) * n, :]

    # ---- linear: (n, 3136) @ (3136, 128) + bias; lane-dense (128) final store.
    out = jnp.dot(flat_ref[...], wl_ref[...], preferred_element_type=jnp.float32)
    o_ref[...] = out + bl_ref[...]


# ---------------------------------------------------------------------------
# Host-side glue: conv1 patch rows (tiny), ordered (row-phase, col-phase, rr, cc, img)
# ---------------------------------------------------------------------------
def _conv1_patches(x_nchw):
    n = x_nchw.shape[0]
    xp = jnp.pad(x_nchw[:, 0], ((0, 0), (1, 1), (1, 1)))            # (n, 30, 30)
    taps = [xp[:, di:di + 2 * H1:2, dj:dj + 2 * W1:2]                # (n, 14, 14)
            for di in range(3) for dj in range(3)]
    t = jnp.stack(taps, axis=-1)                                     # (n, 14, 14, 9)
    t6 = t.reshape(n, 7, 2, 7, 2, KK)                                # i1 = 2a+b, j1 = 2c+d
    p = jnp.transpose(t6, (2, 4, 1, 3, 0, 5))[::-1, ::-1]            # (pr, pc, rr, cc, n, 9)
    return p.reshape(4 * H2 * W2 * n, KK).astype(jnp.bfloat16)


# ---------------------------------------------------------------------------
# Deterministic parameter init (synthetic; shapes follow the PyTorch module)
# ---------------------------------------------------------------------------
def init_params(key):
    ks = jax.random.split(key, 8)
    p = {}
    # conv1: torch weight (32, 1, 3, 3) -> (kh*kw, cout); bias dropped (no-op before BN)
    w1 = 0.10 * jax.random.normal(ks[0], (C1, 1, 3, 3), jnp.float32)
    p["w1"] = jnp.transpose(w1, (2, 3, 1, 0)).reshape(KK, C1).astype(jnp.bfloat16)
    p["g1"] = 1.0 + 0.10 * jax.random.normal(ks[1], (1, C1), jnp.float32)
    p["b1"] = 0.10 * jax.random.normal(ks[2], (1, C1), jnp.float32)
    # conv2: torch weight (64, 32, 3, 3) -> per-tap (9, cin, cout); bias dropped
    w2 = 0.05 * jax.random.normal(ks[3], (C2, C1, 3, 3), jnp.float32)
    p["w2"] = jnp.transpose(w2, (2, 3, 1, 0)).reshape(KK, C1, C2).astype(jnp.bfloat16)
    p["g2"] = 1.0 + 0.10 * jax.random.normal(ks[4], (1, C2), jnp.float32)
    p["b2"] = 0.10 * jax.random.normal(ks[5], (1, C2), jnp.float32)
    # linear: torch weight (2*latent, 64*7*7) with (C,H,W)-ordered columns;
    # stored transposed AND permuted to (H,W,C) row order to match the in-kernel flatten.
    wl = 0.02 * jax.random.normal(ks[6], (2 * LATENT_DIM, C2 * H2 * W2), jnp.float32)
    p["wl"] = (jnp.transpose(wl.reshape(2 * LATENT_DIM, C2, H2, W2), (2, 3, 1, 0))
               .reshape(H2 * W2 * C2, 2 * LATENT_DIM).astype(jnp.bfloat16))
    p["bl"] = 0.02 * jax.random.normal(ks[7], (1, 2 * LATENT_DIM), jnp.float32)
    return p


# ---------------------------------------------------------------------------
# Forward pass: one fused pallas_call
# ---------------------------------------------------------------------------
def encoder_forward(params, x_nchw):
    assert x_nchw.shape[1:] == (1, 28, 28), x_nchw.shape  # Linear hardcodes 64*7*7
    n = x_nchw.shape[0]
    p1 = _conv1_patches(x_nchw)

    vmem = pltpu.MemorySpace.VMEM
    fused = pl.pallas_call(
        _encoder_kernel,
        out_shape=jax.ShapeDtypeStruct((n, 2 * LATENT_DIM), jnp.float32),
        in_specs=[pl.BlockSpec(memory_space=vmem)] * 9,
        out_specs=pl.BlockSpec(memory_space=vmem),
        scratch_shapes=[
            pltpu.VMEM((4 * H2 * W2 * n, C1), jnp.float32),            # raw conv1 output
            pltpu.VMEM((2, 2, 2, 8 * H2 * n, C1), jnp.bfloat16),       # phase/window buffers
            pltpu.VMEM((n, H2 * W2 * C2), jnp.bfloat16),               # (H,W,C) flatten
        ],
    )
    return fused(p1, params["w1"], params["g1"], params["b1"],
                 params["w2"], params["g2"], params["b2"],
                 params["wl"], params["bl"])


if __name__ == "__main__":
    key = jax.random.PRNGKey(0)
    params = init_params(key)
    x = jax.random.normal(jax.random.fold_in(key, 1), (2, 1, 28, 28), jnp.float32)

    out = jax.jit(encoder_forward)(params, x)
    out = jax.block_until_ready(out)

    assert out.shape == (2, 2 * LATENT_DIM), out.shape
    assert bool(jnp.all(jnp.isfinite(out)))
    print("KERNEL_OK")
</pallas_src>

<mosaic_0001>
module attributes {stable_mosaic.version = 11 : i64} {
  func.func @_encoder_kernel(%arg0: memref<392x9xbf16, #tpu.memory_space<vmem>>, %arg1: memref<9x32xbf16, #tpu.memory_space<vmem>>, %arg2: memref<1x32xf32, #tpu.memory_space<vmem>>, %arg3: memref<1x32xf32, #tpu.memory_space<vmem>>, %arg4: memref<9x32x64xbf16, #tpu.memory_space<vmem>>, %arg5: memref<1x64xf32, #tpu.memory_space<vmem>>, %arg6: memref<1x64xf32, #tpu.memory_space<vmem>>, %arg7: memref<3136x128xbf16, #tpu.memory_space<vmem>>, %arg8: memref<1x128xf32, #tpu.memory_space<vmem>>, %arg9: memref<2x128xf32, #tpu.memory_space<vmem>>, %arg10: memref<392x32xf32, #tpu.memory_space<vmem>>, %arg11: memref<2x2x2x112x32xbf16, #tpu.memory_space<vmem>>, %arg12: memref<2x3136xbf16, #tpu.memory_space<vmem>>) attributes {dimension_semantics = [], scalar_prefetch = 0 : i64, scratch_operands = 3 : i64, tpu.core_type = #tpu.core_type<tc>} {
    %cst = arith.constant 0.000000e+00 : f32
    %0 = vector.broadcast %cst : f32 to vector<1x32xf32>
    %cst_0 = arith.constant 0.000000e+00 : f32
    %1 = vector.broadcast %cst_0 : f32 to vector<1x32xf32>
    %c0 = arith.constant 0 : index
    %c0_1 = arith.constant 0 : index
    %2 = vector.load %arg0[%c0, %c0_1] : memref<392x9xbf16, #tpu.memory_space<vmem>>, vector<98x9xbf16>
    %c0_2 = arith.constant 0 : index
    %c0_3 = arith.constant 0 : index
    %3 = vector.load %arg1[%c0_2, %c0_3] : memref<9x32xbf16, #tpu.memory_space<vmem>>, vector<9x32xbf16>
    %cst_4 = arith.constant dense<0.000000e+00> : vector<98x32xf32>
    %4 = tpu.matmul %2, %3, %cst_4 {dimension_numbers = #tpu.dot_dimension_numbers<[1], [0], [0], [1], [0, 0, 1, 1], [], []>} : vector<98x9xbf16>, vector<9x32xbf16>, vector<98x32xf32> -> vector<98x32xf32>
    %c0_5 = arith.constant 0 : index
    %c0_6 = arith.constant 0 : index
    %5 = vector.load %arg10[%c0_5, %c0_6] : memref<392x32xf32, #tpu.memory_space<vmem>>, vector<98x32xf32>
    tpu.vector_store %arg10[%c0_5, %c0_6], %4 {strides = array<i32>} : memref<392x32xf32, #tpu.memory_space<vmem>>, vector<98x32xf32>,
    %cst_7 = arith.constant dense<0.000000e+00> : vector<32xf32>
    %6 = vector.multi_reduction <add>, %4, %cst_7 [0] : vector<98x32xf32> to vector<32xf32>
    %7 = vector.shape_cast %6 : vector<32xf32> to vector<1x32xf32>
    %8 = arith.addf %0, %7 : vector<1x32xf32>
    %9 = arith.mulf %4, %4 : vector<98x32xf32>
    %cst_8 = arith.constant dense<0.000000e+00> : vector<32xf32>
    %10 = vector.multi_reduction <add>, %9, %cst_8 [0] : vector<98x32xf32> to vector<32xf32>
    %11 = vector.shape_cast %10 : vector<32xf32> to vector<1x32xf32>
    %12 = arith.addf %1, %11 : vector<1x32xf32>
    %c98 = arith.constant 98 : index
    %c0_9 = arith.constant 0 : index
    %13 = vector.load %arg0[%c98, %c0_9] : memref<392x9xbf16, #tpu.memory_space<vmem>>, vector<98x9xbf16>
    %c0_10 = arith.constant 0 : index
    %c0_11 = arith.constant 0 : index
    %14 = vector.load %arg1[%c0_10, %c0_11] : memref<9x32xbf16, #tpu.memory_space<vmem>>, vector<9x32xbf16>
    %cst_12 = arith.constant dense<0.000000e+00> : vector<98x32xf32>
    %15 = tpu.matmul %13, %14, %cst_12 {dimension_numbers = #tpu.dot_dimension_numbers<[1], [0], [0], [1], [0, 0, 1, 1], [], []>} : vector<98x9xbf16>, vector<9x32xbf16>, vector<98x32xf32> -> vector<98x32xf32>
    %c98_13 = arith.constant 98 : index
    %c0_14 = arith.constant 0 : index
    %16 = vector.load %arg10[%c98_13, %c0_14] : memref<392x32xf32, #tpu.memory_space<vmem>>, vector<98x32xf32>
    tpu.vector_store %arg10[%c98_13, %c0_14], %15 {strides = array<i32>} : memref<392x32xf32, #tpu.memory_space<vmem>>, vector<98x32xf32>,
    %cst_15 = arith.constant dense<0.000000e+00> : vector<32xf32>
    %17 = vector.multi_reduction <add>, %15, %cst_15 [0] : vector<98x32xf32> to vector<32xf32>
    %18 = vector.shape_cast %17 : vector<32xf32> to vector<1x32xf32>
    %19 = arith.addf %8, %18 : vector<1x32xf32>
    %20 = arith.mulf %15, %15 : vector<98x32xf32>
    %cst_16 = arith.constant dense<0.000000e+00> : vector<32xf32>
    %21 = vector.multi_reduction <add>, %20, %cst_16 [0] : vector<98x32xf32> to vector<32xf32>
    %22 = vector.shape_cast %21 : vector<32xf32> to vector<1x32xf32>
    %23 = arith.addf %12, %22 : vector<1x32xf32>
    %c196 = arith.constant 196 : index
    %c0_17 = arith.constant 0 : index
    %24 = vector.load %arg0[%c196, %c0_17] : memref<392x9xbf16, #tpu.memory_space<vmem>>, vector<98x9xbf16>
    %c0_18 = arith.constant 0 : index
    %c0_19 = arith.constant 0 : index
    %25 = vector.load %arg1[%c0_18, %c0_19] : memref<9x32xbf16, #tpu.memory_space<vmem>>, vector<9x32xbf16>
    %cst_20 = arith.constant dense<0.000000e+00> : vector<98x32xf32>
    %26 = tpu.matmul %24, %25, %cst_20 {dimension_numbers = #tpu.dot_dimension_numbers<[1], [0], [0], [1], [0, 0, 1, 1], [], []>} : vector<98x9xbf16>, vector<9x32xbf16>, vector<98x32xf32> -> vector<98x32xf32>
    %c196_21 = arith.constant 196 : index
    %c0_22 = arith.constant 0 : index
    %27 = vector.load %arg10[%c196_21, %c0_22] : memref<392x32xf32, #tpu.memory_space<vmem>>, vector<98x32xf32>
    tpu.vector_store %arg10[%c196_21, %c0_22], %26 {strides = array<i32>} : memref<392x32xf32, #tpu.memory_space<vmem>>, vector<98x32xf32>,
    %cst_23 = arith.constant dense<0.000000e+00> : vector<32xf32>
    %28 = vector.multi_reduction <add>, %26, %cst_23 [0] : vector<98x32xf32> to vector<32xf32>
    %29 = vector.shape_cast %28 : vector<32xf32> to vector<1x32xf32>
    %30 = arith.addf %19, %29 : vector<1x32xf32>
    %31 = arith.mulf %26, %26 : vector<98x32xf32>
    %cst_24 = arith.constant dense<0.000000e+00> : vector<32xf32>
    %32 = vector.multi_reduction <add>, %31, %cst_24 [0] : vector<98x32xf32> to vector<32xf32>
    %33 = vector.shape_cast %32 : vector<32xf32> to vector<1x32xf32>
    %34 = arith.addf %23, %33 : vector<1x32xf32>
    %c294 = arith.constant 294 : index
    %c0_25 = arith.constant 0 : index
    %35 = vector.load %arg0[%c294, %c0_25] : memref<392x9xbf16, #tpu.memory_space<vmem>>, vector<98x9xbf16>
    %c0_26 = arith.constant 0 : index
    %c0_27 = arith.constant 0 : index
    %36 = vector.load %arg1[%c0_26, %c0_27] : memref<9x32xbf16, #tpu.memory_space<vmem>>, vector<9x32xbf16>
    %cst_28 = arith.constant dense<0.000000e+00> : vector<98x32xf32>
    %37 = tpu.matmul %35, %36, %cst_28 {dimension_numbers = #tpu.dot_dimension_numbers<[1], [0], [0], [1], [0, 0, 1, 1], [], []>} : vector<98x9xbf16>, vector<9x32xbf16>, vector<98x32xf32> -> vector<98x32xf32>
    %c294_29 = arith.constant 294 : index
    %c0_30 = arith.constant 0 : index
    %38 = vector.load %arg10[%c294_29, %c0_30] : memref<392x32xf32, #tpu.memory_space<vmem>>, vector<98x32xf32>
    tpu.vector_store %arg10[%c294_29, %c0_30], %37 {strides = array<i32>} : memref<392x32xf32, #tpu.memory_space<vmem>>, vector<98x32xf32>,
    %cst_31 = arith.constant dense<0.000000e+00> : vector<32xf32>
    %39 = vector.multi_reduction <add>, %37, %cst_31 [0] : vector<98x32xf32> to vector<32xf32>
    %40 = vector.shape_cast %39 : vector<32xf32> to vector<1x32xf32>
    %41 = arith.addf %30, %40 : vector<1x32xf32>
    %42 = arith.mulf %37, %37 : vector<98x32xf32>
    %cst_32 = arith.constant dense<0.000000e+00> : vector<32xf32>
    %43 = vector.multi_reduction <add>, %42, %cst_32 [0] : vector<98x32xf32> to vector<32xf32>
    %44 = vector.shape_cast %43 : vector<32xf32> to vector<1x32xf32>
    %45 = arith.addf %34, %44 : vector<1x32xf32>
    %cst_33 = arith.constant 3.920000e+02 : f32
    %46 = vector.broadcast %cst_33 : f32 to vector<1x32xf32>
    %47 = arith.divf %41, %46 : vector<1x32xf32>
    %cst_34 = arith.constant 3.920000e+02 : f32
    %48 = vector.broadcast %cst_34 : f32 to vector<1x32xf32>
    %49 = arith.divf %45, %48 : vector<1x32xf32>
    %50 = arith.mulf %47, %47 : vector<1x32xf32>
    %51 = arith.subf %49, %50 : vector<1x32xf32>
    %c0_35 = arith.constant 0 : index
    %c0_36 = arith.constant 0 : index
    %52 = vector.load %arg2[%c0_35, %c0_36] : memref<1x32xf32, #tpu.memory_space<vmem>>, vector<1x32xf32>
    %cst_37 = arith.constant 9.99999974E-6 : f32
    %53 = vector.broadcast %cst_37 : f32 to vector<1x32xf32>
    %54 = arith.addf %51, %53 : vector<1x32xf32>
    %55 = math.rsqrt %54 : vector<1x32xf32>
    %56 = arith.mulf %52, %55 : vector<1x32xf32>
    %c0_38 = arith.constant 0 : index
    %c0_39 = arith.constant 0 : index
    %57 = vector.load %arg3[%c0_38, %c0_39] : memref<1x32xf32, #tpu.memory_space<vmem>>, vector<1x32xf32>
    %58 = arith.mulf %47, %56 : vector<1x32xf32>
    %59 = arith.subf %57, %58 : vector<1x32xf32>
    %cst_40 = arith.constant 0.000000e+00 : bf16
    %60 = vector.broadcast %cst_40 : bf16 to vector<2x2x2x112x32xbf16>
    %c0_41 = arith.constant 0 : index
    %c0_42 = arith.constant 0 : index
    %c0_43 = arith.constant 0 : index
    %c0_44 = arith.constant 0 : index
    %c0_45 = arith.constant 0 : index
    %61 = vector.load %arg11[%c0_41, %c0_42, %c0_43, %c0_44, %c0_45] : memref<2x2x2x112x32xbf16, #tpu.memory_space<vmem>>, vector<2x2x2x112x32xbf16>
    tpu.vector_store %arg11[%c0_41, %c0_42, %c0_43, %c0_44, %c0_45], %60 {strides = array<i32>} : memref<2x2x2x112x32xbf16, #tpu.memory_space<vmem>>, vector<2x2x2x112x32xbf16>,
    %c0_46 = arith.constant 0 : index
    %c0_47 = arith.constant 0 : index
    %62 = vector.load %arg10[%c0_46, %c0_47] : memref<392x32xf32, #tpu.memory_space<vmem>>, vector<12x32xf32>
    %63 = vector.broadcast %56 : vector<1x32xf32> to vector<12x32xf32>
    %64 = arith.mulf %62, %63 : vector<12x32xf32>
    %65 = vector.broadcast %59 : vector<1x32xf32> to vector<12x32xf32>
    %66 = arith.addf %64, %65 : vector<12x32xf32>
    %cst_48 = arith.constant 0.000000e+00 : f32
    %67 = vector.broadcast %cst_48 : f32 to vector<12x32xf32>
    %68 = arith.maximumf %66, %67 : vector<12x32xf32>
    %69 = arith.truncf %68 : vector<12x32xf32> to vector<12x32xbf16>
    %c0_49 = arith.constant 0 : index
    %c0_50 = arith.constant 0 : index
    %c0_51 = arith.constant 0 : index
    %c16 = arith.constant 16 : index
    %c0_52 = arith.constant 0 : index
    %70 = vector.load %arg11[%c0_49, %c0_50, %c0_51, %c16, %c0_52] : memref<2x2x2x112x32xbf16, #tpu.memory_space<vmem>>, vector<1x1x1x12x32xbf16>
    %71 = vector.shape_cast %70 : vector<1x1x1x12x32xbf16> to vector<12x32xbf16>
    %72 = vector.shape_cast %69 : vector<12x32xbf16> to vector<1x1x1x12x32xbf16>
    tpu.vector_store %arg11[%c0_49, %c0_50, %c0_51, %c16, %c0_52], %72 {strides = array<i32>} : memref<2x2x2x112x32xbf16, #tpu.memory_space<vmem>>, vector<1x1x1x12x32xbf16>,
    %c14 = arith.constant 14 : index
    %c0_53 = arith.constant 0 : index
    %73 = vector.load %arg10[%c14, %c0_53] : memref<392x32xf32, #tpu.memory_space<vmem>>, vector<12x32xf32>
    %74 = vector.broadcast %56 : vector<1x32xf32> to vector<12x32xf32>
    %75 = arith.mulf %73, %74 : vector<12x32xf32>
    %76 = vector.broadcast %59 : vector<1x32xf32> to vector<12x32xf32>
    %77 = arith.addf %75, %76 : vector<12x32xf32>
    %cst_54 = arith.constant 0.000000e+00 : f32
    %78 = vector.broadcast %cst_54 : f32 to vector<12x32xf32>
    %79 = arith.maximumf %77, %78 : vector<12x32xf32>
    %80 = arith.truncf %79 : vector<12x32xf32> to vector<12x32xbf16>
    %c0_55 = arith.constant 0 : index
    %c0_56 = arith.constant 0 : index
    %c0_57 = arith.constant 0 : index
    %c30 = arith.constant 30 : index
    %c0_58 = arith.constant 0 : index
    %81 = vector.load %arg11[%c0_55, %c0_56, %c0_57, %c30, %c0_58] : memref<2x2x2x112x32xbf16, #tpu.memory_space<vmem>>, vector<1x1x1x12x32xbf16>
    %82 = vector.shape_cast %81 : vector<1x1x1x12x32xbf16> to vector<12x32xbf16>
    %83 = vector.shape_cast %80 : vector<12x32xbf16> to vector<1x1x1x12x32xbf16>
    tpu.vector_store %arg11[%c0_55, %c0_56, %c0_57, %c30, %c0_58], %83 {strides = array<i32>} : memref<2x2x2x112x32xbf16, #tpu.memory_space<vmem>>, vector<1x1x1x12x32xbf16>,
    %c28 = arith.constant 28 : index
    %c0_59 = arith.constant 0 : index
    %84 = vector.load %arg10[%c28, %c0_59] : memref<392x32xf32, #tpu.memory_space<vmem>>, vector<12x32xf32>
    %85 = vector.broadcast %56 : vector<1x32xf32> to vector<12x32xf32>
    %86 = arith.mulf %84, %85 : vector<12x32xf32>
    %87 = vector.broadcast %59 : vector<1x32xf32> to vector<12x32xf32>
    %88 = arith.addf %86, %87 : vector<12x32xf32>
    %cst_60 = arith.constant 0.000000e+00 : f32
    %89 = vector.broadcast %cst_60 : f32 to vector<12x32xf32>
    %90 = arith.maximumf %88, %89 : vector<12x32xf32>
    %91 = arith.truncf %90 : vector<12x32xf32> to vector<12x32xbf16>
    %c0_61 = arith.constant 0 : index
    %c0_62 = arith.constant 0 : index
    %c0_63 = arith.constant 0 : index
    %c44 = arith.constant 44 : index
    %c0_64 = arith.constant 0 : index
    %92 = vector.load %arg11[%c0_61, %c0_62, %c0_63, %c44, %c0_64] : memref<2x2x2x112x32xbf16, #tpu.memory_space<vmem>>, vector<1x1x1x12x32xbf16>
    %93 = vector.shape_cast %92 : vector<1x1x1x12x32xbf16> to vector<12x32xbf16>
    %94 = vector.shape_cast %91 : vector<12x32xbf16> to vector<1x1x1x12x32xbf16>
    tpu.vector_store %arg11[%c0_61, %c0_62, %c0_63, %c44, %c0_64], %94 {strides = array<i32>} : memref<2x2x2x112x32xbf16, #tpu.memory_space<vmem>>, vector<1x1x1x12x32xbf16>,
    %c42 = arith.constant 42 : index
    %c0_65 = arith.constant 0 : index
    %95 = vector.load %arg10[%c42, %c0_65] : memref<392x32xf32, #tpu.memory_space<vmem>>, vector<12x32xf32>
    %96 = vector.broadcast %56 : vector<1x32xf32> to vector<12x32xf32>
    %97 = arith.mulf %95, %96 : vector<12x32xf32>
    %98 = vector.broadcast %59 : vector<1x32xf32> to vector<12x32xf32>
    %99 = arith.addf %97, %98 : vector<12x32xf32>
    %cst_66 = arith.constant 0.000000e+00 : f32
    %100 = vector.broadcast %cst_66 : f32 to vector<12x32xf32>
    %101 = arith.maximumf %99, %100 : vector<12x32xf32>
    %102 = arith.truncf %101 : vector<12x32xf32> to vector<12x32xbf16>
    %c0_67 = arith.constant 0 : index
    %c0_68 = arith.constant 0 : index
    %c0_69 = arith.constant 0 : index
    %c58 = arith.constant 58 : index
    %c0_70 = arith.constant 0 : index
    %103 = vector.load %arg11[%c0_67, %c0_68, %c0_69, %c58, %c0_70] : memref<2x2x2x112x32xbf16, #tpu.memory_space<vmem>>, vector<1x1x1x12x32xbf16>
    %104 = vector.shape_cast %103 : vector<1x1x1x12x32xbf16> to vector<12x32xbf16>
    %105 = vector.shape_cast %102 : vector<12x32xbf16> to vector<1x1x1x12x32xbf16>
    tpu.vector_store %arg11[%c0_67, %c0_68, %c0_69, %c58, %c0_70], %105 {strides = array<i32>} : memref<2x2x2x112x32xbf16, #tpu.memory_space<vmem>>, vector<1x1x1x12x32xbf16>,
    %c56 = arith.constant 56 : index
    %c0_71 = arith.constant 0 : index
    %106 = vector.load %arg10[%c56, %c0_71] : memref<392x32xf32, #tpu.memory_space<vmem>>, vector<12x32xf32>
    %107 = vector.broadcast %56 : vector<1x32xf32> to vector<12x32xf32>
    %108 = arith.mulf %106, %107 : vector<12x32xf32>
    %109 = vector.broadcast %59 : vector<1x32xf32> to vector<12x32xf32>
    %110 = arith.addf %108, %109 : vector<12x32xf32>
    %cst_72 = arith.constant 0.000000e+00 : f32
    %111 = vector.broadcast %cst_72 : f32 to vector<12x32xf32>
    %112 = arith.maximumf %110, %111 : vector<12x32xf32>
    %113 = arith.truncf %112 : vector<12x32xf32> to vector<12x32xbf16>
    %c0_73 = arith.constant 0 : index
    %c0_74 = arith.constant 0 : index
    %c0_75 = arith.constant 0 : index
    %c72 = arith.constant 72 : index
    %c0_76 = arith.constant 0 : index
    %114 = vector.load %arg11[%c0_73, %c0_74, %c0_75, %c72, %c0_76] : memref<2x2x2x112x32xbf16, #tpu.memory_space<vmem>>, vector<1x1x1x12x32xbf16>
    %115 = vector.shape_cast %114 : vector<1x1x1x12x32xbf16> to vector<12x32xbf16>
    %116 = vector.shape_cast %113 : vector<12x32xbf16> to vector<1x1x1x12x32xbf16>
    tpu.vector_store %arg11[%c0_73, %c0_74, %c0_75, %c72, %c0_76], %116 {strides = array<i32>} : memref<2x2x2x112x32xbf16, #tpu.memory_space<vmem>>, vector<1x1x1x12x32xbf16>,
    %c70 = arith.constant 70 : index
    %c0_77 = arith.constant 0 : index
    %117 = vector.load %arg10[%c70, %c0_77] : memref<392x32xf32, #tpu.memory_space<vmem>>, vector<12x32xf32>
    %118 = vector.broadcast %56 : vector<1x32xf32> to vector<12x32xf32>
    %119 = arith.mulf %117, %118 : vector<12x32xf32>
    %120 = vector.broadcast %59 : vector<1x32xf32> to vector<12x32xf32>
    %121 = arith.addf %119, %120 : vector<12x32xf32>
    %cst_78 = arith.constant 0.000000e+00 : f32
    %122 = vector.broadcast %cst_78 : f32 to vector<12x32xf32>
    %123 = arith.maximumf %121, %122 : vector<12x32xf32>
    %124 = arith.truncf %123 : vector<12x32xf32> to vector<12x32xbf16>
    %c0_79 = arith.constant 0 : index
    %c0_80 = arith.constant 0 : index
    %c0_81 = arith.constant 0 : index
    %c86 = arith.constant 86 : index
    %c0_82 = arith.constant 0 : index
    %125 = vector.load %arg11[%c0_79, %c0_80, %c0_81, %c86, %c0_82] : memref<2x2x2x112x32xbf16, #tpu.memory_space<vmem>>, vector<1x1x1x12x32xbf16>
    %126 = vector.shape_cast %125 : vector<1x1x1x12x32xbf16> to vector<12x32xbf16>
    %127 = vector.shape_cast %124 : vector<12x32xbf16> to vector<1x1x1x12x32xbf16>
    tpu.vector_store %arg11[%c0_79, %c0_80, %c0_81, %c86, %c0_82], %127 {strides = array<i32>} : memref<2x2x2x112x32xbf16, #tpu.memory_space<vmem>>, vector<1x1x1x12x32xbf16>,
    %c84 = arith.constant 84 : index
    %c0_83 = arith.constant 0 : index
    %128 = vector.load %arg10[%c84, %c0_83] : memref<392x32xf32, #tpu.memory_space<vmem>>, vector<12x32xf32>
    %129 = vector.broadcast %56 : vector<1x32xf32> to vector<12x32xf32>
    %130 = arith.mulf %128, %129 : vector<12x32xf32>
    %131 = vector.broadcast %59 : vector<1x32xf32> to vector<12x32xf32>
    %132 = arith.addf %130, %131 : vector<12x32xf32>
    %cst_84 = arith.constant 0.000000e+00 : f32
    %133 = vector.broadcast %cst_84 : f32 to vector<12x32xf32>
    %134 = arith.maximumf %132, %133 : vector<12x32xf32>
    %135 = arith.truncf %134 : vector<12x32xf32> to vector<12x32xbf16>
    %c0_85 = arith.constant 0 : index
    %c0_86 = arith.constant 0 : index
    %c0_87 = arith.constant 0 : index
    %c100 = arith.constant 100 : index
    %c0_88 = arith.constant 0 : index
    %136 = vector.load %arg11[%c0_85, %c0_86, %c0_87, %c100, %c0_88] : memref<2x2x2x112x32xbf16, #tpu.memory_space<vmem>>, vector<1x1x1x12x32xbf16>
    %137 = vector.shape_cast %136 : vector<1x1x1x12x32xbf16> to vector<12x32xbf16>
    %138 = vector.shape_cast %135 : vector<12x32xbf16> to vector<1x1x1x12x32xbf16>
    tpu.vector_store %arg11[%c0_85, %c0_86, %c0_87, %c100, %c0_88], %138 {strides = array<i32>} : memref<2x2x2x112x32xbf16, #tpu.memory_space<vmem>>, vector<1x1x1x12x32xbf16>,
    %c0_89 = arith.constant 0 : index
    %c0_90 = arith.constant 0 : index
    %139 = vector.load %arg10[%c0_89, %c0_90] : memref<392x32xf32, #tpu.memory_space<vmem>>, vector<98x32xf32>
    %140 = vector.broadcast %56 : vector<1x32xf32> to vector<98x32xf32>
    %141 = arith.mulf %139, %140 : vector<98x32xf32>
    %142 = vector.broadcast %59 : vector<1x32xf32> to vector<98x32xf32>
    %143 = arith.addf %141, %142 : vector<98x32xf32>
    %cst_91 = arith.constant 0.000000e+00 : f32
    %144 = vector.broadcast %cst_91 : f32 to vector<98x32xf32>
    %145 = arith.maximumf %143, %144 : vector<98x32xf32>
    %146 = arith.truncf %145 : vector<98x32xf32> to vector<98x32xbf16>
    %c0_92 = arith.constant 0 : index
    %c0_93 = arith.constant 0 : index
    %c1 = arith.constant 1 : index
    %c14_94 = arith.constant 14 : index
    %c0_95 = arith.constant 0 : index
    %147 = vector.load %arg11[%c0_92, %c0_93, %c1, %c14_94, %c0_95] : memref<2x2x2x112x32xbf16, #tpu.memory_space<vmem>>, vector<1x1x1x98x32xbf16>
    %148 = vector.shape_cast %147 : vector<1x1x1x98x32xbf16> to vector<98x32xbf16>
    %149 = vector.shape_cast %146 : vector<98x32xbf16> to vector<1x1x1x98x32xbf16>
    tpu.vector_store %arg11[%c0_92, %c0_93, %c1, %c14_94, %c0_95], %149 {strides = array<i32>} : memref<2x2x2x112x32xbf16, #tpu.memory_space<vmem>>, vector<1x1x1x98x32xbf16>,
    %c98_96 = arith.constant 98 : index
    %c0_97 = arith.constant 0 : index
    %150 = vector.load %arg10[%c98_96, %c0_97] : memref<392x32xf32, #tpu.memory_space<vmem>>, vector<98x32xf32>
    %151 = vector.broadcast %56 : vector<1x32xf32> to vector<98x32xf32>
    %152 = arith.mulf %150, %151 : vector<98x32xf32>
    %153 = vector.broadcast %59 : vector<1x32xf32> to vector<98x32xf32>
    %154 = arith.addf %152, %153 : vector<98x32xf32>
    %cst_98 = arith.constant 0.000000e+00 : f32
    %155 = vector.broadcast %cst_98 : f32 to vector<98x32xf32>
    %156 = arith.maximumf %154, %155 : vector<98x32xf32>
    %157 = arith.truncf %156 : vector<98x32xf32> to vector<98x32xbf16>
    %c0_99 = arith.constant 0 : index
    %c1_100 = arith.constant 1 : index
    %c0_101 = arith.constant 0 : index
    %c14_102 = arith.constant 14 : index
    %c0_103 = arith.constant 0 : index
    %158 = vector.load %arg11[%c0_99, %c1_100, %c0_101, %c14_102, %c0_103] : memref<2x2x2x112x32xbf16, #tpu.memory_space<vmem>>, vector<1x1x1x98x32xbf16>
    %159 = vector.shape_cast %158 : vector<1x1x1x98x32xbf16> to vector<98x32xbf16>
    %160 = vector.shape_cast %157 : vector<98x32xbf16> to vector<1x1x1x98x32xbf16>
    tpu.vector_store %arg11[%c0_99, %c1_100, %c0_101, %c14_102, %c0_103], %160 {strides = array<i32>} : memref<2x2x2x112x32xbf16, #tpu.memory_space<vmem>>, vector<1x1x1x98x32xbf16>,
    %c100_104 = arith.constant 100 : index
    %c0_105 = arith.constant 0 : index
    %161 = vector.load %arg10[%c100_104, %c0_105] : memref<392x32xf32, #tpu.memory_space<vmem>>, vector<12x32xf32>
    %162 = vector.broadcast %56 : vector<1x32xf32> to vector<12x32xf32>
    %163 = arith.mulf %161, %162 : vector<12x32xf32>
    %164 = vector.broadcast %59 : vector<1x32xf32> to vector<12x32xf32>
    %165 = arith.addf %163, %164 : vector<12x32xf32>
    %cst_106 = arith.constant 0.000000e+00 : f32
    %166 = vector.broadcast %cst_106 : f32 to vector<12x32xf32>
    %167 = arith.maximumf %165, %166 : vector<12x32xf32>
    %168 = arith.truncf %167 : vector<12x32xf32> to vector<12x32xbf16>
    %c0_107 = arith.constant 0 : index
    %c1_108 = arith.constant 1 : index
    %c1_109 = arith.constant 1 : index
    %c14_110 = arith.constant 14 : index
    %c0_111 = arith.constant 0 : index
    %169 = vector.load %arg11[%c0_107, %c1_108, %c1_109, %c14_110, %c0_111] : memref<2x2x2x112x32xbf16, #tpu.memory_space<vmem>>, vector<1x1x1x12x32xbf16>
    %170 = vector.shape_cast %169 : vector<1x1x1x12x32xbf16> to vector<12x32xbf16>
    %171 = vector.shape_cast %168 : vector<12x32xbf16> to vector<1x1x1x12x32xbf16>
    tpu.vector_store %arg11[%c0_107, %c1_108, %c1_109, %c14_110, %c0_111], %171 {strides = array<i32>} : memref<2x2x2x112x32xbf16, #tpu.memory_space<vmem>>, vector<1x1x1x12x32xbf16>,
    %c114 = arith.constant 114 : index
    %c0_112 = arith.constant 0 : index
    %172 = vector.load %arg10[%c114, %c0_112] : memref<392x32xf32, #tpu.memory_space<vmem>>, vector<12x32xf32>
    %173 = vector.broadcast %56 : vector<1x32xf32> to vector<12x32xf32>
    %174 = arith.mulf %172, %173 : vector<12x32xf32>
    %175 = vector.broadcast %59 : vector<1x32xf32> to vector<12x32xf32>
    %176 = arith.addf %174, %175 : vector<12x32xf32>
    %cst_113 = arith.constant 0.000000e+00 : f32
    %177 = vector.broadcast %cst_113 : f32 to vector<12x32xf32>
    %178 = arith.maximumf %176, %177 : vector<12x32xf32>
    %179 = arith.truncf %178 : vector<12x32xf32> to vector<12x32xbf16>
    %c0_114 = arith.constant 0 : index
    %c1_115 = arith.constant 1 : index
    %c1_116 = arith.constant 1 : index
    %c28_117 = arith.constant 28 : index
    %c0_118 = arith.constant 0 : index
    %180 = vector.load %arg11[%c0_114, %c1_115, %c1_116, %c28_117, %c0_118] : memref<2x2x2x112x32xbf16, #tpu.memory_space<vmem>>, vector<1x1x1x12x32xbf16>
    %181 = vector.shape_cast %180 : vector<1x1x1x12x32xbf16> to vector<12x32xbf16>
    %182 = vector.shape_cast %179 : vector<12x32xbf16> to vector<1x1x1x12x32xbf16>
    tpu.vector_store %arg11[%c0_114, %c1_115, %c1_116, %c28_117, %c0_118], %182 {strides = array<i32>} : memref<2x2x2x112x32xbf16, #tpu.memory_space<vmem>>, vector<1x1x1x12x32xbf16>,
    %c128 = arith.constant 128 : index
    %c0_119 = arith.constant 0 : index
    %183 = vector.load %arg10[%c128, %c0_119] : memref<392x32xf32, #tpu.memory_space<vmem>>, vector<12x32xf32>
    %184 = vector.broadcast %56 : vector<1x32xf32> to vector<12x32xf32>
    %185 = arith.mulf %183, %184 : vector<12x32xf32>
    %186 = vector.broadcast %59 : vector<1x32xf32> to vector<12x32xf32>
    %187 = arith.addf %185, %186 : vector<12x32xf32>
    %cst_120 = arith.constant 0.000000e+00 : f32
    %188 = vector.broadcast %cst_120 : f32 to vector<12x32xf32>
    %189 = arith.maximumf %187, %188 : vector<12x32xf32>
    %190 = arith.truncf %189 : vector<12x32xf32> to vector<12x32xbf16>
    %c0_121 = arith.constant 0 : index
    %c1_122 = arith.constant 1 : index
    %c1_123 = arith.constant 1 : index
    %c42_124 = arith.constant 42 : index
    %c0_125 = arith.constant 0 : index
    %191 = vector.load %arg11[%c0_121, %c1_122, %c1_123, %c42_124, %c0_125] : memref<2x2x2x112x32xbf16, #tpu.memory_space<vmem>>, vector<1x1x1x12x32xbf16>
    %192 = vector.shape_cast %191 : vector<1x1x1x12x32xbf16> to vector<12x32xbf16>
    %193 = vector.shape_cast %190 : vector<12x32xbf16> to vector<1x1x1x12x32xbf16>
    tpu.vector_store %arg11[%c0_121, %c1_122, %c1_123, %c42_124, %c0_125], %193 {strides = array<i32>} : memref<2x2x2x112x32xbf16, #tpu.memory_space<vmem>>, vector<1x1x1x12x32xbf16>,
    %c142 = arith.constant 142 : index
    %c0_126 = arith.constant 0 : index
    %194 = vector.load %arg10[%c142, %c0_126] : memref<392x32xf32, #tpu.memory_space<vmem>>, vector<12x32xf32>
    %195 = vector.broadcast %56 : vector<1x32xf32> to vector<12x32xf32>
    %196 = arith.mulf %194, %195 : vector<12x32xf32>
    %197 = vector.broadcast %59 : vector<1x32xf32> to vector<12x32xf32>
    %198 = arith.addf %196, %197 : vector<12x32xf32>
    %cst_127 = arith.constant 0.000000e+00 : f32
    %199 = vector.broadcast %cst_127 : f32 to vector<12x32xf32>
    %200 = arith.maximumf %198, %199 : vector<12x32xf32>
    %201 = arith.truncf %200 : vector<12x32xf32> to vector<12x32xbf16>
    %c0_128 = arith.constant 0 : index
    %c1_129 = arith.constant 1 : index
    %c1_130 = arith.constant 1 : index
    %c56_131 = arith.constant 56 : index
    %c0_132 = arith.constant 0 : index
    %202 = vector.load %arg11[%c0_128, %c1_129, %c1_130, %c56_131, %c0_132] : memref<2x2x2x112x32xbf16, #tpu.memory_space<vmem>>, vector<1x1x1x12x32xbf16>
    %203 = vector.shape_cast %202 : vector<1x1x1x12x32xbf16> to vector<12x32xbf16>
    %204 = vector.shape_cast %201 : vector<12x32xbf16> to vector<1x1x1x12x32xbf16>
    tpu.vector_store %arg11[%c0_128, %c1_129, %c1_130, %c56_131, %c0_132], %204 {strides = array<i32>} : memref<2x2x2x112x32xbf16, #tpu.memory_space<vmem>>, vector<1x1x1x12x32xbf16>,
    %c156 = arith.constant 156 : index
    %c0_133 = arith.constant 0 : index
    %205 = vector.load %arg10[%c156, %c0_133] : memref<392x32xf32, #tpu.memory_space<vmem>>, vector<12x32xf32>
    %206 = vector.broadcast %56 : vector<1x32xf32> to vector<12x32xf32>
    %207 = arith.mulf %205, %206 : vector<12x32xf32>
    %208 = vector.broadcast %59 : vector<1x32xf32> to vector<12x32xf32>
    %209 = arith.addf %207, %208 : vector<12x32xf32>
    %cst_134 = arith.constant 0.000000e+00 : f32
    %210 = vector.broadcast %cst_134 : f32 to vector<12x32xf32>
    %211 = arith.maximumf %209, %210 : vector<12x32xf32>
    %212 = arith.truncf %211 : vector<12x32xf32> to vector<12x32xbf16>
    %c0_135 = arith.constant 0 : index
    %c1_136 = arith.constant 1 : index
    %c1_137 = arith.constant 1 : index
    %c70_138 = arith.constant 70 : index
    %c0_139 = arith.constant 0 : index
    %213 = vector.load %arg11[%c0_135, %c1_136, %c1_137, %c70_138, %c0_139] : memref<2x2x2x112x32xbf16, #tpu.memory_space<vmem>>, vector<1x1x1x12x32xbf16>
    %214 = vector.shape_cast %213 : vector<1x1x1x12x32xbf16> to vector<12x32xbf16>
    %215 = vector.shape_cast %212 : vector<12x32xbf16> to vector<1x1x1x12x32xbf16>
    tpu.vector_store %arg11[%c0_135, %c1_136, %c1_137, %c70_138, %c0_139], %215 {strides = array<i32>} : memref<2x2x2x112x32xbf16, #tpu.memory_space<vmem>>, vector<1x1x1x12x32xbf16>,
    %c170 = arith.constant 170 : index
    %c0_140 = arith.constant 0 : index
    %216 = vector.load %arg10[%c170, %c0_140] : memref<392x32xf32, #tpu.memory_space<vmem>>, vector<12x32xf32>
    %217 = vector.broadcast %56 : vector<1x32xf32> to vector<12x32xf32>
    %218 = arith.mulf %216, %217 : vector<12x32xf32>
    %219 = vector.broadcast %59 : vector<1x32xf32> to vector<12x32xf32>
    %220 = arith.addf %218, %219 : vector<12x32xf32>
    %cst_141 = arith.constant 0.000000e+00 : f32
    %221 = vector.broadcast %cst_141 : f32 to vector<12x32xf32>
    %222 = arith.maximumf %220, %221 : vector<12x32xf32>
    %223 = arith.truncf %222 : vector<12x32xf32> to vector<12x32xbf16>
    %c0_142 = arith.constant 0 : index
    %c1_143 = arith.constant 1 : index
    %c1_144 = arith.constant 1 : index
    %c84_145 = arith.constant 84 : index
    %c0_146 = arith.constant 0 : index
    %224 = vector.load %arg11[%c0_142, %c1_143, %c1_144, %c84_145, %c0_146] : memref<2x2x2x112x32xbf16, #tpu.memory_space<vmem>>, vector<1x1x1x12x32xbf16>
    %225 = vector.shape_cast %224 : vector<1x1x1x12x32xbf16> to vector<12x32xbf16>
    %226 = vector.shape_cast %223 : vector<12x32xbf16> to vector<1x1x1x12x32xbf16>
    tpu.vector_store %arg11[%c0_142, %c1_143, %c1_144, %c84_145, %c0_146], %226 {strides = array<i32>} : memref<2x2x2x112x32xbf16, #tpu.memory_space<vmem>>, vector<1x1x1x12x32xbf16>,
    %c184 = arith.constant 184 : index
    %c0_147 = arith.constant 0 : index
    %227 = vector.load %arg10[%c184, %c0_147] : memref<392x32xf32, #tpu.memory_space<vmem>>, vector<12x32xf32>
    %228 = vector.broadcast %56 : vector<1x32xf32> to vector<12x32xf32>
    %229 = arith.mulf %227, %228 : vector<12x32xf32>
    %230 = vector.broadcast %59 : vector<1x32xf32> to vector<12x32xf32>
    %231 = arith.addf %229, %230 : vector<12x32xf32>
    %cst_148 = arith.constant 0.000000e+00 : f32
    %232 = vector.broadcast %cst_148 : f32 to vector<12x32xf32>
    %233 = arith.maximumf %231, %232 : vector<12x32xf32>
    %234 = arith.truncf %233 : vector<12x32xf32> to vector<12x32xbf16>
    %c0_149 = arith.constant 0 : index
    %c1_150 = arith.constant 1 : index
    %c1_151 = arith.constant 1 : index
    %c98_152 = arith.constant 98 : index
    %c0_153 = arith.constant 0 : index
    %235 = vector.load %arg11[%c0_149, %c1_150, %c1_151, %c98_152, %c0_153] : memref<2x2x2x112x32xbf16, #tpu.memory_space<vmem>>, vector<1x1x1x12x32xbf16>
    %236 = vector.shape_cast %235 : vector<1x1x1x12x32xbf16> to vector<12x32xbf16>
    %237 = vector.shape_cast %234 : vector<12x32xbf16> to vector<1x1x1x12x32xbf16>
    tpu.vector_store %arg11[%c0_149, %c1_150, %c1_151, %c98_152, %c0_153], %237 {strides = array<i32>} : memref<2x2x2x112x32xbf16, #tpu.memory_space<vmem>>, vector<1x1x1x12x32xbf16>,
    %c196_154 = arith.constant 196 : index
    %c0_155 = arith.constant 0 : index
    %238 = vector.load %arg10[%c196_154, %c0_155] : memref<392x32xf32, #tpu.memory_space<vmem>>, vector<12x32xf32>
    %239 = vector.broadcast %56 : vector<1x32xf32> to vector<12x32xf32>
    %240 = arith.mulf %238, %239 : vector<12x32xf32>
    %241 = vector.broadcast %59 : vector<1x32xf32> to vector<12x32xf32>
    %242 = arith.addf %240, %241 : vector<12x32xf32>
    %cst_156 = arith.constant 0.000000e+00 : f32
    %243 = vector.broadcast %cst_156 : f32 to vector<12x32xf32>
    %244 = arith.maximumf %242, %243 : vector<12x32xf32>
    %245 = arith.truncf %244 : vector<12x32xf32> to vector<12x32xbf16>
    %c1_157 = arith.constant 1 : index
    %c0_158 = arith.constant 0 : index
    %c0_159 = arith.constant 0 : index
    %c2 = arith.constant 2 : index
    %c0_160 = arith.constant 0 : index
    %246 = vector.load %arg11[%c1_157, %c0_158, %c0_159, %c2, %c0_160] : memref<2x2x2x112x32xbf16, #tpu.memory_space<vmem>>, vector<1x1x1x12x32xbf16>
    %247 = vector.shape_cast %246 : vector<1x1x1x12x32xbf16> to vector<12x32xbf16>
    %248 = vector.shape_cast %245 : vector<12x32xbf16> to vector<1x1x1x12x32xbf16>
    tpu.vector_store %arg11[%c1_157, %c0_158, %c0_159, %c2, %c0_160], %248 {strides = array<i32>} : memref<2x2x2x112x32xbf16, #tpu.memory_space<vmem>>, vector<1x1x1x12x32xbf16>,
    %c210 = arith.constant 210 : index
    %c0_161 = arith.constant 0 : index
    %249 = vector.load %arg10[%c210, %c0_161] : memref<392x32xf32, #tpu.memory_space<vmem>>, vector<12x32xf32>
    %250 = vector.broadcast %56 : vector<1x32xf32> to vector<12x32xf32>
    %251 = arith.mulf %249, %250 : vector<12x32xf32>
    %252 = vector.broadcast %59 : vector<1x32xf32> to vector<12x32xf32>
    %253 = arith.addf %251, %252 : vector<12x32xf32>
    %cst_162 = arith.constant 0.000000e+00 : f32
    %254 = vector.broadcast %cst_162 : f32 to vector<12x32xf32>
    %255 = arith.maximumf %253, %254 : vector<12x32xf32>
    %256 = arith.truncf %255 : vector<12x32xf32> to vector<12x32xbf16>
    %c1_163 = arith.constant 1 : index
    %c0_164 = arith.constant 0 : index
    %c0_165 = arith.constant 0 : index
    %c16_166 = arith.constant 16 : index
    %c0_167 = arith.constant 0 : index
    %257 = vector.load %arg11[%c1_163, %c0_164, %c0_165, %c16_166, %c0_167] : memref<2x2x2x112x32xbf16, #tpu.memory_space<vmem>>, vector<1x1x1x12x32xbf16>
    %258 = vector.shape_cast %257 : vector<1x1x1x12x32xbf16> to vector<12x32xbf16>
    %259 = vector.shape_cast %256 : vector<12x32xbf16> to vector<1x1x1x12x32xbf16>
    tpu.vector_store %arg11[%c1_163, %c0_164, %c0_165, %c16_166, %c0_167], %259 {strides = array<i32>} : memref<2x2x2x112x32xbf16, #tpu.memory_space<vmem>>, vector<1x1x1x12x32xbf16>,
    %c224 = arith.constant 224 : index
    %c0_168 = arith.constant 0 : index
    %260 = vector.load %arg10[%c224, %c0_168] : memref<392x32xf32, #tpu.memory_space<vmem>>, vector<12x32xf32>
    %261 = vector.broadcast %56 : vector<1x32xf32> to vector<12x32xf32>
    %262 = arith.mulf %260, %261 : vector<12x32xf32>
    %263 = vector.broadcast %59 : vector<1x32xf32> to vector<12x32xf32>
    %264 = arith.addf %262, %263 : vector<12x32xf32>
    %cst_169 = arith.constant 0.000000e+00 : f32
    %265 = vector.broadcast %cst_169 : f32 to vector<12x32xf32>
    %266 = arith.maximumf %264, %265 : vector<12x32xf32>
    %267 = arith.truncf %266 : vector<12x32xf32> to vector<12x32xbf16>
    %c1_170 = arith.constant 1 : index
    %c0_171 = arith.constant 0 : index
    %c0_172 = arith.constant 0 : index
    %c30_173 = arith.constant 30 : index
    %c0_174 = arith.constant 0 : index
    %268 = vector.load %arg11[%c1_170, %c0_171, %c0_172, %c30_173, %c0_174] : memref<2x2x2x112x32xbf16, #tpu.memory_space<vmem>>, vector<1x1x1x12x32xbf16>
    %269 = vector.shape_cast %268 : vector<1x1x1x12x32xbf16> to vector<12x32xbf16>
    %270 = vector.shape_cast %267 : vector<12x32xbf16> to vector<1x1x1x12x32xbf16>
    tpu.vector_store %arg11[%c1_170, %c0_171, %c0_172, %c30_173, %c0_174], %270 {strides = array<i32>} : memref<2x2x2x112x32xbf16, #tpu.memory_space<vmem>>, vector<1x1x1x12x32xbf16>,
    %c238 = arith.constant 238 : index
    %c0_175 = arith.constant 0 : index
    %271 = vector.load %arg10[%c238, %c0_175] : memref<392x32xf32, #tpu.memory_space<vmem>>, vector<12x32xf32>
    %272 = vector.broadcast %56 : vector<1x32xf32> to vector<12x32xf32>
    %273 = arith.mulf %271, %272 : vector<12x32xf32>
    %274 = vector.broadcast %59 : vector<1x32xf32> to vector<12x32xf32>
    %275 = arith.addf %273, %274 : vector<12x32xf32>
    %cst_176 = arith.constant 0.000000e+00 : f32
    %276 = vector.broadcast %cst_176 : f32 to vector<12x32xf32>
    %277 = arith.maximumf %275, %276 : vector<12x32xf32>
    %278 = arith.truncf %277 : vector<12x32xf32> to vector<12x32xbf16>
    %c1_177 = arith.constant 1 : index
    %c0_178 = arith.constant 0 : index
    %c0_179 = arith.constant 0 : index
    %c44_180 = arith.constant 44 : index
    %c0_181 = arith.constant 0 : index
    %279 = vector.load %arg11[%c1_177, %c0_178, %c0_179, %c44_180, %c0_181] : memref<2x2x2x112x32xbf16, #tpu.memory_space<vmem>>, vector<1x1x1x12x32xbf16>
    %280 = vector.shape_cast %279 : vector<1x1x1x12x32xbf16> to vector<12x32xbf16>
    %281 = vector.shape_cast %278 : vector<12x32xbf16> to vector<1x1x1x12x32xbf16>
    tpu.vector_store %arg11[%c1_177, %c0_178, %c0_179, %c44_180, %c0_181], %281 {strides = array<i32>} : memref<2x2x2x112x32xbf16, #tpu.memory_space<vmem>>, vector<1x1x1x12x32xbf16>,
    %c252 = arith.constant 252 : index
    %c0_182 = arith.constant 0 : index
    %282 = vector.load %arg10[%c252, %c0_182] : memref<392x32xf32, #tpu.memory_space<vmem>>, vector<12x32xf32>
    %283 = vector.broadcast %56 : vector<1x32xf32> to vector<12x32xf32>
    %284 = arith.mulf %282, %283 : vector<12x32xf32>
    %285 = vector.broadcast %59 : vector<1x32xf32> to vector<12x32xf32>
    %286 = arith.addf %284, %285 : vector<12x32xf32>
    %cst_183 = arith.constant 0.000000e+00 : f32
    %287 = vector.broadcast %cst_183 : f32 to vector<12x32xf32>
    %288 = arith.maximumf %286, %287 : vector<12x32xf32>
    %289 = arith.truncf %288 : vector<12x32xf32> to vector<12x32xbf16>
    %c1_184 = arith.constant 1 : index
    %c0_185 = arith.constant 0 : index
    %c0_186 = arith.constant 0 : index
    %c58_187 = arith.constant 58 : index
    %c0_188 = arith.constant 0 : index
    %290 = vector.load %arg11[%c1_184, %c0_185, %c0_186, %c58_187, %c0_188] : memref<2x2x2x112x32xbf16, #tpu.memory_space<vmem>>, vector<1x1x1x12x32xbf16>
    %291 = vector.shape_cast %290 : vector<1x1x1x12x32xbf16> to vector<12x32xbf16>
    %292 = vector.shape_cast %289 : vector<12x32xbf16> to vector<1x1x1x12x32xbf16>
    tpu.vector_store %arg11[%c1_184, %c0_185, %c0_186, %c58_187, %c0_188], %292 {strides = array<i32>} : memref<2x2x2x112x32xbf16, #tpu.memory_space<vmem>>, vector<1x1x1x12x32xbf16>,
    %c266 = arith.constant 266 : index
    %c0_189 = arith.constant 0 : index
    %293 = vector.load %arg10[%c266, %c0_189] : memref<392x32xf32, #tpu.memory_space<vmem>>, vector<12x32xf32>
    %294 = vector.broadcast %56 : vector<1x32xf32> to vector<12x32xf32>
    %295 = arith.mulf %293, %294 : vector<12x32xf32>
    %296 = vector.broadcast %59 : vector<1x32xf32> to vector<12x32xf32>
    %297 = arith.addf %295, %296 : vector<12x32xf32>
    %cst_190 = arith.constant 0.000000e+00 : f32
    %298 = vector.broadcast %cst_190 : f32 to vector<12x32xf32>
    %299 = arith.maximumf %297, %298 : vector<12x32xf32>
    %300 = arith.truncf %299 : vector<12x32xf32> to vector<12x32xbf16>
    %c1_191 = arith.constant 1 : index
    %c0_192 = arith.constant 0 : index
    %c0_193 = arith.constant 0 : index
    %c72_194 = arith.constant 72 : index
    %c0_195 = arith.constant 0 : index
    %301 = vector.load %arg11[%c1_191, %c0_192, %c0_193, %c72_194, %c0_195] : memref<2x2x2x112x32xbf16, #tpu.memory_space<vmem>>, vector<1x1x1x12x32xbf16>
    %302 = vector.shape_cast %301 : vector<1x1x1x12x32xbf16> to vector<12x32xbf16>
    %303 = vector.shape_cast %300 : vector<12x32xbf16> to vector<1x1x1x12x32xbf16>
    tpu.vector_store %arg11[%c1_191, %c0_192, %c0_193, %c72_194, %c0_195], %303 {strides = array<i32>} : memref<2x2x2x112x32xbf16, #tpu.memory_space<vmem>>, vector<1x1x1x12x32xbf16>,
    %c280 = arith.constant 280 : index
    %c0_196 = arith.constant 0 : index
    %304 = vector.load %arg10[%c280, %c0_196] : memref<392x32xf32, #tpu.memory_space<vmem>>, vector<12x32xf32>
    %305 = vector.broadcast %56 : vector<1x32xf32> to vector<12x32xf32>
    %306 = arith.mulf %304, %305 : vector<12x32xf32>
    %307 = vector.broadcast %59 : vector<1x32xf32> to vector<12x32xf32>
    %308 = arith.addf %306, %307 : vector<12x32xf32>
    %cst_197 = arith.constant 0.000000e+00 : f32
    %309 = vector.broadcast %cst_197 : f32 to vector<12x32xf32>
    %310 = arith.maximumf %308, %309 : vector<12x32xf32>
    %311 = arith.truncf %310 : vector<12x32xf32> to vector<12x32xbf16>
    %c1_198 = arith.constant 1 : index
    %c0_199 = arith.constant 0 : index
    %c0_200 = arith.constant 0 : index
    %c86_201 = arith.constant 86 : index
    %c0_202 = arith.constant 0 : index
    %312 = vector.load %arg11[%c1_198, %c0_199, %c0_200, %c86_201, %c0_202] : memref<2x2x2x112x32xbf16, #tpu.memory_space<vmem>>, vector<1x1x1x12x32xbf16>
    %313 = vector.shape_cast %312 : vector<1x1x1x12x32xbf16> to vector<12x32xbf16>
    %314 = vector.shape_cast %311 : vector<12x32xbf16> to vector<1x1x1x12x32xbf16>
    tpu.vector_store %arg11[%c1_198, %c0_199, %c0_200, %c86_201, %c0_202], %314 {strides = array<i32>} : memref<2x2x2x112x32xbf16, #tpu.memory_space<vmem>>, vector<1x1x1x12x32xbf16>,
    %c196_203 = arith.constant 196 : index
    %c0_204 = arith.constant 0 : index
    %315 = vector.load %arg10[%c196_203, %c0_204] : memref<392x32xf32, #tpu.memory_space<vmem>>, vector<98x32xf32>
    %316 = vector.broadcast %56 : vector<1x32xf32> to vector<98x32xf32>
    %317 = arith.mulf %315, %316 : vector<98x32xf32>
    %318 = vector.broadcast %59 : vector<1x32xf32> to vector<98x32xf32>
    %319 = arith.addf %317, %318 : vector<98x32xf32>
    %cst_205 = arith.constant 0.000000e+00 : f32
    %320 = vector.broadcast %cst_205 : f32 to vector<98x32xf32>
    %321 = arith.maximumf %319, %320 : vector<98x32xf32>
    %322 = arith.truncf %321 : vector<98x32xf32> to vector<98x32xbf16>
    %c1_206 = arith.constant 1 : index
    %c0_207 = arith.constant 0 : index
    %c1_208 = arith.constant 1 : index
    %c0_209 = arith.constant 0 : index
    %c0_210 = arith.constant 0 : index
    %323 = vector.load %arg11[%c1_206, %c0_207, %c1_208, %c0_209, %c0_210] : memref<2x2x2x112x32xbf16, #tpu.memory_space<vmem>>, vector<1x1x1x98x32xbf16>
    %324 = vector.shape_cast %323 : vector<1x1x1x98x32xbf16> to vector<98x32xbf16>
    %325 = vector.shape_cast %322 : vector<98x32xbf16> to vector<1x1x1x98x32xbf16>
    tpu.vector_store %arg11[%c1_206, %c0_207, %c1_208, %c0_209, %c0_210], %325 {strides = array<i32>} : memref<2x2x2x112x32xbf16, #tpu.memory_space<vmem>>, vector<1x1x1x98x32xbf16>,
    %c294_211 = arith.constant 294 : index
    %c0_212 = arith.constant 0 : index
    %326 = vector.load %arg10[%c294_211, %c0_212] : memref<392x32xf32, #tpu.memory_space<vmem>>, vector<98x32xf32>
    %327 = vector.broadcast %56 : vector<1x32xf32> to vector<98x32xf32>
    %328 = arith.mulf %326, %327 : vector<98x32xf32>
    %329 = vector.broadcast %59 : vector<1x32xf32> to vector<98x32xf32>
    %330 = arith.addf %328, %329 : vector<98x32xf32>
    %cst_213 = arith.constant 0.000000e+00 : f32
    %331 = vector.broadcast %cst_213 : f32 to vector<98x32xf32>
    %332 = arith.maximumf %330, %331 : vector<98x32xf32>
    %333 = arith.truncf %332 : vector<98x32xf32> to vector<98x32xbf16>
    %c1_214 = arith.constant 1 : index
    %c1_215 = arith.constant 1 : index
    %c0_216 = arith.constant 0 : index
    %c0_217 = arith.constant 0 : index
    %c0_218 = arith.constant 0 : index
    %334 = vector.load %arg11[%c1_214, %c1_215, %c0_216, %c0_217, %c0_218] : memref<2x2x2x112x32xbf16, #tpu.memory_space<vmem>>, vector<1x1x1x98x32xbf16>
    %335 = vector.shape_cast %334 : vector<1x1x1x98x32xbf16> to vector<98x32xbf16>
    %336 = vector.shape_cast %333 : vector<98x32xbf16> to vector<1x1x1x98x32xbf16>
    tpu.vector_store %arg11[%c1_214, %c1_215, %c0_216, %c0_217, %c0_218], %336 {strides = array<i32>} : memref<2x2x2x112x32xbf16, #tpu.memory_space<vmem>>, vector<1x1x1x98x32xbf16>,
    %c296 = arith.constant 296 : index
    %c0_219 = arith.constant 0 : index
    %337 = vector.load %arg10[%c296, %c0_219] : memref<392x32xf32, #tpu.memory_space<vmem>>, vector<12x32xf32>
    %338 = vector.broadcast %56 : vector<1x32xf32> to vector<12x32xf32>
    %339 = arith.mulf %337, %338 : vector<12x32xf32>
    %340 = vector.broadcast %59 : vector<1x32xf32> to vector<12x32xf32>
    %341 = arith.addf %339, %340 : vector<12x32xf32>
    %cst_220 = arith.constant 0.000000e+00 : f32
    %342 = vector.broadcast %cst_220 : f32 to vector<12x32xf32>
    %343 = arith.maximumf %341, %342 : vector<12x32xf32>
    %344 = arith.truncf %343 : vector<12x32xf32> to vector<12x32xbf16>
    %c1_221 = arith.constant 1 : index
    %c1_222 = arith.constant 1 : index
    %c1_223 = arith.constant 1 : index
    %c0_224 = arith.constant 0 : index
    %c0_225 = arith.constant 0 : index
    %345 = vector.load %arg11[%c1_221, %c1_222, %c1_223, %c0_224, %c0_225] : memref<2x2x2x112x32xbf16, #tpu.memory_space<vmem>>, vector<1x1x1x12x32xbf16>
    %346 = vector.shape_cast %345 : vector<1x1x1x12x32xbf16> to vector<12x32xbf16>
    %347 = vector.shape_cast %344 : vector<12x32xbf16> to vector<1x1x1x12x32xbf16>
    tpu.vector_store %arg11[%c1_221, %c1_222, %c1_223, %c0_224, %c0_225], %347 {strides = array<i32>} : memref<2x2x2x112x32xbf16, #tpu.memory_space<vmem>>, vector<1x1x1x12x32xbf16>,
    %c310 = arith.constant 310 : index
    %c0_226 = arith.constant 0 : index
    %348 = vector.load %arg10[%c310, %c0_226] : memref<392x32xf32, #tpu.memory_space<vmem>>, vector<12x32xf32>
    %349 = vector.broadcast %56 : vector<1x32xf32> to vector<12x32xf32>
    %350 = arith.mulf %348, %349 : vector<12x32xf32>
    %351 = vector.broadcast %59 : vector<1x32xf32> to vector<12x32xf32>
    %352 = arith.addf %350, %351 : vector<12x32xf32>
    %cst_227 = arith.constant 0.000000e+00 : f32
    %353 = vector.broadcast %cst_227 : f32 to vector<12x32xf32>
    %354 = arith.maximumf %352, %353 : vector<12x32xf32>
    %355 = arith.truncf %354 : vector<12x32xf32> to vector<12x32xbf16>
    %c1_228 = arith.constant 1 : index
    %c1_229 = arith.constant 1 : index
    %c1_230 = arith.constant 1 : index
    %c14_231 = arith.constant 14 : index
    %c0_232 = arith.constant 0 : index
    %356 = vector.load %arg11[%c1_228, %c1_229, %c1_230, %c14_231, %c0_232] : memref<2x2x2x112x32xbf16, #tpu.memory_space<vmem>>, vector<1x1x1x12x32xbf16>
    %357 = vector.shape_cast %356 : vector<1x1x1x12x32xbf16> to vector<12x32xbf16>
    %358 = vector.shape_cast %355 : vector<12x32xbf16> to vector<1x1x1x12x32xbf16>
    tpu.vector_store %arg11[%c1_228, %c1_229, %c1_230, %c14_231, %c0_232], %358 {strides = array<i32>} : memref<2x2x2x112x32xbf16, #tpu.memory_space<vmem>>, vector<1x1x1x12x32xbf16>,
    %c324 = arith.constant 324 : index
    %c0_233 = arith.constant 0 : index
    %359 = vector.load %arg10[%c324, %c0_233] : memref<392x32xf32, #tpu.memory_space<vmem>>, vector<12x32xf32>
    %360 = vector.broadcast %56 : vector<1x32xf32> to vector<12x32xf32>
    %361 = arith.mulf %359, %360 : vector<12x32xf32>
    %362 = vector.broadcast %59 : vector<1x32xf32> to vector<12x32xf32>
    %363 = arith.addf %361, %362 : vector<12x32xf32>
    %cst_234 = arith.constant 0.000000e+00 : f32
    %364 = vector.broadcast %cst_234 : f32 to vector<12x32xf32>
    %365 = arith.maximumf %363, %364 : vector<12x32xf32>
    %366 = arith.truncf %365 : vector<12x32xf32> to vector<12x32xbf16>
    %c1_235 = arith.constant 1 : index
    %c1_236 = arith.constant 1 : index
    %c1_237 = arith.constant 1 : index
    %c28_238 = arith.constant 28 : index
    %c0_239 = arith.constant 0 : index
    %367 = vector.load %arg11[%c1_235, %c1_236, %c1_237, %c28_238, %c0_239] : memref<2x2x2x112x32xbf16, #tpu.memory_space<vmem>>, vector<1x1x1x12x32xbf16>
    %368 = vector.shape_cast %367 : vector<1x1x1x12x32xbf16> to vector<12x32xbf16>
    %369 = vector.shape_cast %366 : vector<12x32xbf16> to vector<1x1x1x12x32xbf16>
    tpu.vector_store %arg11[%c1_235, %c1_236, %c1_237, %c28_238, %c0_239], %369 {strides = array<i32>} : memref<2x2x2x112x32xbf16, #tpu.memory_space<vmem>>, vector<1x1x1x12x32xbf16>,
    %c338 = arith.constant 338 : index
    %c0_240 = arith.constant 0 : index
    %370 = vector.load %arg10[%c338, %c0_240] : memref<392x32xf32, #tpu.memory_space<vmem>>, vector<12x32xf32>
    %371 = vector.broadcast %56 : vector<1x32xf32> to vector<12x32xf32>
    %372 = arith.mulf %370, %371 : vector<12x32xf32>
    %373 = vector.broadcast %59 : vector<1x32xf32> to vector<12x32xf32>
    %374 = arith.addf %372, %373 : vector<12x32xf32>
    %cst_241 = arith.constant 0.000000e+00 : f32
    %375 = vector.broadcast %cst_241 : f32 to vector<12x32xf32>
    %376 = arith.maximumf %374, %375 : vector<12x32xf32>
    %377 = arith.truncf %376 : vector<12x32xf32> to vector<12x32xbf16>
    %c1_242 = arith.constant 1 : index
    %c1_243 = arith.constant 1 : index
    %c1_244 = arith.constant 1 : index
    %c42_245 = arith.constant 42 : index
    %c0_246 = arith.constant 0 : index
    %378 = vector.load %arg11[%c1_242, %c1_243, %c1_244, %c42_245, %c0_246] : memref<2x2x2x112x32xbf16, #tpu.memory_space<vmem>>, vector<1x1x1x12x32xbf16>
    %379 = vector.shape_cast %378 : vector<1x1x1x12x32xbf16> to vector<12x32xbf16>
    %380 = vector.shape_cast %377 : vector<12x32xbf16> to vector<1x1x1x12x32xbf16>
    tpu.vector_store %arg11[%c1_242, %c1_243, %c1_244, %c42_245, %c0_246], %380 {strides = array<i32>} : memref<2x2x2x112x32xbf16, #tpu.memory_space<vmem>>, vector<1x1x1x12x32xbf16>,
    %c352 = arith.constant 352 : index
    %c0_247 = arith.constant 0 : index
    %381 = vector.load %arg10[%c352, %c0_247] : memref<392x32xf32, #tpu.memory_space<vmem>>, vector<12x32xf32>
    %382 = vector.broadcast %56 : vector<1x32xf32> to vector<12x32xf32>
    %383 = arith.mulf %381, %382 : vector<12x32xf32>
    %384 = vector.broadcast %59 : vector<1x32xf32> to vector<12x32xf32>
    %385 = arith.addf %383, %384 : vector<12x32xf32>
    %cst_248 = arith.constant 0.000000e+00 : f32
    %386 = vector.broadcast %cst_248 : f32 to vector<12x32xf32>
    %387 = arith.maximumf %385, %386 : vector<12x32xf32>
    %388 = arith.truncf %387 : vector<12x32xf32> to vector<12x32xbf16>
    %c1_249 = arith.constant 1 : index
    %c1_250 = arith.constant 1 : index
    %c1_251 = arith.constant 1 : index
    %c56_252 = arith.constant 56 : index
    %c0_253 = arith.constant 0 : index
    %389 = vector.load %arg11[%c1_249, %c1_250, %c1_251, %c56_252, %c0_253] : memref<2x2x2x112x32xbf16, #tpu.memory_space<vmem>>, vector<1x1x1x12x32xbf16>
    %390 = vector.shape_cast %389 : vector<1x1x1x12x32xbf16> to vector<12x32xbf16>
    %391 = vector.shape_cast %388 : vector<12x32xbf16> to vector<1x1x1x12x32xbf16>
    tpu.vector_store %arg11[%c1_249, %c1_250, %c1_251, %c56_252, %c0_253], %391 {strides = array<i32>} : memref<2x2x2x112x32xbf16, #tpu.memory_space<vmem>>, vector<1x1x1x12x32xbf16>,
    %c366 = arith.constant 366 : index
    %c0_254 = arith.constant 0 : index
    %392 = vector.load %arg10[%c366, %c0_254] : memref<392x32xf32, #tpu.memory_space<vmem>>, vector<12x32xf32>
    %393 = vector.broadcast %56 : vector<1x32xf32> to vector<12x32xf32>
    %394 = arith.mulf %392, %393 : vector<12x32xf32>
    %395 = vector.broadcast %59 : vector<1x32xf32> to vector<12x32xf32>
    %396 = arith.addf %394, %395 : vector<12x32xf32>
    %cst_255 = arith.constant 0.000000e+00 : f32
    %397 = vector.broadcast %cst_255 : f32 to vector<12x32xf32>
    %398 = arith.maximumf %396, %397 : vector<12x32xf32>
    %399 = arith.truncf %398 : vector<12x32xf32> to vector<12x32xbf16>
    %c1_256 = arith.constant 1 : index
    %c1_257 = arith.constant 1 : index
    %c1_258 = arith.constant 1 : index
    %c70_259 = arith.constant 70 : index
    %c0_260 = arith.constant 0 : index
    %400 = vector.load %arg11[%c1_256, %c1_257, %c1_258, %c70_259, %c0_260] : memref<2x2x2x112x32xbf16, #tpu.memory_space<vmem>>, vector<1x1x1x12x32xbf16>
    %401 = vector.shape_cast %400 : vector<1x1x1x12x32xbf16> to vector<12x32xbf16>
    %402 = vector.shape_cast %399 : vector<12x32xbf16> to vector<1x1x1x12x32xbf16>
    tpu.vector_store %arg11[%c1_256, %c1_257, %c1_258, %c70_259, %c0_260], %402 {strides = array<i32>} : memref<2x2x2x112x32xbf16, #tpu.memory_space<vmem>>, vector<1x1x1x12x32xbf16>,
    %c380 = arith.constant 380 : index
    %c0_261 = arith.constant 0 : index
    %403 = vector.load %arg10[%c380, %c0_261] : memref<392x32xf32, #tpu.memory_space<vmem>>, vector<12x32xf32>
    %404 = vector.broadcast %56 : vector<1x32xf32> to vector<12x32xf32>
    %405 = arith.mulf %403, %404 : vector<12x32xf32>
    %406 = vector.broadcast %59 : vector<1x32xf32> to vector<12x32xf32>
    %407 = arith.addf %405, %406 : vector<12x32xf32>
    %cst_262 = arith.constant 0.000000e+00 : f32
    %408 = vector.broadcast %cst_262 : f32 to vector<12x32xf32>
    %409 = arith.maximumf %407, %408 : vector<12x32xf32>
    %410 = arith.truncf %409 : vector<12x32xf32> to vector<12x32xbf16>
    %c1_263 = arith.constant 1 : index
    %c1_264 = arith.constant 1 : index
    %c1_265 = arith.constant 1 : index
    %c84_266 = arith.constant 84 : index
    %c0_267 = arith.constant 0 : index
    %411 = vector.load %arg11[%c1_263, %c1_264, %c1_265, %c84_266, %c0_267] : memref<2x2x2x112x32xbf16, #tpu.memory_space<vmem>>, vector<1x1x1x12x32xbf16>
    %412 = vector.shape_cast %411 : vector<1x1x1x12x32xbf16> to vector<12x32xbf16>
    %413 = vector.shape_cast %410 : vector<12x32xbf16> to vector<1x1x1x12x32xbf16>
    tpu.vector_store %arg11[%c1_263, %c1_264, %c1_265, %c84_266, %c0_267], %413 {strides = array<i32>} : memref<2x2x2x112x32xbf16, #tpu.memory_space<vmem>>, vector<1x1x1x12x32xbf16>,
    %cst_268 = arith.constant 0.000000e+00 : f32
    %414 = vector.broadcast %cst_268 : f32 to vector<98x64xf32>
    %c0_269 = arith.constant 0 : index
    %c0_270 = arith.constant 0 : index
    %c0_271 = arith.constant 0 : index
    %c0_272 = arith.constant 0 : index
    %c0_273 = arith.constant 0 : index
    %415 = vector.load %arg11[%c0_269, %c0_270, %c0_271, %c0_272, %c0_273] : memref<2x2x2x112x32xbf16, #tpu.memory_space<vmem>>, vector<1x1x1x98x32xbf16>
    %416 = vector.shape_cast %415 : vector<1x1x1x98x32xbf16> to vector<98x32xbf16>
    %c0_274 = arith.constant 0 : index
    %c0_275 = arith.constant 0 : index
    %c0_276 = arith.constant 0 : index
    %417 = vector.load %arg4[%c0_274, %c0_275, %c0_276] : memref<9x32x64xbf16, #tpu.memory_space<vmem>>, vector<1x32x64xbf16>
    %418 = vector.shape_cast %417 : vector<1x32x64xbf16> to vector<32x64xbf16>
    %cst_277 = arith.constant dense<0.000000e+00> : vector<98x64xf32>
    %419 = tpu.matmul %416, %418, %cst_277 {dimension_numbers = #tpu.dot_dimension_numbers<[1], [0], [0], [1], [0, 0, 1, 1], [], []>} : vector<98x32xbf16>, vector<32x64xbf16>, vector<98x64xf32> -> vector<98x64xf32>
    %420 = arith.addf %414, %419 : vector<98x64xf32>
    %c0_278 = arith.constant 0 : index
    %c1_279 = arith.constant 1 : index
    %c0_280 = arith.constant 0 : index
    %c0_281 = arith.constant 0 : index
    %c0_282 = arith.constant 0 : index
    %421 = vector.load %arg11[%c0_278, %c1_279, %c0_280, %c0_281, %c0_282] : memref<2x2x2x112x32xbf16, #tpu.memory_space<vmem>>, vector<1x1x1x98x32xbf16>
    %422 = vector.shape_cast %421 : vector<1x1x1x98x32xbf16> to vector<98x32xbf16>
    %c1_283 = arith.constant 1 : index
    %c0_284 = arith.constant 0 : index
    %c0_285 = arith.constant 0 : index
    %423 = vector.load %arg4[%c1_283, %c0_284, %c0_285] : memref<9x32x64xbf16, #tpu.memory_space<vmem>>, vector<1x32x64xbf16>
    %424 = vector.shape_cast %423 : vector<1x32x64xbf16> to vector<32x64xbf16>
    %cst_286 = arith.constant dense<0.000000e+00> : vector<98x64xf32>
    %425 = tpu.matmul %422, %424, %cst_286 {dimension_numbers = #tpu.dot_dimension_numbers<[1], [0], [0], [1], [0, 0, 1, 1], [], []>} : vector<98x32xbf16>, vector<32x64xbf16>, vector<98x64xf32> -> vector<98x64xf32>
    %426 = arith.addf %420, %425 : vector<98x64xf32>
    %c0_287 = arith.constant 0 : index
    %c0_288 = arith.constant 0 : index
    %c1_289 = arith.constant 1 : index
    %c0_290 = arith.constant 0 : index
    %c0_291 = arith.constant 0 : index
    %427 = vector.load %arg11[%c0_287, %c0_288, %c1_289, %c0_290, %c0_291] : memref<2x2x2x112x32xbf16, #tpu.memory_space<vmem>>, vector<1x1x1x98x32xbf16>
    %428 = vector.shape_cast %427 : vector<1x1x1x98x32xbf16> to vector<98x32xbf16>
    %c2_292 = arith.constant 2 : index
    %c0_293 = arith.constant 0 : index
    %c0_294 = arith.constant 0 : index
    %429 = vector.load %arg4[%c2_292, %c0_293, %c0_294] : memref<9x32x64xbf16, #tpu.memory_space<vmem>>, vector<1x32x64xbf16>
    %430 = vector.shape_cast %429 : vector<1x32x64xbf16> to vector<32x64xbf16>
    %cst_295 = arith.constant dense<0.000000e+00> : vector<98x64xf32>
    %431 = tpu.matmul %428, %430, %cst_295 {dimension_numbers = #tpu.dot_dimension_numbers<[1], [0], [0], [1], [0, 0, 1, 1], [], []>} : vector<98x32xbf16>, vector<32x64xbf16>, vector<98x64xf32> -> vector<98x64xf32>
    %432 = arith.addf %426, %431 : vector<98x64xf32>
    %c1_296 = arith.constant 1 : index
    %c0_297 = arith.constant 0 : index
    %c0_298 = arith.constant 0 : index
    %c0_299 = arith.constant 0 : index
    %c0_300 = arith.constant 0 : index
    %433 = vector.load %arg11[%c1_296, %c0_297, %c0_298, %c0_299, %c0_300] : memref<2x2x2x112x32xbf16, #tpu.memory_space<vmem>>, vector<1x1x1x98x32xbf16>
    %434 = vector.shape_cast %433 : vector<1x1x1x98x32xbf16> to vector<98x32xbf16>
    %c3 = arith.constant 3 : index
    %c0_301 = arith.constant 0 : index
    %c0_302 = arith.constant 0 : index
    %435 = vector.load %arg4[%c3, %c0_301, %c0_302] : memref<9x32x64xbf16, #tpu.memory_space<vmem>>, vector<1x32x64xbf16>
    %436 = vector.shape_cast %435 : vector<1x32x64xbf16> to vector<32x64xbf16>
    %cst_303 = arith.constant dense<0.000000e+00> : vector<98x64xf32>
    %437 = tpu.matmul %434, %436, %cst_303 {dimension_numbers = #tpu.dot_dimension_numbers<[1], [0], [0], [1], [0, 0, 1, 1], [], []>} : vector<98x32xbf16>, vector<32x64xbf16>, vector<98x64xf32> -> vector<98x64xf32>
    %438 = arith.addf %432, %437 : vector<98x64xf32>
    %c1_304 = arith.constant 1 : index
    %c1_305 = arith.constant 1 : index
    %c0_306 = arith.constant 0 : index
    %c0_307 = arith.constant 0 : index
    %c0_308 = arith.constant 0 : index
    %439 = vector.load %arg11[%c1_304, %c1_305, %c0_306, %c0_307, %c0_308] : memref<2x2x2x112x32xbf16, #tpu.memory_space<vmem>>, vector<1x1x1x98x32xbf16>
    %440 = vector.shape_cast %439 : vector<1x1x1x98x32xbf16> to vector<98x32xbf16>
    %c4 = arith.constant 4 : index
    %c0_309 = arith.constant 0 : index
    %c0_310 = arith.constant 0 : index
    %441 = vector.load %arg4[%c4, %c0_309, %c0_310] : memref<9x32x64xbf16, #tpu.memory_space<vmem>>, vector<1x32x64xbf16>
    %442 = vector.shape_cast %441 : vector<1x32x64xbf16> to vector<32x64xbf16>
    %cst_311 = arith.constant dense<0.000000e+00> : vector<98x64xf32>
    %443 = tpu.matmul %440, %442, %cst_311 {dimension_numbers = #tpu.dot_dimension_numbers<[1], [0], [0], [1], [0, 0, 1, 1], [], []>} : vector<98x32xbf16>, vector<32x64xbf16>, vector<98x64xf32> -> vector<98x64xf32>
    %444 = arith.addf %438, %443 : vector<98x64xf32>
    %c1_312 = arith.constant 1 : index
    %c0_313 = arith.constant 0 : index
    %c1_314 = arith.constant 1 : index
    %c0_315 = arith.constant 0 : index
    %c0_316 = arith.constant 0 : index
    %445 = vector.load %arg11[%c1_312, %c0_313, %c1_314, %c0_315, %c0_316] : memref<2x2x2x112x32xbf16, #tpu.memory_space<vmem>>, vector<1x1x1x98x32xbf16>
    %446 = vector.shape_cast %445 : vector<1x1x1x98x32xbf16> to vector<98x32xbf16>
    %c5 = arith.constant 5 : index
    %c0_317 = arith.constant 0 : index
    %c0_318 = arith.constant 0 : index
    %447 = vector.load %arg4[%c5, %c0_317, %c0_318] : memref<9x32x64xbf16, #tpu.memory_space<vmem>>, vector<1x32x64xbf16>
    %448 = vector.shape_cast %447 : vector<1x32x64xbf16> to vector<32x64xbf16>
    %cst_319 = arith.constant dense<0.000000e+00> : vector<98x64xf32>
    %449 = tpu.matmul %446, %448, %cst_319 {dimension_numbers = #tpu.dot_dimension_numbers<[1], [0], [0], [1], [0, 0, 1, 1], [], []>} : vector<98x32xbf16>, vector<32x64xbf16>, vector<98x64xf32> -> vector<98x64xf32>
    %450 = arith.addf %444, %449 : vector<98x64xf32>
    %c0_320 = arith.constant 0 : index
    %c0_321 = arith.constant 0 : index
    %c0_322 = arith.constant 0 : index
    %c14_323 = arith.constant 14 : index
    %c0_324 = arith.constant 0 : index
    %451 = vector.load %arg11[%c0_320, %c0_321, %c0_322, %c14_323, %c0_324] : memref<2x2x2x112x32xbf16, #tpu.memory_space<vmem>>, vector<1x1x1x98x32xbf16>
    %452 = vector.shape_cast %451 : vector<1x1x1x98x32xbf16> to vector<98x32xbf16>
    %c6 = arith.constant 6 : index
    %c0_325 = arith.constant 0 : index
    %c0_326 = arith.constant 0 : index
    %453 = vector.load %arg4[%c6, %c0_325, %c0_326] : memref<9x32x64xbf16, #tpu.memory_space<vmem>>, vector<1x32x64xbf16>
    %454 = vector.shape_cast %453 : vector<1x32x64xbf16> to vector<32x64xbf16>
    %cst_327 = arith.constant dense<0.000000e+00> : vector<98x64xf32>
    %455 = tpu.matmul %452, %454, %cst_327 {dimension_numbers = #tpu.dot_dimension_numbers<[1], [0], [0], [1], [0, 0, 1, 1], [], []>} : vector<98x32xbf16>, vector<32x64xbf16>, vector<98x64xf32> -> vector<98x64xf32>
    %456 = arith.addf %450, %455 : vector<98x64xf32>
    %c0_328 = arith.constant 0 : index
    %c1_329 = arith.constant 1 : index
    %c0_330 = arith.constant 0 : index
    %c14_331 = arith.constant 14 : index
    %c0_332 = arith.constant 0 : index
    %457 = vector.load %arg11[%c0_328, %c1_329, %c0_330, %c14_331, %c0_332] : memref<2x2x2x112x32xbf16, #tpu.memory_space<vmem>>, vector<1x1x1x98x32xbf16>
    %458 = vector.shape_cast %457 : vector<1x1x1x98x32xbf16> to vector<98x32xbf16>
    %c7 = arith.constant 7 : index
    %c0_333 = arith.constant 0 : index
    %c0_334 = arith.constant 0 : index
    %459 = vector.load %arg4[%c7, %c0_333, %c0_334] : memref<9x32x64xbf16, #tpu.memory_space<vmem>>, vector<1x32x64xbf16>
    %460 = vector.shape_cast %459 : vector<1x32x64xbf16> to vector<32x64xbf16>
    %cst_335 = arith.constant dense<0.000000e+00> : vector<98x64xf32>
    %461 = tpu.matmul %458, %460, %cst_335 {dimension_numbers = #tpu.dot_dimension_numbers<[1], [0], [0], [1], [0, 0, 1, 1], [], []>} : vector<98x32xbf16>, vector<32x64xbf16>, vector<98x64xf32> -> vector<98x64xf32>
    %462 = arith.addf %456, %461 : vector<98x64xf32>
    %c0_336 = arith.constant 0 : index
    %c0_337 = arith.constant 0 : index
    %c1_338 = arith.constant 1 : index
    %c14_339 = arith.constant 14 : index
    %c0_340 = arith.constant 0 : index
    %463 = vector.load %arg11[%c0_336, %c0_337, %c1_338, %c14_339, %c0_340] : memref<2x2x2x112x32xbf16, #tpu.memory_space<vmem>>, vector<1x1x1x98x32xbf16>
    %464 = vector.shape_cast %463 : vector<1x1x1x98x32xbf16> to vector<98x32xbf16>
    %c8 = arith.constant 8 : index
    %c0_341 = arith.constant 0 : index
    %c0_342 = arith.constant 0 : index
    %465 = vector.load %arg4[%c8, %c0_341, %c0_342] : memref<9x32x64xbf16, #tpu.memory_space<vmem>>, vector<1x32x64xbf16>
    %466 = vector.shape_cast %465 : vector<1x32x64xbf16> to vector<32x64xbf16>
    %cst_343 = arith.constant dense<0.000000e+00> : vector<98x64xf32>
    %467 = tpu.matmul %464, %466, %cst_343 {dimension_numbers = #tpu.dot_dimension_numbers<[1], [0], [0], [1], [0, 0, 1, 1], [], []>} : vector<98x32xbf16>, vector<32x64xbf16>, vector<98x64xf32> -> vector<98x64xf32>
    %468 = arith.addf %462, %467 : vector<98x64xf32>
    %cst_344 = arith.constant dense<0.000000e+00> : vector<64xf32>
    %469 = vector.multi_reduction <add>, %468, %cst_344 [0] : vector<98x64xf32> to vector<64xf32>
    %470 = vector.shape_cast %469 : vector<64xf32> to vector<1x64xf32>
    %cst_345 = arith.constant 9.800000e+01 : f32
    %471 = vector.broadcast %cst_345 : f32 to vector<1x64xf32>
    %472 = arith.divf %470, %471 : vector<1x64xf32>
    %473 = arith.mulf %468, %468 : vector<98x64xf32>
    %cst_346 = arith.constant dense<0.000000e+00> : vector<64xf32>
    %474 = vector.multi_reduction <add>, %473, %cst_346 [0] : vector<98x64xf32> to vector<64xf32>
    %475 = vector.shape_cast %474 : vector<64xf32> to vector<1x64xf32>
    %cst_347 = arith.constant 9.800000e+01 : f32
    %476 = vector.broadcast %cst_347 : f32 to vector<1x64xf32>
    %477 = arith.divf %475, %476 : vector<1x64xf32>
    %478 = arith.mulf %472, %472 : vector<1x64xf32>
    %479 = arith.subf %477, %478 : vector<1x64xf32>
    %c0_348 = arith.constant 0 : index
    %c0_349 = arith.constant 0 : index
    %480 = vector.load %arg5[%c0_348, %c0_349] : memref<1x64xf32, #tpu.memory_space<vmem>>, vector<1x64xf32>
    %cst_350 = arith.constant 9.99999974E-6 : f32
    %481 = vector.broadcast %cst_350 : f32 to vector<1x64xf32>
    %482 = arith.addf %479, %481 : vector<1x64xf32>
    %483 = math.rsqrt %482 : vector<1x64xf32>
    %484 = arith.mulf %480, %483 : vector<1x64xf32>
    %c0_351 = arith.constant 0 : index
    %c0_352 = arith.constant 0 : index
    %485 = vector.load %arg6[%c0_351, %c0_352] : memref<1x64xf32, #tpu.memory_space<vmem>>, vector<1x64xf32>
    %486 = arith.mulf %472, %484 : vector<1x64xf32>
    %487 = arith.subf %485, %486 : vector<1x64xf32>
    %488 = vector.broadcast %484 : vector<1x64xf32> to vector<98x64xf32>
    %489 = arith.mulf %468, %488 : vector<98x64xf32>
    %490 = vector.broadcast %487 : vector<1x64xf32> to vector<98x64xf32>
    %491 = arith.addf %489, %490 : vector<98x64xf32>
    %cst_353 = arith.constant 0.000000e+00 : f32
    %492 = vector.broadcast %cst_353 : f32 to vector<98x64xf32>
    %493 = arith.maximumf %491, %492 : vector<98x64xf32>
    %494 = arith.truncf %493 : vector<98x64xf32> to vector<98x64xbf16>
    %495 = vector.extract_strided_slice %494 {offsets = [0, 0], sizes = [2, 64], strides = [1, 1]} : vector<98x64xbf16> to vector<2x64xbf16>
    %c0_354 = arith.constant 0 : index
    %c0_355 = arith.constant 0 : index
    %496 = vector.load %arg12[%c0_354, %c0_355] : memref<2x3136xbf16, #tpu.memory_space<vmem>>, vector<2x64xbf16>
    tpu.vector_store %arg12[%c0_354, %c0_355], %495 {strides = array<i32>} : memref<2x3136xbf16, #tpu.memory_space<vmem>>, vector<2x64xbf16>,
    %497 = vector.extract_strided_slice %494 {offsets = [2, 0], sizes = [2, 64], strides = [1, 1]} : vector<98x64xbf16> to vector<2x64xbf16>
    %c0_356 = arith.constant 0 : index
    %c64 = arith.constant 64 : index
    %498 = vector.load %arg12[%c0_356, %c64] : memref<2x3136xbf16, #tpu.memory_space<vmem>>, vector<2x64xbf16>
    tpu.vector_store %arg12[%c0_356, %c64], %497 {strides = array<i32>} : memref<2x3136xbf16, #tpu.memory_space<vmem>>, vector<2x64xbf16>,
    %499 = vector.extract_strided_slice %494 {offsets = [4, 0], sizes = [2, 64], strides = [1, 1]} : vector<98x64xbf16> to vector<2x64xbf16>
    %c0_357 = arith.constant 0 : index
    %c128_358 = arith.constant 128 : index
    %500 = vector.load %arg12[%c0_357, %c128_358] : memref<2x3136xbf16, #tpu.memory_space<vmem>>, vector<2x64xbf16>
    tpu.vector_store %arg12[%c0_357, %c128_358], %499 {strides = array<i32>} : memref<2x3136xbf16, #tpu.memory_space<vmem>>, vector<2x64xbf16>,
    %501 = vector.extract_strided_slice %494 {offsets = [6, 0], sizes = [2, 64], strides = [1, 1]} : vector<98x64xbf16> to vector<2x64xbf16>
    %c0_359 = arith.constant 0 : index
    %c192 = arith.constant 192 : index
    %502 = vector.load %arg12[%c0_359, %c192] : memref<2x3136xbf16, #tpu.memory_space<vmem>>, vector<2x64xbf16>
    tpu.vector_store %arg12[%c0_359, %c192], %501 {strides = array<i32>} : memref<2x3136xbf16, #tpu.memory_space<vmem>>, vector<2x64xbf16>,
    %503 = vector.extract_strided_slice %494 {offsets = [8, 0], sizes = [2, 64], strides = [1, 1]} : vector<98x64xbf16> to vector<2x64xbf16>
    %c0_360 = arith.constant 0 : index
    %c256 = arith.constant 256 : index
    %504 = vector.load %arg12[%c0_360, %c256] : memref<2x3136xbf16, #tpu.memory_space<vmem>>, vector<2x64xbf16>
    tpu.vector_store %arg12[%c0_360, %c256], %503 {strides = array<i32>} : memref<2x3136xbf16, #tpu.memory_space<vmem>>, vector<2x64xbf16>,
    %505 = vector.extract_strided_slice %494 {offsets = [10, 0], sizes = [2, 64], strides = [1, 1]} : vector<98x64xbf16> to vector<2x64xbf16>
    %c0_361 = arith.constant 0 : index
    %c320 = arith.constant 320 : index
    %506 = vector.load %arg12[%c0_361, %c320] : memref<2x3136xbf16, #tpu.memory_space<vmem>>, vector<2x64xbf16>
    tpu.vector_store %arg12[%c0_361, %c320], %505 {strides = array<i32>} : memref<2x3136xbf16, #tpu.memory_space<vmem>>, vector<2x64xbf16>,
    %507 = vector.extract_strided_slice %494 {offsets = [12, 0], sizes = [2, 64], strides = [1, 1]} : vector<98x64xbf16> to vector<2x64xbf16>
    %c0_362 = arith.constant 0 : index
    %c384 = arith.constant 384 : index
    %508 = vector.load %arg12[%c0_362, %c384] : memref<2x3136xbf16, #tpu.memory_space<vmem>>, vector<2x64xbf16>
    tpu.vector_store %arg12[%c0_362, %c384], %507 {strides = array<i32>} : memref<2x3136xbf16, #tpu.memory_space<vmem>>, vector<2x64xbf16>,
    %509 = vector.extract_strided_slice %494 {offsets = [14, 0], sizes = [2, 64], strides = [1, 1]} : vector<98x64xbf16> to vector<2x64xbf16>
    %c0_363 = arith.constant 0 : index
    %c448 = arith.constant 448 : index
    %510 = vector.load %arg12[%c0_363, %c448] : memref<2x3136xbf16, #tpu.memory_space<vmem>>, vector<2x64xbf16>
    tpu.vector_store %arg12[%c0_363, %c448], %509 {strides = array<i32>} : memref<2x3136xbf16, #tpu.memory_space<vmem>>, vector<2x64xbf16>,
    %511 = vector.extract_strided_slice %494 {offsets = [16, 0], sizes = [2, 64], strides = [1, 1]} : vector<98x64xbf16> to vector<2x64xbf16>
    %c0_364 = arith.constant 0 : index
    %c512 = arith.constant 512 : index
    %512 = vector.load %arg12[%c0_364, %c512] : memref<2x3136xbf16, #tpu.memory_space<vmem>>, vector<2x64xbf16>
    tpu.vector_store %arg12[%c0_364, %c512], %511 {strides = array<i32>} : memref<2x3136xbf16, #tpu.memory_space<vmem>>, vector<2x64xbf16>,
    %513 = vector.extract_strided_slice %494 {offsets = [18, 0], sizes = [2, 64], strides = [1, 1]} : vector<98x64xbf16> to vector<2x64xbf16>
    %c0_365 = arith.constant 0 : index
    %c576 = arith.constant 576 : index
    %514 = vector.load %arg12[%c0_365, %c576] : memref<2x3136xbf16, #tpu.memory_space<vmem>>, vector<2x64xbf16>
    tpu.vector_store %arg12[%c0_365, %c576], %513 {strides = array<i32>} : memref<2x3136xbf16, #tpu.memory_space<vmem>>, vector<2x64xbf16>,
    %515 = vector.extract_strided_slice %494 {offsets = [20, 0], sizes = [2, 64], strides = [1, 1]} : vector<98x64xbf16> to vector<2x64xbf16>
    %c0_366 = arith.constant 0 : index
    %c640 = arith.constant 640 : index
    %516 = vector.load %arg12[%c0_366, %c640] : memref<2x3136xbf16, #tpu.memory_space<vmem>>, vector<2x64xbf16>
    tpu.vector_store %arg12[%c0_366, %c640], %515 {strides = array<i32>} : memref<2x3136xbf16, #tpu.memory_space<vmem>>, vector<2x64xbf16>,
    %517 = vector.extract_strided_slice %494 {offsets = [22, 0], sizes = [2, 64], strides = [1, 1]} : vector<98x64xbf16> to vector<2x64xbf16>
    %c0_367 = arith.constant 0 : index
    %c704 = arith.constant 704 : index
    %518 = vector.load %arg12[%c0_367, %c704] : memref<2x3136xbf16, #tpu.memory_space<vmem>>, vector<2x64xbf16>
    tpu.vector_store %arg12[%c0_367, %c704], %517 {strides = array<i32>} : memref<2x3136xbf16, #tpu.memory_space<vmem>>, vector<2x64xbf16>,
    %519 = vector.extract_strided_slice %494 {offsets = [24, 0], sizes = [2, 64], strides = [1, 1]} : vector<98x64xbf16> to vector<2x64xbf16>
    %c0_368 = arith.constant 0 : index
    %c768 = arith.constant 768 : index
    %520 = vector.load %arg12[%c0_368, %c768] : memref<2x3136xbf16, #tpu.memory_space<vmem>>, vector<2x64xbf16>
    tpu.vector_store %arg12[%c0_368, %c768], %519 {strides = array<i32>} : memref<2x3136xbf16, #tpu.memory_space<vmem>>, vector<2x64xbf16>,
    %521 = vector.extract_strided_slice %494 {offsets = [26, 0], sizes = [2, 64], strides = [1, 1]} : vector<98x64xbf16> to vector<2x64xbf16>
    %c0_369 = arith.constant 0 : index
    %c832 = arith.constant 832 : index
    %522 = vector.load %arg12[%c0_369, %c832] : memref<2x3136xbf16, #tpu.memory_space<vmem>>, vector<2x64xbf16>
    tpu.vector_store %arg12[%c0_369, %c832], %521 {strides = array<i32>} : memref<2x3136xbf16, #tpu.memory_space<vmem>>, vector<2x64xbf16>,
    %523 = vector.extract_strided_slice %494 {offsets = [28, 0], sizes = [2, 64], strides = [1, 1]} : vector<98x64xbf16> to vector<2x64xbf16>
    %c0_370 = arith.constant 0 : index
    %c896 = arith.constant 896 : index
    %524 = vector.load %arg12[%c0_370, %c896] : memref<2x3136xbf16, #tpu.memory_space<vmem>>, vector<2x64xbf16>
    tpu.vector_store %arg12[%c0_370, %c896], %523 {strides = array<i32>} : memref<2x3136xbf16, #tpu.memory_space<vmem>>, vector<2x64xbf16>,
    %525 = vector.extract_strided_slice %494 {offsets = [30, 0], sizes = [2, 64], strides = [1, 1]} : vector<98x64xbf16> to vector<2x64xbf16>
    %c0_371 = arith.constant 0 : index
    %c960 = arith.constant 960 : index
    %526 = vector.load %arg12[%c0_371, %c960] : memref<2x3136xbf16, #tpu.memory_space<vmem>>, vector<2x64xbf16>
    tpu.vector_store %arg12[%c0_371, %c960], %525 {strides = array<i32>} : memref<2x3136xbf16, #tpu.memory_space<vmem>>, vector<2x64xbf16>,
    %527 = vector.extract_strided_slice %494 {offsets = [32, 0], sizes = [2, 64], strides = [1, 1]} : vector<98x64xbf16> to vector<2x64xbf16>
    %c0_372 = arith.constant 0 : index
    %c1024 = arith.constant 1024 : index
    %528 = vector.load %arg12[%c0_372, %c1024] : memref<2x3136xbf16, #tpu.memory_space<vmem>>, vector<2x64xbf16>
    tpu.vector_store %arg12[%c0_372, %c1024], %527 {strides = array<i32>} : memref<2x3136xbf16, #tpu.memory_space<vmem>>, vector<2x64xbf16>,
    %529 = vector.extract_strided_slice %494 {offsets = [34, 0], sizes = [2, 64], strides = [1, 1]} : vector<98x64xbf16> to vector<2x64xbf16>
    %c0_373 = arith.constant 0 : index
    %c1088 = arith.constant 1088 : index
    %530 = vector.load %arg12[%c0_373, %c1088] : memref<2x3136xbf16, #tpu.memory_space<vmem>>, vector<2x64xbf16>
    tpu.vector_store %arg12[%c0_373, %c1088], %529 {strides = array<i32>} : memref<2x3136xbf16, #tpu.memory_space<vmem>>, vector<2x64xbf16>,
    %531 = vector.extract_strided_slice %494 {offsets = [36, 0], sizes = [2, 64], strides = [1, 1]} : vector<98x64xbf16> to vector<2x64xbf16>
    %c0_374 = arith.constant 0 : index
    %c1152 = arith.constant 1152 : index
    %532 = vector.load %arg12[%c0_374, %c1152] : memref<2x3136xbf16, #tpu.memory_space<vmem>>, vector<2x64xbf16>
    tpu.vector_store %arg12[%c0_374, %c1152], %531 {strides = array<i32>} : memref<2x3136xbf16, #tpu.memory_space<vmem>>, vector<2x64xbf16>,
    %533 = vector.extract_strided_slice %494 {offsets = [38, 0], sizes = [2, 64], strides = [1, 1]} : vector<98x64xbf16> to vector<2x64xbf16>
    %c0_375 = arith.constant 0 : index
    %c1216 = arith.constant 1216 : index
    %534 = vector.load %arg12[%c0_375, %c1216] : memref<2x3136xbf16, #tpu.memory_space<vmem>>, vector<2x64xbf16>
    tpu.vector_store %arg12[%c0_375, %c1216], %533 {strides = array<i32>} : memref<2x3136xbf16, #tpu.memory_space<vmem>>, vector<2x64xbf16>,
    %535 = vector.extract_strided_slice %494 {offsets = [40, 0], sizes = [2, 64], strides = [1, 1]} : vector<98x64xbf16> to vector<2x64xbf16>
    %c0_376 = arith.constant 0 : index
    %c1280 = arith.constant 1280 : index
    %536 = vector.load %arg12[%c0_376, %c1280] : memref<2x3136xbf16, #tpu.memory_space<vmem>>, vector<2x64xbf16>
    tpu.vector_store %arg12[%c0_376, %c1280], %535 {strides = array<i32>} : memref<2x3136xbf16, #tpu.memory_space<vmem>>, vector<2x64xbf16>,
    %537 = vector.extract_strided_slice %494 {offsets = [42, 0], sizes = [2, 64], strides = [1, 1]} : vector<98x64xbf16> to vector<2x64xbf16>
    %c0_377 = arith.constant 0 : index
    %c1344 = arith.constant 1344 : index
    %538 = vector.load %arg12[%c0_377, %c1344] : memref<2x3136xbf16, #tpu.memory_space<vmem>>, vector<2x64xbf16>
    tpu.vector_store %arg12[%c0_377, %c1344], %537 {strides = array<i32>} : memref<2x3136xbf16, #tpu.memory_space<vmem>>, vector<2x64xbf16>,
    %539 = vector.extract_strided_slice %494 {offsets = [44, 0], sizes = [2, 64], strides = [1, 1]} : vector<98x64xbf16> to vector<2x64xbf16>
    %c0_378 = arith.constant 0 : index
    %c1408 = arith.constant 1408 : index
    %540 = vector.load %arg12[%c0_378, %c1408] : memref<2x3136xbf16, #tpu.memory_space<vmem>>, vector<2x64xbf16>
    tpu.vector_store %arg12[%c0_378, %c1408], %539 {strides = array<i32>} : memref<2x3136xbf16, #tpu.memory_space<vmem>>, vector<2x64xbf16>,
    %541 = vector.extract_strided_slice %494 {offsets = [46, 0], sizes = [2, 64], strides = [1, 1]} : vector<98x64xbf16> to vector<2x64xbf16>
    %c0_379 = arith.constant 0 : index
    %c1472 = arith.constant 1472 : index
    %542 = vector.load %arg12[%c0_379, %c1472] : memref<2x3136xbf16, #tpu.memory_space<vmem>>, vector<2x64xbf16>
    tpu.vector_store %arg12[%c0_379, %c1472], %541 {strides = array<i32>} : memref<2x3136xbf16, #tpu.memory_space<vmem>>, vector<2x64xbf16>,
    %543 = vector.extract_strided_slice %494 {offsets = [48, 0], sizes = [2, 64], strides = [1, 1]} : vector<98x64xbf16> to vector<2x64xbf16>
    %c0_380 = arith.constant 0 : index
    %c1536 = arith.constant 1536 : index
    %544 = vector.load %arg12[%c0_380, %c1536] : memref<2x3136xbf16, #tpu.memory_space<vmem>>, vector<2x64xbf16>
    tpu.vector_store %arg12[%c0_380, %c1536], %543 {strides = array<i32>} : memref<2x3136xbf16, #tpu.memory_space<vmem>>, vector<2x64xbf16>,
    %545 = vector.extract_strided_slice %494 {offsets = [50, 0], sizes = [2, 64], strides = [1, 1]} : vector<98x64xbf16> to vector<2x64xbf16>
    %c0_381 = arith.constant 0 : index
    %c1600 = arith.constant 1600 : index
    %546 = vector.load %arg12[%c0_381, %c1600] : memref<2x3136xbf16, #tpu.memory_space<vmem>>, vector<2x64xbf16>
    tpu.vector_store %arg12[%c0_381, %c1600], %545 {strides = array<i32>} : memref<2x3136xbf16, #tpu.memory_space<vmem>>, vector<2x64xbf16>,
    %547 = vector.extract_strided_slice %494 {offsets = [52, 0], sizes = [2, 64], strides = [1, 1]} : vector<98x64xbf16> to vector<2x64xbf16>
    %c0_382 = arith.constant 0 : index
    %c1664 = arith.constant 1664 : index
    %548 = vector.load %arg12[%c0_382, %c1664] : memref<2x3136xbf16, #tpu.memory_space<vmem>>, vector<2x64xbf16>
    tpu.vector_store %arg12[%c0_382, %c1664], %547 {strides = array<i32>} : memref<2x3136xbf16, #tpu.memory_space<vmem>>, vector<2x64xbf16>,
    %549 = vector.extract_strided_slice %494 {offsets = [54, 0], sizes = [2, 64], strides = [1, 1]} : vector<98x64xbf16> to vector<2x64xbf16>
    %c0_383 = arith.constant 0 : index
    %c1728 = arith.constant 1728 : index
    %550 = vector.load %arg12[%c0_383, %c1728] : memref<2x3136xbf16, #tpu.memory_space<vmem>>, vector<2x64xbf16>
    tpu.vector_store %arg12[%c0_383, %c1728], %549 {strides = array<i32>} : memref<2x3136xbf16, #tpu.memory_space<vmem>>, vector<2x64xbf16>,
    %551 = vector.extract_strided_slice %494 {offsets = [56, 0], sizes = [2, 64], strides = [1, 1]} : vector<98x64xbf16> to vector<2x64xbf16>
    %c0_384 = arith.constant 0 : index
    %c1792 = arith.constant 1792 : index
    %552 = vector.load %arg12[%c0_384, %c1792] : memref<2x3136xbf16, #tpu.memory_space<vmem>>, vector<2x64xbf16>
    tpu.vector_store %arg12[%c0_384, %c1792], %551 {strides = array<i32>} : memref<2x3136xbf16, #tpu.memory_space<vmem>>, vector<2x64xbf16>,
    %553 = vector.extract_strided_slice %494 {offsets = [58, 0], sizes = [2, 64], strides = [1, 1]} : vector<98x64xbf16> to vector<2x64xbf16>
    %c0_385 = arith.constant 0 : index
    %c1856 = arith.constant 1856 : index
    %554 = vector.load %arg12[%c0_385, %c1856] : memref<2x3136xbf16, #tpu.memory_space<vmem>>, vector<2x64xbf16>
    tpu.vector_store %arg12[%c0_385, %c1856], %553 {strides = array<i32>} : memref<2x3136xbf16, #tpu.memory_space<vmem>>, vector<2x64xbf16>,
    %555 = vector.extract_strided_slice %494 {offsets = [60, 0], sizes = [2, 64], strides = [1, 1]} : vector<98x64xbf16> to vector<2x64xbf16>
    %c0_386 = arith.constant 0 : index
    %c1920 = arith.constant 1920 : index
    %556 = vector.load %arg12[%c0_386, %c1920] : memref<2x3136xbf16, #tpu.memory_space<vmem>>, vector<2x64xbf16>
    tpu.vector_store %arg12[%c0_386, %c1920], %555 {strides = array<i32>} : memref<2x3136xbf16, #tpu.memory_space<vmem>>, vector<2x64xbf16>,
    %557 = vector.extract_strided_slice %494 {offsets = [62, 0], sizes = [2, 64], strides = [1, 1]} : vector<98x64xbf16> to vector<2x64xbf16>
    %c0_387 = arith.constant 0 : index
    %c1984 = arith.constant 1984 : index
    %558 = vector.load %arg12[%c0_387, %c1984] : memref<2x3136xbf16, #tpu.memory_space<vmem>>, vector<2x64xbf16>
    tpu.vector_store %arg12[%c0_387, %c1984], %557 {strides = array<i32>} : memref<2x3136xbf16, #tpu.memory_space<vmem>>, vector<2x64xbf16>,
    %559 = vector.extract_strided_slice %494 {offsets = [64, 0], sizes = [2, 64], strides = [1, 1]} : vector<98x64xbf16> to vector<2x64xbf16>
    %c0_388 = arith.constant 0 : index
    %c2048 = arith.constant 2048 : index
    %560 = vector.load %arg12[%c0_388, %c2048] : memref<2x3136xbf16, #tpu.memory_space<vmem>>, vector<2x64xbf16>
    tpu.vector_store %arg12[%c0_388, %c2048], %559 {strides = array<i32>} : memref<2x3136xbf16, #tpu.memory_space<vmem>>, vector<2x64xbf16>,
    %561 = vector.extract_strided_slice %494 {offsets = [66, 0], sizes = [2, 64], strides = [1, 1]} : vector<98x64xbf16> to vector<2x64xbf16>
    %c0_389 = arith.constant 0 : index
    %c2112 = arith.constant 2112 : index
    %562 = vector.load %arg12[%c0_389, %c2112] : memref<2x3136xbf16, #tpu.memory_space<vmem>>, vector<2x64xbf16>
    tpu.vector_store %arg12[%c0_389, %c2112], %561 {strides = array<i32>} : memref<2x3136xbf16, #tpu.memory_space<vmem>>, vector<2x64xbf16>,
    %563 = vector.extract_strided_slice %494 {offsets = [68, 0], sizes = [2, 64], strides = [1, 1]} : vector<98x64xbf16> to vector<2x64xbf16>
    %c0_390 = arith.constant 0 : index
    %c2176 = arith.constant 2176 : index
    %564 = vector.load %arg12[%c0_390, %c2176] : memref<2x3136xbf16, #tpu.memory_space<vmem>>, vector<2x64xbf16>
    tpu.vector_store %arg12[%c0_390, %c2176], %563 {strides = array<i32>} : memref<2x3136xbf16, #tpu.memory_space<vmem>>, vector<2x64xbf16>,
    %565 = vector.extract_strided_slice %494 {offsets = [70, 0], sizes = [2, 64], strides = [1, 1]} : vector<98x64xbf16> to vector<2x64xbf16>
    %c0_391 = arith.constant 0 : index
    %c2240 = arith.constant 2240 : index
    %566 = vector.load %arg12[%c0_391, %c2240] : memref<2x3136xbf16, #tpu.memory_space<vmem>>, vector<2x64xbf16>
    tpu.vector_store %arg12[%c0_391, %c2240], %565 {strides = array<i32>} : memref<2x3136xbf16, #tpu.memory_space<vmem>>, vector<2x64xbf16>,
    %567 = vector.extract_strided_slice %494 {offsets = [72, 0], sizes = [2, 64], strides = [1, 1]} : vector<98x64xbf16> to vector<2x64xbf16>
    %c0_392 = arith.constant 0 : index
    %c2304 = arith.constant 2304 : index
    %568 = vector.load %arg12[%c0_392, %c2304] : memref<2x3136xbf16, #tpu.memory_space<vmem>>, vector<2x64xbf16>
    tpu.vector_store %arg12[%c0_392, %c2304], %567 {strides = array<i32>} : memref<2x3136xbf16, #tpu.memory_space<vmem>>, vector<2x64xbf16>,
    %569 = vector.extract_strided_slice %494 {offsets = [74, 0], sizes = [2, 64], strides = [1, 1]} : vector<98x64xbf16> to vector<2x64xbf16>
    %c0_393 = arith.constant 0 : index
    %c2368 = arith.constant 2368 : index
    %570 = vector.load %arg12[%c0_393, %c2368] : memref<2x3136xbf16, #tpu.memory_space<vmem>>, vector<2x64xbf16>
    tpu.vector_store %arg12[%c0_393, %c2368], %569 {strides = array<i32>} : memref<2x3136xbf16, #tpu.memory_space<vmem>>, vector<2x64xbf16>,
    %571 = vector.extract_strided_slice %494 {offsets = [76, 0], sizes = [2, 64], strides = [1, 1]} : vector<98x64xbf16> to vector<2x64xbf16>
    %c0_394 = arith.constant 0 : index
    %c2432 = arith.constant 2432 : index
    %572 = vector.load %arg12[%c0_394, %c2432] : memref<2x3136xbf16, #tpu.memory_space<vmem>>, vector<2x64xbf16>
    tpu.vector_store %arg12[%c0_394, %c2432], %571 {strides = array<i32>} : memref<2x3136xbf16, #tpu.memory_space<vmem>>, vector<2x64xbf16>,
    %573 = vector.extract_strided_slice %494 {offsets = [78, 0], sizes = [2, 64], strides = [1, 1]} : vector<98x64xbf16> to vector<2x64xbf16>
    %c0_395 = arith.constant 0 : index
    %c2496 = arith.constant 2496 : index
    %574 = vector.load %arg12[%c0_395, %c2496] : memref<2x3136xbf16, #tpu.memory_space<vmem>>, vector<2x64xbf16>
    tpu.vector_store %arg12[%c0_395, %c2496], %573 {strides = array<i32>} : memref<2x3136xbf16, #tpu.memory_space<vmem>>, vector<2x64xbf16>,
    %575 = vector.extract_strided_slice %494 {offsets = [80, 0], sizes = [2, 64], strides = [1, 1]} : vector<98x64xbf16> to vector<2x64xbf16>
    %c0_396 = arith.constant 0 : index
    %c2560 = arith.constant 2560 : index
    %576 = vector.load %arg12[%c0_396, %c2560] : memref<2x3136xbf16, #tpu.memory_space<vmem>>, vector<2x64xbf16>
    tpu.vector_store %arg12[%c0_396, %c2560], %575 {strides = array<i32>} : memref<2x3136xbf16, #tpu.memory_space<vmem>>, vector<2x64xbf16>,
    %577 = vector.extract_strided_slice %494 {offsets = [82, 0], sizes = [2, 64], strides = [1, 1]} : vector<98x64xbf16> to vector<2x64xbf16>
    %c0_397 = arith.constant 0 : index
    %c2624 = arith.constant 2624 : index
    %578 = vector.load %arg12[%c0_397, %c2624] : memref<2x3136xbf16, #tpu.memory_space<vmem>>, vector<2x64xbf16>
    tpu.vector_store %arg12[%c0_397, %c2624], %577 {strides = array<i32>} : memref<2x3136xbf16, #tpu.memory_space<vmem>>, vector<2x64xbf16>,
    %579 = vector.extract_strided_slice %494 {offsets = [84, 0], sizes = [2, 64], strides = [1, 1]} : vector<98x64xbf16> to vector<2x64xbf16>
    %c0_398 = arith.constant 0 : index
    %c2688 = arith.constant 2688 : index
    %580 = vector.load %arg12[%c0_398, %c2688] : memref<2x3136xbf16, #tpu.memory_space<vmem>>, vector<2x64xbf16>
    tpu.vector_store %arg12[%c0_398, %c2688], %579 {strides = array<i32>} : memref<2x3136xbf16, #tpu.memory_space<vmem>>, vector<2x64xbf16>,
    %581 = vector.extract_strided_slice %494 {offsets = [86, 0], sizes = [2, 64], strides = [1, 1]} : vector<98x64xbf16> to vector<2x64xbf16>
    %c0_399 = arith.constant 0 : index
    %c2752 = arith.constant 2752 : index
    %582 = vector.load %arg12[%c0_399, %c2752] : memref<2x3136xbf16, #tpu.memory_space<vmem>>, vector<2x64xbf16>
    tpu.vector_store %arg12[%c0_399, %c2752], %581 {strides = array<i32>} : memref<2x3136xbf16, #tpu.memory_space<vmem>>, vector<2x64xbf16>,
    %583 = vector.extract_strided_slice %494 {offsets = [88, 0], sizes = [2, 64], strides = [1, 1]} : vector<98x64xbf16> to vector<2x64xbf16>
    %c0_400 = arith.constant 0 : index
    %c2816 = arith.constant 2816 : index
    %584 = vector.load %arg12[%c0_400, %c2816] : memref<2x3136xbf16, #tpu.memory_space<vmem>>, vector<2x64xbf16>
    tpu.vector_store %arg12[%c0_400, %c2816], %583 {strides = array<i32>} : memref<2x3136xbf16, #tpu.memory_space<vmem>>, vector<2x64xbf16>,
    %585 = vector.extract_strided_slice %494 {offsets = [90, 0], sizes = [2, 64], strides = [1, 1]} : vector<98x64xbf16> to vector<2x64xbf16>
    %c0_401 = arith.constant 0 : index
    %c2880 = arith.constant 2880 : index
    %586 = vector.load %arg12[%c0_401, %c2880] : memref<2x3136xbf16, #tpu.memory_space<vmem>>, vector<2x64xbf16>
    tpu.vector_store %arg12[%c0_401, %c2880], %585 {strides = array<i32>} : memref<2x3136xbf16, #tpu.memory_space<vmem>>, vector<2x64xbf16>,
    %587 = vector.extract_strided_slice %494 {offsets = [92, 0], sizes = [2, 64], strides = [1, 1]} : vector<98x64xbf16> to vector<2x64xbf16>
    %c0_402 = arith.constant 0 : index
    %c2944 = arith.constant 2944 : index
    %588 = vector.load %arg12[%c0_402, %c2944] : memref<2x3136xbf16, #tpu.memory_space<vmem>>, vector<2x64xbf16>
    tpu.vector_store %arg12[%c0_402, %c2944], %587 {strides = array<i32>} : memref<2x3136xbf16, #tpu.memory_space<vmem>>, vector<2x64xbf16>,
    %589 = vector.extract_strided_slice %494 {offsets = [94, 0], sizes = [2, 64], strides = [1, 1]} : vector<98x64xbf16> to vector<2x64xbf16>
    %c0_403 = arith.constant 0 : index
    %c3008 = arith.constant 3008 : index
    %590 = vector.load %arg12[%c0_403, %c3008] : memref<2x3136xbf16, #tpu.memory_space<vmem>>, vector<2x64xbf16>
    tpu.vector_store %arg12[%c0_403, %c3008], %589 {strides = array<i32>} : memref<2x3136xbf16, #tpu.memory_space<vmem>>, vector<2x64xbf16>,
    %591 = vector.extract_strided_slice %494 {offsets = [96, 0], sizes = [2, 64], strides = [1, 1]} : vector<98x64xbf16> to vector<2x64xbf16>
    %c0_404 = arith.constant 0 : index
    %c3072 = arith.constant 3072 : index
    %592 = vector.load %arg12[%c0_404, %c3072] : memref<2x3136xbf16, #tpu.memory_space<vmem>>, vector<2x64xbf16>
    tpu.vector_store %arg12[%c0_404, %c3072], %591 {strides = array<i32>} : memref<2x3136xbf16, #tpu.memory_space<vmem>>, vector<2x64xbf16>,
    %c0_405 = arith.constant 0 : index
    %c0_406 = arith.constant 0 : index
    %593 = vector.load %arg12[%c0_405, %c0_406] : memref<2x3136xbf16, #tpu.memory_space<vmem>>, vector<2x3136xbf16>
    %c0_407 = arith.constant 0 : index
    %c0_408 = arith.constant 0 : index
    %594 = vector.load %arg7[%c0_407, %c0_408] : memref<3136x128xbf16, #tpu.memory_space<vmem>>, vector<3136x128xbf16>
    %cst_409 = arith.constant dense<0.000000e+00> : vector<2x128xf32>
    %595 = tpu.matmul %593, %594, %cst_409 {dimension_numbers = #tpu.dot_dimension_numbers<[1], [0], [0], [1], [0, 0, 1, 1], [], []>} : vector<2x3136xbf16>, vector<3136x128xbf16>, vector<2x128xf32> -> vector<2x128xf32>
    %c0_410 = arith.constant 0 : index
    %c0_411 = arith.constant 0 : index
    %596 = vector.load %arg8[%c0_410, %c0_411] : memref<1x128xf32, #tpu.memory_space<vmem>>, vector<1x128xf32>
    %597 = vector.broadcast %596 : vector<1x128xf32> to vector<2x128xf32>
    %598 = arith.addf %595, %597 : vector<2x128xf32>
    %c0_412 = arith.constant 0 : index
    %c0_413 = arith.constant 0 : index
    %599 = vector.load %arg9[%c0_412, %c0_413] : memref<2x128xf32, #tpu.memory_space<vmem>>, vector<2x128xf32>
    tpu.vector_store %arg9[%c0_412, %c0_413], %598 {strides = array<i32>} : memref<2x128xf32, #tpu.memory_space<vmem>>, vector<2x128xf32>,
    return
  }
}

</mosaic_0001>

<llo_original>
// kernel: encoder_forward.1
$region0: #{encoder_forward.1}
  #allocation0 [shape = 'u32[]', space=smem, size = 0x4, offset = 0x4, fixed_abs, tag = 'smem constant byte address 0x4 - core index']
  #allocation1 [shape = 'u32[72,128]{1,0:T(1,128)}', space=vmem, size = 0x9000, scoped, tag = 'internal scratch']
  #allocation2 [shape = 'f32[392,32]{1,0:T(8,128)}', space=vmem, size = 0x31000, scoped, tag = 'scratch operand']
  #allocation3 [shape = 'bf16[2,2,2,112,32]{4,3,2,1,0:T(8,128)(2,1)}', space=vmem, size = 0x38000, scoped, tag = 'scratch operand']
  #allocation4 [shape = 'bf16[2,3136]{1,0:T(2,128)(2,1)}', space=vmem, size = 0x3200, scoped, tag = 'scratch operand']
  %s0 = inlined_call_operand.vmem [shape: bf16[392,9], index: 0, kind: input, shape index: {}]
  %s1 = inlined_call_operand.vmem [shape: bf16[9,32], index: 1, kind: input, shape index: {}]
  %s2 = inlined_call_operand.vmem [shape: f32[1,32], index: 2, kind: input, shape index: {}]
  %s3 = inlined_call_operand.vmem [shape: f32[1,32], index: 3, kind: input, shape index: {}]
  %s4 = inlined_call_operand.vmem [shape: bf16[9,32,64], index: 4, kind: input, shape index: {}]
  %s5 = inlined_call_operand.vmem [shape: f32[1,64], index: 5, kind: input, shape index: {}]
  %s6 = inlined_call_operand.vmem [shape: f32[1,64], index: 6, kind: input, shape index: {}]
  %s7 = inlined_call_operand.vmem [shape: bf16[3136,128], index: 7, kind: input, shape index: {}]
  %s8 = inlined_call_operand.vmem [shape: f32[1,128], index: 8, kind: input, shape index: {}]
  %s9 = inlined_call_operand.hbm [shape: f32[2,128], index: 9, kind: output, shape index: {}]
  %s10 = sld [smem:[#allocation0]]
  $region46: #{encoder_forward.1} parent=0
    _
  %s12 = ssub.s32 1, %s10
  %s13 = scalar_select 0, %s12, %s10
  $region1: #{encoder_forward.1} parent=0
    #allocation5 [shape = 'u8[1024]{0}', space=vmem, size = 0x400, scoped, tag = 'output window, operand 0, single buffered']
    #allocation6 [shape = 's32[1]{0}', space=sflag, size = 0x4, scoped, tag = 'scoped memory for encoder_forward.1']
    %14 = vsyncpa [#allocation6], 0
    // Predicated region
    $region2: #{encoder_forward.1} parent=1 // pred_check
      _
    $region3: #{encoder_forward.1} parent=1 // pred_check_branch
      %16 = sbr.rel (0) target = $region5
    $region4: #{encoder_forward.1} parent=1 // pred_region
      _
    $region5: #{encoder_forward.1} parent=1 // pred_fallthru
      _
    // Predicated region
    $region6: #{encoder_forward.1} parent=1 // pred_check
      _
    $region7: #{encoder_forward.1} parent=1 // pred_check_branch
      %18 = sbr.rel (0) target = $region9
    $region8: #{encoder_forward.1} parent=1 // pred_region
      _
    $region9: #{encoder_forward.1} parent=1 // pred_fallthru
      _
    // Predicated region
    $region10: #{encoder_forward.1} parent=1 // pred_check
      _
    $region11: #{encoder_forward.1} parent=1 // pred_check_branch
      %20 = sbr.rel (0) target = $region13
    $region12: #{encoder_forward.1} parent=1 // pred_region
      _
    $region13: #{encoder_forward.1} parent=1 // pred_fallthru
      _
    // Predicated region
    $region14: #{encoder_forward.1} parent=1 // pred_check
      _
    $region15: #{encoder_forward.1} parent=1 // pred_check_branch
      %22 = sbr.rel (0) target = $region17
    $region16: #{encoder_forward.1} parent=1 // pred_region
      _
    $region17: #{encoder_forward.1} parent=1 // pred_fallthru
      _
    // Predicated region
    $region18: #{encoder_forward.1} parent=1 // pred_check
      _
    $region19: #{encoder_forward.1} parent=1 // pred_check_branch
      %24 = sbr.rel (0) target = $region21
    $region20: #{encoder_forward.1} parent=1 // pred_region
      _
    $region21: #{encoder_forward.1} parent=1 // pred_fallthru
      _
    // Predicated region
    $region22: #{encoder_forward.1} parent=1 // pred_check
      _
    $region23: #{encoder_forward.1} parent=1 // pred_check_branch
      %26 = sbr.rel (0) target = $region25
    $region24: #{encoder_forward.1} parent=1 // pred_region
      _
    $region25: #{encoder_forward.1} parent=1 // pred_fallthru
      _
    // Predicated region
    $region26: #{encoder_forward.1} parent=1 // pred_check
      _
    $region27: #{encoder_forward.1} parent=1 // pred_check_branch
      %28 = sbr.rel (0) target = $region29
    $region28: #{encoder_forward.1} parent=1 // pred_region
      _
    $region29: #{encoder_forward.1} parent=1 // pred_fallthru
      _
    // Predicated region
    $region30: #{encoder_forward.1} parent=1 // pred_check
      _
    $region31: #{encoder_forward.1} parent=1 // pred_check_branch
      %30 = sbr.rel (0) target = $region33
    $region32: #{encoder_forward.1} parent=1 // pred_region
      _
    $region33: #{encoder_forward.1} parent=1 // pred_fallthru
      _
    // Predicated region
    $region34: #{encoder_forward.1} parent=1 // pred_check
      _
    $region35: #{encoder_forward.1} parent=1 // pred_check_branch
      %32 = sbr.rel (0) target = $region37
    $region36: #{encoder_forward.1} parent=1 // pred_region
      _
    $region37: #{encoder_forward.1} parent=1 // pred_fallthru
      _
    %v34 = vld [vmem:[%s0] sm:$0xf]
    %v35 = vld [vmem:[%s0 + $0x4] sm:$0xf]
    %v36 = vld [vmem:[%s0 + $0x8] sm:$0xf]
    %v37 = vld [vmem:[%s0 + $0xc] sm:$0xf]
    %v38 = vld [vmem:[%s0 + $0x10] sm:$0xf]
    %v39 = vld [vmem:[%s0 + $0x14] sm:$0xf]
    %v40 = vld [vmem:[%s0 + $0x18] sm:$0xf]
    %v41 = vld [vmem:[%s0 + $0x1c] sm:$0xf]
    %v42 = vld [vmem:[%s0 + $0x20] sm:$0xf]
    %v43 = vld [vmem:[%s0 + $0x24] sm:$0xf]
    %v44 = vld [vmem:[%s0 + $0x28] sm:$0xf]
    %v45 = vld [vmem:[%s0 + $0x2c] sm:$0xf]
    %v46 = vld [vmem:[%s0 + $0x30] sm:$0x1]
    %v47 = vld [vmem:[%s1] sm:$0xf]
    %v48 = vld [vmem:[%s1 + $0x4] sm:$0x1]
    %v62 = vunpack.c.l.b16 %v34
    %v63 = vunpack.c.l.b16 %v35
    %v64 = vunpack.c.l.b16 %v36
    %v65 = vunpack.c.l.b16 %v37
    %v66 = vunpack.c.l.b16 %v38
    %v67 = vunpack.c.l.b16 %v39
    %v68 = vunpack.c.l.b16 %v40
    %v69 = vunpack.c.l.b16 %v41
    %v70 = vunpack.c.l.b16 %v42
    %v71 = vunpack.c.l.b16 %v43
    %v72 = vunpack.c.l.b16 %v44
    %v73 = vunpack.c.l.b16 %v45
    %v74 = vunpack.c.l.b16 %v46
    %v75 = vpack.c.b16 %v63, %v62
    %v76 = vpack.c.b16 %v65, %v64
    %v77 = vpack.c.b16 %v67, %v66
    %v78 = vpack.c.b16 %v69, %v68
    %v79 = vpack.c.b16 %v71, %v70
    %v80 = vpack.c.b16 %v73, %v72
    %v81 = vpack.c.b16 %v74, %v74
    %v84 = vunpack.c.l.b16 %v47
    %v85 = vunpack.c.l.b16 %v48
    %v86 = vpack.c.b16 %v85, %v84
    %vm87 = vcmask 72704
    %v89 = vsel %vm87, %v75, 0
    %v92 = vsel %vm87, %v76, 0
    %v95 = vsel %vm87, %v77, 0
    %v98 = vsel %vm87, %v78, 0
    %v101 = vsel %vm87, %v79, 0
    %v104 = vsel %vm87, %v80, 0
    %v107 = vsel %vm87, %v81, 0
    %vm109 = vcmask 1043456
    %vm110 = vcmask 1044480
    %v111 = vsel %vm109, 4294967295, 65535
    %v112 = vsel %vm110, %v111, 0
    %v114 = vand.u32 %v86, %v112
    %116 = vmatpush.bf16.msra.mxu0 0
    %117 = vmatpush.bf16.msra.mxu0 0
    %118 = vmatpush.bf16.msra.mxu0 0
    %119 = vmatpush.bf16.msra.mxu0 0
    %120 = vmatpush.bf16.msra.mxu0 0
    %121 = vmatpush.bf16.msra.mxu0 0
    %122 = vmatpush.bf16.msra.mxu0 0
    %123 = vmatpush.bf16.msra.mxu0 %v114
    %124 = vmatmul.bf16.gmra.mxu0 %v89
    %v125 = vpop.f32.mrf.mxu0
    %v126 = vadd.f32 0.0, %v125
    %v127 = vpop.f32.mrf.mxu0
    %v128 = vadd.f32 0.0, %v127
    %129 = vmatmul.bf16.gmra.mxu0 %v92
    %v130 = vpop.f32.mrf.mxu0
    %v131 = vadd.f32 0.0, %v130
    %v132 = vpop.f32.mrf.mxu0
    %v133 = vadd.f32 0.0, %v132
    %134 = vmatmul.bf16.gmra.mxu0 %v95
    %v135 = vpop.f32.mrf.mxu0
    %v136 = vadd.f32 0.0, %v135
    %v137 = vpop.f32.mrf.mxu0
    %v138 = vadd.f32 0.0, %v137
    %139 = vmatmul.bf16.gmra.mxu0 %v98
    %v140 = vpop.f32.mrf.mxu0
    %v141 = vadd.f32 0.0, %v140
    %v142 = vpop.f32.mrf.mxu0
    %v143 = vadd.f32 0.0, %v142
    %144 = vmatmul.bf16.gmra.mxu0 %v101
    %v145 = vpop.f32.mrf.mxu0
    %v146 = vadd.f32 0.0, %v145
    %v147 = vpop.f32.mrf.mxu0
    %v148 = vadd.f32 0.0, %v147
    %149 = vmatmul.bf16.gmra.mxu0 %v104
    %v150 = vpop.f32.mrf.mxu0
    %v151 = vadd.f32 0.0, %v150
    %v152 = vpop.f32.mrf.mxu0
    %v153 = vadd.f32 0.0, %v152
    %154 = vmatmul.bf16.gmra.mxu0 %v107
    %v155 = vpop.f32.mrf.mxu0
    %v156 = vadd.f32 0.0, %v155
    %v157 = vpop.f32.mrf.mxu0
    %158 = vdwg.mxu0
    %vm159 = vcmask 261120
    %160 = vst.msk [vmem:[#allocation2] sm:$0xff] %vm159, %v126
    %161 = vst.msk [vmem:[#allocation2 + $0x8] sm:$0xff] %vm159, %v128
    %162 = vst.msk [vmem:[#allocation2 + $0x10] sm:$0xff] %vm159, %v131
    %163 = vst.msk [vmem:[#allocation2 + $0x18] sm:$0xff] %vm159, %v133
    %164 = vst.msk [vmem:[#allocation2 + $0x20] sm:$0xff] %vm159, %v136
    %165 = vst.msk [vmem:[#allocation2 + $0x28] sm:$0xff] %vm159, %v138
    %166 = vst.msk [vmem:[#allocation2 + $0x30] sm:$0xff] %vm159, %v141
    %167 = vst.msk [vmem:[#allocation2 + $0x38] sm:$0xff] %vm159, %v143
    %168 = vst.msk [vmem:[#allocation2 + $0x40] sm:$0xff] %vm159, %v146
    %169 = vst.msk [vmem:[#allocation2 + $0x48] sm:$0xff] %vm159, %v148
    %170 = vst.msk [vmem:[#allocation2 + $0x50] sm:$0xff] %vm159, %v151
    %171 = vst.msk [vmem:[#allocation2 + $0x58] sm:$0xff] %vm159, %v153
    %vm172 = vcmask 254976
    %173 = vst.msk [vmem:[#allocation2 + $0x60] sm:$0x3] %vm172, %v156
    %v174 = vsel %vm159, %v126, 0.0
    %v175 = vsel %vm159, %v128, 0.0
    %v176 = vadd.f32 %v174, %v175
    %v177 = vsel %vm159, %v131, 0.0
    %v178 = vadd.f32 %v176, %v177
    %v179 = vsel %vm159, %v133, 0.0
    %v180 = vadd.f32 %v178, %v179
    %v181 = vsel %vm159, %v136, 0.0
    %v182 = vadd.f32 %v180, %v181
    %v183 = vsel %vm159, %v138, 0.0
    %v184 = vadd.f32 %v182, %v183
    %v185 = vsel %vm159, %v141, 0.0
    %v186 = vadd.f32 %v184, %v185
    %v187 = vsel %vm159, %v143, 0.0
    %v188 = vadd.f32 %v186, %v187
    %v189 = vsel %vm159, %v146, 0.0
    %v190 = vadd.f32 %v188, %v189
    %v191 = vsel %vm159, %v148, 0.0
    %v192 = vadd.f32 %v190, %v191
    %v193 = vsel %vm159, %v151, 0.0
    %v194 = vadd.f32 %v192, %v193
    %v195 = vsel %vm159, %v153, 0.0
    %v196 = vadd.f32 %v194, %v195
    %v197 = vsel %vm172, %v156, 0.0
    %v198 = vadd.f32 %v196, %v197
    %v199 = vrot.slane %v198, 4
    %v200 = vadd.f32 %v198, %v199
    %v201 = vrot.slane %v200, 2
    %v202 = vadd.f32 %v200, %v201
    %v203 = vrot.slane %v202, 1
    %v204 = vadd.f32 %v202, %v203
    %v205 = vadd.f32 %v204, 0.0
    %v206 = vmul.f32 %v126, %v126
    %v207 = vmul.f32 %v128, %v128
    %v208 = vmul.f32 %v131, %v131
    %v209 = vmul.f32 %v133, %v133
    %v210 = vmul.f32 %v136, %v136
    %v211 = vmul.f32 %v138, %v138
    %v212 = vmul.f32 %v141, %v141
    %v213 = vmul.f32 %v143, %v143
    %v214 = vmul.f32 %v146, %v146
    %v215 = vmul.f32 %v148, %v148
    %v216 = vmul.f32 %v151, %v151
    %v217 = vmul.f32 %v153, %v153
    %v218 = vmul.f32 %v156, %v156
    %v219 = vsel %vm159, %v206, 0.0
    %v220 = vsel %vm159, %v207, 0.0
    %v221 = vadd.f32 %v219, %v220
    %v222 = vsel %vm159, %v208, 0.0
    %v223 = vadd.f32 %v221, %v222
    %v224 = vsel %vm159, %v209, 0.0
    %v225 = vadd.f32 %v223, %v224
    %v226 = vsel %vm159, %v210, 0.0
    %v227 = vadd.f32 %v225, %v226
    %v228 = vsel %vm159, %v211, 0.0
    %v229 = vadd.f32 %v227, %v228
    %v230 = vsel %vm159, %v212, 0.0
    %v231 = vadd.f32 %v229, %v230
    %v232 = vsel %vm159, %v213, 0.0
    %v233 = vadd.f32 %v231, %v232
    %v234 = vsel %vm159, %v214, 0.0
    %v235 = vadd.f32 %v233, %v234
    %v236 = vsel %vm159, %v215, 0.0
    %v237 = vadd.f32 %v235, %v236
    %v238 = vsel %vm159, %v216, 0.0
    %v239 = vadd.f32 %v237, %v238
    %v240 = vsel %vm159, %v217, 0.0
    %v241 = vadd.f32 %v239, %v240
    %v242 = vsel %vm172, %v218, 0.0
    %v243 = vadd.f32 %v241, %v242
    %v244 = vrot.slane %v243, 4
    %v245 = vadd.f32 %v243, %v244
    %v246 = vrot.slane %v245, 2
    %v247 = vadd.f32 %v245, %v246
    %v248 = vrot.slane %v247, 1
    %v249 = vadd.f32 %v247, %v248
    %v250 = vadd.f32 %v249, 0.0
    %v251 = vld [vmem:[%s0 + $0x30] sm:$0xe]
    %v252 = vld [vmem:[%s0 + $0x34] sm:$0xf]
    %v253 = vld [vmem:[%s0 + $0x38] sm:$0xf]
    %v254 = vld [vmem:[%s0 + $0x3c] sm:$0xf]
    %v255 = vld [vmem:[%s0 + $0x40] sm:$0xf]
    %v256 = vld [vmem:[%s0 + $0x44] sm:$0xf]
    %v257 = vld [vmem:[%s0 + $0x48] sm:$0xf]
    %v258 = vld [vmem:[%s0 + $0x4c] sm:$0xf]
    %v259 = vld [vmem:[%s0 + $0x50] sm:$0xf]
    %v260 = vld [vmem:[%s0 + $0x54] sm:$0xf]
    %v261 = vld [vmem:[%s0 + $0x58] sm:$0xf]
    %v262 = vld [vmem:[%s0 + $0x5c] sm:$0xf]
    %v263 = vld [vmem:[%s0 + $0x60] sm:$0x3]
    %v264 = vld [vmem:[%s1] sm:$0xf]
    %v265 = vld [vmem:[%s1 + $0x4] sm:$0x1]
    %v279 = vunpack.c.l.b16 %v251
    %v280 = vunpack.c.l.b16 %v252
    %v281 = vunpack.c.l.b16 %v253
    %v282 = vunpack.c.l.b16 %v254
    %v283 = vunpack.c.l.b16 %v255
    %v284 = vunpack.c.l.b16 %v256
    %v285 = vunpack.c.l.b16 %v257
    %v286 = vunpack.c.l.b16 %v258
    %v287 = vunpack.c.l.b16 %v259
    %v288 = vunpack.c.l.b16 %v260
    %v289 = vunpack.c.l.b16 %v261
    %v290 = vunpack.c.l.b16 %v262
    %v291 = vunpack.c.l.b16 %v263
    %v292 = vpack.c.b16 %v280, %v279
    %v293 = vpack.c.b16 %v282, %v281
    %v294 = vpack.c.b16 %v284, %v283
    %v295 = vpack.c.b16 %v286, %v285
    %v296 = vpack.c.b16 %v288, %v287
    %v297 = vpack.c.b16 %v290, %v289
    %v298 = vpack.c.b16 %v291, %v291
    %vm299 = vcmask 1046528
    %v300 = vrot.slane %v292, 1
    %v301 = vrot.slane %v293, 1
    %v302 = vsel %vm299, %v300, %v301
    %v303 = vrot.slane %v294, 1
    %v304 = vsel %vm299, %v301, %v303
    %v305 = vrot.slane %v295, 1
    %v306 = vsel %vm299, %v303, %v305
    %v307 = vrot.slane %v296, 1
    %v308 = vsel %vm299, %v305, %v307
    %v309 = vrot.slane %v297, 1
    %v310 = vsel %vm299, %v307, %v309
    %v311 = vrot.slane %v298, 1
    %v312 = vsel %vm299, %v309, %v311
    %v315 = vunpack.c.l.b16 %v264
    %v316 = vunpack.c.l.b16 %v265
    %v317 = vpack.c.b16 %v316, %v315
    %v319 = vsel %vm87, %v302, 0
    %v322 = vsel %vm87, %v304, 0
    %v325 = vsel %vm87, %v306, 0
    %v328 = vsel %vm87, %v308, 0
    %v331 = vsel %vm87, %v310, 0
    %v334 = vsel %vm87, %v312, 0
    %v337 = vsel %vm87, %v311, 0
    %v340 = vand.u32 %v317, %v112
    %342 = vmatpush.bf16.msra.mxu0 0
    %343 = vmatpush.bf16.msra.mxu0 0
    %344 = vmatpush.bf16.msra.mxu0 0
    %345 = vmatpush.bf16.msra.mxu0 0
    %346 = vmatpush.bf16.msra.mxu0 0
    %347 = vmatpush.bf16.msra.mxu0 0
    %348 = vmatpush.bf16.msra.mxu0 0
    %349 = vmatpush.bf16.msra.mxu0 %v340
    %350 = vmatmul.bf16.gmra.mxu0 %v319
    %v351 = vpop.f32.mrf.mxu0
    %v352 = vadd.f32 0.0, %v351
    %v353 = vpop.f32.mrf.mxu0
    %v354 = vadd.f32 0.0, %v353
    %355 = vmatmul.bf16.gmra.mxu0 %v322
    %v356 = vpop.f32.mrf.mxu0
    %v357 = vadd.f32 0.0, %v356
    %v358 = vpop.f32.mrf.mxu0
    %v359 = vadd.f32 0.0, %v358
    %360 = vmatmul.bf16.gmra.mxu0 %v325
    %v361 = vpop.f32.mrf.mxu0
    %v362 = vadd.f32 0.0, %v361
    %v363 = vpop.f32.mrf.mxu0
    %v364 = vadd.f32 0.0, %v363
    %365 = vmatmul.bf16.gmra.mxu0 %v328
    %v366 = vpop.f32.mrf.mxu0
    %v367 = vadd.f32 0.0, %v366
    %v368 = vpop.f32.mrf.mxu0
    %v369 = vadd.f32 0.0, %v368
    %370 = vmatmul.bf16.gmra.mxu0 %v331
    %v371 = vpop.f32.mrf.mxu0
    %v372 = vadd.f32 0.0, %v371
    %v373 = vpop.f32.mrf.mxu0
    %v374 = vadd.f32 0.0, %v373
    %375 = vmatmul.bf16.gmra.mxu0 %v334
    %v376 = vpop.f32.mrf.mxu0
    %v377 = vadd.f32 0.0, %v376
    %v378 = vpop.f32.mrf.mxu0
    %v379 = vadd.f32 0.0, %v378
    %380 = vmatmul.bf16.gmra.mxu0 %v337
    %v381 = vpop.f32.mrf.mxu0
    %v382 = vadd.f32 0.0, %v381
    %v383 = vpop.f32.mrf.mxu0
    %384 = vdwg.mxu0
    %385 = vst.msk [vmem:[#allocation2 + $0x62] sm:$0xff] %vm159, %v352
    %386 = vst.msk [vmem:[#allocation2 + $0x6a] sm:$0xff] %vm159, %v354
    %387 = vst.msk [vmem:[#allocation2 + $0x72] sm:$0xff] %vm159, %v357
    %388 = vst.msk [vmem:[#allocation2 + $0x7a] sm:$0xff] %vm159, %v359
    %389 = vst.msk [vmem:[#allocation2 + $0x82] sm:$0xff] %vm159, %v362
    %390 = vst.msk [vmem:[#allocation2 + $0x8a] sm:$0xff] %vm159, %v364
    %391 = vst.msk [vmem:[#allocation2 + $0x92] sm:$0xff] %vm159, %v367
    %392 = vst.msk [vmem:[#allocation2 + $0x9a] sm:$0xff] %vm159, %v369
    %393 = vst.msk [vmem:[#allocation2 + $0xa2] sm:$0xff] %vm159, %v372
    %394 = vst.msk [vmem:[#allocation2 + $0xaa] sm:$0xff] %vm159, %v374
    %395 = vst.msk [vmem:[#allocation2 + $0xb2] sm:$0xff] %vm159, %v377
    %396 = vst.msk [vmem:[#allocation2 + $0xba] sm:$0xff] %vm159, %v379
    %397 = vst.msk [vmem:[#allocation2 + $0xc2] sm:$0x3] %vm172, %v382
    %v398 = vsel %vm159, %v352, 0.0
    %v399 = vsel %vm159, %v354, 0.0
    %v400 = vadd.f32 %v398, %v399
    %v401 = vsel %vm159, %v357, 0.0
    %v402 = vadd.f32 %v400, %v401
    %v403 = vsel %vm159, %v359, 0.0
    %v404 = vadd.f32 %v402, %v403
    %v405 = vsel %vm159, %v362, 0.0
    %v406 = vadd.f32 %v404, %v405
    %v407 = vsel %vm159, %v364, 0.0
    %v408 = vadd.f32 %v406, %v407
    %v409 = vsel %vm159, %v367, 0.0
    %v410 = vadd.f32 %v408, %v409
    %v411 = vsel %vm159, %v369, 0.0
    %v412 = vadd.f32 %v410, %v411
    %v413 = vsel %vm159, %v372, 0.0
    %v414 = vadd.f32 %v412, %v413
    %v415 = vsel %vm159, %v374, 0.0
    %v416 = vadd.f32 %v414, %v415
    %v417 = vsel %vm159, %v377, 0.0
    %v418 = vadd.f32 %v416, %v417
    %v419 = vsel %vm159, %v379, 0.0
    %v420 = vadd.f32 %v418, %v419
    %v421 = vsel %vm172, %v382, 0.0
    %v422 = vadd.f32 %v420, %v421
    %v423 = vrot.slane %v422, 4
    %v424 = vadd.f32 %v422, %v423
    %v425 = vrot.slane %v424, 2
    %v426 = vadd.f32 %v424, %v425
    %v427 = vrot.slane %v426, 1
    %v428 = vadd.f32 %v426, %v427
    %v429 = vadd.f32 %v205, %v428
    %v430 = vmul.f32 %v352, %v352
    %v431 = vmul.f32 %v354, %v354
    %v432 = vmul.f32 %v357, %v357
    %v433 = vmul.f32 %v359, %v359
    %v434 = vmul.f32 %v362, %v362
    %v435 = vmul.f32 %v364, %v364
    %v436 = vmul.f32 %v367, %v367
    %v437 = vmul.f32 %v369, %v369
    %v438 = vmul.f32 %v372, %v372
    %v439 = vmul.f32 %v374, %v374
    %v440 = vmul.f32 %v377, %v377
    %v441 = vmul.f32 %v379, %v379
    %v442 = vmul.f32 %v382, %v382
    %v443 = vsel %vm159, %v430, 0.0
    %v444 = vsel %vm159, %v431, 0.0
    %v445 = vadd.f32 %v443, %v444
    %v446 = vsel %vm159, %v432, 0.0
    %v447 = vadd.f32 %v445, %v446
    %v448 = vsel %vm159, %v433, 0.0
    %v449 = vadd.f32 %v447, %v448
    %v450 = vsel %vm159, %v434, 0.0
    %v451 = vadd.f32 %v449, %v450
    %v452 = vsel %vm159, %v435, 0.0
    %v453 = vadd.f32 %v451, %v452
    %v454 = vsel %vm159, %v436, 0.0
    %v455 = vadd.f32 %v453, %v454
    %v456 = vsel %vm159, %v437, 0.0
    %v457 = vadd.f32 %v455, %v456
    %v458 = vsel %vm159, %v438, 0.0
    %v459 = vadd.f32 %v457, %v458
    %v460 = vsel %vm159, %v439, 0.0
    %v461 = vadd.f32 %v459, %v460
    %v462 = vsel %vm159, %v440, 0.0
    %v463 = vadd.f32 %v461, %v462
    %v464 = vsel %vm159, %v441, 0.0
    %v465 = vadd.f32 %v463, %v464
    %v466 = vsel %vm172, %v442, 0.0
    %v467 = vadd.f32 %v465, %v466
    %v468 = vrot.slane %v467, 4
    %v469 = vadd.f32 %v467, %v468
    %v470 = vrot.slane %v469, 2
    %v471 = vadd.f32 %v469, %v470
    %v472 = vrot.slane %v471, 1
    %v473 = vadd.f32 %v471, %v472
    %v474 = vadd.f32 %v250, %v473
    %v475 = vld [vmem:[%s0 + $0x60] sm:$0xc]
    %v476 = vld [vmem:[%s0 + $0x64] sm:$0xf]
    %v477 = vld [vmem:[%s0 + $0x68] sm:$0xf]
    %v478 = vld [vmem:[%s0 + $0x6c] sm:$0xf]
    %v479 = vld [vmem:[%s0 + $0x70] sm:$0xf]
    %v480 = vld [vmem:[%s0 + $0x74] sm:$0xf]
    %v481 = vld [vmem:[%s0 + $0x78] sm:$0xf]
    %v482 = vld [vmem:[%s0 + $0x7c] sm:$0xf]
    %v483 = vld [vmem:[%s0 + $0x80] sm:$0xf]
    %v484 = vld [vmem:[%s0 + $0x84] sm:$0xf]
    %v485 = vld [vmem:[%s0 + $0x88] sm:$0xf]
    %v486 = vld [vmem:[%s0 + $0x8c] sm:$0xf]
    %v487 = vld [vmem:[%s0 + $0x90] sm:$0x7]
    %v488 = vld [vmem:[%s1] sm:$0xf]
    %v489 = vld [vmem:[%s1 + $0x4] sm:$0x1]
    %v503 = vunpack.c.l.b16 %v475
    %v504 = vunpack.c.l.b16 %v476
    %v505 = vunpack.c.l.b16 %v477
    %v506 = vunpack.c.l.b16 %v478
    %v507 = vunpack.c.l.b16 %v479
    %v508 = vunpack.c.l.b16 %v480
    %v509 = vunpack.c.l.b16 %v481
    %v510 = vunpack.c.l.b16 %v482
    %v511 = vunpack.c.l.b16 %v483
    %v512 = vunpack.c.l.b16 %v484
    %v513 = vunpack.c.l.b16 %v485
    %v514 = vunpack.c.l.b16 %v486
    %v515 = vunpack.c.l.b16 %v487
    %v516 = vpack.c.b16 %v504, %v503
    %v517 = vpack.c.b16 %v506, %v505
    %v518 = vpack.c.b16 %v508, %v507
    %v519 = vpack.c.b16 %v510, %v509
    %v520 = vpack.c.b16 %v512, %v511
    %v521 = vpack.c.b16 %v514, %v513
    %v522 = vpack.c.b16 %v515, %v515
    %vm523 = vcmask 1045504
    %v524 = vrot.slane %v516, 2
    %v525 = vrot.slane %v517, 2
    %v526 = vsel %vm523, %v524, %v525
    %v527 = vrot.slane %v518, 2
    %v528 = vsel %vm523, %v525, %v527
    %v529 = vrot.slane %v519, 2
    %v530 = vsel %vm523, %v527, %v529
    %v531 = vrot.slane %v520, 2
    %v532 = vsel %vm523, %v529, %v531
    %v533 = vrot.slane %v521, 2
    %v534 = vsel %vm523, %v531, %v533
    %v535 = vrot.slane %v522, 2
    %v536 = vsel %vm523, %v533, %v535
    %v539 = vunpack.c.l.b16 %v488
    %v540 = vunpack.c.l.b16 %v489
    %v541 = vpack.c.b16 %v540, %v539
    %v543 = vsel %vm87, %v526, 0
    %v546 = vsel %vm87, %v528, 0
    %v549 = vsel %vm87, %v530, 0
    %v552 = vsel %vm87, %v532, 0
    %v555 = vsel %vm87, %v534, 0
    %v558 = vsel %vm87, %v536, 0
    %v561 = vsel %vm87, %v535, 0
    %v564 = vand.u32 %v541, %v112
    %566 = vmatpush.bf16.msra.mxu0 0
    %567 = vmatpush.bf16.msra.mxu0 0
    %568 = vmatpush.bf16.msra.mxu0 0
    %569 = vmatpush.bf16.msra.mxu0 0
    %570 = vmatpush.bf16.msra.mxu0 0
    %571 = vmatpush.bf16.msra.mxu0 0
    %572 = vmatpush.bf16.msra.mxu0 0
    %573 = vmatpush.bf16.msra.mxu0 %v564
    %574 = vmatmul.bf16.gmra.mxu0 %v543
    %v575 = vpop.f32.mrf.mxu0
    %v576 = vadd.f32 0.0, %v575
    %v577 = vpop.f32.mrf.mxu0
    %v578 = vadd.f32 0.0, %v577
    %579 = vmatmul.bf16.gmra.mxu0 %v546
    %v580 = vpop.f32.mrf.mxu0
    %v581 = vadd.f32 0.0, %v580
    %v582 = vpop.f32.mrf.mxu0
    %v583 = vadd.f32 0.0, %v582
    %584 = vmatmul.bf16.gmra.mxu0 %v549
    %v585 = vpop.f32.mrf.mxu0
    %v586 = vadd.f32 0.0, %v585
    %v587 = vpop.f32.mrf.mxu0
    %v588 = vadd.f32 0.0, %v587
    %589 = vmatmul.bf16.gmra.mxu0 %v552
    %v590 = vpop.f32.mrf.mxu0
    %v591 = vadd.f32 0.0, %v590
    %v592 = vpop.f32.mrf.mxu0
    %v593 = vadd.f32 0.0, %v592
    %594 = vmatmul.bf16.gmra.mxu0 %v555
    %v595 = vpop.f32.mrf.mxu0
    %v596 = vadd.f32 0.0, %v595
    %v597 = vpop.f32.mrf.mxu0
    %v598 = vadd.f32 0.0, %v597
    %599 = vmatmul.bf16.gmra.mxu0 %v558
    %v600 = vpop.f32.mrf.mxu0
    %v601 = vadd.f32 0.0, %v600
    %v602 = vpop.f32.mrf.mxu0
    %v603 = vadd.f32 0.0, %v602
    %604 = vmatmul.bf16.gmra.mxu0 %v561
    %v605 = vpop.f32.mrf.mxu0
    %v606 = vadd.f32 0.0, %v605
    %v607 = vpop.f32.mrf.mxu0
    %608 = vdwg.mxu0
    %609 = vst.msk [vmem:[#allocation2 + $0xc4] sm:$0xff] %vm159, %v576
    %610 = vst.msk [vmem:[#allocation2 + $0xcc] sm:$0xff] %vm159, %v578
    %611 = vst.msk [vmem:[#allocation2 + $0xd4] sm:$0xff] %vm159, %v581
    %612 = vst.msk [vmem:[#allocation2 + $0xdc] sm:$0xff] %vm159, %v583
    %613 = vst.msk [vmem:[#allocation2 + $0xe4] sm:$0xff] %vm159, %v586
    %614 = vst.msk [vmem:[#allocation2 + $0xec] sm:$0xff] %vm159, %v588
    %615 = vst.msk [vmem:[#allocation2 + $0xf4] sm:$0xff] %vm159, %v591
    %616 = vst.msk [vmem:[#allocation2 + $0xfc] sm:$0xff] %vm159, %v593
    %617 = vst.msk [vmem:[#allocation2 + $0x104] sm:$0xff] %vm159, %v596
    %618 = vst.msk [vmem:[#allocation2 + $0x10c] sm:$0xff] %vm159, %v598
    %619 = vst.msk [vmem:[#allocation2 + $0x114] sm:$0xff] %vm159, %v601
    %620 = vst.msk [vmem:[#allocation2 + $0x11c] sm:$0xff] %vm159, %v603
    %621 = vst.msk [vmem:[#allocation2 + $0x124] sm:$0x3] %vm172, %v606
    %v622 = vsel %vm159, %v576, 0.0
    %v623 = vsel %vm159, %v578, 0.0
    %v624 = vadd.f32 %v622, %v623
    %v625 = vsel %vm159, %v581, 0.0
    %v626 = vadd.f32 %v624, %v625
    %v627 = vsel %vm159, %v583, 0.0
    %v628 = vadd.f32 %v626, %v627
    %v629 = vsel %vm159, %v586, 0.0
    %v630 = vadd.f32 %v628, %v629
    %v631 = vsel %vm159, %v588, 0.0
    %v632 = vadd.f32 %v630, %v631
    %v633 = vsel %vm159, %v591, 0.0
    %v634 = vadd.f32 %v632, %v633
    %v635 = vsel %vm159, %v593, 0.0
    %v636 = vadd.f32 %v634, %v635
    %v637 = vsel %vm159, %v596, 0.0
    %v638 = vadd.f32 %v636, %v637
    %v639 = vsel %vm159, %v598, 0.0
    %v640 = vadd.f32 %v638, %v639
    %v641 = vsel %vm159, %v601, 0.0
    %v642 = vadd.f32 %v640, %v641
    %v643 = vsel %vm159, %v603, 0.0
    %v644 = vadd.f32 %v642, %v643
    %v645 = vsel %vm172, %v606, 0.0
    %v646 = vadd.f32 %v644, %v645
    %v647 = vrot.slane %v646, 4
    %v648 = vadd.f32 %v646, %v647
    %v649 = vrot.slane %v648, 2
    %v650 = vadd.f32 %v648, %v649
    %v651 = vrot.slane %v650, 1
    %v652 = vadd.f32 %v650, %v651
    %v653 = vadd.f32 %v429, %v652
    %v654 = vmul.f32 %v576, %v576
    %v655 = vmul.f32 %v578, %v578
    %v656 = vmul.f32 %v581, %v581
    %v657 = vmul.f32 %v583, %v583
    %v658 = vmul.f32 %v586, %v586
    %v659 = vmul.f32 %v588, %v588
    %v660 = vmul.f32 %v591, %v591
    %v661 = vmul.f32 %v593, %v593
    %v662 = vmul.f32 %v596, %v596
    %v663 = vmul.f32 %v598, %v598
    %v664 = vmul.f32 %v601, %v601
    %v665 = vmul.f32 %v603, %v603
    %v666 = vmul.f32 %v606, %v606
    %v667 = vsel %vm159, %v654, 0.0
    %v668 = vsel %vm159, %v655, 0.0
    %v669 = vadd.f32 %v667, %v668
    %v670 = vsel %vm159, %v656, 0.0
    %v671 = vadd.f32 %v669, %v670
    %v672 = vsel %vm159, %v657, 0.0
    %v673 = vadd.f32 %v671, %v672
    %v674 = vsel %vm159, %v658, 0.0
    %v675 = vadd.f32 %v673, %v674
    %v676 = vsel %vm159, %v659, 0.0
    %v677 = vadd.f32 %v675, %v676
    %v678 = vsel %vm159, %v660, 0.0
    %v679 = vadd.f32 %v677, %v678
    %v680 = vsel %vm159, %v661, 0.0
    %v681 = vadd.f32 %v679, %v680
    %v682 = vsel %vm159, %v662, 0.0
    %v683 = vadd.f32 %v681, %v682
    %v684 = vsel %vm159, %v663, 0.0
    %v685 = vadd.f32 %v683, %v684
    %v686 = vsel %vm159, %v664, 0.0
    %v687 = vadd.f32 %v685, %v686
    %v688 = vsel %vm159, %v665, 0.0
    %v689 = vadd.f32 %v687, %v688
    %v690 = vsel %vm172, %v666, 0.0
    %v691 = vadd.f32 %v689, %v690
    %v692 = vrot.slane %v691, 4
    %v693 = vadd.f32 %v691, %v692
    %v694 = vrot.slane %v693, 2
    %v695 = vadd.f32 %v693, %v694
    %v696 = vrot.slane %v695, 1
    %v697 = vadd.f32 %v695, %v696
    %v698 = vadd.f32 %v474, %v697
    %v699 = vld [vmem:[%s0 + $0x90] sm:$0x8]
    %v700 = vld [vmem:[%s0 + $0x94] sm:$0xf]
    %v701 = vld [vmem:[%s0 + $0x98] sm:$0xf]
    %v702 = vld [vmem:[%s0 + $0x9c] sm:$0xf]
    %v703 = vld [vmem:[%s0 + $0xa0] sm:$0xf]
    %v704 = vld [vmem:[%s0 + $0xa4] sm:$0xf]
    %v705 = vld [vmem:[%s0 + $0xa8] sm:$0xf]
    %v706 = vld [vmem:[%s0 + $0xac] sm:$0xf]
    %v707 = vld [vmem:[%s0 + $0xb0] sm:$0xf]
    %v708 = vld [vmem:[%s0 + $0xb4] sm:$0xf]
    %v709 = vld [vmem:[%s0 + $0xb8] sm:$0xf]
    %v710 = vld [vmem:[%s0 + $0xbc] sm:$0xf]
    %v711 = vld [vmem:[%s0 + $0xc0] sm:$0xf]
    %v712 = vld [vmem:[%s1] sm:$0xf]
    %v713 = vld [vmem:[%s1 + $0x4] sm:$0x1]
    %v727 = vunpack.c.l.b16 %v699
    %v728 = vunpack.c.l.b16 %v700
    %v729 = vunpack.c.l.b16 %v701
    %v730 = vunpack.c.l.b16 %v702
    %v731 = vunpack.c.l.b16 %v703
    %v732 = vunpack.c.l.b16 %v704
    %v733 = vunpack.c.l.b16 %v705
    %v734 = vunpack.c.l.b16 %v706
    %v735 = vunpack.c.l.b16 %v707
    %v736 = vunpack.c.l.b16 %v708
    %v737 = vunpack.c.l.b16 %v709
    %v738 = vunpack.c.l.b16 %v710
    %v739 = vunpack.c.l.b16 %v711
    %v740 = vpack.c.b16 %v728, %v727
    %v741 = vpack.c.b16 %v730, %v729
    %v742 = vpack.c.b16 %v732, %v731
    %v743 = vpack.c.b16 %v734, %v733
    %v744 = vpack.c.b16 %v736, %v735
    %v745 = vpack.c.b16 %v738, %v737
    %v746 = vpack.c.b16 %v739, %v739
    %vm747 = vcmask 1044480
    %v748 = vrot.slane %v740, 3
    %v749 = vrot.slane %v741, 3
    %v750 = vsel %vm747, %v748, %v749
    %v751 = vrot.slane %v742, 3
    %v752 = vsel %vm747, %v749, %v751
    %v753 = vrot.slane %v743, 3
    %v754 = vsel %vm747, %v751, %v753
    %v755 = vrot.slane %v744, 3
    %v756 = vsel %vm747, %v753, %v755
    %v757 = vrot.slane %v745, 3
    %v758 = vsel %vm747, %v755, %v757
    %v759 = vrot.slane %v746, 3
    %v760 = vsel %vm747, %v757, %v759
    %v763 = vunpack.c.l.b16 %v712
    %v764 = vunpack.c.l.b16 %v713
    %v765 = vpack.c.b16 %v764, %v763
    %v767 = vsel %vm87, %v750, 0
    %v770 = vsel %vm87, %v752, 0
    %v773 = vsel %vm87, %v754, 0
    %v776 = vsel %vm87, %v756, 0
    %v779 = vsel %vm87, %v758, 0
    %v782 = vsel %vm87, %v760, 0
    %v785 = vsel %vm87, %v759, 0
    %v788 = vand.u32 %v765, %v112
    %790 = vmatpush.bf16.msra.mxu0 0
    %791 = vmatpush.bf16.msra.mxu0 0
    %792 = vmatpush.bf16.msra.mxu0 0
    %793 = vmatpush.bf16.msra.mxu0 0
    %794 = vmatpush.bf16.msra.mxu0 0
    %795 = vmatpush.bf16.msra.mxu0 0
    %796 = vmatpush.bf16.msra.mxu0 0
    %797 = vmatpush.bf16.msra.mxu0 %v788
    %798 = vmatmul.bf16.gmra.mxu0 %v767
    %v799 = vpop.f32.mrf.mxu0
    %v800 = vadd.f32 0.0, %v799
    %v801 = vpop.f32.mrf.mxu0
    %v802 = vadd.f32 0.0, %v801
    %803 = vmatmul.bf16.gmra.mxu0 %v770
    %v804 = vpop.f32.mrf.mxu0
    %v805 = vadd.f32 0.0, %v804
    %v806 = vpop.f32.mrf.mxu0
    %v807 = vadd.f32 0.0, %v806
    %808 = vmatmul.bf16.gmra.mxu0 %v773
    %v809 = vpop.f32.mrf.mxu0
    %v810 = vadd.f32 0.0, %v809
    %v811 = vpop.f32.mrf.mxu0
    %v812 = vadd.f32 0.0, %v811
    %813 = vmatmul.bf16.gmra.mxu0 %v776
    %v814 = vpop.f32.mrf.mxu0
    %v815 = vadd.f32 0.0, %v814
    %v816 = vpop.f32.mrf.mxu0
    %v817 = vadd.f32 0.0, %v816
    %818 = vmatmul.bf16.gmra.mxu0 %v779
    %v819 = vpop.f32.mrf.mxu0
    %v820 = vadd.f32 0.0, %v819
    %v821 = vpop.f32.mrf.mxu0
    %v822 = vadd.f32 0.0, %v821
    %823 = vmatmul.bf16.gmra.mxu0 %v782
    %v824 = vpop.f32.mrf.mxu0
    %v825 = vadd.f32 0.0, %v824
    %v826 = vpop.f32.mrf.mxu0
    %v827 = vadd.f32 0.0, %v826
    %828 = vmatmul.bf16.gmra.mxu0 %v785
    %v829 = vpop.f32.mrf.mxu0
    %v830 = vadd.f32 0.0, %v829
    %v831 = vpop.f32.mrf.mxu0
    %832 = vdwg.mxu0
    %833 = vst.msk [vmem:[#allocation2 + $0x126] sm:$0xff] %vm159, %v800
    %834 = vst.msk [vmem:[#allocation2 + $0x12e] sm:$0xff] %vm159, %v802
    %835 = vst.msk [vmem:[#allocation2 + $0x136] sm:$0xff] %vm159, %v805
    %836 = vst.msk [vmem:[#allocation2 + $0x13e] sm:$0xff] %vm159, %v807
    %837 = vst.msk [vmem:[#allocation2 + $0x146] sm:$0xff] %vm159, %v810
    %838 = vst.msk [vmem:[#allocation2 + $0x14e] sm:$0xff] %vm159, %v812
    %839 = vst.msk [vmem:[#allocation2 + $0x156] sm:$0xff] %vm159, %v815
    %840 = vst.msk [vmem:[#allocation2 + $0x15e] sm:$0xff] %vm159, %v817
    %841 = vst.msk [vmem:[#allocation2 + $0x166] sm:$0xff] %vm159, %v820
    %842 = vst.msk [vmem:[#allocation2 + $0x16e] sm:$0xff] %vm159, %v822
    %843 = vst.msk [vmem:[#allocation2 + $0x176] sm:$0xff] %vm159, %v825
    %844 = vst.msk [vmem:[#allocation2 + $0x17e] sm:$0xff] %vm159, %v827
    %845 = vst.msk [vmem:[#allocation2 + $0x186] sm:$0x3] %vm172, %v830
    %v846 = vsel %vm159, %v800, 0.0
    %v847 = vsel %vm159, %v802, 0.0
    %v848 = vadd.f32 %v846, %v847
    %v849 = vsel %vm159, %v805, 0.0
    %v850 = vadd.f32 %v848, %v849
    %v851 = vsel %vm159, %v807, 0.0
    %v852 = vadd.f32 %v850, %v851
    %v853 = vsel %vm159, %v810, 0.0
    %v854 = vadd.f32 %v852, %v853
    %v855 = vsel %vm159, %v812, 0.0
    %v856 = vadd.f32 %v854, %v855
    %v857 = vsel %vm159, %v815, 0.0
    %v858 = vadd.f32 %v856, %v857
    %v859 = vsel %vm159, %v817, 0.0
    %v860 = vadd.f32 %v858, %v859
    %v861 = vsel %vm159, %v820, 0.0
    %v862 = vadd.f32 %v860, %v861
    %v863 = vsel %vm159, %v822, 0.0
    %v864 = vadd.f32 %v862, %v863
    %v865 = vsel %vm159, %v825, 0.0
    %v866 = vadd.f32 %v864, %v865
    %v867 = vsel %vm159, %v827, 0.0
    %v868 = vadd.f32 %v866, %v867
    %v869 = vsel %vm172, %v830, 0.0
    %v870 = vadd.f32 %v868, %v869
    %v871 = vrot.slane %v870, 4
    %v872 = vadd.f32 %v870, %v871
    %v873 = vrot.slane %v872, 2
    %v874 = vadd.f32 %v872, %v873
    %v875 = vrot.slane %v874, 1
    %v876 = vadd.f32 %v874, %v875
    %v877 = vadd.f32 %v653, %v876
    %v878 = vmul.f32 %v800, %v800
    %v879 = vmul.f32 %v802, %v802
    %v880 = vmul.f32 %v805, %v805
    %v881 = vmul.f32 %v807, %v807
    %v882 = vmul.f32 %v810, %v810
    %v883 = vmul.f32 %v812, %v812
    %v884 = vmul.f32 %v815, %v815
    %v885 = vmul.f32 %v817, %v817
    %v886 = vmul.f32 %v820, %v820
    %v887 = vmul.f32 %v822, %v822
    %v888 = vmul.f32 %v825, %v825
    %v889 = vmul.f32 %v827, %v827
    %v890 = vmul.f32 %v830, %v830
    %v891 = vsel %vm159, %v878, 0.0
    %v892 = vsel %vm159, %v879, 0.0
    %v893 = vadd.f32 %v891, %v892
    %v894 = vsel %vm159, %v880, 0.0
    %v895 = vadd.f32 %v893, %v894
    %v896 = vsel %vm159, %v881, 0.0
    %v897 = vadd.f32 %v895, %v896
    %v898 = vsel %vm159, %v882, 0.0
    %v899 = vadd.f32 %v897, %v898
    %v900 = vsel %vm159, %v883, 0.0
    %v901 = vadd.f32 %v899, %v900
    %v902 = vsel %vm159, %v884, 0.0
    %v903 = vadd.f32 %v901, %v902
    %v904 = vsel %vm159, %v885, 0.0
    %v905 = vadd.f32 %v903, %v904
    %v906 = vsel %vm159, %v886, 0.0
    %v907 = vadd.f32 %v905, %v906
    %v908 = vsel %vm159, %v887, 0.0
    %v909 = vadd.f32 %v907, %v908
    %v910 = vsel %vm159, %v888, 0.0
    %v911 = vadd.f32 %v909, %v910
    %v912 = vsel %vm159, %v889, 0.0
    %v913 = vadd.f32 %v911, %v912
    %v914 = vsel %vm172, %v890, 0.0
    %v915 = vadd.f32 %v913, %v914
    %v916 = vrot.slane %v915, 4
    %v917 = vadd.f32 %v915, %v916
    %v918 = vrot.slane %v917, 2
    %v919 = vadd.f32 %v917, %v918
    %v920 = vrot.slane %v919, 1
    %v921 = vadd.f32 %v919, %v920
    %v922 = vadd.f32 %v698, %v921
    %v923 = vrcp.pop 392.0
    %v924 = vmul.f32 392.0, %v923
    %v925 = vsub.f32 1.0, %v924
    %v926 = vmul.f32 %v923, %v925
    %v927 = vadd.f32 %v923, %v926
    %vm928 = vweird.f32 %v923
    %v929 = vsel %vm928, %v923, %v927
    %v930 = vmul.f32 %v877, %v929
    %v931 = vmul.f32 %v922, %v929
    %v932 = vmul.f32 %v930, %v930
    %v933 = vsub.f32 %v931, %v932
    %v934 = vld [vmem:[%s2] sm:$0x1]
    %v935 = vadd.f32 %v933, 1e-05
    %v936 = vrsqrt.pop %v935
    %v937 = vmul.f32 %v936, %v935
    %v938 = vmul.f32 %v937, %v936
    %v939 = vmul.f32 0.5, %v938
    %v940 = vsub.f32 1.5, %v939
    %v941 = vmul.f32 %v936, %v940
    %vm942 = vweird.f32 %v935
    %vm943 = vweird.f32 %v936
    %vm944 = vmor %vm942, %vm943
    %v945 = vsel %vm944, %v936, %v941
    %v946 = vmul.f32 %v934, %v945
    %v947 = vld [vmem:[%s3] sm:$0x1]
    %v948 = vmul.f32 %v930, %v946
    %v949 = vsub.f32 %v947, %v948
    %vm950 = vcmask 257024
    %951 = vst.msk [vmem:[#allocation3] sm:$0xf] %vm950, 0
    %952 = vst.msk [vmem:[#allocation3 + $0x4] sm:$0xf] %vm950, 0
    %953 = vst.msk [vmem:[#allocation3 + $0x8] sm:$0xf] %vm950, 0
    %954 = vst.msk [vmem:[#allocation3 + $0xc] sm:$0xf] %vm950, 0
    %955 = vst.msk [vmem:[#allocation3 + $0x10] sm:$0xf] %vm950, 0
    %956 = vst.msk [vmem:[#allocation3 + $0x14] sm:$0xf] %vm950, 0
    %957 = vst.msk [vmem:[#allocation3 + $0x18] sm:$0xf] %vm950, 0
    %958 = vst.msk [vmem:[#allocation3 + $0x1c] sm:$0xf] %vm950, 0
    %959 = vst.msk [vmem:[#allocation3 + $0x20] sm:$0xf] %vm950, 0
    %960 = vst.msk [vmem:[#allocation3 + $0x24] sm:$0xf] %vm950, 0
    %961 = vst.msk [vmem:[#allocation3 + $0x28] sm:$0xf] %vm950, 0
    %962 = vst.msk [vmem:[#allocation3 + $0x2c] sm:$0xf] %vm950, 0
    %963 = vst.msk [vmem:[#allocation3 + $0x30] sm:$0xf] %vm950, 0
    %964 = vst.msk [vmem:[#allocation3 + $0x34] sm:$0xf] %vm950, 0
    %965 = vst.msk [vmem:[#allocation3 + $0x38] sm:$0xf] %vm950, 0
    %966 = vst.msk [vmem:[#allocation3 + $0x3c] sm:$0xf] %vm950, 0
    %967 = vst.msk [vmem:[#allocation3 + $0x40] sm:$0xf] %vm950, 0
    %968 = vst.msk [vmem:[#allocation3 + $0x44] sm:$0xf] %vm950, 0
    %969 = vst.msk [vmem:[#allocation3 + $0x48] sm:$0xf] %vm950, 0
    %970 = vst.msk [vmem:[#allocation3 + $0x4c] sm:$0xf] %vm950, 0
    %971 = vst.msk [vmem:[#allocation3 + $0x50] sm:$0xf] %vm950, 0
    %972 = vst.msk [vmem:[#allocation3 + $0x54] sm:$0xf] %vm950, 0
    %973 = vst.msk [vmem:[#allocation3 + $0x58] sm:$0xf] %vm950, 0
    %974 = vst.msk [vmem:[#allocation3 + $0x5c] sm:$0xf] %vm950, 0
    %975 = vst.msk [vmem:[#allocation3 + $0x60] sm:$0xf] %vm950, 0
    %976 = vst.msk [vmem:[#allocation3 + $0x64] sm:$0xf] %vm950, 0
    %977 = vst.msk [vmem:[#allocation3 + $0x68] sm:$0xf] %vm950, 0
    %978 = vst.msk [vmem:[#allocation3 + $0x6c] sm:$0xf] %vm950, 0
    %979 = vst.msk [vmem:[#allocation3 + $0x70] sm:$0xf] %vm950, 0
    %980 = vst.msk [vmem:[#allocation3 + $0x74] sm:$0xf] %vm950, 0
    %981 = vst.msk [vmem:[#allocation3 + $0x78] sm:$0xf] %vm950, 0
    %982 = vst.msk [vmem:[#allocation3 + $0x7c] sm:$0xf] %vm950, 0
    %983 = vst.msk [vmem:[#allocation3 + $0x80] sm:$0xf] %vm950, 0
    %984 = vst.msk [vmem:[#allocation3 + $0x84] sm:$0xf] %vm950, 0
    %985 = vst.msk [vmem:[#allocation3 + $0x88] sm:$0xf] %vm950, 0
    %986 = vst.msk [vmem:[#allocation3 + $0x8c] sm:$0xf] %vm950, 0
    %987 = vst.msk [vmem:[#allocation3 + $0x90] sm:$0xf] %vm950, 0
    %988 = vst.msk [vmem:[#allocation3 + $0x94] sm:$0xf] %vm950, 0
    %989 = vst.msk [vmem:[#allocation3 + $0x98] sm:$0xf] %vm950, 0
    %990 = vst.msk [vmem:[#allocation3 + $0x9c] sm:$0xf] %vm950, 0
    %991 = vst.msk [vmem:[#allocation3 + $0xa0] sm:$0xf] %vm950, 0
    %992 = vst.msk [vmem:[#allocation3 + $0xa4] sm:$0xf] %vm950, 0
    %993 = vst.msk [vmem:[#allocation3 + $0xa8] sm:$0xf] %vm950, 0
    %994 = vst.msk [vmem:[#allocation3 + $0xac] sm:$0xf] %vm950, 0
    %995 = vst.msk [vmem:[#allocation3 + $0xb0] sm:$0xf] %vm950, 0
    %996 = vst.msk [vmem:[#allocation3 + $0xb4] sm:$0xf] %vm950, 0
    %997 = vst.msk [vmem:[#allocation3 + $0xb8] sm:$0xf] %vm950, 0
    %998 = vst.msk [vmem:[#allocation3 + $0xbc] sm:$0xf] %vm950, 0
    %999 = vst.msk [vmem:[#allocation3 + $0xc0] sm:$0xf] %vm950, 0
    %1000 = vst.msk [vmem:[#allocation3 + $0xc4] sm:$0xf] %vm950, 0
    %1001 = vst.msk [vmem:[#allocation3 + $0xc8] sm:$0xf] %vm950, 0
    %1002 = vst.msk [vmem:[#allocation3 + $0xcc] sm:$0xf] %vm950, 0
    %1003 = vst.msk [vmem:[#allocation3 + $0xd0] sm:$0xf] %vm950, 0
    %1004 = vst.msk [vmem:[#allocation3 + $0xd4] sm:$0xf] %vm950, 0
    %1005 = vst.msk [vmem:[#allocation3 + $0xd8] sm:$0xf] %vm950, 0
    %1006 = vst.msk [vmem:[#allocation3 + $0xdc] sm:$0xf] %vm950, 0
    %1007 = vst.msk [vmem:[#allocation3 + $0xe0] sm:$0xf] %vm950, 0
    %1008 = vst.msk [vmem:[#allocation3 + $0xe4] sm:$0xf] %vm950, 0
    %1009 = vst.msk [vmem:[#allocation3 + $0xe8] sm:$0xf] %vm950, 0
    %1010 = vst.msk [vmem:[#allocation3 + $0xec] sm:$0xf] %vm950, 0
    %1011 = vst.msk [vmem:[#allocation3 + $0xf0] sm:$0xf] %vm950, 0
    %1012 = vst.msk [vmem:[#allocation3 + $0xf4] sm:$0xf] %vm950, 0
    %1013 = vst.msk [vmem:[#allocation3 + $0xf8] sm:$0xf] %vm950, 0
    %1014 = vst.msk [vmem:[#allocation3 + $0xfc] sm:$0xf] %vm950, 0
    %1015 = vst.msk [vmem:[#allocation3 + $0x100] sm:$0xf] %vm950, 0
    %1016 = vst.msk [vmem:[#allocation3 + $0x104] sm:$0xf] %vm950, 0
    %1017 = vst.msk [vmem:[#allocation3 + $0x108] sm:$0xf] %vm950, 0
    %1018 = vst.msk [vmem:[#allocation3 + $0x10c] sm:$0xf] %vm950, 0
    %1019 = vst.msk [vmem:[#allocation3 + $0x110] sm:$0xf] %vm950, 0
    %1020 = vst.msk [vmem:[#allocation3 + $0x114] sm:$0xf] %vm950, 0
    %1021 = vst.msk [vmem:[#allocation3 + $0x118] sm:$0xf] %vm950, 0
    %1022 = vst.msk [vmem:[#allocation3 + $0x11c] sm:$0xf] %vm950, 0
    %1023 = vst.msk [vmem:[#allocation3 + $0x120] sm:$0xf] %vm950, 0
    %1024 = vst.msk [vmem:[#allocation3 + $0x124] sm:$0xf] %vm950, 0
    %1025 = vst.msk [vmem:[#allocation3 + $0x128] sm:$0xf] %vm950, 0
    %1026 = vst.msk [vmem:[#allocation3 + $0x12c] sm:$0xf] %vm950, 0
    %1027 = vst.msk [vmem:[#allocation3 + $0x130] sm:$0xf] %vm950, 0
    %1028 = vst.msk [vmem:[#allocation3 + $0x134] sm:$0xf] %vm950, 0
    %1029 = vst.msk [vmem:[#allocation3 + $0x138] sm:$0xf] %vm950, 0
    %1030 = vst.msk [vmem:[#allocation3 + $0x13c] sm:$0xf] %vm950, 0
    %1031 = vst.msk [vmem:[#allocation3 + $0x140] sm:$0xf] %vm950, 0
    %1032 = vst.msk [vmem:[#allocation3 + $0x144] sm:$0xf] %vm950, 0
    %1033 = vst.msk [vmem:[#allocation3 + $0x148] sm:$0xf] %vm950, 0
    %1034 = vst.msk [vmem:[#allocation3 + $0x14c] sm:$0xf] %vm950, 0
    %1035 = vst.msk [vmem:[#allocation3 + $0x150] sm:$0xf] %vm950, 0
    %1036 = vst.msk [vmem:[#allocation3 + $0x154] sm:$0xf] %vm950, 0
    %1037 = vst.msk [vmem:[#allocation3 + $0x158] sm:$0xf] %vm950, 0
    %1038 = vst.msk [vmem:[#allocation3 + $0x15c] sm:$0xf] %vm950, 0
    %1039 = vst.msk [vmem:[#allocation3 + $0x160] sm:$0xf] %vm950, 0
    %1040 = vst.msk [vmem:[#allocation3 + $0x164] sm:$0xf] %vm950, 0
    %1041 = vst.msk [vmem:[#allocation3 + $0x168] sm:$0xf] %vm950, 0
    %1042 = vst.msk [vmem:[#allocation3 + $0x16c] sm:$0xf] %vm950, 0
    %1043 = vst.msk [vmem:[#allocation3 + $0x170] sm:$0xf] %vm950, 0
    %1044 = vst.msk [vmem:[#allocation3 + $0x174] sm:$0xf] %vm950, 0
    %1045 = vst.msk [vmem:[#allocation3 + $0x178] sm:$0xf] %vm950, 0
    %1046 = vst.msk [vmem:[#allocation3 + $0x17c] sm:$0xf] %vm950, 0
    %1047 = vst.msk [vmem:[#allocation3 + $0x180] sm:$0xf] %vm950, 0
    %1048 = vst.msk [vmem:[#allocation3 + $0x184] sm:$0xf] %vm950, 0
    %1049 = vst.msk [vmem:[#allocation3 + $0x188] sm:$0xf] %vm950, 0
    %1050 = vst.msk [vmem:[#allocation3 + $0x18c] sm:$0xf] %vm950, 0
    %1051 = vst.msk [vmem:[#allocation3 + $0x190] sm:$0xf] %vm950, 0
    %1052 = vst.msk [vmem:[#allocation3 + $0x194] sm:$0xf] %vm950, 0
    %1053 = vst.msk [vmem:[#allocation3 + $0x198] sm:$0xf] %vm950, 0
    %1054 = vst.msk [vmem:[#allocation3 + $0x19c] sm:$0xf] %vm950, 0
    %1055 = vst.msk [vmem:[#allocation3 + $0x1a0] sm:$0xf] %vm950, 0
    %1056 = vst.msk [vmem:[#allocation3 + $0x1a4] sm:$0xf] %vm950, 0
    %1057 = vst.msk [vmem:[#allocation3 + $0x1a8] sm:$0xf] %vm950, 0
    %1058 = vst.msk [vmem:[#allocation3 + $0x1ac] sm:$0xf] %vm950, 0
    %1059 = vst.msk [vmem:[#allocation3 + $0x1b0] sm:$0xf] %vm950, 0
    %1060 = vst.msk [vmem:[#allocation3 + $0x1b4] sm:$0xf] %vm950, 0
    %1061 = vst.msk [vmem:[#allocation3 + $0x1b8] sm:$0xf] %vm950, 0
    %1062 = vst.msk [vmem:[#allocation3 + $0x1bc] sm:$0xf] %vm950, 0
    %v1063 = vld [vmem:[#allocation2] sm:$0xff]
    %v1064 = vld [vmem:[#allocation2 + $0x8] sm:$0xf]
    %v1066 = vperm.slane %v946, 0
    %v1068 = vmul.f32 %v1063, %v1066
    %v1069 = vmul.f32 %v1064, %v1066
    %v1071 = vperm.slane %v949, 0
    %v1073 = vadd.f32 %v1068, %v1071
    %v1074 = vadd.f32 %v1069, %v1071
    %v1075 = vmax.f32 %v1073, 0.0
    %v1076 = vmax.f32 %v1074, 0.0
    %v1077 = vpack.c.bf16 %v1075, %v1075
    %v1078 = vpack.c.bf16 %v1076, %v1076
    %1079 = vst.msk [vmem:[#allocation3 + $0x8] sm:$0xf] %vm950, %v1077
    %1080 = vst.msk [vmem:[#allocation3 + $0xc] sm:$0x3] %vm172, %v1078
    %v1081 = vld [vmem:[#allocation2 + $0xe] sm:$0xff]
    %v1082 = vld [vmem:[#allocation2 + $0x16] sm:$0xf]
    %v1083 = vmul.f32 %v1081, %v1066
    %v1084 = vmul.f32 %v1082, %v1066
    %v1085 = vadd.f32 %v1083, %v1071
    %v1086 = vadd.f32 %v1084, %v1071
    %v1087 = vmax.f32 %v1085, 0.0
    %v1088 = vmax.f32 %v1086, 0.0
    %v1089 = vpack.c.bf16 %v1087, %v1087
    %v1090 = vpack.c.bf16 %v1088, %v1088
    %vm1093 = vcmask 1042432
    %vm1094 = vcmask 1046532
    %vm1095 = vmor %vm1093, %vm1094
    %v1096 = vrot.slane %v1089, 5
    %v1097 = vrot.slane %v1096, 4
    %v1098 = vrot.slane %v1090, 5
    %v1099 = vsel %vm1095, %v1097, %v1098
    %v1100 = vrot.slane %v1098, 4
    %vm1104 = vcmask 257027
    %1105 = vst.msk [vmem:[#allocation3 + $0xc] sm:$0x8] %vm1104, %v1096
    %1106 = vst.msk [vmem:[#allocation3 + $0x10] sm:$0xf] %vm950, %v1099
    %vm1107 = vcmask 253952
    %1108 = vst.msk [vmem:[#allocation3 + $0x14] sm:$0x1] %vm1107, %v1100
    %v1109 = vld [vmem:[#allocation2 + $0x1c] sm:$0xff]
    %v1110 = vld [vmem:[#allocation2 + $0x24] sm:$0xf]
    %v1111 = vmul.f32 %v1109, %v1066
    %v1112 = vmul.f32 %v1110, %v1066
    %v1113 = vadd.f32 %v1111, %v1071
    %v1114 = vadd.f32 %v1112, %v1071
    %v1115 = vmax.f32 %v1113, 0.0
    %v1116 = vmax.f32 %v1114, 0.0
    %v1117 = vpack.c.bf16 %v1115, %v1115
    %v1118 = vpack.c.bf16 %v1116, %v1116
    %vm1121 = vcmask 1041408
    %vm1122 = vcmask 1045508
    %vm1123 = vmor %vm1121, %vm1122
    %v1124 = vrot.slane %v1117, 6
    %v1125 = vrot.slane %v1124, 4
    %v1126 = vrot.slane %v1118, 6
    %v1127 = vsel %vm1123, %v1125, %v1126
    %vm1130 = vcmask 257026
    %1131 = vst.msk [vmem:[#allocation3 + $0x14] sm:$0xc] %vm1130, %v1124
    %1132 = vst.msk [vmem:[#allocation3 + $0x18] sm:$0xf] %vm950, %v1127
    %v1133 = vld [vmem:[#allocation2 + $0x2a] sm:$0xff]
    %v1134 = vld [vmem:[#allocation2 + $0x32] sm:$0xf]
    %v1135 = vmul.f32 %v1133, %v1066
    %v1136 = vmul.f32 %v1134, %v1066
    %v1137 = vadd.f32 %v1135, %v1071
    %v1138 = vadd.f32 %v1136, %v1071
    %v1139 = vmax.f32 %v1137, 0.0
    %v1140 = vmax.f32 %v1138, 0.0
    %v1141 = vpack.c.bf16 %v1139, %v1139
    %v1142 = vpack.c.bf16 %v1140, %v1140
    %vm1145 = vcmask 1040384
    %vm1146 = vcmask 1044484
    %vm1147 = vmor %vm1145, %vm1146
    %v1148 = vrot.slane %v1141, 7
    %v1149 = vrot.slane %v1148, 4
    %v1150 = vrot.slane %v1142, 7
    %v1151 = vsel %vm1147, %v1149, %v1150
    %vm1154 = vcmask 257025
    %1155 = vst.msk [vmem:[#allocation3 + $0x1c] sm:$0xe] %vm1154, %v1148
    %vm1156 = vcmask 256000
    %1157 = vst.msk [vmem:[#allocation3 + $0x20] sm:$0x7] %vm1156, %v1151
    %v1158 = vld [vmem:[#allocation2 + $0x38] sm:$0xff]
    %v1159 = vld [vmem:[#allocation2 + $0x40] sm:$0xf]
    %v1160 = vmul.f32 %v1158, %v1066
    %v1161 = vmul.f32 %v1159, %v1066
    %v1162 = vadd.f32 %v1160, %v1071
    %v1163 = vadd.f32 %v1161, %v1071
    %v1164 = vmax.f32 %v1162, 0.0
    %v1165 = vmax.f32 %v1163, 0.0
    %v1166 = vpack.c.bf16 %v1164, %v1164
    %v1167 = vpack.c.bf16 %v1165, %v1165
    %1168 = vst.msk [vmem:[#allocation3 + $0x24] sm:$0xf] %vm950, %v1166
    %1169 = vst.msk [vmem:[#allocation3 + $0x28] sm:$0x3] %vm172, %v1167
    %v1170 = vld [vmem:[#allocation2 + $0x46] sm:$0xff]
    %v1171 = vld [vmem:[#allocation2 + $0x4e] sm:$0xf]
    %v1172 = vmul.f32 %v1170, %v1066
    %v1173 = vmul.f32 %v1171, %v1066
    %v1174 = vadd.f32 %v1172, %v1071
    %v1175 = vadd.f32 %v1173, %v1071
    %v1176 = vmax.f32 %v1174, 0.0
    %v1177 = vmax.f32 %v1175, 0.0
    %v1178 = vpack.c.bf16 %v1176, %v1176
    %v1179 = vpack.c.bf16 %v1177, %v1177
    %v1182 = vrot.slane %v1178, 5
    %v1183 = vrot.slane %v1182, 4
    %v1184 = vrot.slane %v1179, 5
    %v1185 = vsel %vm1095, %v1183, %v1184
    %v1186 = vrot.slane %v1184, 4
    %1190 = vst.msk [vmem:[#allocation3 + $0x28] sm:$0x8] %vm1104, %v1182
    %1191 = vst.msk [vmem:[#allocation3 + $0x2c] sm:$0xf] %vm950, %v1185
    %1192 = vst.msk [vmem:[#allocation3 + $0x30] sm:$0x1] %vm1107, %v1186
    %v1193 = vld [vmem:[#allocation2 + $0x54] sm:$0xff]
    %v1194 = vld [vmem:[#allocation2 + $0x5c] sm:$0xf]
    %v1195 = vmul.f32 %v1193, %v1066
    %v1196 = vmul.f32 %v1194, %v1066
    %v1197 = vadd.f32 %v1195, %v1071
    %v1198 = vadd.f32 %v1196, %v1071
    %v1199 = vmax.f32 %v1197, 0.0
    %v1200 = vmax.f32 %v1198, 0.0
    %v1201 = vpack.c.bf16 %v1199, %v1199
    %v1202 = vpack.c.bf16 %v1200, %v1200
    %v1205 = vrot.slane %v1201, 6
    %v1206 = vrot.slane %v1205, 4
    %v1207 = vrot.slane %v1202, 6
    %v1208 = vsel %vm1123, %v1206, %v1207
    %1211 = vst.msk [vmem:[#allocation3 + $0x30] sm:$0xc] %vm1130, %v1205
    %1212 = vst.msk [vmem:[#allocation3 + $0x34] sm:$0xf] %vm950, %v1208
    %v1213 = vld [vmem:[#allocation2] sm:$0xff]
    %v1214 = vld [vmem:[#allocation2 + $0x8] sm:$0xff]
    %v1215 = vld [vmem:[#allocation2 + $0x10] sm:$0xff]
    %v1216 = vld [vmem:[#allocation2 + $0x18] sm:$0xff]
    %v1217 = vld [vmem:[#allocation2 + $0x20] sm:$0xff]
    %v1218 = vld [vmem:[#allocation2 + $0x28] sm:$0xff]
    %v1219 = vld [vmem:[#allocation2 + $0x30] sm:$0xff]
    %v1220 = vld [vmem:[#allocation2 + $0x38] sm:$0xff]
    %v1221 = vld [vmem:[#allocation2 + $0x40] sm:$0xff]
    %v1222 = vld [vmem:[#allocation2 + $0x48] sm:$0xff]
    %v1223 = vld [vmem:[#allocation2 + $0x50] sm:$0xff]
    %v1224 = vld [vmem:[#allocation2 + $0x58] sm:$0xff]
    %v1225 = vld [vmem:[#allocation2 + $0x60] sm:$0x3]
    %v1226 = vmul.f32 %v1213, %v1066
    %v1227 = vmul.f32 %v1214, %v1066
    %v1228 = vmul.f32 %v1215, %v1066
    %v1229 = vmul.f32 %v1216, %v1066
    %v1230 = vmul.f32 %v1217, %v1066
    %v1231 = vmul.f32 %v1218, %v1066
    %v1232 = vmul.f32 %v1219, %v1066
    %v1233 = vmul.f32 %v1220, %v1066
    %v1234 = vmul.f32 %v1221, %v1066
    %v1235 = vmul.f32 %v1222, %v1066
    %v1236 = vmul.f32 %v1223, %v1066
    %v1237 = vmul.f32 %v1224, %v1066
    %v1238 = vmul.f32 %v1225, %v1066
    %v1239 = vadd.f32 %v1226, %v1071
    %v1240 = vadd.f32 %v1227, %v1071
    %v1241 = vadd.f32 %v1228, %v1071
    %v1242 = vadd.f32 %v1229, %v1071
    %v1243 = vadd.f32 %v1230, %v1071
    %v1244 = vadd.f32 %v1231, %v1071
    %v1245 = vadd.f32 %v1232, %v1071
    %v1246 = vadd.f32 %v1233, %v1071
    %v1247 = vadd.f32 %v1234, %v1071
    %v1248 = vadd.f32 %v1235, %v1071
    %v1249 = vadd.f32 %v1236, %v1071
    %v1250 = vadd.f32 %v1237, %v1071
    %v1251 = vadd.f32 %v1238, %v1071
    %v1252 = vmax.f32 %v1239, 0.0
    %v1253 = vmax.f32 %v1240, 0.0
    %v1254 = vmax.f32 %v1241, 0.0
    %v1255 = vmax.f32 %v1242, 0.0
    %v1256 = vmax.f32 %v1243, 0.0
    %v1257 = vmax.f32 %v1244, 0.0
    %v1258 = vmax.f32 %v1245, 0.0
    %v1259 = vmax.f32 %v1246, 0.0
    %v1260 = vmax.f32 %v1247, 0.0
    %v1261 = vmax.f32 %v1248, 0.0
    %v1262 = vmax.f32 %v1249, 0.0
    %v1263 = vmax.f32 %v1250, 0.0
    %v1264 = vmax.f32 %v1251, 0.0
    %v1265 = vpack.c.bf16 %v1252, %v1252
    %v1266 = vpack.c.bf16 %v1253, %v1253
    %v1267 = vpack.c.bf16 %v1254, %v1254
    %v1268 = vpack.c.bf16 %v1255, %v1255
    %v1269 = vpack.c.bf16 %v1256, %v1256
    %v1270 = vpack.c.bf16 %v1257, %v1257
    %v1271 = vpack.c.bf16 %v1258, %v1258
    %v1272 = vpack.c.bf16 %v1259, %v1259
    %v1273 = vpack.c.bf16 %v1260, %v1260
    %v1274 = vpack.c.bf16 %v1261, %v1261
    %v1275 = vpack.c.bf16 %v1262, %v1262
    %v1276 = vpack.c.bf16 %v1263, %v1263
    %v1277 = vpack.c.bf16 %v1264, %v1264
    %v1291 = vrot.slane %v1265, 5
    %v1292 = vrot.slane %v1291, 4
    %v1293 = vrot.slane %v1266, 5
    %v1294 = vsel %vm1095, %v1292, %v1293
    %v1295 = vrot.slane %v1293, 4
    %v1296 = vrot.slane %v1267, 5
    %v1297 = vsel %vm1095, %v1295, %v1296
    %v1298 = vrot.slane %v1296, 4
    %v1299 = vrot.slane %v1268, 5
    %v1300 = vsel %vm1095, %v1298, %v1299
    %v1301 = vrot.slane %v1299, 4
    %v1302 = vrot.slane %v1269, 5
    %v1303 = vsel %vm1095, %v1301, %v1302
    %v1304 = vrot.slane %v1302, 4
    %v1305 = vrot.slane %v1270, 5
    %v1306 = vsel %vm1095, %v1304, %v1305
    %v1307 = vrot.slane %v1305, 4
    %v1308 = vrot.slane %v1271, 5
    %v1309 = vsel %vm1095, %v1307, %v1308
    %v1310 = vrot.slane %v1308, 4
    %v1311 = vrot.slane %v1272, 5
    %v1312 = vsel %vm1095, %v1310, %v1311
    %v1313 = vrot.slane %v1311, 4
    %v1314 = vrot.slane %v1273, 5
    %v1315 = vsel %vm1095, %v1313, %v1314
    %v1316 = vrot.slane %v1314, 4
    %v1317 = vrot.slane %v1274, 5
    %v1318 = vsel %vm1095, %v1316, %v1317
    %v1319 = vrot.slane %v1317, 4
    %v1320 = vrot.slane %v1275, 5
    %v1321 = vsel %vm1095, %v1319, %v1320
    %v1322 = vrot.slane %v1320, 4
    %v1323 = vrot.slane %v1276, 5
    %v1324 = vsel %vm1095, %v1322, %v1323
    %v1325 = vrot.slane %v1323, 4
    %v1326 = vrot.slane %v1277, 5
    %v1327 = vsel %vm1095, %v1325, %v1326
    %s1341 = scalar_lea.vmem [#allocation3], 56
    %1342 = vst.msk [vmem:[%s1341 + $0x4] sm:$0x8] %vm1104, %v1291
    %1343 = vst.msk [vmem:[%s1341 + $0x8] sm:$0xf] %vm950, %v1294
    %1344 = vst.msk [vmem:[%s1341 + $0xc] sm:$0xf] %vm950, %v1297
    %1345 = vst.msk [vmem:[%s1341 + $0x10] sm:$0xf] %vm950, %v1300
    %1346 = vst.msk [vmem:[%s1341 + $0x14] sm:$0xf] %vm950, %v1303
    %1347 = vst.msk [vmem:[%s1341 + $0x18] sm:$0xf] %vm950, %v1306
    %1348 = vst.msk [vmem:[%s1341 + $0x1c] sm:$0xf] %vm950, %v1309
    %1349 = vst.msk [vmem:[%s1341 + $0x20] sm:$0xf] %vm950, %v1312
    %1350 = vst.msk [vmem:[%s1341 + $0x24] sm:$0xf] %vm950, %v1315
    %1351 = vst.msk [vmem:[%s1341 + $0x28] sm:$0xf] %vm950, %v1318
    %1352 = vst.msk [vmem:[%s1341 + $0x2c] sm:$0xf] %vm950, %v1321
    %1353 = vst.msk [vmem:[%s1341 + $0x30] sm:$0xf] %vm950, %v1324
    %1354 = vst.msk [vmem:[%s1341 + $0x34] sm:$0xf] %vm950, %v1327
    %v1355 = vld [vmem:[#allocation2 + $0x62] sm:$0xff]
    %v1356 = vld [vmem:[#allocation2 + $0x6a] sm:$0xff]
    %v1357 = vld [vmem:[#allocation2 + $0x72] sm:$0xff]
    %v1358 = vld [vmem:[#allocation2 + $0x7a] sm:$0xff]
    %v1359 = vld [vmem:[#allocation2 + $0x82] sm:$0xff]
    %v1360 = vld [vmem:[#allocation2 + $0x8a] sm:$0xff]
    %v1361 = vld [vmem:[#allocation2 + $0x92] sm:$0xff]
    %v1362 = vld [vmem:[#allocation2 + $0x9a] sm:$0xff]
    %v1363 = vld [vmem:[#allocation2 + $0xa2] sm:$0xff]
    %v1364 = vld [vmem:[#allocation2 + $0xaa] sm:$0xff]
    %v1365 = vld [vmem:[#allocation2 + $0xb2] sm:$0xff]
    %v1366 = vld [vmem:[#allocation2 + $0xba] sm:$0xff]
    %v1367 = vld [vmem:[#allocation2 + $0xc2] sm:$0x3]
    %v1368 = vmul.f32 %v1355, %v1066
    %v1369 = vmul.f32 %v1356, %v1066
    %v1370 = vmul.f32 %v1357, %v1066
    %v1371 = vmul.f32 %v1358, %v1066
    %v1372 = vmul.f32 %v1359, %v1066
    %v1373 = vmul.f32 %v1360, %v1066
    %v1374 = vmul.f32 %v1361, %v1066
    %v1375 = vmul.f32 %v1362, %v1066
    %v1376 = vmul.f32 %v1363, %v1066
    %v1377 = vmul.f32 %v1364, %v1066
    %v1378 = vmul.f32 %v1365, %v1066
    %v1379 = vmul.f32 %v1366, %v1066
    %v1380 = vmul.f32 %v1367, %v1066
    %v1381 = vadd.f32 %v1368, %v1071
    %v1382 = vadd.f32 %v1369, %v1071
    %v1383 = vadd.f32 %v1370, %v1071
    %v1384 = vadd.f32 %v1371, %v1071
    %v1385 = vadd.f32 %v1372, %v1071
    %v1386 = vadd.f32 %v1373, %v1071
    %v1387 = vadd.f32 %v1374, %v1071
    %v1388 = vadd.f32 %v1375, %v1071
    %v1389 = vadd.f32 %v1376, %v1071
    %v1390 = vadd.f32 %v1377, %v1071
    %v1391 = vadd.f32 %v1378, %v1071
    %v1392 = vadd.f32 %v1379, %v1071
    %v1393 = vadd.f32 %v1380, %v1071
    %v1394 = vmax.f32 %v1381, 0.0
    %v1395 = vmax.f32 %v1382, 0.0
    %v1396 = vmax.f32 %v1383, 0.0
    %v1397 = vmax.f32 %v1384, 0.0
    %v1398 = vmax.f32 %v1385, 0.0
    %v1399 = vmax.f32 %v1386, 0.0
    %v1400 = vmax.f32 %v1387, 0.0
    %v1401 = vmax.f32 %v1388, 0.0
    %v1402 = vmax.f32 %v1389, 0.0
    %v1403 = vmax.f32 %v1390, 0.0
    %v1404 = vmax.f32 %v1391, 0.0
    %v1405 = vmax.f32 %v1392, 0.0
    %v1406 = vmax.f32 %v1393, 0.0
    %v1407 = vpack.c.bf16 %v1394, %v1394
    %v1408 = vpack.c.bf16 %v1395, %v1395
    %v1409 = vpack.c.bf16 %v1396, %v1396
    %v1410 = vpack.c.bf16 %v1397, %v1397
    %v1411 = vpack.c.bf16 %v1398, %v1398
    %v1412 = vpack.c.bf16 %v1399, %v1399
    %v1413 = vpack.c.bf16 %v1400, %v1400
    %v1414 = vpack.c.bf16 %v1401, %v1401
    %v1415 = vpack.c.bf16 %v1402, %v1402
    %v1416 = vpack.c.bf16 %v1403, %v1403
    %v1417 = vpack.c.bf16 %v1404, %v1404
    %v1418 = vpack.c.bf16 %v1405, %v1405
    %v1419 = vpack.c.bf16 %v1406, %v1406
    %v1433 = vrot.slane %v1407, 5
    %v1434 = vrot.slane %v1433, 4
    %v1435 = vrot.slane %v1408, 5
    %v1436 = vsel %vm1095, %v1434, %v1435
    %v1437 = vrot.slane %v1435, 4
    %v1438 = vrot.slane %v1409, 5
    %v1439 = vsel %vm1095, %v1437, %v1438
    %v1440 = vrot.slane %v1438, 4
    %v1441 = vrot.slane %v1410, 5
    %v1442 = vsel %vm1095, %v1440, %v1441
    %v1443 = vrot.slane %v1441, 4
    %v1444 = vrot.slane %v1411, 5
    %v1445 = vsel %vm1095, %v1443, %v1444
    %v1446 = vrot.slane %v1444, 4
    %v1447 = vrot.slane %v1412, 5
    %v1448 = vsel %vm1095, %v1446, %v1447
    %v1449 = vrot.slane %v1447, 4
    %v1450 = vrot.slane %v1413, 5
    %v1451 = vsel %vm1095, %v1449, %v1450
    %v1452 = vrot.slane %v1450, 4
    %v1453 = vrot.slane %v1414, 5
    %v1454 = vsel %vm1095, %v1452, %v1453
    %v1455 = vrot.slane %v1453, 4
    %v1456 = vrot.slane %v1415, 5
    %v1457 = vsel %vm1095, %v1455, %v1456
    %v1458 = vrot.slane %v1456, 4
    %v1459 = vrot.slane %v1416, 5
    %v1460 = vsel %vm1095, %v1458, %v1459
    %v1461 = vrot.slane %v1459, 4
    %v1462 = vrot.slane %v1417, 5
    %v1463 = vsel %vm1095, %v1461, %v1462
    %v1464 = vrot.slane %v1462, 4
    %v1465 = vrot.slane %v1418, 5
    %v1466 = vsel %vm1095, %v1464, %v1465
    %v1467 = vrot.slane %v1465, 4
    %v1468 = vrot.slane %v1419, 5
    %v1469 = vsel %vm1095, %v1467, %v1468
    %s1483 = scalar_lea.vmem [#allocation3], 112
    %1484 = vst.msk [vmem:[%s1483 + $0x4] sm:$0x8] %vm1104, %v1433
    %1485 = vst.msk [vmem:[%s1483 + $0x8] sm:$0xf] %vm950, %v1436
    %1486 = vst.msk [vmem:[%s1483 + $0xc] sm:$0xf] %vm950, %v1439
    %1487 = vst.msk [vmem:[%s1483 + $0x10] sm:$0xf] %vm950, %v1442
    %1488 = vst.msk [vmem:[%s1483 + $0x14] sm:$0xf] %vm950, %v1445
    %1489 = vst.msk [vmem:[%s1483 + $0x18] sm:$0xf] %vm950, %v1448
    %1490 = vst.msk [vmem:[%s1483 + $0x1c] sm:$0xf] %vm950, %v1451
    %1491 = vst.msk [vmem:[%s1483 + $0x20] sm:$0xf] %vm950, %v1454
    %1492 = vst.msk [vmem:[%s1483 + $0x24] sm:$0xf] %vm950, %v1457
    %1493 = vst.msk [vmem:[%s1483 + $0x28] sm:$0xf] %vm950, %v1460
    %1494 = vst.msk [vmem:[%s1483 + $0x2c] sm:$0xf] %vm950, %v1463
    %1495 = vst.msk [vmem:[%s1483 + $0x30] sm:$0xf] %vm950, %v1466
    %1496 = vst.msk [vmem:[%s1483 + $0x34] sm:$0xf] %vm950, %v1469
    %v1497 = vld [vmem:[#allocation2 + $0x64] sm:$0xff]
    %v1498 = vld [vmem:[#allocation2 + $0x6c] sm:$0xf]
    %v1499 = vmul.f32 %v1497, %v1066
    %v1500 = vmul.f32 %v1498, %v1066
    %v1501 = vadd.f32 %v1499, %v1071
    %v1502 = vadd.f32 %v1500, %v1071
    %v1503 = vmax.f32 %v1501, 0.0
    %v1504 = vmax.f32 %v1502, 0.0
    %v1505 = vpack.c.bf16 %v1503, %v1503
    %v1506 = vpack.c.bf16 %v1504, %v1504
    %v1509 = vrot.slane %v1505, 5
    %v1510 = vrot.slane %v1509, 4
    %v1511 = vrot.slane %v1506, 5
    %v1512 = vsel %vm1095, %v1510, %v1511
    %v1513 = vrot.slane %v1511, 4
    %s1517 = scalar_lea.vmem [#allocation3], 168
    %1518 = vst.msk [vmem:[%s1517 + $0x4] sm:$0x8] %vm1104, %v1509
    %1519 = vst.msk [vmem:[%s1517 + $0x8] sm:$0xf] %vm950, %v1512
    %1520 = vst.msk [vmem:[%s1517 + $0xc] sm:$0x1] %vm1107, %v1513
    %v1521 = vld [vmem:[#allocation2 + $0x72] sm:$0xff]
    %v1522 = vld [vmem:[#allocation2 + $0x7a] sm:$0xf]
    %v1523 = vmul.f32 %v1521, %v1066
    %v1524 = vmul.f32 %v1522, %v1066
    %v1525 = vadd.f32 %v1523, %v1071
    %v1526 = vadd.f32 %v1524, %v1071
    %v1527 = vmax.f32 %v1525, 0.0
    %v1528 = vmax.f32 %v1526, 0.0
    %v1529 = vpack.c.bf16 %v1527, %v1527
    %v1530 = vpack.c.bf16 %v1528, %v1528
    %v1533 = vrot.slane %v1529, 6
    %v1534 = vrot.slane %v1533, 4
    %v1535 = vrot.slane %v1530, 6
    %v1536 = vsel %vm1123, %v1534, %v1535
    %1539 = vst.msk [vmem:[%s1517 + $0xc] sm:$0xc] %vm1130, %v1533
    %1540 = vst.msk [vmem:[%s1517 + $0x10] sm:$0xf] %vm950, %v1536
    %v1541 = vld [vmem:[#allocation2 + $0x80] sm:$0xff]
    %v1542 = vld [vmem:[#allocation2 + $0x88] sm:$0xf]
    %v1543 = vmul.f32 %v1541, %v1066
    %v1544 = vmul.f32 %v1542, %v1066
    %v1545 = vadd.f32 %v1543, %v1071
    %v1546 = vadd.f32 %v1544, %v1071
    %v1547 = vmax.f32 %v1545, 0.0
    %v1548 = vmax.f32 %v1546, 0.0
    %v1549 = vpack.c.bf16 %v1547, %v1547
    %v1550 = vpack.c.bf16 %v1548, %v1548
    %v1553 = vrot.slane %v1549, 7
    %v1554 = vrot.slane %v1553, 4
    %v1555 = vrot.slane %v1550, 7
    %v1556 = vsel %vm1147, %v1554, %v1555
    %1559 = vst.msk [vmem:[%s1517 + $0x14] sm:$0xe] %vm1154, %v1553
    %1560 = vst.msk [vmem:[%s1517 + $0x18] sm:$0x7] %vm1156, %v1556
    %v1561 = vld [vmem:[#allocation2 + $0x8e] sm:$0xff]
    %v1562 = vld [vmem:[#allocation2 + $0x96] sm:$0xf]
    %v1563 = vmul.f32 %v1561, %v1066
    %v1564 = vmul.f32 %v1562, %v1066
    %v1565 = vadd.f32 %v1563, %v1071
    %v1566 = vadd.f32 %v1564, %v1071
    %v1567 = vmax.f32 %v1565, 0.0
    %v1568 = vmax.f32 %v1566, 0.0
    %v1569 = vpack.c.bf16 %v1567, %v1567
    %v1570 = vpack.c.bf16 %v1568, %v1568
    %1571 = vst.msk [vmem:[%s1517 + $0x1c] sm:$0xf] %vm950, %v1569
    %1572 = vst.msk [vmem:[%s1517 + $0x20] sm:$0x3] %vm172, %v1570
    %v1573 = vld [vmem:[#allocation2 + $0x9c] sm:$0xff]
    %v1574 = vld [vmem:[#allocation2 + $0xa4] sm:$0xf]
    %v1575 = vmul.f32 %v1573, %v1066
    %v1576 = vmul.f32 %v1574, %v1066
    %v1577 = vadd.f32 %v1575, %v1071
    %v1578 = vadd.f32 %v1576, %v1071
    %v1579 = vmax.f32 %v1577, 0.0
    %v1580 = vmax.f32 %v1578, 0.0
    %v1581 = vpack.c.bf16 %v1579, %v1579
    %v1582 = vpack.c.bf16 %v1580, %v1580
    %v1585 = vrot.slane %v1581, 5
    %v1586 = vrot.slane %v1585, 4
    %v1587 = vrot.slane %v1582, 5
    %v1588 = vsel %vm1095, %v1586, %v1587
    %v1589 = vrot.slane %v1587, 4
    %1593 = vst.msk [vmem:[%s1517 + $0x20] sm:$0x8] %vm1104, %v1585
    %1594 = vst.msk [vmem:[%s1517 + $0x24] sm:$0xf] %vm950, %v1588
    %1595 = vst.msk [vmem:[%s1517 + $0x28] sm:$0x1] %vm1107, %v1589
    %v1596 = vld [vmem:[#allocation2 + $0xaa] sm:$0xff]
    %v1597 = vld [vmem:[#allocation2 + $0xb2] sm:$0xf]
    %v1598 = vmul.f32 %v1596, %v1066
    %v1599 = vmul.f32 %v1597, %v1066
    %v1600 = vadd.f32 %v1598, %v1071
    %v1601 = vadd.f32 %v1599, %v1071
    %v1602 = vmax.f32 %v1600, 0.0
    %v1603 = vmax.f32 %v1601, 0.0
    %v1604 = vpack.c.bf16 %v1602, %v1602
    %v1605 = vpack.c.bf16 %v1603, %v1603
    %v1608 = vrot.slane %v1604, 6
    %v1609 = vrot.slane %v1608, 4
    %v1610 = vrot.slane %v1605, 6
    %v1611 = vsel %vm1123, %v1609, %v1610
    %1614 = vst.msk [vmem:[%s1517 + $0x28] sm:$0xc] %vm1130, %v1608
    %1615 = vst.msk [vmem:[%s1517 + $0x2c] sm:$0xf] %vm950, %v1611
    %v1616 = vld [vmem:[#allocation2 + $0xb8] sm:$0xff]
    %v1617 = vld [vmem:[#allocation2 + $0xc0] sm:$0xf]
    %v1618 = vmul.f32 %v1616, %v1066
    %v1619 = vmul.f32 %v1617, %v1066
    %v1620 = vadd.f32 %v1618, %v1071
    %v1621 = vadd.f32 %v1619, %v1071
    %v1622 = vmax.f32 %v1620, 0.0
    %v1623 = vmax.f32 %v1621, 0.0
    %v1624 = vpack.c.bf16 %v1622, %v1622
    %v1625 = vpack.c.bf16 %v1623, %v1623
    %v1628 = vrot.slane %v1624, 7
    %v1629 = vrot.slane %v1628, 4
    %v1630 = vrot.slane %v1625, 7
    %v1631 = vsel %vm1147, %v1629, %v1630
    %1634 = vst.msk [vmem:[%s1517 + $0x30] sm:$0xe] %vm1154, %v1628
    %1635 = vst.msk [vmem:[%s1517 + $0x34] sm:$0x7] %vm1156, %v1631
    %v1636 = vld [vmem:[#allocation2 + $0xc4] sm:$0xff]
    %v1637 = vld [vmem:[#allocation2 + $0xcc] sm:$0xf]
    %v1638 = vmul.f32 %v1636, %v1066
    %v1639 = vmul.f32 %v1637, %v1066
    %v1640 = vadd.f32 %v1638, %v1071
    %v1641 = vadd.f32 %v1639, %v1071
    %v1642 = vmax.f32 %v1640, 0.0
    %v1643 = vmax.f32 %v1641, 0.0
    %v1644 = vpack.c.bf16 %v1642, %v1642
    %v1645 = vpack.c.bf16 %v1643, %v1643
    %v1648 = vrot.slane %v1644, 7
    %v1649 = vrot.slane %v1648, 4
    %v1650 = vrot.slane %v1645, 7
    %v1651 = vsel %vm1147, %v1649, %v1650
    %s1654 = scalar_lea.vmem [#allocation3], 224
    %1655 = vst.msk [vmem:[%s1654] sm:$0xe] %vm1154, %v1648
    %1656 = vst.msk [vmem:[%s1654 + $0x4] sm:$0x7] %vm1156, %v1651
    %v1657 = vld [vmem:[#allocation2 + $0xd2] sm:$0xff]
    %v1658 = vld [vmem:[#allocation2 + $0xda] sm:$0xf]
    %v1659 = vmul.f32 %v1657, %v1066
    %v1660 = vmul.f32 %v1658, %v1066
    %v1661 = vadd.f32 %v1659, %v1071
    %v1662 = vadd.f32 %v1660, %v1071
    %v1663 = vmax.f32 %v1661, 0.0
    %v1664 = vmax.f32 %v1662, 0.0
    %v1665 = vpack.c.bf16 %v1663, %v1663
    %v1666 = vpack.c.bf16 %v1664, %v1664
    %1667 = vst.msk [vmem:[%s1654 + $0x8] sm:$0xf] %vm950, %v1665
    %1668 = vst.msk [vmem:[%s1654 + $0xc] sm:$0x3] %vm172, %v1666
    %v1669 = vld [vmem:[#allocation2 + $0xe0] sm:$0xff]
    %v1670 = vld [vmem:[#allocation2 + $0xe8] sm:$0xf]
    %v1671 = vmul.f32 %v1669, %v1066
    %v1672 = vmul.f32 %v1670, %v1066
    %v1673 = vadd.f32 %v1671, %v1071
    %v1674 = vadd.f32 %v1672, %v1071
    %v1675 = vmax.f32 %v1673, 0.0
    %v1676 = vmax.f32 %v1674, 0.0
    %v1677 = vpack.c.bf16 %v1675, %v1675
    %v1678 = vpack.c.bf16 %v1676, %v1676
    %v1681 = vrot.slane %v1677, 5
    %v1682 = vrot.slane %v1681, 4
    %v1683 = vrot.slane %v1678, 5
    %v1684 = vsel %vm1095, %v1682, %v1683
    %v1685 = vrot.slane %v1683, 4
    %1689 = vst.msk [vmem:[%s1654 + $0xc] sm:$0x8] %vm1104, %v1681
    %1690 = vst.msk [vmem:[%s1654 + $0x10] sm:$0xf] %vm950, %v1684
    %1691 = vst.msk [vmem:[%s1654 + $0x14] sm:$0x1] %vm1107, %v1685
    %v1692 = vld [vmem:[#allocation2 + $0xee] sm:$0xff]
    %v1693 = vld [vmem:[#allocation2 + $0xf6] sm:$0xf]
    %v1694 = vmul.f32 %v1692, %v1066
    %v1695 = vmul.f32 %v1693, %v1066
    %v1696 = vadd.f32 %v1694, %v1071
    %v1697 = vadd.f32 %v1695, %v1071
    %v1698 = vmax.f32 %v1696, 0.0
    %v1699 = vmax.f32 %v1697, 0.0
    %v1700 = vpack.c.bf16 %v1698, %v1698
    %v1701 = vpack.c.bf16 %v1699, %v1699
    %v1704 = vrot.slane %v1700, 6
    %v1705 = vrot.slane %v1704, 4
    %v1706 = vrot.slane %v1701, 6
    %v1707 = vsel %vm1123, %v1705, %v1706
    %1710 = vst.msk [vmem:[%s1654 + $0x14] sm:$0xc] %vm1130, %v1704
    %1711 = vst.msk [vmem:[%s1654 + $0x18] sm:$0xf] %vm950, %v1707
    %v1712 = vld [vmem:[#allocation2 + $0xfc] sm:$0xff]
    %v1713 = vld [vmem:[#allocation2 + $0x104] sm:$0xf]
    %v1714 = vmul.f32 %v1712, %v1066
    %v1715 = vmul.f32 %v1713, %v1066
    %v1716 = vadd.f32 %v1714, %v1071
    %v1717 = vadd.f32 %v1715, %v1071
    %v1718 = vmax.f32 %v1716, 0.0
    %v1719 = vmax.f32 %v1717, 0.0
    %v1720 = vpack.c.bf16 %v1718, %v1718
    %v1721 = vpack.c.bf16 %v1719, %v1719
    %v1724 = vrot.slane %v1720, 7
    %v1725 = vrot.slane %v1724, 4
    %v1726 = vrot.slane %v1721, 7
    %v1727 = vsel %vm1147, %v1725, %v1726
    %1730 = vst.msk [vmem:[%s1654 + $0x1c] sm:$0xe] %vm1154, %v1724
    %1731 = vst.msk [vmem:[%s1654 + $0x20] sm:$0x7] %vm1156, %v1727
    %v1732 = vld [vmem:[#allocation2 + $0x10a] sm:$0xff]
    %v1733 = vld [vmem:[#allocation2 + $0x112] sm:$0xf]
    %v1734 = vmul.f32 %v1732, %v1066
    %v1735 = vmul.f32 %v1733, %v1066
    %v1736 = vadd.f32 %v1734, %v1071
    %v1737 = vadd.f32 %v1735, %v1071
    %v1738 = vmax.f32 %v1736, 0.0
    %v1739 = vmax.f32 %v1737, 0.0
    %v1740 = vpack.c.bf16 %v1738, %v1738
    %v1741 = vpack.c.bf16 %v1739, %v1739
    %1742 = vst.msk [vmem:[%s1654 + $0x24] sm:$0xf] %vm950, %v1740
    %1743 = vst.msk [vmem:[%s1654 + $0x28] sm:$0x3] %vm172, %v1741
    %v1744 = vld [vmem:[#allocation2 + $0x118] sm:$0xff]
    %v1745 = vld [vmem:[#allocation2 + $0x120] sm:$0xf]
    %v1746 = vmul.f32 %v1744, %v1066
    %v1747 = vmul.f32 %v1745, %v1066
    %v1748 = vadd.f32 %v1746, %v1071
    %v1749 = vadd.f32 %v1747, %v1071
    %v1750 = vmax.f32 %v1748, 0.0
    %v1751 = vmax.f32 %v1749, 0.0
    %v1752 = vpack.c.bf16 %v1750, %v1750
    %v1753 = vpack.c.bf16 %v1751, %v1751
    %v1756 = vrot.slane %v1752, 5
    %v1757 = vrot.slane %v1756, 4
    %v1758 = vrot.slane %v1753, 5
    %v1759 = vsel %vm1095, %v1757, %v1758
    %v1760 = vrot.slane %v1758, 4
    %1764 = vst.msk [vmem:[%s1654 + $0x28] sm:$0x8] %vm1104, %v1756
    %1765 = vst.msk [vmem:[%s1654 + $0x2c] sm:$0xf] %vm950, %v1759
    %1766 = vst.msk [vmem:[%s1654 + $0x30] sm:$0x1] %vm1107, %v1760
    %v1767 = vld [vmem:[#allocation2 + $0xc4] sm:$0xff]
    %v1768 = vld [vmem:[#allocation2 + $0xcc] sm:$0xff]
    %v1769 = vld [vmem:[#allocation2 + $0xd4] sm:$0xff]
    %v1770 = vld [vmem:[#allocation2 + $0xdc] sm:$0xff]
    %v1771 = vld [vmem:[#allocation2 + $0xe4] sm:$0xff]
    %v1772 = vld [vmem:[#allocation2 + $0xec] sm:$0xff]
    %v1773 = vld [vmem:[#allocation2 + $0xf4] sm:$0xff]
    %v1774 = vld [vmem:[#allocation2 + $0xfc] sm:$0xff]
    %v1775 = vld [vmem:[#allocation2 + $0x104] sm:$0xff]
    %v1776 = vld [vmem:[#allocation2 + $0x10c] sm:$0xff]
    %v1777 = vld [vmem:[#allocation2 + $0x114] sm:$0xff]
    %v1778 = vld [vmem:[#allocation2 + $0x11c] sm:$0xff]
    %v1779 = vld [vmem:[#allocation2 + $0x124] sm:$0x3]
    %v1780 = vmul.f32 %v1767, %v1066
    %v1781 = vmul.f32 %v1768, %v1066
    %v1782 = vmul.f32 %v1769, %v1066
    %v1783 = vmul.f32 %v1770, %v1066
    %v1784 = vmul.f32 %v1771, %v1066
    %v1785 = vmul.f32 %v1772, %v1066
    %v1786 = vmul.f32 %v1773, %v1066
    %v1787 = vmul.f32 %v1774, %v1066
    %v1788 = vmul.f32 %v1775, %v1066
    %v1789 = vmul.f32 %v1776, %v1066
    %v1790 = vmul.f32 %v1777, %v1066
    %v1791 = vmul.f32 %v1778, %v1066
    %v1792 = vmul.f32 %v1779, %v1066
    %v1793 = vadd.f32 %v1780, %v1071
    %v1794 = vadd.f32 %v1781, %v1071
    %v1795 = vadd.f32 %v1782, %v1071
    %v1796 = vadd.f32 %v1783, %v1071
    %v1797 = vadd.f32 %v1784, %v1071
    %v1798 = vadd.f32 %v1785, %v1071
    %v1799 = vadd.f32 %v1786, %v1071
    %v1800 = vadd.f32 %v1787, %v1071
    %v1801 = vadd.f32 %v1788, %v1071
    %v1802 = vadd.f32 %v1789, %v1071
    %v1803 = vadd.f32 %v1790, %v1071
    %v1804 = vadd.f32 %v1791, %v1071
    %v1805 = vadd.f32 %v1792, %v1071
    %v1806 = vmax.f32 %v1793, 0.0
    %v1807 = vmax.f32 %v1794, 0.0
    %v1808 = vmax.f32 %v1795, 0.0
    %v1809 = vmax.f32 %v1796, 0.0
    %v1810 = vmax.f32 %v1797, 0.0
    %v1811 = vmax.f32 %v1798, 0.0
    %v1812 = vmax.f32 %v1799, 0.0
    %v1813 = vmax.f32 %v1800, 0.0
    %v1814 = vmax.f32 %v1801, 0.0
    %v1815 = vmax.f32 %v1802, 0.0
    %v1816 = vmax.f32 %v1803, 0.0
    %v1817 = vmax.f32 %v1804, 0.0
    %v1818 = vmax.f32 %v1805, 0.0
    %v1819 = vpack.c.bf16 %v1806, %v1806
    %v1820 = vpack.c.bf16 %v1807, %v1807
    %v1821 = vpack.c.bf16 %v1808, %v1808
    %v1822 = vpack.c.bf16 %v1809, %v1809
    %v1823 = vpack.c.bf16 %v1810, %v1810
    %v1824 = vpack.c.bf16 %v1811, %v1811
    %v1825 = vpack.c.bf16 %v1812, %v1812
    %v1826 = vpack.c.bf16 %v1813, %v1813
    %v1827 = vpack.c.bf16 %v1814, %v1814
    %v1828 = vpack.c.bf16 %v1815, %v1815
    %v1829 = vpack.c.bf16 %v1816, %v1816
    %v1830 = vpack.c.bf16 %v1817, %v1817
    %v1831 = vpack.c.bf16 %v1818, %v1818
    %s1832 = scalar_lea.vmem [#allocation3], 280
    %1833 = vst.msk [vmem:[%s1832] sm:$0xf] %vm950, %v1819
    %1834 = vst.msk [vmem:[%s1832 + $0x4] sm:$0xf] %vm950, %v1820
    %1835 = vst.msk [vmem:[%s1832 + $0x8] sm:$0xf] %vm950, %v1821
    %1836 = vst.msk [vmem:[%s1832 + $0xc] sm:$0xf] %vm950, %v1822
    %1837 = vst.msk [vmem:[%s1832 + $0x10] sm:$0xf] %vm950, %v1823
    %1838 = vst.msk [vmem:[%s1832 + $0x14] sm:$0xf] %vm950, %v1824
    %1839 = vst.msk [vmem:[%s1832 + $0x18] sm:$0xf] %vm950, %v1825
    %1840 = vst.msk [vmem:[%s1832 + $0x1c] sm:$0xf] %vm950, %v1826
    %1841 = vst.msk [vmem:[%s1832 + $0x20] sm:$0xf] %vm950, %v1827
    %1842 = vst.msk [vmem:[%s1832 + $0x24] sm:$0xf] %vm950, %v1828
    %1843 = vst.msk [vmem:[%s1832 + $0x28] sm:$0xf] %vm950, %v1829
    %1844 = vst.msk [vmem:[%s1832 + $0x2c] sm:$0xf] %vm950, %v1830
    %1845 = vst.msk [vmem:[%s1832 + $0x30] sm:$0x1] %vm1107, %v1831
    %v1846 = vld [vmem:[#allocation2 + $0x126] sm:$0xff]
    %v1847 = vld [vmem:[#allocation2 + $0x12e] sm:$0xff]
    %v1848 = vld [vmem:[#allocation2 + $0x136] sm:$0xff]
    %v1849 = vld [vmem:[#allocation2 + $0x13e] sm:$0xff]
    %v1850 = vld [vmem:[#allocation2 + $0x146] sm:$0xff]
    %v1851 = vld [vmem:[#allocation2 + $0x14e] sm:$0xff]
    %v1852 = vld [vmem:[#allocation2 + $0x156] sm:$0xff]
    %v1853 = vld [vmem:[#allocation2 + $0x15e] sm:$0xff]
    %v1854 = vld [vmem:[#allocation2 + $0x166] sm:$0xff]
    %v1855 = vld [vmem:[#allocation2 + $0x16e] sm:$0xff]
    %v1856 = vld [vmem:[#allocation2 + $0x176] sm:$0xff]
    %v1857 = vld [vmem:[#allocation2 + $0x17e] sm:$0xff]
    %v1858 = vld [vmem:[#allocation2 + $0x186] sm:$0x3]
    %v1859 = vmul.f32 %v1846, %v1066
    %v1860 = vmul.f32 %v1847, %v1066
    %v1861 = vmul.f32 %v1848, %v1066
    %v1862 = vmul.f32 %v1849, %v1066
    %v1863 = vmul.f32 %v1850, %v1066
    %v1864 = vmul.f32 %v1851, %v1066
    %v1865 = vmul.f32 %v1852, %v1066
    %v1866 = vmul.f32 %v1853, %v1066
    %v1867 = vmul.f32 %v1854, %v1066
    %v1868 = vmul.f32 %v1855, %v1066
    %v1869 = vmul.f32 %v1856, %v1066
    %v1870 = vmul.f32 %v1857, %v1066
    %v1871 = vmul.f32 %v1858, %v1066
    %v1872 = vadd.f32 %v1859, %v1071
    %v1873 = vadd.f32 %v1860, %v1071
    %v1874 = vadd.f32 %v1861, %v1071
    %v1875 = vadd.f32 %v1862, %v1071
    %v1876 = vadd.f32 %v1863, %v1071
    %v1877 = vadd.f32 %v1864, %v1071
    %v1878 = vadd.f32 %v1865, %v1071
    %v1879 = vadd.f32 %v1866, %v1071
    %v1880 = vadd.f32 %v1867, %v1071
    %v1881 = vadd.f32 %v1868, %v1071
    %v1882 = vadd.f32 %v1869, %v1071
    %v1883 = vadd.f32 %v1870, %v1071
    %v1884 = vadd.f32 %v1871, %v1071
    %v1885 = vmax.f32 %v1872, 0.0
    %v1886 = vmax.f32 %v1873, 0.0
    %v1887 = vmax.f32 %v1874, 0.0
    %v1888 = vmax.f32 %v1875, 0.0
    %v1889 = vmax.f32 %v1876, 0.0
    %v1890 = vmax.f32 %v1877, 0.0
    %v1891 = vmax.f32 %v1878, 0.0
    %v1892 = vmax.f32 %v1879, 0.0
    %v1893 = vmax.f32 %v1880, 0.0
    %v1894 = vmax.f32 %v1881, 0.0
    %v1895 = vmax.f32 %v1882, 0.0
    %v1896 = vmax.f32 %v1883, 0.0
    %v1897 = vmax.f32 %v1884, 0.0
    %v1898 = vpack.c.bf16 %v1885, %v1885
    %v1899 = vpack.c.bf16 %v1886, %v1886
    %v1900 = vpack.c.bf16 %v1887, %v1887
    %v1901 = vpack.c.bf16 %v1888, %v1888
    %v1902 = vpack.c.bf16 %v1889, %v1889
    %v1903 = vpack.c.bf16 %v1890, %v1890
    %v1904 = vpack.c.bf16 %v1891, %v1891
    %v1905 = vpack.c.bf16 %v1892, %v1892
    %v1906 = vpack.c.bf16 %v1893, %v1893
    %v1907 = vpack.c.bf16 %v1894, %v1894
    %v1908 = vpack.c.bf16 %v1895, %v1895
    %v1909 = vpack.c.bf16 %v1896, %v1896
    %v1910 = vpack.c.bf16 %v1897, %v1897
    %s1911 = scalar_lea.vmem [#allocation3], 336
    %1912 = vst.msk [vmem:[%s1911] sm:$0xf] %vm950, %v1898
    %1913 = vst.msk [vmem:[%s1911 + $0x4] sm:$0xf] %vm950, %v1899
    %1914 = vst.msk [vmem:[%s1911 + $0x8] sm:$0xf] %vm950, %v1900
    %1915 = vst.msk [vmem:[%s1911 + $0xc] sm:$0xf] %vm950, %v1901
    %1916 = vst.msk [vmem:[%s1911 + $0x10] sm:$0xf] %vm950, %v1902
    %1917 = vst.msk [vmem:[%s1911 + $0x14] sm:$0xf] %vm950, %v1903
    %1918 = vst.msk [vmem:[%s1911 + $0x18] sm:$0xf] %vm950, %v1904
    %1919 = vst.msk [vmem:[%s1911 + $0x1c] sm:$0xf] %vm950, %v1905
    %1920 = vst.msk [vmem:[%s1911 + $0x20] sm:$0xf] %vm950, %v1906
    %1921 = vst.msk [vmem:[%s1911 + $0x24] sm:$0xf] %vm950, %v1907
    %1922 = vst.msk [vmem:[%s1911 + $0x28] sm:$0xf] %vm950, %v1908
    %1923 = vst.msk [vmem:[%s1911 + $0x2c] sm:$0xf] %vm950, %v1909
    %1924 = vst.msk [vmem:[%s1911 + $0x30] sm:$0x1] %vm1107, %v1910
    %v1925 = vld [vmem:[#allocation2 + $0x128] sm:$0xff]
    %v1926 = vld [vmem:[#allocation2 + $0x130] sm:$0xf]
    %v1927 = vmul.f32 %v1925, %v1066
    %v1928 = vmul.f32 %v1926, %v1066
    %v1929 = vadd.f32 %v1927, %v1071
    %v1930 = vadd.f32 %v1928, %v1071
    %v1931 = vmax.f32 %v1929, 0.0
    %v1932 = vmax.f32 %v1930, 0.0
    %v1933 = vpack.c.bf16 %v1931, %v1931
    %v1934 = vpack.c.bf16 %v1932, %v1932
    %s1935 = scalar_lea.vmem [#allocation3], 392
    %1936 = vst.msk [vmem:[%s1935] sm:$0xf] %vm950, %v1933
    %1937 = vst.msk [vmem:[%s1935 + $0x4] sm:$0x3] %vm172, %v1934
    %v1938 = vld [vmem:[#allocation2 + $0x136] sm:$0xff]
    %v1939 = vld [vmem:[#allocation2 + $0x13e] sm:$0xf]
    %v1940 = vmul.f32 %v1938, %v1066
    %v1941 = vmul.f32 %v1939, %v1066
    %v1942 = vadd.f32 %v1940, %v1071
    %v1943 = vadd.f32 %v1941, %v1071
    %v1944 = vmax.f32 %v1942, 0.0
    %v1945 = vmax.f32 %v1943, 0.0
    %v1946 = vpack.c.bf16 %v1944, %v1944
    %v1947 = vpack.c.bf16 %v1945, %v1945
    %v1950 = vrot.slane %v1946, 5
    %v1951 = vrot.slane %v1950, 4
    %v1952 = vrot.slane %v1947, 5
    %v1953 = vsel %vm1095, %v1951, %v1952
    %v1954 = vrot.slane %v1952, 4
    %1958 = vst.msk [vmem:[%s1935 + $0x4] sm:$0x8] %vm1104, %v1950
    %1959 = vst.msk [vmem:[%s1935 + $0x8] sm:$0xf] %vm950, %v1953
    %1960 = vst.msk [vmem:[%s1935 + $0xc] sm:$0x1] %vm1107, %v1954
    %v1961 = vld [vmem:[#allocation2 + $0x144] sm:$0xff]
    %v1962 = vld [vmem:[#allocation2 + $0x14c] sm:$0xf]
    %v1963 = vmul.f32 %v1961, %v1066
    %v1964 = vmul.f32 %v1962, %v1066
    %v1965 = vadd.f32 %v1963, %v1071
    %v1966 = vadd.f32 %v1964, %v1071
    %v1967 = vmax.f32 %v1965, 0.0
    %v1968 = vmax.f32 %v1966, 0.0
    %v1969 = vpack.c.bf16 %v1967, %v1967
    %v1970 = vpack.c.bf16 %v1968, %v1968
    %v1973 = vrot.slane %v1969, 6
    %v1974 = vrot.slane %v1973, 4
    %v1975 = vrot.slane %v1970, 6
    %v1976 = vsel %vm1123, %v1974, %v1975
    %1979 = vst.msk [vmem:[%s1935 + $0xc] sm:$0xc] %vm1130, %v1973
    %1980 = vst.msk [vmem:[%s1935 + $0x10] sm:$0xf] %vm950, %v1976
    %v1981 = vld [vmem:[#allocation2 + $0x152] sm:$0xff]
    %v1982 = vld [vmem:[#allocation2 + $0x15a] sm:$0xf]
    %v1983 = vmul.f32 %v1981, %v1066
    %v1984 = vmul.f32 %v1982, %v1066
    %v1985 = vadd.f32 %v1983, %v1071
    %v1986 = vadd.f32 %v1984, %v1071
    %v1987 = vmax.f32 %v1985, 0.0
    %v1988 = vmax.f32 %v1986, 0.0
    %v1989 = vpack.c.bf16 %v1987, %v1987
    %v1990 = vpack.c.bf16 %v1988, %v1988
    %v1993 = vrot.slane %v1989, 7
    %v1994 = vrot.slane %v1993, 4
    %v1995 = vrot.slane %v1990, 7
    %v1996 = vsel %vm1147, %v1994, %v1995
    %1999 = vst.msk [vmem:[%s1935 + $0x14] sm:$0xe] %vm1154, %v1993
    %2000 = vst.msk [vmem:[%s1935 + $0x18] sm:$0x7] %vm1156, %v1996
    %v2001 = vld [vmem:[#allocation2 + $0x160] sm:$0xff]
    %v2002 = vld [vmem:[#allocation2 + $0x168] sm:$0xf]
    %v2003 = vmul.f32 %v2001, %v1066
    %v2004 = vmul.f32 %v2002, %v1066
    %v2005 = vadd.f32 %v2003, %v1071
    %v2006 = vadd.f32 %v2004, %v1071
    %v2007 = vmax.f32 %v2005, 0.0
    %v2008 = vmax.f32 %v2006, 0.0
    %v2009 = vpack.c.bf16 %v2007, %v2007
    %v2010 = vpack.c.bf16 %v2008, %v2008
    %2011 = vst.msk [vmem:[%s1935 + $0x1c] sm:$0xf] %vm950, %v2009
    %2012 = vst.msk [vmem:[%s1935 + $0x20] sm:$0x3] %vm172, %v2010
    %v2013 = vld [vmem:[#allocation2 + $0x16e] sm:$0xff]
    %v2014 = vld [vmem:[#allocation2 + $0x176] sm:$0xf]
    %v2015 = vmul.f32 %v2013, %v1066
    %v2016 = vmul.f32 %v2014, %v1066
    %v2017 = vadd.f32 %v2015, %v1071
    %v2018 = vadd.f32 %v2016, %v1071
    %v2019 = vmax.f32 %v2017, 0.0
    %v2020 = vmax.f32 %v2018, 0.0
    %v2021 = vpack.c.bf16 %v2019, %v2019
    %v2022 = vpack.c.bf16 %v2020, %v2020
    %v2025 = vrot.slane %v2021, 5
    %v2026 = vrot.slane %v2025, 4
    %v2027 = vrot.slane %v2022, 5
    %v2028 = vsel %vm1095, %v2026, %v2027
    %v2029 = vrot.slane %v2027, 4
    %2033 = vst.msk [vmem:[%s1935 + $0x20] sm:$0x8] %vm1104, %v2025
    %2034 = vst.msk [vmem:[%s1935 + $0x24] sm:$0xf] %vm950, %v2028
    %2035 = vst.msk [vmem:[%s1935 + $0x28] sm:$0x1] %vm1107, %v2029
    %v2036 = vld [vmem:[#allocation2 + $0x17c] sm:$0xff]
    %v2037 = vld [vmem:[#allocation2 + $0x184] sm:$0xf]
    %v2038 = vmul.f32 %v2036, %v1066
    %v2039 = vmul.f32 %v2037, %v1066
    %v2040 = vadd.f32 %v2038, %v1071
    %v2041 = vadd.f32 %v2039, %v1071
    %v2042 = vmax.f32 %v2040, 0.0
    %v2043 = vmax.f32 %v2041, 0.0
    %v2044 = vpack.c.bf16 %v2042, %v2042
    %v2045 = vpack.c.bf16 %v2043, %v2043
    %v2048 = vrot.slane %v2044, 6
    %v2049 = vrot.slane %v2048, 4
    %v2050 = vrot.slane %v2045, 6
    %v2051 = vsel %vm1123, %v2049, %v2050
    %2054 = vst.msk [vmem:[%s1935 + $0x28] sm:$0xc] %vm1130, %v2048
    %2055 = vst.msk [vmem:[%s1935 + $0x2c] sm:$0xf] %vm950, %v2051
    %v2056 = vld [vmem:[#allocation3] sm:$0xf]
    %v2057 = vld [vmem:[#allocation3 + $0x4] sm:$0xf]
    %v2058 = vld [vmem:[#allocation3 + $0x8] sm:$0xf]
    %v2059 = vld [vmem:[#allocation3 + $0xc] sm:$0xf]
    %v2060 = vld [vmem:[#allocation3 + $0x10] sm:$0xf]
    %v2061 = vld [vmem:[#allocation3 + $0x14] sm:$0xf]
    %v2062 = vld [vmem:[#allocation3 + $0x18] sm:$0xf]
    %v2063 = vld [vmem:[#allocation3 + $0x1c] sm:$0xf]
    %v2064 = vld [vmem:[#allocation3 + $0x20] sm:$0xf]
    %v2065 = vld [vmem:[#allocation3 + $0x24] sm:$0xf]
    %v2066 = vld [vmem:[#allocation3 + $0x28] sm:$0xf]
    %v2067 = vld [vmem:[#allocation3 + $0x2c] sm:$0xf]
    %v2068 = vld [vmem:[#allocation3 + $0x30] sm:$0x1]
    %v2069 = vld [vmem:[%s4] sm:$0xf]
    %v2070 = vld [vmem:[%s4 + $0x4] sm:$0xf]
    %v2071 = vld [vmem:[%s4 + $0x8] sm:$0xf]
    %v2072 = vld [vmem:[%s4 + $0xc] sm:$0xf]
    %v2073 = vld [vmem:[%s1483] sm:$0xf]
    %v2074 = vld [vmem:[%s1483 + $0x4] sm:$0xf]
    %v2075 = vld [vmem:[%s1483 + $0x8] sm:$0xf]
    %v2076 = vld [vmem:[%s1483 + $0xc] sm:$0xf]
    %v2077 = vld [vmem:[%s1483 + $0x10] sm:$0xf]
    %v2078 = vld [vmem:[%s1483 + $0x14] sm:$0xf]
    %v2079 = vld [vmem:[%s1483 + $0x18] sm:$0xf]
    %v2080 = vld [vmem:[%s1483 + $0x1c] sm:$0xf]
    %v2081 = vld [vmem:[%s1483 + $0x20] sm:$0xf]
    %v2082 = vld [vmem:[%s1483 + $0x24] sm:$0xf]
    %v2083 = vld [vmem:[%s1483 + $0x28] sm:$0xf]
    %v2084 = vld [vmem:[%s1483 + $0x2c] sm:$0xf]
    %v2085 = vld [vmem:[%s1483 + $0x30] sm:$0x1]
    %s2086 = scalar_lea.vmem %s4, 16
    %v2087 = vld [vmem:[%s2086] sm:$0xf]
    %v2088 = vld [vmem:[%s2086 + $0x4] sm:$0xf]
    %v2089 = vld [vmem:[%s2086 + $0x8] sm:$0xf]
    %v2090 = vld [vmem:[%s2086 + $0xc] sm:$0xf]
    %v2104 = vunpack.c.l.b16 %v2073
    %v2105 = vunpack.c.l.b16 %v2074
    %v2106 = vunpack.c.l.b16 %v2075
    %v2107 = vunpack.c.l.b16 %v2076
    %v2108 = vunpack.c.l.b16 %v2077
    %v2109 = vunpack.c.l.b16 %v2078
    %v2110 = vunpack.c.l.b16 %v2079
    %v2111 = vunpack.c.l.b16 %v2080
    %v2112 = vunpack.c.l.b16 %v2081
    %v2113 = vunpack.c.l.b16 %v2082
    %v2114 = vunpack.c.l.b16 %v2083
    %v2115 = vunpack.c.l.b16 %v2084
    %v2116 = vunpack.c.l.b16 %v2085
    %v2117 = vpack.c.b16 %v2105, %v2104
    %v2118 = vpack.c.b16 %v2107, %v2106
    %v2119 = vpack.c.b16 %v2109, %v2108
    %v2120 = vpack.c.b16 %v2111, %v2110
    %v2121 = vpack.c.b16 %v2113, %v2112
    %v2122 = vpack.c.b16 %v2115, %v2114
    %v2123 = vpack.c.b16 %v2116, %v2116
    %v2128 = vunpack.c.l.b16 %v2087
    %v2129 = vunpack.c.l.b16 %v2088
    %v2130 = vunpack.c.l.b16 %v2089
    %v2131 = vunpack.c.l.b16 %v2090
    %v2132 = vpack.c.b16 %v2129, %v2128
    %v2133 = vpack.c.b16 %v2131, %v2130
    %v2137 = vsel %vm159, %v2117, 0
    %v2140 = vsel %vm159, %v2118, 0
    %v2143 = vsel %vm159, %v2119, 0
    %v2146 = vsel %vm159, %v2120, 0
    %v2149 = vsel %vm159, %v2121, 0
    %v2152 = vsel %vm159, %v2122, 0
    %v2155 = vsel %vm159, %v2123, 0
    %2157 = vmatpush.bf16.msra.mxu0 0
    %2158 = vmatpush.bf16.msra.mxu0 0
    %2159 = vmatpush.bf16.msra.mxu0 0
    %2160 = vmatpush.bf16.msra.mxu0 0
    %2161 = vmatpush.bf16.msra.mxu0 0
    %2162 = vmatpush.bf16.msra.mxu0 0
    %2163 = vmatpush.bf16.msra.mxu0 %v2133
    %2164 = vmatpush.bf16.msra.mxu0 %v2132
    %2165 = vmatmul.bf16.gmra.mxu0 %v2137
    %v2166 = vpop.f32.mrf.mxu0
    %v2167 = vadd.f32 0.0, %v2166
    %v2168 = vpop.f32.mrf.mxu0
    %v2169 = vadd.f32 0.0, %v2168
    %2170 = vmatmul.bf16.gmra.mxu0 %v2140
    %v2171 = vpop.f32.mrf.mxu0
    %v2172 = vadd.f32 0.0, %v2171
    %v2173 = vpop.f32.mrf.mxu0
    %v2174 = vadd.f32 0.0, %v2173
    %2175 = vmatmul.bf16.gmra.mxu0 %v2143
    %v2176 = vpop.f32.mrf.mxu0
    %v2177 = vadd.f32 0.0, %v2176
    %v2178 = vpop.f32.mrf.mxu0
    %v2179 = vadd.f32 0.0, %v2178
    %2180 = vmatmul.bf16.gmra.mxu0 %v2146
    %v2181 = vpop.f32.mrf.mxu0
    %v2182 = vadd.f32 0.0, %v2181
    %v2183 = vpop.f32.mrf.mxu0
    %v2184 = vadd.f32 0.0, %v2183
    %2185 = vmatmul.bf16.gmra.mxu0 %v2149
    %v2186 = vpop.f32.mrf.mxu0
    %v2187 = vadd.f32 0.0, %v2186
    %v2188 = vpop.f32.mrf.mxu0
    %v2189 = vadd.f32 0.0, %v2188
    %2190 = vmatmul.bf16.gmra.mxu0 %v2152
    %v2191 = vpop.f32.mrf.mxu0
    %v2192 = vadd.f32 0.0, %v2191
    %v2193 = vpop.f32.mrf.mxu0
    %v2194 = vadd.f32 0.0, %v2193
    %2195 = vmatmul.bf16.gmra.mxu0 %v2155
    %v2196 = vpop.f32.mrf.mxu0
    %v2197 = vadd.f32 0.0, %v2196
    %v2198 = vpop.f32.mrf.mxu0
    %2199 = vdwg.mxu0
    %v2213 = vunpack.c.l.b16 %v2056
    %v2214 = vunpack.c.l.b16 %v2057
    %v2215 = vunpack.c.l.b16 %v2058
    %v2216 = vunpack.c.l.b16 %v2059
    %v2217 = vunpack.c.l.b16 %v2060
    %v2218 = vunpack.c.l.b16 %v2061
    %v2219 = vunpack.c.l.b16 %v2062
    %v2220 = vunpack.c.l.b16 %v2063
    %v2221 = vunpack.c.l.b16 %v2064
    %v2222 = vunpack.c.l.b16 %v2065
    %v2223 = vunpack.c.l.b16 %v2066
    %v2224 = vunpack.c.l.b16 %v2067
    %v2225 = vunpack.c.l.b16 %v2068
    %v2226 = vpack.c.b16 %v2214, %v2213
    %v2227 = vpack.c.b16 %v2216, %v2215
    %v2228 = vpack.c.b16 %v2218, %v2217
    %v2229 = vpack.c.b16 %v2220, %v2219
    %v2230 = vpack.c.b16 %v2222, %v2221
    %v2231 = vpack.c.b16 %v2224, %v2223
    %v2232 = vpack.c.b16 %v2225, %v2225
    %v2237 = vunpack.c.l.b16 %v2069
    %v2238 = vunpack.c.l.b16 %v2070
    %v2239 = vunpack.c.l.b16 %v2071
    %v2240 = vunpack.c.l.b16 %v2072
    %v2241 = vpack.c.b16 %v2238, %v2237
    %v2242 = vpack.c.b16 %v2240, %v2239
    %v2246 = vsel %vm159, %v2226, 0
    %v2249 = vsel %vm159, %v2227, 0
    %v2252 = vsel %vm159, %v2228, 0
    %v2255 = vsel %vm159, %v2229, 0
    %v2258 = vsel %vm159, %v2230, 0
    %v2261 = vsel %vm159, %v2231, 0
    %v2264 = vsel %vm159, %v2232, 0
    %2266 = vmatpush.bf16.msra.mxu0 0
    %2267 = vmatpush.bf16.msra.mxu0 0
    %2268 = vmatpush.bf16.msra.mxu0 0
    %2269 = vmatpush.bf16.msra.mxu0 0
    %2270 = vmatpush.bf16.msra.mxu0 0
    %2271 = vmatpush.bf16.msra.mxu0 0
    %2272 = vmatpush.bf16.msra.mxu0 %v2242
    %2273 = vmatpush.bf16.msra.mxu0 %v2241
    %2274 = vmatmul.bf16.gmra.mxu0 %v2246
    %v2275 = vpop.f32.mrf.mxu0
    %v2276 = vadd.f32 %v2167, %v2275
    %v2277 = vpop.f32.mrf.mxu0
    %v2278 = vadd.f32 %v2169, %v2277
    %2279 = vmatmul.bf16.gmra.mxu0 %v2249
    %v2280 = vpop.f32.mrf.mxu0
    %v2281 = vadd.f32 %v2172, %v2280
    %v2282 = vpop.f32.mrf.mxu0
    %v2283 = vadd.f32 %v2174, %v2282
    %2284 = vmatmul.bf16.gmra.mxu0 %v2252
    %v2285 = vpop.f32.mrf.mxu0
    %v2286 = vadd.f32 %v2177, %v2285
    %v2287 = vpop.f32.mrf.mxu0
    %v2288 = vadd.f32 %v2179, %v2287
    %2289 = vmatmul.bf16.gmra.mxu0 %v2255
    %v2290 = vpop.f32.mrf.mxu0
    %v2291 = vadd.f32 %v2182, %v2290
    %v2292 = vpop.f32.mrf.mxu0
    %v2293 = vadd.f32 %v2184, %v2292
    %2294 = vmatmul.bf16.gmra.mxu0 %v2258
    %v2295 = vpop.f32.mrf.mxu0
    %v2296 = vadd.f32 %v2187, %v2295
    %v2297 = vpop.f32.mrf.mxu0
    %v2298 = vadd.f32 %v2189, %v2297
    %2299 = vmatmul.bf16.gmra.mxu0 %v2261
    %v2300 = vpop.f32.mrf.mxu0
    %v2301 = vadd.f32 %v2192, %v2300
    %v2302 = vpop.f32.mrf.mxu0
    %v2303 = vadd.f32 %v2194, %v2302
    %2304 = vmatmul.bf16.gmra.mxu0 %v2264
    %v2305 = vpop.f32.mrf.mxu0
    %v2306 = vadd.f32 %v2197, %v2305
    %v2307 = vpop.f32.mrf.mxu0
    %2308 = vdwg.mxu0
    %v2309 = vld [vmem:[%s1341] sm:$0xf]
    %v2310 = vld [vmem:[%s1341 + $0x4] sm:$0xf]
    %v2311 = vld [vmem:[%s1341 + $0x8] sm:$0xf]
    %v2312 = vld [vmem:[%s1341 + $0xc] sm:$0xf]
    %v2313 = vld [vmem:[%s1341 + $0x10] sm:$0xf]
    %v2314 = vld [vmem:[%s1341 + $0x14] sm:$0xf]
    %v2315 = vld [vmem:[%s1341 + $0x18] sm:$0xf]
    %v2316 = vld [vmem:[%s1341 + $0x1c] sm:$0xf]
    %v2317 = vld [vmem:[%s1341 + $0x20] sm:$0xf]
    %v2318 = vld [vmem:[%s1341 + $0x24] sm:$0xf]
    %v2319 = vld [vmem:[%s1341 + $0x28] sm:$0xf]
    %v2320 = vld [vmem:[%s1341 + $0x2c] sm:$0xf]
    %v2321 = vld [vmem:[%s1341 + $0x30] sm:$0x1]
    %s2322 = scalar_lea.vmem %s4, 32
    %v2323 = vld [vmem:[%s2322] sm:$0xf]
    %v2324 = vld [vmem:[%s2322 + $0x4] sm:$0xf]
    %v2325 = vld [vmem:[%s2322 + $0x8] sm:$0xf]
    %v2326 = vld [vmem:[%s2322 + $0xc] sm:$0xf]
    %v2340 = vunpack.c.l.b16 %v2309
    %v2341 = vunpack.c.l.b16 %v2310
    %v2342 = vunpack.c.l.b16 %v2311
    %v2343 = vunpack.c.l.b16 %v2312
    %v2344 = vunpack.c.l.b16 %v2313
    %v2345 = vunpack.c.l.b16 %v2314
    %v2346 = vunpack.c.l.b16 %v2315
    %v2347 = vunpack.c.l.b16 %v2316
    %v2348 = vunpack.c.l.b16 %v2317
    %v2349 = vunpack.c.l.b16 %v2318
    %v2350 = vunpack.c.l.b16 %v2319
    %v2351 = vunpack.c.l.b16 %v2320
    %v2352 = vunpack.c.l.b16 %v2321
    %v2353 = vpack.c.b16 %v2341, %v2340
    %v2354 = vpack.c.b16 %v2343, %v2342
    %v2355 = vpack.c.b16 %v2345, %v2344
    %v2356 = vpack.c.b16 %v2347, %v2346
    %v2357 = vpack.c.b16 %v2349, %v2348
    %v2358 = vpack.c.b16 %v2351, %v2350
    %v2359 = vpack.c.b16 %v2352, %v2352
    %v2364 = vunpack.c.l.b16 %v2323
    %v2365 = vunpack.c.l.b16 %v2324
    %v2366 = vunpack.c.l.b16 %v2325
    %v2367 = vunpack.c.l.b16 %v2326
    %v2368 = vpack.c.b16 %v2365, %v2364
    %v2369 = vpack.c.b16 %v2367, %v2366
    %v2373 = vsel %vm159, %v2353, 0
    %v2376 = vsel %vm159, %v2354, 0
    %v2379 = vsel %vm159, %v2355, 0
    %v2382 = vsel %vm159, %v2356, 0
    %v2385 = vsel %vm159, %v2357, 0
    %v2388 = vsel %vm159, %v2358, 0
    %v2391 = vsel %vm159, %v2359, 0
    %2393 = vmatpush.bf16.msra.mxu0 0
    %2394 = vmatpush.bf16.msra.mxu0 0
    %2395 = vmatpush.bf16.msra.mxu0 0
    %2396 = vmatpush.bf16.msra.mxu0 0
    %2397 = vmatpush.bf16.msra.mxu0 0
    %2398 = vmatpush.bf16.msra.mxu0 0
    %2399 = vmatpush.bf16.msra.mxu0 %v2369
    %2400 = vmatpush.bf16.msra.mxu0 %v2368
    %2401 = vmatmul.bf16.gmra.mxu0 %v2373
    %v2402 = vpop.f32.mrf.mxu0
    %v2403 = vadd.f32 0.0, %v2402
    %v2404 = vpop.f32.mrf.mxu0
    %v2405 = vadd.f32 0.0, %v2404
    %2406 = vmatmul.bf16.gmra.mxu0 %v2376
    %v2407 = vpop.f32.mrf.mxu0
    %v2408 = vadd.f32 0.0, %v2407
    %v2409 = vpop.f32.mrf.mxu0
    %v2410 = vadd.f32 0.0, %v2409
    %2411 = vmatmul.bf16.gmra.mxu0 %v2379
    %v2412 = vpop.f32.mrf.mxu0
    %v2413 = vadd.f32 0.0, %v2412
    %v2414 = vpop.f32.mrf.mxu0
    %v2415 = vadd.f32 0.0, %v2414
    %2416 = vmatmul.bf16.gmra.mxu0 %v2382
    %v2417 = vpop.f32.mrf.mxu0
    %v2418 = vadd.f32 0.0, %v2417
    %v2419 = vpop.f32.mrf.mxu0
    %v2420 = vadd.f32 0.0, %v2419
    %2421 = vmatmul.bf16.gmra.mxu0 %v2385
    %v2422 = vpop.f32.mrf.mxu0
    %v2423 = vadd.f32 0.0, %v2422
    %v2424 = vpop.f32.mrf.mxu0
    %v2425 = vadd.f32 0.0, %v2424
    %2426 = vmatmul.bf16.gmra.mxu0 %v2388
    %v2427 = vpop.f32.mrf.mxu0
    %v2428 = vadd.f32 0.0, %v2427
    %v2429 = vpop.f32.mrf.mxu0
    %v2430 = vadd.f32 0.0, %v2429
    %2431 = vmatmul.bf16.gmra.mxu0 %v2391
    %v2432 = vpop.f32.mrf.mxu0
    %v2433 = vadd.f32 0.0, %v2432
    %v2434 = vpop.f32.mrf.mxu0
    %2435 = vdwg.mxu0
    %v2436 = vadd.f32 %v2276, %v2403
    %v2437 = vadd.f32 %v2278, %v2405
    %v2438 = vadd.f32 %v2281, %v2408
    %v2439 = vadd.f32 %v2283, %v2410
    %v2440 = vadd.f32 %v2286, %v2413
    %v2441 = vadd.f32 %v2288, %v2415
    %v2442 = vadd.f32 %v2291, %v2418
    %v2443 = vadd.f32 %v2293, %v2420
    %v2444 = vadd.f32 %v2296, %v2423
    %v2445 = vadd.f32 %v2298, %v2425
    %v2446 = vadd.f32 %v2301, %v2428
    %v2447 = vadd.f32 %v2303, %v2430
    %v2448 = vadd.f32 %v2306, %v2433
    %v2449 = vld [vmem:[%s1654] sm:$0xf]
    %v2450 = vld [vmem:[%s1654 + $0x4] sm:$0xf]
    %v2451 = vld [vmem:[%s1654 + $0x8] sm:$0xf]
    %v2452 = vld [vmem:[%s1654 + $0xc] sm:$0xf]
    %v2453 = vld [vmem:[%s1654 + $0x10] sm:$0xf]
    %v2454 = vld [vmem:[%s1654 + $0x14] sm:$0xf]
    %v2455 = vld [vmem:[%s1654 + $0x18] sm:$0xf]
    %v2456 = vld [vmem:[%s1654 + $0x1c] sm:$0xf]
    %v2457 = vld [vmem:[%s1654 + $0x20] sm:$0xf]
    %v2458 = vld [vmem:[%s1654 + $0x24] sm:$0xf]
    %v2459 = vld [vmem:[%s1654 + $0x28] sm:$0xf]
    %v2460 = vld [vmem:[%s1654 + $0x2c] sm:$0xf]
    %v2461 = vld [vmem:[%s1654 + $0x30] sm:$0x1]
    %s2462 = scalar_lea.vmem %s4, 48
    %v2463 = vld [vmem:[%s2462] sm:$0xf]
    %v2464 = vld [vmem:[%s2462 + $0x4] sm:$0xf]
    %v2465 = vld [vmem:[%s2462 + $0x8] sm:$0xf]
    %v2466 = vld [vmem:[%s2462 + $0xc] sm:$0xf]
    %v2480 = vunpack.c.l.b16 %v2449
    %v2481 = vunpack.c.l.b16 %v2450
    %v2482 = vunpack.c.l.b16 %v2451
    %v2483 = vunpack.c.l.b16 %v2452
    %v2484 = vunpack.c.l.b16 %v2453
    %v2485 = vunpack.c.l.b16 %v2454
    %v2486 = vunpack.c.l.b16 %v2455
    %v2487 = vunpack.c.l.b16 %v2456
    %v2488 = vunpack.c.l.b16 %v2457
    %v2489 = vunpack.c.l.b16 %v2458
    %v2490 = vunpack.c.l.b16 %v2459
    %v2491 = vunpack.c.l.b16 %v2460
    %v2492 = vunpack.c.l.b16 %v2461
    %v2493 = vpack.c.b16 %v2481, %v2480
    %v2494 = vpack.c.b16 %v2483, %v2482
    %v2495 = vpack.c.b16 %v2485, %v2484
    %v2496 = vpack.c.b16 %v2487, %v2486
    %v2497 = vpack.c.b16 %v2489, %v2488
    %v2498 = vpack.c.b16 %v2491, %v2490
    %v2499 = vpack.c.b16 %v2492, %v2492
    %v2504 = vunpack.c.l.b16 %v2463
    %v2505 = vunpack.c.l.b16 %v2464
    %v2506 = vunpack.c.l.b16 %v2465
    %v2507 = vunpack.c.l.b16 %v2466
    %v2508 = vpack.c.b16 %v2505, %v2504
    %v2509 = vpack.c.b16 %v2507, %v2506
    %v2513 = vsel %vm159, %v2493, 0
    %v2516 = vsel %vm159, %v2494, 0
    %v2519 = vsel %vm159, %v2495, 0
    %v2522 = vsel %vm159, %v2496, 0
    %v2525 = vsel %vm159, %v2497, 0
    %v2528 = vsel %vm159, %v2498, 0
    %v2531 = vsel %vm159, %v2499, 0
    %2533 = vmatpush.bf16.msra.mxu0 0
    %2534 = vmatpush.bf16.msra.mxu0 0
    %2535 = vmatpush.bf16.msra.mxu0 0
    %2536 = vmatpush.bf16.msra.mxu0 0
    %2537 = vmatpush.bf16.msra.mxu0 0
    %2538 = vmatpush.bf16.msra.mxu0 0
    %2539 = vmatpush.bf16.msra.mxu0 %v2509
    %2540 = vmatpush.bf16.msra.mxu0 %v2508
    %2541 = vmatmul.bf16.gmra.mxu0 %v2513
    %v2542 = vpop.f32.mrf.mxu0
    %v2543 = vadd.f32 0.0, %v2542
    %v2544 = vpop.f32.mrf.mxu0
    %v2545 = vadd.f32 0.0, %v2544
    %2546 = vmatmul.bf16.gmra.mxu0 %v2516
    %v2547 = vpop.f32.mrf.mxu0
    %v2548 = vadd.f32 0.0, %v2547
    %v2549 = vpop.f32.mrf.mxu0
    %v2550 = vadd.f32 0.0, %v2549
    %2551 = vmatmul.bf16.gmra.mxu0 %v2519
    %v2552 = vpop.f32.mrf.mxu0
    %v2553 = vadd.f32 0.0, %v2552
    %v2554 = vpop.f32.mrf.mxu0
    %v2555 = vadd.f32 0.0, %v2554
    %2556 = vmatmul.bf16.gmra.mxu0 %v2522
    %v2557 = vpop.f32.mrf.mxu0
    %v2558 = vadd.f32 0.0, %v2557
    %v2559 = vpop.f32.mrf.mxu0
    %v2560 = vadd.f32 0.0, %v2559
    %2561 = vmatmul.bf16.gmra.mxu0 %v2525
    %v2562 = vpop.f32.mrf.mxu0
    %v2563 = vadd.f32 0.0, %v2562
    %v2564 = vpop.f32.mrf.mxu0
    %v2565 = vadd.f32 0.0, %v2564
    %2566 = vmatmul.bf16.gmra.mxu0 %v2528
    %v2567 = vpop.f32.mrf.mxu0
    %v2568 = vadd.f32 0.0, %v2567
    %v2569 = vpop.f32.mrf.mxu0
    %v2570 = vadd.f32 0.0, %v2569
    %2571 = vmatmul.bf16.gmra.mxu0 %v2531
    %v2572 = vpop.f32.mrf.mxu0
    %v2573 = vadd.f32 0.0, %v2572
    %v2574 = vpop.f32.mrf.mxu0
    %2575 = vdwg.mxu0
    %v2576 = vadd.f32 %v2436, %v2543
    %v2577 = vadd.f32 %v2437, %v2545
    %v2578 = vadd.f32 %v2438, %v2548
    %v2579 = vadd.f32 %v2439, %v2550
    %v2580 = vadd.f32 %v2440, %v2553
    %v2581 = vadd.f32 %v2441, %v2555
    %v2582 = vadd.f32 %v2442, %v2558
    %v2583 = vadd.f32 %v2443, %v2560
    %v2584 = vadd.f32 %v2444, %v2563
    %v2585 = vadd.f32 %v2445, %v2565
    %v2586 = vadd.f32 %v2446, %v2568
    %v2587 = vadd.f32 %v2447, %v2570
    %v2588 = vadd.f32 %v2448, %v2573
    %v2589 = vld [vmem:[%s1911] sm:$0xf]
    %v2590 = vld [vmem:[%s1911 + $0x4] sm:$0xf]
    %v2591 = vld [vmem:[%s1911 + $0x8] sm:$0xf]
    %v2592 = vld [vmem:[%s1911 + $0xc] sm:$0xf]
    %v2593 = vld [vmem:[%s1911 + $0x10] sm:$0xf]
    %v2594 = vld [vmem:[%s1911 + $0x14] sm:$0xf]
    %v2595 = vld [vmem:[%s1911 + $0x18] sm:$0xf]
    %v2596 = vld [vmem:[%s1911 + $0x1c] sm:$0xf]
    %v2597 = vld [vmem:[%s1911 + $0x20] sm:$0xf]
    %v2598 = vld [vmem:[%s1911 + $0x24] sm:$0xf]
    %v2599 = vld [vmem:[%s1911 + $0x28] sm:$0xf]
    %v2600 = vld [vmem:[%s1911 + $0x2c] sm:$0xf]
    %v2601 = vld [vmem:[%s1911 + $0x30] sm:$0x1]
    %s2602 = scalar_lea.vmem %s4, 64
    %v2603 = vld [vmem:[%s2602] sm:$0xf]
    %v2604 = vld [vmem:[%s2602 + $0x4] sm:$0xf]
    %v2605 = vld [vmem:[%s2602 + $0x8] sm:$0xf]
    %v2606 = vld [vmem:[%s2602 + $0xc] sm:$0xf]
    %v2620 = vunpack.c.l.b16 %v2589
    %v2621 = vunpack.c.l.b16 %v2590
    %v2622 = vunpack.c.l.b16 %v2591
    %v2623 = vunpack.c.l.b16 %v2592
    %v2624 = vunpack.c.l.b16 %v2593
    %v2625 = vunpack.c.l.b16 %v2594
    %v2626 = vunpack.c.l.b16 %v2595
    %v2627 = vunpack.c.l.b16 %v2596
    %v2628 = vunpack.c.l.b16 %v2597
    %v2629 = vunpack.c.l.b16 %v2598
    %v2630 = vunpack.c.l.b16 %v2599
    %v2631 = vunpack.c.l.b16 %v2600
    %v2632 = vunpack.c.l.b16 %v2601
    %v2633 = vpack.c.b16 %v2621, %v2620
    %v2634 = vpack.c.b16 %v2623, %v2622
    %v2635 = vpack.c.b16 %v2625, %v2624
    %v2636 = vpack.c.b16 %v2627, %v2626
    %v2637 = vpack.c.b16 %v2629, %v2628
    %v2638 = vpack.c.b16 %v2631, %v2630
    %v2639 = vpack.c.b16 %v2632, %v2632
    %v2644 = vunpack.c.l.b16 %v2603
    %v2645 = vunpack.c.l.b16 %v2604
    %v2646 = vunpack.c.l.b16 %v2605
    %v2647 = vunpack.c.l.b16 %v2606
    %v2648 = vpack.c.b16 %v2645, %v2644
    %v2649 = vpack.c.b16 %v2647, %v2646
    %v2653 = vsel %vm159, %v2633, 0
    %v2656 = vsel %vm159, %v2634, 0
    %v2659 = vsel %vm159, %v2635, 0
    %v2662 = vsel %vm159, %v2636, 0
    %v2665 = vsel %vm159, %v2637, 0
    %v2668 = vsel %vm159, %v2638, 0
    %v2671 = vsel %vm159, %v2639, 0
    %2673 = vmatpush.bf16.msra.mxu0 0
    %2674 = vmatpush.bf16.msra.mxu0 0
    %2675 = vmatpush.bf16.msra.mxu0 0
    %2676 = vmatpush.bf16.msra.mxu0 0
    %2677 = vmatpush.bf16.msra.mxu0 0
    %2678 = vmatpush.bf16.msra.mxu0 0
    %2679 = vmatpush.bf16.msra.mxu0 %v2649
    %2680 = vmatpush.bf16.msra.mxu0 %v2648
    %2681 = vmatmul.bf16.gmra.mxu0 %v2653
    %v2682 = vpop.f32.mrf.mxu0
    %v2683 = vadd.f32 0.0, %v2682
    %v2684 = vpop.f32.mrf.mxu0
    %v2685 = vadd.f32 0.0, %v2684
    %2686 = vmatmul.bf16.gmra.mxu0 %v2656
    %v2687 = vpop.f32.mrf.mxu0
    %v2688 = vadd.f32 0.0, %v2687
    %v2689 = vpop.f32.mrf.mxu0
    %v2690 = vadd.f32 0.0, %v2689
    %2691 = vmatmul.bf16.gmra.mxu0 %v2659
    %v2692 = vpop.f32.mrf.mxu0
    %v2693 = vadd.f32 0.0, %v2692
    %v2694 = vpop.f32.mrf.mxu0
    %v2695 = vadd.f32 0.0, %v2694
    %2696 = vmatmul.bf16.gmra.mxu0 %v2662
    %v2697 = vpop.f32.mrf.mxu0
    %v2698 = vadd.f32 0.0, %v2697
    %v2699 = vpop.f32.mrf.mxu0
    %v2700 = vadd.f32 0.0, %v2699
    %2701 = vmatmul.bf16.gmra.mxu0 %v2665
    %v2702 = vpop.f32.mrf.mxu0
    %v2703 = vadd.f32 0.0, %v2702
    %v2704 = vpop.f32.mrf.mxu0
    %v2705 = vadd.f32 0.0, %v2704
    %2706 = vmatmul.bf16.gmra.mxu0 %v2668
    %v2707 = vpop.f32.mrf.mxu0
    %v2708 = vadd.f32 0.0, %v2707
    %v2709 = vpop.f32.mrf.mxu0
    %v2710 = vadd.f32 0.0, %v2709
    %2711 = vmatmul.bf16.gmra.mxu0 %v2671
    %v2712 = vpop.f32.mrf.mxu0
    %v2713 = vadd.f32 0.0, %v2712
    %v2714 = vpop.f32.mrf.mxu0
    %2715 = vdwg.mxu0
    %v2716 = vadd.f32 %v2576, %v2683
    %v2717 = vadd.f32 %v2577, %v2685
    %v2718 = vadd.f32 %v2578, %v2688
    %v2719 = vadd.f32 %v2579, %v2690
    %v2720 = vadd.f32 %v2580, %v2693
    %v2721 = vadd.f32 %v2581, %v2695
    %v2722 = vadd.f32 %v2582, %v2698
    %v2723 = vadd.f32 %v2583, %v2700
    %v2724 = vadd.f32 %v2584, %v2703
    %v2725 = vadd.f32 %v2585, %v2705
    %v2726 = vadd.f32 %v2586, %v2708
    %v2727 = vadd.f32 %v2587, %v2710
    %v2728 = vadd.f32 %v2588, %v2713
    %v2729 = vld [vmem:[%s1832] sm:$0xf]
    %v2730 = vld [vmem:[%s1832 + $0x4] sm:$0xf]
    %v2731 = vld [vmem:[%s1832 + $0x8] sm:$0xf]
    %v2732 = vld [vmem:[%s1832 + $0xc] sm:$0xf]
    %v2733 = vld [vmem:[%s1832 + $0x10] sm:$0xf]
    %v2734 = vld [vmem:[%s1832 + $0x14] sm:$0xf]
    %v2735 = vld [vmem:[%s1832 + $0x18] sm:$0xf]
    %v2736 = vld [vmem:[%s1832 + $0x1c] sm:$0xf]
    %v2737 = vld [vmem:[%s1832 + $0x20] sm:$0xf]
    %v2738 = vld [vmem:[%s1832 + $0x24] sm:$0xf]
    %v2739 = vld [vmem:[%s1832 + $0x28] sm:$0xf]
    %v2740 = vld [vmem:[%s1832 + $0x2c] sm:$0xf]
    %v2741 = vld [vmem:[%s1832 + $0x30] sm:$0x1]
    %s2742 = scalar_lea.vmem %s4, 80
    %v2743 = vld [vmem:[%s2742] sm:$0xf]
    %v2744 = vld [vmem:[%s2742 + $0x4] sm:$0xf]
    %v2745 = vld [vmem:[%s2742 + $0x8] sm:$0xf]
    %v2746 = vld [vmem:[%s2742 + $0xc] sm:$0xf]
    %v2760 = vunpack.c.l.b16 %v2729
    %v2761 = vunpack.c.l.b16 %v2730
    %v2762 = vunpack.c.l.b16 %v2731
    %v2763 = vunpack.c.l.b16 %v2732
    %v2764 = vunpack.c.l.b16 %v2733
    %v2765 = vunpack.c.l.b16 %v2734
    %v2766 = vunpack.c.l.b16 %v2735
    %v2767 = vunpack.c.l.b16 %v2736
    %v2768 = vunpack.c.l.b16 %v2737
    %v2769 = vunpack.c.l.b16 %v2738
    %v2770 = vunpack.c.l.b16 %v2739
    %v2771 = vunpack.c.l.b16 %v2740
    %v2772 = vunpack.c.l.b16 %v2741
    %v2773 = vpack.c.b16 %v2761, %v2760
    %v2774 = vpack.c.b16 %v2763, %v2762
    %v2775 = vpack.c.b16 %v2765, %v2764
    %v2776 = vpack.c.b16 %v2767, %v2766
    %v2777 = vpack.c.b16 %v2769, %v2768
    %v2778 = vpack.c.b16 %v2771, %v2770
    %v2779 = vpack.c.b16 %v2772, %v2772
    %v2784 = vunpack.c.l.b16 %v2743
    %v2785 = vunpack.c.l.b16 %v2744
    %v2786 = vunpack.c.l.b16 %v2745
    %v2787 = vunpack.c.l.b16 %v2746
    %v2788 = vpack.c.b16 %v2785, %v2784
    %v2789 = vpack.c.b16 %v2787, %v2786
    %v2793 = vsel %vm159, %v2773, 0
    %v2796 = vsel %vm159, %v2774, 0
    %v2799 = vsel %vm159, %v2775, 0
    %v2802 = vsel %vm159, %v2776, 0
    %v2805 = vsel %vm159, %v2777, 0
    %v2808 = vsel %vm159, %v2778, 0
    %v2811 = vsel %vm159, %v2779, 0
    %2813 = vmatpush.bf16.msra.mxu0 0
    %2814 = vmatpush.bf16.msra.mxu0 0
    %2815 = vmatpush.bf16.msra.mxu0 0
    %2816 = vmatpush.bf16.msra.mxu0 0
    %2817 = vmatpush.bf16.msra.mxu0 0
    %2818 = vmatpush.bf16.msra.mxu0 0
    %2819 = vmatpush.bf16.msra.mxu0 %v2789
    %2820 = vmatpush.bf16.msra.mxu0 %v2788
    %2821 = vmatmul.bf16.gmra.mxu0 %v2793
    %v2822 = vpop.f32.mrf.mxu0
    %v2823 = vadd.f32 0.0, %v2822
    %v2824 = vpop.f32.mrf.mxu0
    %v2825 = vadd.f32 0.0, %v2824
    %2826 = vmatmul.bf16.gmra.mxu0 %v2796
    %v2827 = vpop.f32.mrf.mxu0
    %v2828 = vadd.f32 0.0, %v2827
    %v2829 = vpop.f32.mrf.mxu0
    %v2830 = vadd.f32 0.0, %v2829
    %2831 = vmatmul.bf16.gmra.mxu0 %v2799
    %v2832 = vpop.f32.mrf.mxu0
    %v2833 = vadd.f32 0.0, %v2832
    %v2834 = vpop.f32.mrf.mxu0
    %v2835 = vadd.f32 0.0, %v2834
    %2836 = vmatmul.bf16.gmra.mxu0 %v2802
    %v2837 = vpop.f32.mrf.mxu0
    %v2838 = vadd.f32 0.0, %v2837
    %v2839 = vpop.f32.mrf.mxu0
    %v2840 = vadd.f32 0.0, %v2839
    %2841 = vmatmul.bf16.gmra.mxu0 %v2805
    %v2842 = vpop.f32.mrf.mxu0
    %v2843 = vadd.f32 0.0, %v2842
    %v2844 = vpop.f32.mrf.mxu0
    %v2845 = vadd.f32 0.0, %v2844
    %2846 = vmatmul.bf16.gmra.mxu0 %v2808
    %v2847 = vpop.f32.mrf.mxu0
    %v2848 = vadd.f32 0.0, %v2847
    %v2849 = vpop.f32.mrf.mxu0
    %v2850 = vadd.f32 0.0, %v2849
    %2851 = vmatmul.bf16.gmra.mxu0 %v2811
    %v2852 = vpop.f32.mrf.mxu0
    %v2853 = vadd.f32 0.0, %v2852
    %v2854 = vpop.f32.mrf.mxu0
    %2855 = vdwg.mxu0
    %v2856 = vadd.f32 %v2716, %v2823
    %v2857 = vadd.f32 %v2717, %v2825
    %v2858 = vadd.f32 %v2718, %v2828
    %v2859 = vadd.f32 %v2719, %v2830
    %v2860 = vadd.f32 %v2720, %v2833
    %v2861 = vadd.f32 %v2721, %v2835
    %v2862 = vadd.f32 %v2722, %v2838
    %v2863 = vadd.f32 %v2723, %v2840
    %v2864 = vadd.f32 %v2724, %v2843
    %v2865 = vadd.f32 %v2725, %v2845
    %v2866 = vadd.f32 %v2726, %v2848
    %v2867 = vadd.f32 %v2727, %v2850
    %v2868 = vadd.f32 %v2728, %v2853
    %v2869 = vld [vmem:[#allocation3 + $0x4] sm:$0x8]
    %v2870 = vld [vmem:[#allocation3 + $0x8] sm:$0xf]
    %v2871 = vld [vmem:[#allocation3 + $0xc] sm:$0xf]
    %v2872 = vld [vmem:[#allocation3 + $0x10] sm:$0xf]
    %v2873 = vld [vmem:[#allocation3 + $0x14] sm:$0xf]
    %v2874 = vld [vmem:[#allocation3 + $0x18] sm:$0xf]
    %v2875 = vld [vmem:[#allocation3 + $0x1c] sm:$0xf]
    %v2876 = vld [vmem:[#allocation3 + $0x20] sm:$0xf]
    %v2877 = vld [vmem:[#allocation3 + $0x24] sm:$0xf]
    %v2878 = vld [vmem:[#allocation3 + $0x28] sm:$0xf]
    %v2879 = vld [vmem:[#allocation3 + $0x2c] sm:$0xf]
    %v2880 = vld [vmem:[#allocation3 + $0x30] sm:$0xf]
    %v2881 = vld [vmem:[#allocation3 + $0x34] sm:$0xf]
    %s2882 = scalar_lea.vmem %s4, 96
    %v2883 = vld [vmem:[%s2882] sm:$0xf]
    %v2884 = vld [vmem:[%s2882 + $0x4] sm:$0xf]
    %v2885 = vld [vmem:[%s2882 + $0x8] sm:$0xf]
    %v2886 = vld [vmem:[%s2882 + $0xc] sm:$0xf]
    %v2900 = vunpack.c.l.b16 %v2869
    %v2901 = vunpack.c.l.b16 %v2870
    %v2902 = vunpack.c.l.b16 %v2871
    %v2903 = vunpack.c.l.b16 %v2872
    %v2904 = vunpack.c.l.b16 %v2873
    %v2905 = vunpack.c.l.b16 %v2874
    %v2906 = vunpack.c.l.b16 %v2875
    %v2907 = vunpack.c.l.b16 %v2876
    %v2908 = vunpack.c.l.b16 %v2877
    %v2909 = vunpack.c.l.b16 %v2878
    %v2910 = vunpack.c.l.b16 %v2879
    %v2911 = vunpack.c.l.b16 %v2880
    %v2912 = vunpack.c.l.b16 %v2881
    %v2913 = vpack.c.b16 %v2901, %v2900
    %v2914 = vpack.c.b16 %v2903, %v2902
    %v2915 = vpack.c.b16 %v2905, %v2904
    %v2916 = vpack.c.b16 %v2907, %v2906
    %v2917 = vpack.c.b16 %v2909, %v2908
    %v2918 = vpack.c.b16 %v2911, %v2910
    %v2919 = vpack.c.b16 %v2912, %v2912
    %v2920 = vrot.slane %v2913, 3
    %v2921 = vrot.slane %v2914, 3
    %v2922 = vsel %vm747, %v2920, %v2921
    %v2923 = vrot.slane %v2915, 3
    %v2924 = vsel %vm747, %v2921, %v2923
    %v2925 = vrot.slane %v2916, 3
    %v2926 = vsel %vm747, %v2923, %v2925
    %v2927 = vrot.slane %v2917, 3
    %v2928 = vsel %vm747, %v2925, %v2927
    %v2929 = vrot.slane %v2918, 3
    %v2930 = vsel %vm747, %v2927, %v2929
    %v2931 = vrot.slane %v2919, 3
    %v2932 = vsel %vm747, %v2929, %v2931
    %v2937 = vunpack.c.l.b16 %v2883
    %v2938 = vunpack.c.l.b16 %v2884
    %v2939 = vunpack.c.l.b16 %v2885
    %v2940 = vunpack.c.l.b16 %v2886
    %v2941 = vpack.c.b16 %v2938, %v2937
    %v2942 = vpack.c.b16 %v2940, %v2939
    %v2946 = vsel %vm159, %v2922, 0
    %v2949 = vsel %vm159, %v2924, 0
    %v2952 = vsel %vm159, %v2926, 0
    %v2955 = vsel %vm159, %v2928, 0
    %v2958 = vsel %vm159, %v2930, 0
    %v2961 = vsel %vm159, %v2932, 0
    %v2964 = vsel %vm159, %v2931, 0
    %2966 = vmatpush.bf16.msra.mxu0 0
    %2967 = vmatpush.bf16.msra.mxu0 0
    %2968 = vmatpush.bf16.msra.mxu0 0
    %2969 = vmatpush.bf16.msra.mxu0 0
    %2970 = vmatpush.bf16.msra.mxu0 0
    %2971 = vmatpush.bf16.msra.mxu0 0
    %2972 = vmatpush.bf16.msra.mxu0 %v2942
    %2973 = vmatpush.bf16.msra.mxu0 %v2941
    %2974 = vmatmul.bf16.gmra.mxu0 %v2946
    %v2975 = vpop.f32.mrf.mxu0
    %v2976 = vadd.f32 0.0, %v2975
    %v2977 = vpop.f32.mrf.mxu0
    %v2978 = vadd.f32 0.0, %v2977
    %2979 = vmatmul.bf16.gmra.mxu0 %v2949
    %v2980 = vpop.f32.mrf.mxu0
    %v2981 = vadd.f32 0.0, %v2980
    %v2982 = vpop.f32.mrf.mxu0
    %v2983 = vadd.f32 0.0, %v2982
    %2984 = vmatmul.bf16.gmra.mxu0 %v2952
    %v2985 = vpop.f32.mrf.mxu0
    %v2986 = vadd.f32 0.0, %v2985
    %v2987 = vpop.f32.mrf.mxu0
    %v2988 = vadd.f32 0.0, %v2987
    %2989 = vmatmul.bf16.gmra.mxu0 %v2955
    %v2990 = vpop.f32.mrf.mxu0
    %v2991 = vadd.f32 0.0, %v2990
    %v2992 = vpop.f32.mrf.mxu0
    %v2993 = vadd.f32 0.0, %v2992
    %2994 = vmatmul.bf16.gmra.mxu0 %v2958
    %v2995 = vpop.f32.mrf.mxu0
    %v2996 = vadd.f32 0.0, %v2995
    %v2997 = vpop.f32.mrf.mxu0
    %v2998 = vadd.f32 0.0, %v2997
    %2999 = vmatmul.bf16.gmra.mxu0 %v2961
    %v3000 = vpop.f32.mrf.mxu0
    %v3001 = vadd.f32 0.0, %v3000
    %v3002 = vpop.f32.mrf.mxu0
    %v3003 = vadd.f32 0.0, %v3002
    %3004 = vmatmul.bf16.gmra.mxu0 %v2964
    %v3005 = vpop.f32.mrf.mxu0
    %v3006 = vadd.f32 0.0, %v3005
    %v3007 = vpop.f32.mrf.mxu0
    %3008 = vdwg.mxu0
    %v3009 = vadd.f32 %v2856, %v2976
    %v3010 = vadd.f32 %v2857, %v2978
    %v3011 = vadd.f32 %v2858, %v2981
    %v3012 = vadd.f32 %v2859, %v2983
    %v3013 = vadd.f32 %v2860, %v2986
    %v3014 = vadd.f32 %v2861, %v2988
    %v3015 = vadd.f32 %v2862, %v2991
    %v3016 = vadd.f32 %v2863, %v2993
    %v3017 = vadd.f32 %v2864, %v2996
    %v3018 = vadd.f32 %v2865, %v2998
    %v3019 = vadd.f32 %v2866, %v3001
    %v3020 = vadd.f32 %v2867, %v3003
    %v3021 = vadd.f32 %v2868, %v3006
    %v3022 = vld [vmem:[%s1483 + $0x4] sm:$0x8]
    %v3023 = vld [vmem:[%s1483 + $0x8] sm:$0xf]
    %v3024 = vld [vmem:[%s1483 + $0xc] sm:$0xf]
    %v3025 = vld [vmem:[%s1483 + $0x10] sm:$0xf]
    %v3026 = vld [vmem:[%s1483 + $0x14] sm:$0xf]
    %v3027 = vld [vmem:[%s1483 + $0x18] sm:$0xf]
    %v3028 = vld [vmem:[%s1483 + $0x1c] sm:$0xf]
    %v3029 = vld [vmem:[%s1483 + $0x20] sm:$0xf]
    %v3030 = vld [vmem:[%s1483 + $0x24] sm:$0xf]
    %v3031 = vld [vmem:[%s1483 + $0x28] sm:$0xf]
    %v3032 = vld [vmem:[%s1483 + $0x2c] sm:$0xf]
    %v3033 = vld [vmem:[%s1483 + $0x30] sm:$0xf]
    %v3034 = vld [vmem:[%s1483 + $0x34] sm:$0xf]
    %s3035 = scalar_lea.vmem %s4, 112
    %v3036 = vld [vmem:[%s3035] sm:$0xf]
    %v3037 = vld [vmem:[%s3035 + $0x4] sm:$0xf]
    %v3038 = vld [vmem:[%s3035 + $0x8] sm:$0xf]
    %v3039 = vld [vmem:[%s3035 + $0xc] sm:$0xf]
    %v3053 = vunpack.c.l.b16 %v3022
    %v3054 = vunpack.c.l.b16 %v3023
    %v3055 = vunpack.c.l.b16 %v3024
    %v3056 = vunpack.c.l.b16 %v3025
    %v3057 = vunpack.c.l.b16 %v3026
    %v3058 = vunpack.c.l.b16 %v3027
    %v3059 = vunpack.c.l.b16 %v3028
    %v3060 = vunpack.c.l.b16 %v3029
    %v3061 = vunpack.c.l.b16 %v3030
    %v3062 = vunpack.c.l.b16 %v3031
    %v3063 = vunpack.c.l.b16 %v3032
    %v3064 = vunpack.c.l.b16 %v3033
    %v3065 = vunpack.c.l.b16 %v3034
    %v3066 = vpack.c.b16 %v3054, %v3053
    %v3067 = vpack.c.b16 %v3056, %v3055
    %v3068 = vpack.c.b16 %v3058, %v3057
    %v3069 = vpack.c.b16 %v3060, %v3059
    %v3070 = vpack.c.b16 %v3062, %v3061
    %v3071 = vpack.c.b16 %v3064, %v3063
    %v3072 = vpack.c.b16 %v3065, %v3065
    %v3073 = vrot.slane %v3066, 3
    %v3074 = vrot.slane %v3067, 3
    %v3075 = vsel %vm747, %v3073, %v3074
    %v3076 = vrot.slane %v3068, 3
    %v3077 = vsel %vm747, %v3074, %v3076
    %v3078 = vrot.slane %v3069, 3
    %v3079 = vsel %vm747, %v3076, %v3078
    %v3080 = vrot.slane %v3070, 3
    %v3081 = vsel %vm747, %v3078, %v3080
    %v3082 = vrot.slane %v3071, 3
    %v3083 = vsel %vm747, %v3080, %v3082
    %v3084 = vrot.slane %v3072, 3
    %v3085 = vsel %vm747, %v3082, %v3084
    %v3090 = vunpack.c.l.b16 %v3036
    %v3091 = vunpack.c.l.b16 %v3037
    %v3092 = vunpack.c.l.b16 %v3038
    %v3093 = vunpack.c.l.b16 %v3039
    %v3094 = vpack.c.b16 %v3091, %v3090
    %v3095 = vpack.c.b16 %v3093, %v3092
    %v3099 = vsel %vm159, %v3075, 0
    %v3102 = vsel %vm159, %v3077, 0
    %v3105 = vsel %vm159, %v3079, 0
    %v3108 = vsel %vm159, %v3081, 0
    %v3111 = vsel %vm159, %v3083, 0
    %v3114 = vsel %vm159, %v3085, 0
    %v3117 = vsel %vm159, %v3084, 0
    %3119 = vmatpush.bf16.msra.mxu0 0
    %3120 = vmatpush.bf16.msra.mxu0 0
    %3121 = vmatpush.bf16.msra.mxu0 0
    %3122 = vmatpush.bf16.msra.mxu0 0
    %3123 = vmatpush.bf16.msra.mxu0 0
    %3124 = vmatpush.bf16.msra.mxu0 0
    %3125 = vmatpush.bf16.msra.mxu0 %v3095
    %3126 = vmatpush.bf16.msra.mxu0 %v3094
    %3127 = vmatmul.bf16.gmra.mxu0 %v3099
    %v3128 = vpop.f32.mrf.mxu0
    %v3129 = vadd.f32 0.0, %v3128
    %v3130 = vpop.f32.mrf.mxu0
    %v3131 = vadd.f32 0.0, %v3130
    %3132 = vmatmul.bf16.gmra.mxu0 %v3102
    %v3133 = vpop.f32.mrf.mxu0
    %v3134 = vadd.f32 0.0, %v3133
    %v3135 = vpop.f32.mrf.mxu0
    %v3136 = vadd.f32 0.0, %v3135
    %3137 = vmatmul.bf16.gmra.mxu0 %v3105
    %v3138 = vpop.f32.mrf.mxu0
    %v3139 = vadd.f32 0.0, %v3138
    %v3140 = vpop.f32.mrf.mxu0
    %v3141 = vadd.f32 0.0, %v3140
    %3142 = vmatmul.bf16.gmra.mxu0 %v3108
    %v3143 = vpop.f32.mrf.mxu0
    %v3144 = vadd.f32 0.0, %v3143
    %v3145 = vpop.f32.mrf.mxu0
    %v3146 = vadd.f32 0.0, %v3145
    %3147 = vmatmul.bf16.gmra.mxu0 %v3111
    %v3148 = vpop.f32.mrf.mxu0
    %v3149 = vadd.f32 0.0, %v3148
    %v3150 = vpop.f32.mrf.mxu0
    %v3151 = vadd.f32 0.0, %v3150
    %3152 = vmatmul.bf16.gmra.mxu0 %v3114
    %v3153 = vpop.f32.mrf.mxu0
    %v3154 = vadd.f32 0.0, %v3153
    %v3155 = vpop.f32.mrf.mxu0
    %v3156 = vadd.f32 0.0, %v3155
    %3157 = vmatmul.bf16.gmra.mxu0 %v3117
    %v3158 = vpop.f32.mrf.mxu0
    %v3159 = vadd.f32 0.0, %v3158
    %v3160 = vpop.f32.mrf.mxu0
    %3161 = vdwg.mxu0
    %v3162 = vadd.f32 %v3009, %v3129
    %v3163 = vadd.f32 %v3010, %v3131
    %v3164 = vadd.f32 %v3011, %v3134
    %v3165 = vadd.f32 %v3012, %v3136
    %v3166 = vadd.f32 %v3013, %v3139
    %v3167 = vadd.f32 %v3014, %v3141
    %v3168 = vadd.f32 %v3015, %v3144
    %v3169 = vadd.f32 %v3016, %v3146
    %v3170 = vadd.f32 %v3017, %v3149
    %v3171 = vadd.f32 %v3018, %v3151
    %v3172 = vadd.f32 %v3019, %v3154
    %v3173 = vadd.f32 %v3020, %v3156
    %v3174 = vadd.f32 %v3021, %v3159
    %v3175 = vld [vmem:[%s1341 + $0x4] sm:$0x8]
    %v3176 = vld [vmem:[%s1341 + $0x8] sm:$0xf]
    %v3177 = vld [vmem:[%s1341 + $0xc] sm:$0xf]
    %v3178 = vld [vmem:[%s1341 + $0x10] sm:$0xf]
    %v3179 = vld [vmem:[%s1341 + $0x14] sm:$0xf]
    %v3180 = vld [vmem:[%s1341 + $0x18] sm:$0xf]
    %v3181 = vld [vmem:[%s1341 + $0x1c] sm:$0xf]
    %v3182 = vld [vmem:[%s1341 + $0x20] sm:$0xf]
    %v3183 = vld [vmem:[%s1341 + $0x24] sm:$0xf]
    %v3184 = vld [vmem:[%s1341 + $0x28] sm:$0xf]
    %v3185 = vld [vmem:[%s1341 + $0x2c] sm:$0xf]
    %v3186 = vld [vmem:[%s1341 + $0x30] sm:$0xf]
    %v3187 = vld [vmem:[%s1341 + $0x34] sm:$0xf]
    %s3188 = scalar_lea.vmem %s4, 128
    %v3189 = vld [vmem:[%s3188] sm:$0xf]
    %v3190 = vld [vmem:[%s3188 + $0x4] sm:$0xf]
    %v3191 = vld [vmem:[%s3188 + $0x8] sm:$0xf]
    %v3192 = vld [vmem:[%s3188 + $0xc] sm:$0xf]
    %v3206 = vunpack.c.l.b16 %v3175
    %v3207 = vunpack.c.l.b16 %v3176
    %v3208 = vunpack.c.l.b16 %v3177
    %v3209 = vunpack.c.l.b16 %v3178
    %v3210 = vunpack.c.l.b16 %v3179
    %v3211 = vunpack.c.l.b16 %v3180
    %v3212 = vunpack.c.l.b16 %v3181
    %v3213 = vunpack.c.l.b16 %v3182
    %v3214 = vunpack.c.l.b16 %v3183
    %v3215 = vunpack.c.l.b16 %v3184
    %v3216 = vunpack.c.l.b16 %v3185
    %v3217 = vunpack.c.l.b16 %v3186
    %v3218 = vunpack.c.l.b16 %v3187
    %v3219 = vpack.c.b16 %v3207, %v3206
    %v3220 = vpack.c.b16 %v3209, %v3208
    %v3221 = vpack.c.b16 %v3211, %v3210
    %v3222 = vpack.c.b16 %v3213, %v3212
    %v3223 = vpack.c.b16 %v3215, %v3214
    %v3224 = vpack.c.b16 %v3217, %v3216
    %v3225 = vpack.c.b16 %v3218, %v3218
    %v3226 = vrot.slane %v3219, 3
    %v3227 = vrot.slane %v3220, 3
    %v3228 = vsel %vm747, %v3226, %v3227
    %v3229 = vrot.slane %v3221, 3
    %v3230 = vsel %vm747, %v3227, %v3229
    %v3231 = vrot.slane %v3222, 3
    %v3232 = vsel %vm747, %v3229, %v3231
    %v3233 = vrot.slane %v3223, 3
    %v3234 = vsel %vm747, %v3231, %v3233
    %v3235 = vrot.slane %v3224, 3
    %v3236 = vsel %vm747, %v3233, %v3235
    %v3237 = vrot.slane %v3225, 3
    %v3238 = vsel %vm747, %v3235, %v3237
    %v3243 = vunpack.c.l.b16 %v3189
    %v3244 = vunpack.c.l.b16 %v3190
    %v3245 = vunpack.c.l.b16 %v3191
    %v3246 = vunpack.c.l.b16 %v3192
    %v3247 = vpack.c.b16 %v3244, %v3243
    %v3248 = vpack.c.b16 %v3246, %v3245
    %v3252 = vsel %vm159, %v3228, 0
    %v3255 = vsel %vm159, %v3230, 0
    %v3258 = vsel %vm159, %v3232, 0
    %v3261 = vsel %vm159, %v3234, 0
    %v3264 = vsel %vm159, %v3236, 0
    %v3267 = vsel %vm159, %v3238, 0
    %v3270 = vsel %vm159, %v3237, 0
    %3272 = vmatpush.bf16.msra.mxu0 0
    %3273 = vmatpush.bf16.msra.mxu0 0
    %3274 = vmatpush.bf16.msra.mxu0 0
    %3275 = vmatpush.bf16.msra.mxu0 0
    %3276 = vmatpush.bf16.msra.mxu0 0
    %3277 = vmatpush.bf16.msra.mxu0 0
    %3278 = vmatpush.bf16.msra.mxu0 %v3248
    %3279 = vmatpush.bf16.msra.mxu0 %v3247
    %3280 = vmatmul.bf16.gmra.mxu0 %v3252
    %v3281 = vpop.f32.mrf.mxu0
    %v3282 = vadd.f32 0.0, %v3281
    %v3283 = vpop.f32.mrf.mxu0
    %v3284 = vadd.f32 0.0, %v3283
    %3285 = vmatmul.bf16.gmra.mxu0 %v3255
    %v3286 = vpop.f32.mrf.mxu0
    %v3287 = vadd.f32 0.0, %v3286
    %v3288 = vpop.f32.mrf.mxu0
    %v3289 = vadd.f32 0.0, %v3288
    %3290 = vmatmul.bf16.gmra.mxu0 %v3258
    %v3291 = vpop.f32.mrf.mxu0
    %v3292 = vadd.f32 0.0, %v3291
    %v3293 = vpop.f32.mrf.mxu0
    %v3294 = vadd.f32 0.0, %v3293
    %3295 = vmatmul.bf16.gmra.mxu0 %v3261
    %v3296 = vpop.f32.mrf.mxu0
    %v3297 = vadd.f32 0.0, %v3296
    %v3298 = vpop.f32.mrf.mxu0
    %v3299 = vadd.f32 0.0, %v3298
    %3300 = vmatmul.bf16.gmra.mxu0 %v3264
    %v3301 = vpop.f32.mrf.mxu0
    %v3302 = vadd.f32 0.0, %v3301
    %v3303 = vpop.f32.mrf.mxu0
    %v3304 = vadd.f32 0.0, %v3303
    %3305 = vmatmul.bf16.gmra.mxu0 %v3267
    %v3306 = vpop.f32.mrf.mxu0
    %v3307 = vadd.f32 0.0, %v3306
    %v3308 = vpop.f32.mrf.mxu0
    %v3309 = vadd.f32 0.0, %v3308
    %3310 = vmatmul.bf16.gmra.mxu0 %v3270
    %v3311 = vpop.f32.mrf.mxu0
    %v3312 = vadd.f32 0.0, %v3311
    %v3313 = vpop.f32.mrf.mxu0
    %3314 = vdwg.mxu0
    %v3315 = vadd.f32 %v3162, %v3282
    %v3316 = vadd.f32 %v3163, %v3284
    %v3317 = vadd.f32 %v3164, %v3287
    %v3318 = vadd.f32 %v3165, %v3289
    %v3319 = vadd.f32 %v3166, %v3292
    %v3320 = vadd.f32 %v3167, %v3294
    %v3321 = vadd.f32 %v3168, %v3297
    %v3322 = vadd.f32 %v3169, %v3299
    %v3323 = vadd.f32 %v3170, %v3302
    %v3324 = vadd.f32 %v3171, %v3304
    %v3325 = vadd.f32 %v3172, %v3307
    %v3326 = vadd.f32 %v3173, %v3309
    %v3327 = vadd.f32 %v3174, %v3312
    %vm3328 = vcmask 523264
    %v3329 = vsel %vm3328, %v3315, 0.0
    %v3330 = vsel %vm3328, %v3316, 0.0
    %v3331 = vadd.f32 %v3329, %v3330
    %v3332 = vsel %vm3328, %v3317, 0.0
    %v3333 = vadd.f32 %v3331, %v3332
    %v3334 = vsel %vm3328, %v3318, 0.0
    %v3335 = vadd.f32 %v3333, %v3334
    %v3336 = vsel %vm3328, %v3319, 0.0
    %v3337 = vadd.f32 %v3335, %v3336
    %v3338 = vsel %vm3328, %v3320, 0.0
    %v3339 = vadd.f32 %v3337, %v3338
    %v3340 = vsel %vm3328, %v3321, 0.0
    %v3341 = vadd.f32 %v3339, %v3340
    %v3342 = vsel %vm3328, %v3322, 0.0
    %v3343 = vadd.f32 %v3341, %v3342
    %v3344 = vsel %vm3328, %v3323, 0.0
    %v3345 = vadd.f32 %v3343, %v3344
    %v3346 = vsel %vm3328, %v3324, 0.0
    %v3347 = vadd.f32 %v3345, %v3346
    %v3348 = vsel %vm3328, %v3325, 0.0
    %v3349 = vadd.f32 %v3347, %v3348
    %v3350 = vsel %vm3328, %v3326, 0.0
    %v3351 = vadd.f32 %v3349, %v3350
    %vm3352 = vcmask 517120
    %v3353 = vsel %vm3352, %v3327, 0.0
    %v3354 = vadd.f32 %v3351, %v3353
    %v3355 = vrot.slane %v3354, 4
    %v3356 = vadd.f32 %v3354, %v3355
    %v3357 = vrot.slane %v3356, 2
    %v3358 = vadd.f32 %v3356, %v3357
    %v3359 = vrot.slane %v3358, 1
    %v3360 = vadd.f32 %v3358, %v3359
    %v3361 = vrcp.pop 98.0
    %v3362 = vmul.f32 98.0, %v3361
    %v3363 = vsub.f32 1.0, %v3362
    %v3364 = vmul.f32 %v3361, %v3363
    %v3365 = vadd.f32 %v3361, %v3364
    %vm3366 = vweird.f32 %v3361
    %v3367 = vsel %vm3366, %v3361, %v3365
    %v3368 = vmul.f32 %v3360, %v3367
    %v3369 = vmul.f32 %v3315, %v3315
    %v3370 = vmul.f32 %v3316, %v3316
    %v3371 = vmul.f32 %v3317, %v3317
    %v3372 = vmul.f32 %v3318, %v3318
    %v3373 = vmul.f32 %v3319, %v3319
    %v3374 = vmul.f32 %v3320, %v3320
    %v3375 = vmul.f32 %v3321, %v3321
    %v3376 = vmul.f32 %v3322, %v3322
    %v3377 = vmul.f32 %v3323, %v3323
    %v3378 = vmul.f32 %v3324, %v3324
    %v3379 = vmul.f32 %v3325, %v3325
    %v3380 = vmul.f32 %v3326, %v3326
    %v3381 = vmul.f32 %v3327, %v3327
    %v3382 = vsel %vm3328, %v3369, 0.0
    %v3383 = vsel %vm3328, %v3370, 0.0
    %v3384 = vadd.f32 %v3382, %v3383
    %v3385 = vsel %vm3328, %v3371, 0.0
    %v3386 = vadd.f32 %v3384, %v3385
    %v3387 = vsel %vm3328, %v3372, 0.0
    %v3388 = vadd.f32 %v3386, %v3387
    %v3389 = vsel %vm3328, %v3373, 0.0
    %v3390 = vadd.f32 %v3388, %v3389
    %v3391 = vsel %vm3328, %v3374, 0.0
    %v3392 = vadd.f32 %v3390, %v3391
    %v3393 = vsel %vm3328, %v3375, 0.0
    %v3394 = vadd.f32 %v3392, %v3393
    %v3395 = vsel %vm3328, %v3376, 0.0
    %v3396 = vadd.f32 %v3394, %v3395
    %v3397 = vsel %vm3328, %v3377, 0.0
    %v3398 = vadd.f32 %v3396, %v3397
    %v3399 = vsel %vm3328, %v3378, 0.0
    %v3400 = vadd.f32 %v3398, %v3399
    %v3401 = vsel %vm3328, %v3379, 0.0
    %v3402 = vadd.f32 %v3400, %v3401
    %v3403 = vsel %vm3328, %v3380, 0.0
    %v3404 = vadd.f32 %v3402, %v3403
    %v3405 = vsel %vm3352, %v3381, 0.0
    %v3406 = vadd.f32 %v3404, %v3405
    %v3407 = vrot.slane %v3406, 4
    %v3408 = vadd.f32 %v3406, %v3407
    %v3409 = vrot.slane %v3408, 2
    %v3410 = vadd.f32 %v3408, %v3409
    %v3411 = vrot.slane %v3410, 1
    %v3412 = vadd.f32 %v3410, %v3411
    %v3413 = vmul.f32 %v3412, %v3367
    %v3414 = vmul.f32 %v3368, %v3368
    %v3415 = vsub.f32 %v3413, %v3414
    %v3416 = vld [vmem:[%s5] sm:$0x1]
    %v3417 = vadd.f32 %v3415, 1e-05
    %v3418 = vrsqrt.pop %v3417
    %v3419 = vmul.f32 %v3418, %v3417
    %v3420 = vmul.f32 %v3419, %v3418
    %v3421 = vmul.f32 0.5, %v3420
    %v3422 = vsub.f32 1.5, %v3421
    %v3423 = vmul.f32 %v3418, %v3422
    %vm3424 = vweird.f32 %v3417
    %vm3425 = vweird.f32 %v3418
    %vm3426 = vmor %vm3424, %vm3425
    %v3427 = vsel %vm3426, %v3418, %v3423
    %v3428 = vmul.f32 %v3416, %v3427
    %v3429 = vld [vmem:[%s6] sm:$0x1]
    %v3430 = vmul.f32 %v3368, %v3428
    %v3431 = vsub.f32 %v3429, %v3430
    %v3433 = vperm.slane %v3428, 0
    %v3435 = vmul.f32 %v3315, %v3433
    %v3436 = vmul.f32 %v3316, %v3433
    %v3437 = vmul.f32 %v3317, %v3433
    %v3438 = vmul.f32 %v3318, %v3433
    %v3439 = vmul.f32 %v3319, %v3433
    %v3440 = vmul.f32 %v3320, %v3433
    %v3441 = vmul.f32 %v3321, %v3433
    %v3442 = vmul.f32 %v3322, %v3433
    %v3443 = vmul.f32 %v3323, %v3433
    %v3444 = vmul.f32 %v3324, %v3433
    %v3445 = vmul.f32 %v3325, %v3433
    %v3446 = vmul.f32 %v3326, %v3433
    %v3447 = vmul.f32 %v3327, %v3433
    %v3449 = vperm.slane %v3431, 0
    %v3451 = vadd.f32 %v3435, %v3449
    %v3452 = vadd.f32 %v3436, %v3449
    %v3453 = vadd.f32 %v3437, %v3449
    %v3454 = vadd.f32 %v3438, %v3449
    %v3455 = vadd.f32 %v3439, %v3449
    %v3456 = vadd.f32 %v3440, %v3449
    %v3457 = vadd.f32 %v3441, %v3449
    %v3458 = vadd.f32 %v3442, %v3449
    %v3459 = vadd.f32 %v3443, %v3449
    %v3460 = vadd.f32 %v3444, %v3449
    %v3461 = vadd.f32 %v3445, %v3449
    %v3462 = vadd.f32 %v3446, %v3449
    %v3463 = vadd.f32 %v3447, %v3449
    %v3464 = vmax.f32 %v3451, 0.0
    %v3465 = vmax.f32 %v3452, 0.0
    %v3466 = vmax.f32 %v3453, 0.0
    %v3467 = vmax.f32 %v3454, 0.0
    %v3468 = vmax.f32 %v3455, 0.0
    %v3469 = vmax.f32 %v3456, 0.0
    %v3470 = vmax.f32 %v3457, 0.0
    %v3471 = vmax.f32 %v3458, 0.0
    %v3472 = vmax.f32 %v3459, 0.0
    %v3473 = vmax.f32 %v3460, 0.0
    %v3474 = vmax.f32 %v3461, 0.0
    %v3475 = vmax.f32 %v3462, 0.0
    %v3476 = vmax.f32 %v3463, 0.0
    %v3477 = vpack.c.bf16 %v3464, %v3464
    %v3478 = vpack.c.bf16 %v3465, %v3465
    %v3479 = vpack.c.bf16 %v3466, %v3466
    %v3480 = vpack.c.bf16 %v3467, %v3467
    %v3481 = vpack.c.bf16 %v3468, %v3468
    %v3482 = vpack.c.bf16 %v3469, %v3469
    %v3483 = vpack.c.bf16 %v3470, %v3470
    %v3484 = vpack.c.bf16 %v3471, %v3471
    %v3485 = vpack.c.bf16 %v3472, %v3472
    %v3486 = vpack.c.bf16 %v3473, %v3473
    %v3487 = vpack.c.bf16 %v3474, %v3474
    %v3488 = vpack.c.bf16 %v3475, %v3475
    %v3489 = vpack.c.bf16 %v3476, %v3476
    %vm3490 = vcmask 516096
    %3491 = vst.msk [vmem:[#allocation4] sm:$0x1] %vm3490, %v3477
    %3493 = vst [vmem:[#allocation1] sm:$0xff] %v3477
    %s3494 = scalar_lea.vmem [#allocation1], 1
    %v3495 = vld [vmem:[%s3494] ss:$4 sm:$0xff]
    %3497 = vrot.lane.b32.xlu0 %v3495, 64
    %v3498 = vpop.permute.xlu0 %3497
    %vm3500 = vcmask 1040896
    %3501 = vst.msk [vmem:[#allocation4] sm:$0x1] %vm3500, %v3498
    %3502 = vst [vmem:[#allocation1] sm:$0xff] %v3477
    %s3503 = scalar_lea.vmem [#allocation1], 2
    %v3504 = vld [vmem:[%s3503] ss:$4 sm:$0xff]
    %3506 = vst.msk [vmem:[#allocation4 + $0x1] sm:$0x1] %vm3490, %v3504
    %3507 = vst [vmem:[#allocation1] sm:$0xff] %v3477
    %s3508 = scalar_lea.vmem [#allocation1], 3
    %v3509 = vld [vmem:[%s3508] ss:$4 sm:$0xff]
    %3511 = vrot.lane.b32.xlu0 %v3509, 64
    %v3512 = vpop.permute.xlu0 %3511
    %3514 = vst.msk [vmem:[#allocation4 + $0x1] sm:$0x1] %vm3500, %v3512
    %3515 = vst.msk [vmem:[#allocation4 + $0x2] sm:$0x1] %vm3490, %v3478
    %3517 = vst [vmem:[#allocation1] sm:$0xff] %v3478
    %s3518 = scalar_lea.vmem [#allocation1], 1
    %v3519 = vld [vmem:[%s3518] ss:$4 sm:$0xff]
    %3521 = vrot.lane.b32.xlu0 %v3519, 64
    %v3522 = vpop.permute.xlu0 %3521
    %3524 = vst.msk [vmem:[#allocation4 + $0x2] sm:$0x1] %vm3500, %v3522
    %3525 = vst [vmem:[#allocation1] sm:$0xff] %v3478
    %s3526 = scalar_lea.vmem [#allocation1], 2
    %v3527 = vld [vmem:[%s3526] ss:$4 sm:$0xff]
    %3529 = vst.msk [vmem:[#allocation4 + $0x3] sm:$0x1] %vm3490, %v3527
    %3530 = vst [vmem:[#allocation1] sm:$0xff] %v3478
    %s3531 = scalar_lea.vmem [#allocation1], 3
    %v3532 = vld [vmem:[%s3531] ss:$4 sm:$0xff]
    %3534 = vrot.lane.b32.xlu0 %v3532, 64
    %v3535 = vpop.permute.xlu0 %3534
    %3537 = vst.msk [vmem:[#allocation4 + $0x3] sm:$0x1] %vm3500, %v3535
    %3538 = vst.msk [vmem:[#allocation4 + $0x4] sm:$0x1] %vm3490, %v3479
    %3540 = vst [vmem:[#allocation1] sm:$0xff] %v3479
    %s3541 = scalar_lea.vmem [#allocation1], 1
    %v3542 = vld [vmem:[%s3541] ss:$4 sm:$0xff]
    %3544 = vrot.lane.b32.xlu0 %v3542, 64
    %v3545 = vpop.permute.xlu0 %3544
    %3547 = vst.msk [vmem:[#allocation4 + $0x4] sm:$0x1] %vm3500, %v3545
    %3548 = vst [vmem:[#allocation1] sm:$0xff] %v3479
    %s3549 = scalar_lea.vmem [#allocation1], 2
    %v3550 = vld [vmem:[%s3549] ss:$4 sm:$0xff]
    %3552 = vst.msk [vmem:[#allocation4 + $0x5] sm:$0x1] %vm3490, %v3550
    %3553 = vst [vmem:[#allocation1] sm:$0xff] %v3479
    %s3554 = scalar_lea.vmem [#allocation1], 3
    %v3555 = vld [vmem:[%s3554] ss:$4 sm:$0xff]
    %3557 = vrot.lane.b32.xlu0 %v3555, 64
    %v3558 = vpop.permute.xlu0 %3557
    %3560 = vst.msk [vmem:[#allocation4 + $0x5] sm:$0x1] %vm3500, %v3558
    %3561 = vst.msk [vmem:[#allocation4 + $0x6] sm:$0x1] %vm3490, %v3480
    %3563 = vst [vmem:[#allocation1] sm:$0xff] %v3480
    %s3564 = scalar_lea.vmem [#allocation1], 1
    %v3565 = vld [vmem:[%s3564] ss:$4 sm:$0xff]
    %3567 = vrot.lane.b32.xlu0 %v3565, 64
    %v3568 = vpop.permute.xlu0 %3567
    %3570 = vst.msk [vmem:[#allocation4 + $0x6] sm:$0x1] %vm3500, %v3568
    %3571 = vst [vmem:[#allocation1] sm:$0xff] %v3480
    %s3572 = scalar_lea.vmem [#allocation1], 2
    %v3573 = vld [vmem:[%s3572] ss:$4 sm:$0xff]
    %3575 = vst.msk [vmem:[#allocation4 + $0x7] sm:$0x1] %vm3490, %v3573
    %3576 = vst [vmem:[#allocation1] sm:$0xff] %v3480
    %s3577 = scalar_lea.vmem [#allocation1], 3
    %v3578 = vld [vmem:[%s3577] ss:$4 sm:$0xff]
    %3580 = vrot.lane.b32.xlu0 %v3578, 64
    %v3581 = vpop.permute.xlu0 %3580
    %3583 = vst.msk [vmem:[#allocation4 + $0x7] sm:$0x1] %vm3500, %v3581
    %3584 = vst.msk [vmem:[#allocation4 + $0x8] sm:$0x1] %vm3490, %v3481
    %3586 = vst [vmem:[#allocation1] sm:$0xff] %v3481
    %s3587 = scalar_lea.vmem [#allocation1], 1
    %v3588 = vld [vmem:[%s3587] ss:$4 sm:$0xff]
    %3590 = vrot.lane.b32.xlu0 %v3588, 64
    %v3591 = vpop.permute.xlu0 %3590
    %3593 = vst.msk [vmem:[#allocation4 + $0x8] sm:$0x1] %vm3500, %v3591
    %3594 = vst [vmem:[#allocation1] sm:$0xff] %v3481
    %s3595 = scalar_lea.vmem [#allocation1], 2
    %v3596 = vld [vmem:[%s3595] ss:$4 sm:$0xff]
    %3598 = vst.msk [vmem:[#allocation4 + $0x9] sm:$0x1] %vm3490, %v3596
    %3599 = vst [vmem:[#allocation1] sm:$0xff] %v3481
    %s3600 = scalar_lea.vmem [#allocation1], 3
    %v3601 = vld [vmem:[%s3600] ss:$4 sm:$0xff]
    %3603 = vrot.lane.b32.xlu0 %v3601, 64
    %v3604 = vpop.permute.xlu0 %3603
    %3606 = vst.msk [vmem:[#allocation4 + $0x9] sm:$0x1] %vm3500, %v3604
    %3607 = vst.msk [vmem:[#allocation4 + $0xa] sm:$0x1] %vm3490, %v3482
    %3609 = vst [vmem:[#allocation1] sm:$0xff] %v3482
    %s3610 = scalar_lea.vmem [#allocation1], 1
    %v3611 = vld [vmem:[%s3610] ss:$4 sm:$0xff]
    %3613 = vrot.lane.b32.xlu0 %v3611, 64
    %v3614 = vpop.permute.xlu0 %3613
    %3616 = vst.msk [vmem:[#allocation4 + $0xa] sm:$0x1] %vm3500, %v3614
    %3617 = vst [vmem:[#allocation1] sm:$0xff] %v3482
    %s3618 = scalar_lea.vmem [#allocation1], 2
    %v3619 = vld [vmem:[%s3618] ss:$4 sm:$0xff]
    %3621 = vst.msk [vmem:[#allocation4 + $0xb] sm:$0x1] %vm3490, %v3619
    %3622 = vst [vmem:[#allocation1] sm:$0xff] %v3482
    %s3623 = scalar_lea.vmem [#allocation1], 3
    %v3624 = vld [vmem:[%s3623] ss:$4 sm:$0xff]
    %3626 = vrot.lane.b32.xlu0 %v3624, 64
    %v3627 = vpop.permute.xlu0 %3626
    %3629 = vst.msk [vmem:[#allocation4 + $0xb] sm:$0x1] %vm3500, %v3627
    %3630 = vst.msk [vmem:[#allocation4 + $0xc] sm:$0x1] %vm3490, %v3483
    %3632 = vst [vmem:[#allocation1] sm:$0xff] %v3483
    %s3633 = scalar_lea.vmem [#allocation1], 1
    %v3634 = vld [vmem:[%s3633] ss:$4 sm:$0xff]
    %3636 = vrot.lane.b32.xlu0 %v3634, 64
    %v3637 = vpop.permute.xlu0 %3636
    %3639 = vst.msk [vmem:[#allocation4 + $0xc] sm:$0x1] %vm3500, %v3637
    %3640 = vst [vmem:[#allocation1] sm:$0xff] %v3483
    %s3641 = scalar_lea.vmem [#allocation1], 2
    %v3642 = vld [vmem:[%s3641] ss:$4 sm:$0xff]
    %3644 = vst.msk [vmem:[#allocation4 + $0xd] sm:$0x1] %vm3490, %v3642
    %3645 = vst [vmem:[#allocation1] sm:$0xff] %v3483
    %s3646 = scalar_lea.vmem [#allocation1], 3
    %v3647 = vld [vmem:[%s3646] ss:$4 sm:$0xff]
    %3649 = vrot.lane.b32.xlu0 %v3647, 64
    %v3650 = vpop.permute.xlu0 %3649
    %3652 = vst.msk [vmem:[#allocation4 + $0xd] sm:$0x1] %vm3500, %v3650
    %3653 = vst.msk [vmem:[#allocation4 + $0xe] sm:$0x1] %vm3490, %v3484
    %3655 = vst [vmem:[#allocation1] sm:$0xff] %v3484
    %s3656 = scalar_lea.vmem [#allocation1], 1
    %v3657 = vld [vmem:[%s3656] ss:$4 sm:$0xff]
    %3659 = vrot.lane.b32.xlu0 %v3657, 64
    %v3660 = vpop.permute.xlu0 %3659
    %3662 = vst.msk [vmem:[#allocation4 + $0xe] sm:$0x1] %vm3500, %v3660
    %3663 = vst [vmem:[#allocation1] sm:$0xff] %v3484
    %s3664 = scalar_lea.vmem [#allocation1], 2
    %v3665 = vld [vmem:[%s3664] ss:$4 sm:$0xff]
    %3667 = vst.msk [vmem:[#allocation4 + $0xf] sm:$0x1] %vm3490, %v3665
    %3668 = vst [vmem:[#allocation1] sm:$0xff] %v3484
    %s3669 = scalar_lea.vmem [#allocation1], 3
    %v3670 = vld [vmem:[%s3669] ss:$4 sm:$0xff]
    %3672 = vrot.lane.b32.xlu0 %v3670, 64
    %v3673 = vpop.permute.xlu0 %3672
    %3675 = vst.msk [vmem:[#allocation4 + $0xf] sm:$0x1] %vm3500, %v3673
    %3676 = vst.msk [vmem:[#allocation4 + $0x10] sm:$0x1] %vm3490, %v3485
    %3678 = vst [vmem:[#allocation1] sm:$0xff] %v3485
    %s3679 = scalar_lea.vmem [#allocation1], 1
    %v3680 = vld [vmem:[%s3679] ss:$4 sm:$0xff]
    %3682 = vrot.lane.b32.xlu0 %v3680, 64
    %v3683 = vpop.permute.xlu0 %3682
    %3685 = vst.msk [vmem:[#allocation4 + $0x10] sm:$0x1] %vm3500, %v3683
    %3686 = vst [vmem:[#allocation1] sm:$0xff] %v3485
    %s3687 = scalar_lea.vmem [#allocation1], 2
    %v3688 = vld [vmem:[%s3687] ss:$4 sm:$0xff]
    %3690 = vst.msk [vmem:[#allocation4 + $0x11] sm:$0x1] %vm3490, %v3688
    %3691 = vst [vmem:[#allocation1] sm:$0xff] %v3485
    %s3692 = scalar_lea.vmem [#allocation1], 3
    %v3693 = vld [vmem:[%s3692] ss:$4 sm:$0xff]
    %3695 = vrot.lane.b32.xlu0 %v3693, 64
    %v3696 = vpop.permute.xlu0 %3695
    %3698 = vst.msk [vmem:[#allocation4 + $0x11] sm:$0x1] %vm3500, %v3696
    %3699 = vst.msk [vmem:[#allocation4 + $0x12] sm:$0x1] %vm3490, %v3486
    %3701 = vst [vmem:[#allocation1] sm:$0xff] %v3486
    %s3702 = scalar_lea.vmem [#allocation1], 1
    %v3703 = vld [vmem:[%s3702] ss:$4 sm:$0xff]
    %3705 = vrot.lane.b32.xlu0 %v3703, 64
    %v3706 = vpop.permute.xlu0 %3705
    %3708 = vst.msk [vmem:[#allocation4 + $0x12] sm:$0x1] %vm3500, %v3706
    %3709 = vst [vmem:[#allocation1] sm:$0xff] %v3486
    %s3710 = scalar_lea.vmem [#allocation1], 2
    %v3711 = vld [vmem:[%s3710] ss:$4 sm:$0xff]
    %3713 = vst.msk [vmem:[#allocation4 + $0x13] sm:$0x1] %vm3490, %v3711
    %3714 = vst [vmem:[#allocation1] sm:$0xff] %v3486
    %s3715 = scalar_lea.vmem [#allocation1], 3
    %v3716 = vld [vmem:[%s3715] ss:$4 sm:$0xff]
    %3718 = vrot.lane.b32.xlu0 %v3716, 64
    %v3719 = vpop.permute.xlu0 %3718
    %3721 = vst.msk [vmem:[#allocation4 + $0x13] sm:$0x1] %vm3500, %v3719
    %3722 = vst.msk [vmem:[#allocation4 + $0x14] sm:$0x1] %vm3490, %v3487
    %3724 = vst [vmem:[#allocation1] sm:$0xff] %v3487
    %s3725 = scalar_lea.vmem [#allocation1], 1
    %v3726 = vld [vmem:[%s3725] ss:$4 sm:$0xff]
    %3728 = vrot.lane.b32.xlu0 %v3726, 64
    %v3729 = vpop.permute.xlu0 %3728
    %3731 = vst.msk [vmem:[#allocation4 + $0x14] sm:$0x1] %vm3500, %v3729
    %3732 = vst [vmem:[#allocation1] sm:$0xff] %v3487
    %s3733 = scalar_lea.vmem [#allocation1], 2
    %v3734 = vld [vmem:[%s3733] ss:$4 sm:$0xff]
    %3736 = vst.msk [vmem:[#allocation4 + $0x15] sm:$0x1] %vm3490, %v3734
    %3737 = vst [vmem:[#allocation1] sm:$0xff] %v3487
    %s3738 = scalar_lea.vmem [#allocation1], 3
    %v3739 = vld [vmem:[%s3738] ss:$4 sm:$0xff]
    %3741 = vrot.lane.b32.xlu0 %v3739, 64
    %v3742 = vpop.permute.xlu0 %3741
    %3744 = vst.msk [vmem:[#allocation4 + $0x15] sm:$0x1] %vm3500, %v3742
    %3745 = vst.msk [vmem:[#allocation4 + $0x16] sm:$0x1] %vm3490, %v3488
    %3747 = vst [vmem:[#allocation1] sm:$0xff] %v3488
    %s3748 = scalar_lea.vmem [#allocation1], 1
    %v3749 = vld [vmem:[%s3748] ss:$4 sm:$0xff]
    %3751 = vrot.lane.b32.xlu0 %v3749, 64
    %v3752 = vpop.permute.xlu0 %3751
    %3754 = vst.msk [vmem:[#allocation4 + $0x16] sm:$0x1] %vm3500, %v3752
    %3755 = vst [vmem:[#allocation1] sm:$0xff] %v3488
    %s3756 = scalar_lea.vmem [#allocation1], 2
    %v3757 = vld [vmem:[%s3756] ss:$4 sm:$0xff]
    %3759 = vst.msk [vmem:[#allocation4 + $0x17] sm:$0x1] %vm3490, %v3757
    %3760 = vst [vmem:[#allocation1] sm:$0xff] %v3488
    %s3761 = scalar_lea.vmem [#allocation1], 3
    %v3762 = vld [vmem:[%s3761] ss:$4 sm:$0xff]
    %3764 = vrot.lane.b32.xlu0 %v3762, 64
    %v3765 = vpop.permute.xlu0 %3764
    %3767 = vst.msk [vmem:[#allocation4 + $0x17] sm:$0x1] %vm3500, %v3765
    %3768 = vst.msk [vmem:[#allocation4 + $0x18] sm:$0x1] %vm3490, %v3489
    %v3769 = vld [vmem:[#allocation4] sm:$0xff]
    %v3770 = vld [vmem:[#allocation4 + $0x8] sm:$0xff]
    %v3771 = vld [vmem:[#allocation4 + $0x10] sm:$0xff]
    %v3772 = vld [vmem:[#allocation4 + $0x18] sm:$0x1]
    %v3773 = vld [vmem:[%s7] sm:$0xf]
    %v3774 = vld [vmem:[%s7 + $0x4] sm:$0xf]
    %v3775 = vld [vmem:[%s7 + $0x8] sm:$0xf]
    %v3776 = vld [vmem:[%s7 + $0xc] sm:$0xf]
    %v3777 = vld [vmem:[%s7 + $0x10] sm:$0xf]
    %v3778 = vld [vmem:[%s7 + $0x14] sm:$0xf]
    %v3779 = vld [vmem:[%s7 + $0x18] sm:$0xf]
    %v3780 = vld [vmem:[%s7 + $0x1c] sm:$0xf]
    %v3781 = vld [vmem:[%s7 + $0x20] sm:$0xf]
    %v3782 = vld [vmem:[%s7 + $0x24] sm:$0xf]
    %v3783 = vld [vmem:[%s7 + $0x28] sm:$0xf]
    %v3784 = vld [vmem:[%s7 + $0x2c] sm:$0xf]
    %v3785 = vld [vmem:[%s7 + $0x30] sm:$0xf]
    %v3786 = vld [vmem:[%s7 + $0x34] sm:$0xf]
    %v3787 = vld [vmem:[%s7 + $0x38] sm:$0xf]
    %v3788 = vld [vmem:[%s7 + $0x3c] sm:$0xf]
    %v3789 = vld [vmem:[%s7 + $0x40] sm:$0xf]
    %v3790 = vld [vmem:[%s7 + $0x44] sm:$0xf]
    %v3791 = vld [vmem:[%s7 + $0x48] sm:$0xf]
    %v3792 = vld [vmem:[%s7 + $0x4c] sm:$0xf]
    %v3793 = vld [vmem:[%s7 + $0x50] sm:$0xf]
    %v3794 = vld [vmem:[%s7 + $0x54] sm:$0xf]
    %v3795 = vld [vmem:[%s7 + $0x58] sm:$0xf]
    %v3796 = vld [vmem:[%s7 + $0x5c] sm:$0xf]
    %v3797 = vld [vmem:[%s7 + $0x60] sm:$0xf]
    %v3798 = vld [vmem:[%s7 + $0x64] sm:$0xf]
    %v3799 = vld [vmem:[%s7 + $0x68] sm:$0xf]
    %v3800 = vld [vmem:[%s7 + $0x6c] sm:$0xf]
    %v3801 = vld [vmem:[%s7 + $0x70] sm:$0xf]
    %v3802 = vld [vmem:[%s7 + $0x74] sm:$0xf]
    %v3803 = vld [vmem:[%s7 + $0x78] sm:$0xf]
    %v3804 = vld [vmem:[%s7 + $0x7c] sm:$0xf]
    %v3805 = vld [vmem:[%s7 + $0x80] sm:$0xf]
    %v3806 = vld [vmem:[%s7 + $0x84] sm:$0xf]
    %v3807 = vld [vmem:[%s7 + $0x88] sm:$0xf]
    %v3808 = vld [vmem:[%s7 + $0x8c] sm:$0xf]
    %v3809 = vld [vmem:[%s7 + $0x90] sm:$0xf]
    %v3810 = vld [vmem:[%s7 + $0x94] sm:$0xf]
    %v3811 = vld [vmem:[%s7 + $0x98] sm:$0xf]
    %v3812 = vld [vmem:[%s7 + $0x9c] sm:$0xf]
    %v3813 = vld [vmem:[%s7 + $0xa0] sm:$0xf]
    %v3814 = vld [vmem:[%s7 + $0xa4] sm:$0xf]
    %v3815 = vld [vmem:[%s7 + $0xa8] sm:$0xf]
    %v3816 = vld [vmem:[%s7 + $0xac] sm:$0xf]
    %v3817 = vld [vmem:[%s7 + $0xb0] sm:$0xf]
    %v3818 = vld [vmem:[%s7 + $0xb4] sm:$0xf]
    %v3819 = vld [vmem:[%s7 + $0xb8] sm:$0xf]
    %v3820 = vld [vmem:[%s7 + $0xbc] sm:$0xf]
    %v3821 = vld [vmem:[%s7 + $0xc0] sm:$0xf]
    %v3822 = vld [vmem:[%s7 + $0xc4] sm:$0xf]
    %v3823 = vld [vmem:[%s7 + $0xc8] sm:$0xf]
    %v3824 = vld [vmem:[%s7 + $0xcc] sm:$0xf]
    %v3825 = vld [vmem:[%s7 + $0xd0] sm:$0xf]
    %v3826 = vld [vmem:[%s7 + $0xd4] sm:$0xf]
    %v3827 = vld [vmem:[%s7 + $0xd8] sm:$0xf]
    %v3828 = vld [vmem:[%s7 + $0xdc] sm:$0xf]
    %v3829 = vld [vmem:[%s7 + $0xe0] sm:$0xf]
    %v3830 = vld [vmem:[%s7 + $0xe4] sm:$0xf]
    %v3831 = vld [vmem:[%s7 + $0xe8] sm:$0xf]
    %v3832 = vld [vmem:[%s7 + $0xec] sm:$0xf]
    %v3833 = vld [vmem:[%s7 + $0xf0] sm:$0xf]
    %v3834 = vld [vmem:[%s7 + $0xf4] sm:$0xf]
    %v3835 = vld [vmem:[%s7 + $0xf8] sm:$0xf]
    %v3836 = vld [vmem:[%s7 + $0xfc] sm:$0xf]
    %v3837 = vld [vmem:[%s7 + $0x100] sm:$0xf]
    %v3838 = vld [vmem:[%s7 + $0x104] sm:$0xf]
    %v3839 = vld [vmem:[%s7 + $0x108] sm:$0xf]
    %v3840 = vld [vmem:[%s7 + $0x10c] sm:$0xf]
    %v3841 = vld [vmem:[%s7 + $0x110] sm:$0xf]
    %v3842 = vld [vmem:[%s7 + $0x114] sm:$0xf]
    %v3843 = vld [vmem:[%s7 + $0x118] sm:$0xf]
    %v3844 = vld [vmem:[%s7 + $0x11c] sm:$0xf]
    %v3845 = vld [vmem:[%s7 + $0x120] sm:$0xf]
    %v3846 = vld [vmem:[%s7 + $0x124] sm:$0xf]
    %v3847 = vld [vmem:[%s7 + $0x128] sm:$0xf]
    %v3848 = vld [vmem:[%s7 + $0x12c] sm:$0xf]
    %v3849 = vld [vmem:[%s7 + $0x130] sm:$0xf]
    %v3850 = vld [vmem:[%s7 + $0x134] sm:$0xf]
    %v3851 = vld [vmem:[%s7 + $0x138] sm:$0xf]
    %v3852 = vld [vmem:[%s7 + $0x13c] sm:$0xf]
    %v3853 = vld [vmem:[%s7 + $0x140] sm:$0xf]
    %v3854 = vld [vmem:[%s7 + $0x144] sm:$0xf]
    %v3855 = vld [vmem:[%s7 + $0x148] sm:$0xf]
    %v3856 = vld [vmem:[%s7 + $0x14c] sm:$0xf]
    %v3857 = vld [vmem:[%s7 + $0x150] sm:$0xf]
    %v3858 = vld [vmem:[%s7 + $0x154] sm:$0xf]
    %v3859 = vld [vmem:[%s7 + $0x158] sm:$0xf]
    %v3860 = vld [vmem:[%s7 + $0x15c] sm:$0xf]
    %v3861 = vld [vmem:[%s7 + $0x160] sm:$0xf]
    %v3862 = vld [vmem:[%s7 + $0x164] sm:$0xf]
    %v3863 = vld [vmem:[%s7 + $0x168] sm:$0xf]
    %v3864 = vld [vmem:[%s7 + $0x16c] sm:$0xf]
    %v3865 = vld [vmem:[%s7 + $0x170] sm:$0xf]
    %v3866 = vld [vmem:[%s7 + $0x174] sm:$0xf]
    %v3867 = vld [vmem:[%s7 + $0x178] sm:$0xf]
    %v3868 = vld [vmem:[%s7 + $0x17c] sm:$0xf]
    %v3869 = vld [vmem:[%s7 + $0x180] sm:$0xf]
    %v3870 = vld [vmem:[%s7 + $0x184] sm:$0xf]
    %v3871 = vld [vmem:[%s7 + $0x188] sm:$0xf]
    %v3872 = vld [vmem:[%s7 + $0x18c] sm:$0xf]
    %v3873 = vld [vmem:[%s7 + $0x190] sm:$0xf]
    %v3874 = vld [vmem:[%s7 + $0x194] sm:$0xf]
    %v3875 = vld [vmem:[%s7 + $0x198] sm:$0xf]
    %v3876 = vld [vmem:[%s7 + $0x19c] sm:$0xf]
    %v3877 = vld [vmem:[%s7 + $0x1a0] sm:$0xf]
    %v3878 = vld [vmem:[%s7 + $0x1a4] sm:$0xf]
    %v3879 = vld [vmem:[%s7 + $0x1a8] sm:$0xf]
    %v3880 = vld [vmem:[%s7 + $0x1ac] sm:$0xf]
    %v3881 = vld [vmem:[%s7 + $0x1b0] sm:$0xf]
    %v3882 = vld [vmem:[%s7 + $0x1b4] sm:$0xf]
    %v3883 = vld [vmem:[%s7 + $0x1b8] sm:$0xf]
    %v3884 = vld [vmem:[%s7 + $0x1bc] sm:$0xf]
    %v3885 = vld [vmem:[%s7 + $0x1c0] sm:$0xf]
    %v3886 = vld [vmem:[%s7 + $0x1c4] sm:$0xf]
    %v3887 = vld [vmem:[%s7 + $0x1c8] sm:$0xf]
    %v3888 = vld [vmem:[%s7 + $0x1cc] sm:$0xf]
    %v3889 = vld [vmem:[%s7 + $0x1d0] sm:$0xf]
    %v3890 = vld [vmem:[%s7 + $0x1d4] sm:$0xf]
    %v3891 = vld [vmem:[%s7 + $0x1d8] sm:$0xf]
    %v3892 = vld [vmem:[%s7 + $0x1dc] sm:$0xf]
    %v3893 = vld [vmem:[%s7 + $0x1e0] sm:$0xf]
    %v3894 = vld [vmem:[%s7 + $0x1e4] sm:$0xf]
    %v3895 = vld [vmem:[%s7 + $0x1e8] sm:$0xf]
    %v3896 = vld [vmem:[%s7 + $0x1ec] sm:$0xf]
    %v3897 = vld [vmem:[%s7 + $0x1f0] sm:$0xf]
    %v3898 = vld [vmem:[%s7 + $0x1f4] sm:$0xf]
    %v3899 = vld [vmem:[%s7 + $0x1f8] sm:$0xf]
    %v3900 = vld [vmem:[%s7 + $0x1fc] sm:$0xf]
    %v3901 = vld [vmem:[%s7 + $0x200] sm:$0xf]
    %v3902 = vld [vmem:[%s7 + $0x204] sm:$0xf]
    %v3903 = vld [vmem:[%s7 + $0x208] sm:$0xf]
    %v3904 = vld [vmem:[%s7 + $0x20c] sm:$0xf]
    %v3905 = vld [vmem:[%s7 + $0x210] sm:$0xf]
    %v3906 = vld [vmem:[%s7 + $0x214] sm:$0xf]
    %v3907 = vld [vmem:[%s7 + $0x218] sm:$0xf]
    %v3908 = vld [vmem:[%s7 + $0x21c] sm:$0xf]
    %v3909 = vld [vmem:[%s7 + $0x220] sm:$0xf]
    %v3910 = vld [vmem:[%s7 + $0x224] sm:$0xf]
    %v3911 = vld [vmem:[%s7 + $0x228] sm:$0xf]
    %v3912 = vld [vmem:[%s7 + $0x22c] sm:$0xf]
    %v3913 = vld [vmem:[%s7 + $0x230] sm:$0xf]
    %v3914 = vld [vmem:[%s7 + $0x234] sm:$0xf]
    %v3915 = vld [vmem:[%s7 + $0x238] sm:$0xf]
    %v3916 = vld [vmem:[%s7 + $0x23c] sm:$0xf]
    %v3917 = vld [vmem:[%s7 + $0x240] sm:$0xf]
    %v3918 = vld [vmem:[%s7 + $0x244] sm:$0xf]
    %v3919 = vld [vmem:[%s7 + $0x248] sm:$0xf]
    %v3920 = vld [vmem:[%s7 + $0x24c] sm:$0xf]
    %v3921 = vld [vmem:[%s7 + $0x250] sm:$0xf]
    %v3922 = vld [vmem:[%s7 + $0x254] sm:$0xf]
    %v3923 = vld [vmem:[%s7 + $0x258] sm:$0xf]
    %v3924 = vld [vmem:[%s7 + $0x25c] sm:$0xf]
    %v3925 = vld [vmem:[%s7 + $0x260] sm:$0xf]
    %v3926 = vld [vmem:[%s7 + $0x264] sm:$0xf]
    %v3927 = vld [vmem:[%s7 + $0x268] sm:$0xf]
    %v3928 = vld [vmem:[%s7 + $0x26c] sm:$0xf]
    %v3929 = vld [vmem:[%s7 + $0x270] sm:$0xf]
    %v3930 = vld [vmem:[%s7 + $0x274] sm:$0xf]
    %v3931 = vld [vmem:[%s7 + $0x278] sm:$0xf]
    %v3932 = vld [vmem:[%s7 + $0x27c] sm:$0xf]
    %v3933 = vld [vmem:[%s7 + $0x280] sm:$0xf]
    %v3934 = vld [vmem:[%s7 + $0x284] sm:$0xf]
    %v3935 = vld [vmem:[%s7 + $0x288] sm:$0xf]
    %v3936 = vld [vmem:[%s7 + $0x28c] sm:$0xf]
    %v3937 = vld [vmem:[%s7 + $0x290] sm:$0xf]
    %v3938 = vld [vmem:[%s7 + $0x294] sm:$0xf]
    %v3939 = vld [vmem:[%s7 + $0x298] sm:$0xf]
    %v3940 = vld [vmem:[%s7 + $0x29c] sm:$0xf]
    %v3941 = vld [vmem:[%s7 + $0x2a0] sm:$0xf]
    %v3942 = vld [vmem:[%s7 + $0x2a4] sm:$0xf]
    %v3943 = vld [vmem:[%s7 + $0x2a8] sm:$0xf]
    %v3944 = vld [vmem:[%s7 + $0x2ac] sm:$0xf]
    %v3945 = vld [vmem:[%s7 + $0x2b0] sm:$0xf]
    %v3946 = vld [vmem:[%s7 + $0x2b4] sm:$0xf]
    %v3947 = vld [vmem:[%s7 + $0x2b8] sm:$0xf]
    %v3948 = vld [vmem:[%s7 + $0x2bc] sm:$0xf]
    %v3949 = vld [vmem:[%s7 + $0x2c0] sm:$0xf]
    %v3950 = vld [vmem:[%s7 + $0x2c4] sm:$0xf]
    %v3951 = vld [vmem:[%s7 + $0x2c8] sm:$0xf]
    %v3952 = vld [vmem:[%s7 + $0x2cc] sm:$0xf]
    %v3953 = vld [vmem:[%s7 + $0x2d0] sm:$0xf]
    %v3954 = vld [vmem:[%s7 + $0x2d4] sm:$0xf]
    %v3955 = vld [vmem:[%s7 + $0x2d8] sm:$0xf]
    %v3956 = vld [vmem:[%s7 + $0x2dc] sm:$0xf]
    %v3957 = vld [vmem:[%s7 + $0x2e0] sm:$0xf]
    %v3958 = vld [vmem:[%s7 + $0x2e4] sm:$0xf]
    %v3959 = vld [vmem:[%s7 + $0x2e8] sm:$0xf]
    %v3960 = vld [vmem:[%s7 + $0x2ec] sm:$0xf]
    %v3961 = vld [vmem:[%s7 + $0x2f0] sm:$0xf]
    %v3962 = vld [vmem:[%s7 + $0x2f4] sm:$0xf]
    %v3963 = vld [vmem:[%s7 + $0x2f8] sm:$0xf]
    %v3964 = vld [vmem:[%s7 + $0x2fc] sm:$0xf]
    %v3965 = vld [vmem:[%s7 + $0x300] sm:$0xf]
    %v3966 = vld [vmem:[%s7 + $0x304] sm:$0xf]
    %v3967 = vld [vmem:[%s7 + $0x308] sm:$0xf]
    %v3968 = vld [vmem:[%s7 + $0x30c] sm:$0xf]
    %v3969 = vld [vmem:[%s7 + $0x310] sm:$0xf]
    %v3970 = vld [vmem:[%s7 + $0x314] sm:$0xf]
    %v3971 = vld [vmem:[%s7 + $0x318] sm:$0xf]
    %v3972 = vld [vmem:[%s7 + $0x31c] sm:$0xf]
    %v3973 = vld [vmem:[%s7 + $0x320] sm:$0xf]
    %v3974 = vld [vmem:[%s7 + $0x324] sm:$0xf]
    %v3975 = vld [vmem:[%s7 + $0x328] sm:$0xf]
    %v3976 = vld [vmem:[%s7 + $0x32c] sm:$0xf]
    %v3977 = vld [vmem:[%s7 + $0x330] sm:$0xf]
    %v3978 = vld [vmem:[%s7 + $0x334] sm:$0xf]
    %v3979 = vld [vmem:[%s7 + $0x338] sm:$0xf]
    %v3980 = vld [vmem:[%s7 + $0x33c] sm:$0xf]
    %v3981 = vld [vmem:[%s7 + $0x340] sm:$0xf]
    %v3982 = vld [vmem:[%s7 + $0x344] sm:$0xf]
    %v3983 = vld [vmem:[%s7 + $0x348] sm:$0xf]
    %v3984 = vld [vmem:[%s7 + $0x34c] sm:$0xf]
    %v3985 = vld [vmem:[%s7 + $0x350] sm:$0xf]
    %v3986 = vld [vmem:[%s7 + $0x354] sm:$0xf]
    %v3987 = vld [vmem:[%s7 + $0x358] sm:$0xf]
    %v3988 = vld [vmem:[%s7 + $0x35c] sm:$0xf]
    %v3989 = vld [vmem:[%s7 + $0x360] sm:$0xf]
    %v3990 = vld [vmem:[%s7 + $0x364] sm:$0xf]
    %v3991 = vld [vmem:[%s7 + $0x368] sm:$0xf]
    %v3992 = vld [vmem:[%s7 + $0x36c] sm:$0xf]
    %v3993 = vld [vmem:[%s7 + $0x370] sm:$0xf]
    %v3994 = vld [vmem:[%s7 + $0x374] sm:$0xf]
    %v3995 = vld [vmem:[%s7 + $0x378] sm:$0xf]
    %v3996 = vld [vmem:[%s7 + $0x37c] sm:$0xf]
    %v3997 = vld [vmem:[%s7 + $0x380] sm:$0xf]
    %v3998 = vld [vmem:[%s7 + $0x384] sm:$0xf]
    %v3999 = vld [vmem:[%s7 + $0x388] sm:$0xf]
    %v4000 = vld [vmem:[%s7 + $0x38c] sm:$0xf]
    %v4001 = vld [vmem:[%s7 + $0x390] sm:$0xf]
    %v4002 = vld [vmem:[%s7 + $0x394] sm:$0xf]
    %v4003 = vld [vmem:[%s7 + $0x398] sm:$0xf]
    %v4004 = vld [vmem:[%s7 + $0x39c] sm:$0xf]
    %v4005 = vld [vmem:[%s7 + $0x3a0] sm:$0xf]
    %v4006 = vld [vmem:[%s7 + $0x3a4] sm:$0xf]
    %v4007 = vld [vmem:[%s7 + $0x3a8] sm:$0xf]
    %v4008 = vld [vmem:[%s7 + $0x3ac] sm:$0xf]
    %v4009 = vld [vmem:[%s7 + $0x3b0] sm:$0xf]
    %v4010 = vld [vmem:[%s7 + $0x3b4] sm:$0xf]
    %v4011 = vld [vmem:[%s7 + $0x3b8] sm:$0xf]
    %v4012 = vld [vmem:[%s7 + $0x3bc] sm:$0xf]
    %v4013 = vld [vmem:[%s7 + $0x3c0] sm:$0xf]
    %v4014 = vld [vmem:[%s7 + $0x3c4] sm:$0xf]
    %v4015 = vld [vmem:[%s7 + $0x3c8] sm:$0xf]
    %v4016 = vld [vmem:[%s7 + $0x3cc] sm:$0xf]
    %v4017 = vld [vmem:[%s7 + $0x3d0] sm:$0xf]
    %v4018 = vld [vmem:[%s7 + $0x3d4] sm:$0xf]
    %v4019 = vld [vmem:[%s7 + $0x3d8] sm:$0xf]
    %v4020 = vld [vmem:[%s7 + $0x3dc] sm:$0xf]
    %v4021 = vld [vmem:[%s7 + $0x3e0] sm:$0xf]
    %v4022 = vld [vmem:[%s7 + $0x3e4] sm:$0xf]
    %v4023 = vld [vmem:[%s7 + $0x3e8] sm:$0xf]
    %v4024 = vld [vmem:[%s7 + $0x3ec] sm:$0xf]
    %v4025 = vld [vmem:[%s7 + $0x3f0] sm:$0xf]
    %v4026 = vld [vmem:[%s7 + $0x3f4] sm:$0xf]
    %v4027 = vld [vmem:[%s7 + $0x3f8] sm:$0xf]
    %v4028 = vld [vmem:[%s7 + $0x3fc] sm:$0xf]
    %v4029 = vld [vmem:[%s7 + $0x400] sm:$0xf]
    %v4030 = vld [vmem:[%s7 + $0x404] sm:$0xf]
    %v4031 = vld [vmem:[%s7 + $0x408] sm:$0xf]
    %v4032 = vld [vmem:[%s7 + $0x40c] sm:$0xf]
    %v4033 = vld [vmem:[%s7 + $0x410] sm:$0xf]
    %v4034 = vld [vmem:[%s7 + $0x414] sm:$0xf]
    %v4035 = vld [vmem:[%s7 + $0x418] sm:$0xf]
    %v4036 = vld [vmem:[%s7 + $0x41c] sm:$0xf]
    %v4037 = vld [vmem:[%s7 + $0x420] sm:$0xf]
    %v4038 = vld [vmem:[%s7 + $0x424] sm:$0xf]
    %v4039 = vld [vmem:[%s7 + $0x428] sm:$0xf]
    %v4040 = vld [vmem:[%s7 + $0x42c] sm:$0xf]
    %v4041 = vld [vmem:[%s7 + $0x430] sm:$0xf]
    %v4042 = vld [vmem:[%s7 + $0x434] sm:$0xf]
    %v4043 = vld [vmem:[%s7 + $0x438] sm:$0xf]
    %v4044 = vld [vmem:[%s7 + $0x43c] sm:$0xf]
    %v4045 = vld [vmem:[%s7 + $0x440] sm:$0xf]
    %v4046 = vld [vmem:[%s7 + $0x444] sm:$0xf]
    %v4047 = vld [vmem:[%s7 + $0x448] sm:$0xf]
    %v4048 = vld [vmem:[%s7 + $0x44c] sm:$0xf]
    %v4049 = vld [vmem:[%s7 + $0x450] sm:$0xf]
    %v4050 = vld [vmem:[%s7 + $0x454] sm:$0xf]
    %v4051 = vld [vmem:[%s7 + $0x458] sm:$0xf]
    %v4052 = vld [vmem:[%s7 + $0x45c] sm:$0xf]
    %v4053 = vld [vmem:[%s7 + $0x460] sm:$0xf]
    %v4054 = vld [vmem:[%s7 + $0x464] sm:$0xf]
    %v4055 = vld [vmem:[%s7 + $0x468] sm:$0xf]
    %v4056 = vld [vmem:[%s7 + $0x46c] sm:$0xf]
    %v4057 = vld [vmem:[%s7 + $0x470] sm:$0xf]
    %v4058 = vld [vmem:[%s7 + $0x474] sm:$0xf]
    %v4059 = vld [vmem:[%s7 + $0x478] sm:$0xf]
    %v4060 = vld [vmem:[%s7 + $0x47c] sm:$0xf]
    %v4061 = vld [vmem:[%s7 + $0x480] sm:$0xf]
    %v4062 = vld [vmem:[%s7 + $0x484] sm:$0xf]
    %v4063 = vld [vmem:[%s7 + $0x488] sm:$0xf]
    %v4064 = vld [vmem:[%s7 + $0x48c] sm:$0xf]
    %v4065 = vld [vmem:[%s7 + $0x490] sm:$0xf]
    %v4066 = vld [vmem:[%s7 + $0x494] sm:$0xf]
    %v4067 = vld [vmem:[%s7 + $0x498] sm:$0xf]
    %v4068 = vld [vmem:[%s7 + $0x49c] sm:$0xf]
    %v4069 = vld [vmem:[%s7 + $0x4a0] sm:$0xf]
    %v4070 = vld [vmem:[%s7 + $0x4a4] sm:$0xf]
    %v4071 = vld [vmem:[%s7 + $0x4a8] sm:$0xf]
    %v4072 = vld [vmem:[%s7 + $0x4ac] sm:$0xf]
    %v4073 = vld [vmem:[%s7 + $0x4b0] sm:$0xf]
    %v4074 = vld [vmem:[%s7 + $0x4b4] sm:$0xf]
    %v4075 = vld [vmem:[%s7 + $0x4b8] sm:$0xf]
    %v4076 = vld [vmem:[%s7 + $0x4bc] sm:$0xf]
    %v4077 = vld [vmem:[%s7 + $0x4c0] sm:$0xf]
    %v4078 = vld [vmem:[%s7 + $0x4c4] sm:$0xf]
    %v4079 = vld [vmem:[%s7 + $0x4c8] sm:$0xf]
    %v4080 = vld [vmem:[%s7 + $0x4cc] sm:$0xf]
    %v4081 = vld [vmem:[%s7 + $0x4d0] sm:$0xf]
    %v4082 = vld [vmem:[%s7 + $0x4d4] sm:$0xf]
    %v4083 = vld [vmem:[%s7 + $0x4d8] sm:$0xf]
    %v4084 = vld [vmem:[%s7 + $0x4dc] sm:$0xf]
    %v4085 = vld [vmem:[%s7 + $0x4e0] sm:$0xf]
    %v4086 = vld [vmem:[%s7 + $0x4e4] sm:$0xf]
    %v4087 = vld [vmem:[%s7 + $0x4e8] sm:$0xf]
    %v4088 = vld [vmem:[%s7 + $0x4ec] sm:$0xf]
    %v4089 = vld [vmem:[%s7 + $0x4f0] sm:$0xf]
    %v4090 = vld [vmem:[%s7 + $0x4f4] sm:$0xf]
    %v4091 = vld [vmem:[%s7 + $0x4f8] sm:$0xf]
    %v4092 = vld [vmem:[%s7 + $0x4fc] sm:$0xf]
    %v4093 = vld [vmem:[%s7 + $0x500] sm:$0xf]
    %v4094 = vld [vmem:[%s7 + $0x504] sm:$0xf]
    %v4095 = vld [vmem:[%s7 + $0x508] sm:$0xf]
    %v4096 = vld [vmem:[%s7 + $0x50c] sm:$0xf]
    %v4097 = vld [vmem:[%s7 + $0x510] sm:$0xf]
    %v4098 = vld [vmem:[%s7 + $0x514] sm:$0xf]
    %v4099 = vld [vmem:[%s7 + $0x518] sm:$0xf]
    %v4100 = vld [vmem:[%s7 + $0x51c] sm:$0xf]
    %v4101 = vld [vmem:[%s7 + $0x520] sm:$0xf]
    %v4102 = vld [vmem:[%s7 + $0x524] sm:$0xf]
    %v4103 = vld [vmem:[%s7 + $0x528] sm:$0xf]
    %v4104 = vld [vmem:[%s7 + $0x52c] sm:$0xf]
    %v4105 = vld [vmem:[%s7 + $0x530] sm:$0xf]
    %v4106 = vld [vmem:[%s7 + $0x534] sm:$0xf]
    %v4107 = vld [vmem:[%s7 + $0x538] sm:$0xf]
    %v4108 = vld [vmem:[%s7 + $0x53c] sm:$0xf]
    %v4109 = vld [vmem:[%s7 + $0x540] sm:$0xf]
    %v4110 = vld [vmem:[%s7 + $0x544] sm:$0xf]
    %v4111 = vld [vmem:[%s7 + $0x548] sm:$0xf]
    %v4112 = vld [vmem:[%s7 + $0x54c] sm:$0xf]
    %v4113 = vld [vmem:[%s7 + $0x550] sm:$0xf]
    %v4114 = vld [vmem:[%s7 + $0x554] sm:$0xf]
    %v4115 = vld [vmem:[%s7 + $0x558] sm:$0xf]
    %v4116 = vld [vmem:[%s7 + $0x55c] sm:$0xf]
    %v4117 = vld [vmem:[%s7 + $0x560] sm:$0xf]
    %v4118 = vld [vmem:[%s7 + $0x564] sm:$0xf]
    %v4119 = vld [vmem:[%s7 + $0x568] sm:$0xf]
    %v4120 = vld [vmem:[%s7 + $0x56c] sm:$0xf]
    %v4121 = vld [vmem:[%s7 + $0x570] sm:$0xf]
    %v4122 = vld [vmem:[%s7 + $0x574] sm:$0xf]
    %v4123 = vld [vmem:[%s7 + $0x578] sm:$0xf]
    %v4124 = vld [vmem:[%s7 + $0x57c] sm:$0xf]
    %v4125 = vld [vmem:[%s7 + $0x580] sm:$0xf]
    %v4126 = vld [vmem:[%s7 + $0x584] sm:$0xf]
    %v4127 = vld [vmem:[%s7 + $0x588] sm:$0xf]
    %v4128 = vld [vmem:[%s7 + $0x58c] sm:$0xf]
    %v4129 = vld [vmem:[%s7 + $0x590] sm:$0xf]
    %v4130 = vld [vmem:[%s7 + $0x594] sm:$0xf]
    %v4131 = vld [vmem:[%s7 + $0x598] sm:$0xf]
    %v4132 = vld [vmem:[%s7 + $0x59c] sm:$0xf]
    %v4133 = vld [vmem:[%s7 + $0x5a0] sm:$0xf]
    %v4134 = vld [vmem:[%s7 + $0x5a4] sm:$0xf]
    %v4135 = vld [vmem:[%s7 + $0x5a8] sm:$0xf]
    %v4136 = vld [vmem:[%s7 + $0x5ac] sm:$0xf]
    %v4137 = vld [vmem:[%s7 + $0x5b0] sm:$0xf]
    %v4138 = vld [vmem:[%s7 + $0x5b4] sm:$0xf]
    %v4139 = vld [vmem:[%s7 + $0x5b8] sm:$0xf]
    %v4140 = vld [vmem:[%s7 + $0x5bc] sm:$0xf]
    %v4141 = vld [vmem:[%s7 + $0x5c0] sm:$0xf]
    %v4142 = vld [vmem:[%s7 + $0x5c4] sm:$0xf]
    %v4143 = vld [vmem:[%s7 + $0x5c8] sm:$0xf]
    %v4144 = vld [vmem:[%s7 + $0x5cc] sm:$0xf]
    %v4145 = vld [vmem:[%s7 + $0x5d0] sm:$0xf]
    %v4146 = vld [vmem:[%s7 + $0x5d4] sm:$0xf]
    %v4147 = vld [vmem:[%s7 + $0x5d8] sm:$0xf]
    %v4148 = vld [vmem:[%s7 + $0x5dc] sm:$0xf]
    %v4149 = vld [vmem:[%s7 + $0x5e0] sm:$0xf]
    %v4150 = vld [vmem:[%s7 + $0x5e4] sm:$0xf]
    %v4151 = vld [vmem:[%s7 + $0x5e8] sm:$0xf]
    %v4152 = vld [vmem:[%s7 + $0x5ec] sm:$0xf]
    %v4153 = vld [vmem:[%s7 + $0x5f0] sm:$0xf]
    %v4154 = vld [vmem:[%s7 + $0x5f4] sm:$0xf]
    %v4155 = vld [vmem:[%s7 + $0x5f8] sm:$0xf]
    %v4156 = vld [vmem:[%s7 + $0x5fc] sm:$0xf]
    %v4157 = vld [vmem:[%s7 + $0x600] sm:$0xf]
    %v4158 = vld [vmem:[%s7 + $0x604] sm:$0xf]
    %v4159 = vld [vmem:[%s7 + $0x608] sm:$0xf]
    %v4160 = vld [vmem:[%s7 + $0x60c] sm:$0xf]
    %v4161 = vld [vmem:[%s7 + $0x610] sm:$0xf]
    %v4162 = vld [vmem:[%s7 + $0x614] sm:$0xf]
    %v4163 = vld [vmem:[%s7 + $0x618] sm:$0xf]
    %v4164 = vld [vmem:[%s7 + $0x61c] sm:$0xf]
    %v4165 = vld [vmem:[%s8] sm:$0x1]
    %v4167 = vperm.slane %v4165, 0
    %4170 = vst [vmem:[#allocation1] ss:$9 sm:$0xff] %v3769
    %v4171 = vld [vmem:[#allocation1] sm:$0xff]
    %v4172 = vld [vmem:[#allocation1 + $0x9] sm:$0xff]
    %v4173 = vld [vmem:[#allocation1 + $0x12] sm:$0xff]
    %v4174 = vld [vmem:[#allocation1 + $0x1b] sm:$0xff]
    %v4175 = vld [vmem:[#allocation1 + $0x24] sm:$0xff]
    %v4176 = vld [vmem:[#allocation1 + $0x2d] sm:$0xff]
    %v4177 = vld [vmem:[#allocation1 + $0x36] sm:$0xff]
    %v4178 = vld [vmem:[#allocation1 + $0x3f] sm:$0xff]
    %4180 = vst [vmem:[#allocation1] ss:$9 sm:$0xff] %v3770
    %v4181 = vld [vmem:[#allocation1] sm:$0xff]
    %v4182 = vld [vmem:[#allocation1 + $0x9] sm:$0xff]
    %v4183 = vld [vmem:[#allocation1 + $0x12] sm:$0xff]
    %v4184 = vld [vmem:[#allocation1 + $0x1b] sm:$0xff]
    %v4185 = vld [vmem:[#allocation1 + $0x24] sm:$0xff]
    %v4186 = vld [vmem:[#allocation1 + $0x2d] sm:$0xff]
    %v4187 = vld [vmem:[#allocation1 + $0x36] sm:$0xff]
    %v4188 = vld [vmem:[#allocation1 + $0x3f] sm:$0xff]
    %4190 = vst [vmem:[#allocation1] ss:$9 sm:$0xff] %v3771
    %v4191 = vld [vmem:[#allocation1] sm:$0xff]
    %v4192 = vld [vmem:[#allocation1 + $0x9] sm:$0xff]
    %v4193 = vld [vmem:[#allocation1 + $0x12] sm:$0xff]
    %v4194 = vld [vmem:[#allocation1 + $0x1b] sm:$0xff]
    %v4195 = vld [vmem:[#allocation1 + $0x24] sm:$0xff]
    %v4196 = vld [vmem:[#allocation1 + $0x2d] sm:$0xff]
    %v4197 = vld [vmem:[#allocation1 + $0x36] sm:$0xff]
    %v4198 = vld [vmem:[#allocation1 + $0x3f] sm:$0xff]
    %4200 = vst [vmem:[#allocation1] ss:$9 sm:$0xff] %v3772
    %v4201 = vld [vmem:[#allocation1] sm:$0xff]
    %v4618 = vunpack.c.l.b16 %v3773
    %v4619 = vunpack.c.l.b16 %v3774
    %v4620 = vunpack.c.l.b16 %v3775
    %v4621 = vunpack.c.l.b16 %v3776
    %v4622 = vunpack.c.l.b16 %v3777
    %v4623 = vunpack.c.l.b16 %v3778
    %v4624 = vunpack.c.l.b16 %v3779
    %v4625 = vunpack.c.l.b16 %v3780
    %v4626 = vunpack.c.l.b16 %v3781
    %v4627 = vunpack.c.l.b16 %v3782
    %v4628 = vunpack.c.l.b16 %v3783
    %v4629 = vunpack.c.l.b16 %v3784
    %v4630 = vunpack.c.l.b16 %v3785
    %v4631 = vunpack.c.l.b16 %v3786
    %v4632 = vunpack.c.l.b16 %v3787
    %v4633 = vunpack.c.l.b16 %v3788
    %v4634 = vunpack.c.l.b16 %v3789
    %v4635 = vunpack.c.l.b16 %v3790
    %v4636 = vunpack.c.l.b16 %v3791
    %v4637 = vunpack.c.l.b16 %v3792
    %v4638 = vunpack.c.l.b16 %v3793
    %v4639 = vunpack.c.l.b16 %v3794
    %v4640 = vunpack.c.l.b16 %v3795
    %v4641 = vunpack.c.l.b16 %v3796
    %v4642 = vunpack.c.l.b16 %v3797
    %v4643 = vunpack.c.l.b16 %v3798
    %v4644 = vunpack.c.l.b16 %v3799
    %v4645 = vunpack.c.l.b16 %v3800
    %v4646 = vunpack.c.l.b16 %v3801
    %v4647 = vunpack.c.l.b16 %v3802
    %v4648 = vunpack.c.l.b16 %v3803
    %v4649 = vunpack.c.l.b16 %v3804
    %v4650 = vunpack.c.l.b16 %v3805
    %v4651 = vunpack.c.l.b16 %v3806
    %v4652 = vunpack.c.l.b16 %v3807
    %v4653 = vunpack.c.l.b16 %v3808
    %v4654 = vunpack.c.l.b16 %v3809
    %v4655 = vunpack.c.l.b16 %v3810
    %v4656 = vunpack.c.l.b16 %v3811
    %v4657 = vunpack.c.l.b16 %v3812
    %v4658 = vunpack.c.l.b16 %v3813
    %v4659 = vunpack.c.l.b16 %v3814
    %v4660 = vunpack.c.l.b16 %v3815
    %v4661 = vunpack.c.l.b16 %v3816
    %v4662 = vunpack.c.l.b16 %v3817
    %v4663 = vunpack.c.l.b16 %v3818
    %v4664 = vunpack.c.l.b16 %v3819
    %v4665 = vunpack.c.l.b16 %v3820
    %v4666 = vunpack.c.l.b16 %v3821
    %v4667 = vunpack.c.l.b16 %v3822
    %v4668 = vunpack.c.l.b16 %v3823
    %v4669 = vunpack.c.l.b16 %v3824
    %v4670 = vunpack.c.l.b16 %v3825
    %v4671 = vunpack.c.l.b16 %v3826
    %v4672 = vunpack.c.l.b16 %v3827
    %v4673 = vunpack.c.l.b16 %v3828
    %v4674 = vunpack.c.l.b16 %v3829
    %v4675 = vunpack.c.l.b16 %v3830
    %v4676 = vunpack.c.l.b16 %v3831
    %v4677 = vunpack.c.l.b16 %v3832
    %v4678 = vunpack.c.l.b16 %v3833
    %v4679 = vunpack.c.l.b16 %v3834
    %v4680 = vunpack.c.l.b16 %v3835
    %v4681 = vunpack.c.l.b16 %v3836
    %v4682 = vunpack.c.l.b16 %v3837
    %v4683 = vunpack.c.l.b16 %v3838
    %v4684 = vunpack.c.l.b16 %v3839
    %v4685 = vunpack.c.l.b16 %v3840
    %v4686 = vunpack.c.l.b16 %v3841
    %v4687 = vunpack.c.l.b16 %v3842
    %v4688 = vunpack.c.l.b16 %v3843
    %v4689 = vunpack.c.l.b16 %v3844
    %v4690 = vunpack.c.l.b16 %v3845
    %v4691 = vunpack.c.l.b16 %v3846
    %v4692 = vunpack.c.l.b16 %v3847
    %v4693 = vunpack.c.l.b16 %v3848
    %v4694 = vunpack.c.l.b16 %v3849
    %v4695 = vunpack.c.l.b16 %v3850
    %v4696 = vunpack.c.l.b16 %v3851
    %v4697 = vunpack.c.l.b16 %v3852
    %v4698 = vunpack.c.l.b16 %v3853
    %v4699 = vunpack.c.l.b16 %v3854
    %v4700 = vunpack.c.l.b16 %v3855
    %v4701 = vunpack.c.l.b16 %v3856
    %v4702 = vunpack.c.l.b16 %v3857
    %v4703 = vunpack.c.l.b16 %v3858
    %v4704 = vunpack.c.l.b16 %v3859
    %v4705 = vunpack.c.l.b16 %v3860
    %v4706 = vunpack.c.l.b16 %v3861
    %v4707 = vunpack.c.l.b16 %v3862
    %v4708 = vunpack.c.l.b16 %v3863
    %v4709 = vunpack.c.l.b16 %v3864
    %v4710 = vunpack.c.l.b16 %v3865
    %v4711 = vunpack.c.l.b16 %v3866
    %v4712 = vunpack.c.l.b16 %v3867
    %v4713 = vunpack.c.l.b16 %v3868
    %v4714 = vunpack.c.l.b16 %v3869
    %v4715 = vunpack.c.l.b16 %v3870
    %v4716 = vunpack.c.l.b16 %v3871
    %v4717 = vunpack.c.l.b16 %v3872
    %v4718 = vunpack.c.l.b16 %v3873
    %v4719 = vunpack.c.l.b16 %v3874
    %v4720 = vunpack.c.l.b16 %v3875
    %v4721 = vunpack.c.l.b16 %v3876
    %v4722 = vunpack.c.l.b16 %v3877
    %v4723 = vunpack.c.l.b16 %v3878
    %v4724 = vunpack.c.l.b16 %v3879
    %v4725 = vunpack.c.l.b16 %v3880
    %v4726 = vunpack.c.l.b16 %v3881
    %v4727 = vunpack.c.l.b16 %v3882
    %v4728 = vunpack.c.l.b16 %v3883
    %v4729 = vunpack.c.l.b16 %v3884
    %v4730 = vunpack.c.l.b16 %v3885
    %v4731 = vunpack.c.l.b16 %v3886
    %v4732 = vunpack.c.l.b16 %v3887
    %v4733 = vunpack.c.l.b16 %v3888
    %v4734 = vunpack.c.l.b16 %v3889
    %v4735 = vunpack.c.l.b16 %v3890
    %v4736 = vunpack.c.l.b16 %v3891
    %v4737 = vunpack.c.l.b16 %v3892
    %v4738 = vunpack.c.l.b16 %v3893
    %v4739 = vunpack.c.l.b16 %v3894
    %v4740 = vunpack.c.l.b16 %v3895
    %v4741 = vunpack.c.l.b16 %v3896
    %v4742 = vunpack.c.l.b16 %v3897
    %v4743 = vunpack.c.l.b16 %v3898
    %v4744 = vunpack.c.l.b16 %v3899
    %v4745 = vunpack.c.l.b16 %v3900
    %v4746 = vunpack.c.l.b16 %v3901
    %v4747 = vunpack.c.l.b16 %v3902
    %v4748 = vunpack.c.l.b16 %v3903
    %v4749 = vunpack.c.l.b16 %v3904
    %v4750 = vunpack.c.l.b16 %v3905
    %v4751 = vunpack.c.l.b16 %v3906
    %v4752 = vunpack.c.l.b16 %v3907
    %v4753 = vunpack.c.l.b16 %v3908
    %v4754 = vunpack.c.l.b16 %v3909
    %v4755 = vunpack.c.l.b16 %v3910
    %v4756 = vunpack.c.l.b16 %v3911
    %v4757 = vunpack.c.l.b16 %v3912
    %v4758 = vunpack.c.l.b16 %v3913
    %v4759 = vunpack.c.l.b16 %v3914
    %v4760 = vunpack.c.l.b16 %v3915
    %v4761 = vunpack.c.l.b16 %v3916
    %v4762 = vunpack.c.l.b16 %v3917
    %v4763 = vunpack.c.l.b16 %v3918
    %v4764 = vunpack.c.l.b16 %v3919
    %v4765 = vunpack.c.l.b16 %v3920
    %v4766 = vunpack.c.l.b16 %v3921
    %v4767 = vunpack.c.l.b16 %v3922
    %v4768 = vunpack.c.l.b16 %v3923
    %v4769 = vunpack.c.l.b16 %v3924
    %v4770 = vunpack.c.l.b16 %v3925
    %v4771 = vunpack.c.l.b16 %v3926
    %v4772 = vunpack.c.l.b16 %v3927
    %v4773 = vunpack.c.l.b16 %v3928
    %v4774 = vunpack.c.l.b16 %v3929
    %v4775 = vunpack.c.l.b16 %v3930
    %v4776 = vunpack.c.l.b16 %v3931
    %v4777 = vunpack.c.l.b16 %v3932
    %v4778 = vunpack.c.l.b16 %v3933
    %v4779 = vunpack.c.l.b16 %v3934
    %v4780 = vunpack.c.l.b16 %v3935
    %v4781 = vunpack.c.l.b16 %v3936
    %v4782 = vunpack.c.l.b16 %v3937
    %v4783 = vunpack.c.l.b16 %v3938
    %v4784 = vunpack.c.l.b16 %v3939
    %v4785 = vunpack.c.l.b16 %v3940
    %v4786 = vunpack.c.l.b16 %v3941
    %v4787 = vunpack.c.l.b16 %v3942
    %v4788 = vunpack.c.l.b16 %v3943
    %v4789 = vunpack.c.l.b16 %v3944
    %v4790 = vunpack.c.l.b16 %v3945
    %v4791 = vunpack.c.l.b16 %v3946
    %v4792 = vunpack.c.l.b16 %v3947
    %v4793 = vunpack.c.l.b16 %v3948
    %v4794 = vunpack.c.l.b16 %v3949
    %v4795 = vunpack.c.l.b16 %v3950
    %v4796 = vunpack.c.l.b16 %v3951
    %v4797 = vunpack.c.l.b16 %v3952
    %v4798 = vunpack.c.l.b16 %v3953
    %v4799 = vunpack.c.l.b16 %v3954
    %v4800 = vunpack.c.l.b16 %v3955
    %v4801 = vunpack.c.l.b16 %v3956
    %v4802 = vunpack.c.l.b16 %v3957
    %v4803 = vunpack.c.l.b16 %v3958
    %v4804 = vunpack.c.l.b16 %v3959
    %v4805 = vunpack.c.l.b16 %v3960
    %v4806 = vunpack.c.l.b16 %v3961
    %v4807 = vunpack.c.l.b16 %v3962
    %v4808 = vunpack.c.l.b16 %v3963
    %v4809 = vunpack.c.l.b16 %v3964
    %v4810 = vunpack.c.l.b16 %v3965
    %v4811 = vunpack.c.l.b16 %v3966
    %v4812 = vunpack.c.l.b16 %v3967
    %v4813 = vunpack.c.l.b16 %v3968
    %v4814 = vunpack.c.l.b16 %v3969
    %v4815 = vunpack.c.l.b16 %v3970
    %v4816 = vunpack.c.l.b16 %v3971
    %v4817 = vunpack.c.l.b16 %v3972
    %v4818 = vunpack.c.l.b16 %v3973
    %v4819 = vunpack.c.l.b16 %v3974
    %v4820 = vunpack.c.l.b16 %v3975
    %v4821 = vunpack.c.l.b16 %v3976
    %v4822 = vunpack.c.l.b16 %v3977
    %v4823 = vunpack.c.l.b16 %v3978
    %v4824 = vunpack.c.l.b16 %v3979
    %v4825 = vunpack.c.l.b16 %v3980
    %v4826 = vunpack.c.l.b16 %v3981
    %v4827 = vunpack.c.l.b16 %v3982
    %v4828 = vunpack.c.l.b16 %v3983
    %v4829 = vunpack.c.l.b16 %v3984
    %v4830 = vunpack.c.l.b16 %v3985
    %v4831 = vunpack.c.l.b16 %v3986
    %v4832 = vunpack.c.l.b16 %v3987
    %v4833 = vunpack.c.l.b16 %v3988
    %v4834 = vunpack.c.l.b16 %v3989
    %v4835 = vunpack.c.l.b16 %v3990
    %v4836 = vunpack.c.l.b16 %v3991
    %v4837 = vunpack.c.l.b16 %v3992
    %v4838 = vunpack.c.l.b16 %v3993
    %v4839 = vunpack.c.l.b16 %v3994
    %v4840 = vunpack.c.l.b16 %v3995
    %v4841 = vunpack.c.l.b16 %v3996
    %v4842 = vunpack.c.l.b16 %v3997
    %v4843 = vunpack.c.l.b16 %v3998
    %v4844 = vunpack.c.l.b16 %v3999
    %v4845 = vunpack.c.l.b16 %v4000
    %v4846 = vunpack.c.l.b16 %v4001
    %v4847 = vunpack.c.l.b16 %v4002
    %v4848 = vunpack.c.l.b16 %v4003
    %v4849 = vunpack.c.l.b16 %v4004
    %v4850 = vunpack.c.l.b16 %v4005
    %v4851 = vunpack.c.l.b16 %v4006
    %v4852 = vunpack.c.l.b16 %v4007
    %v4853 = vunpack.c.l.b16 %v4008
    %v4854 = vunpack.c.l.b16 %v4009
    %v4855 = vunpack.c.l.b16 %v4010
    %v4856 = vunpack.c.l.b16 %v4011
    %v4857 = vunpack.c.l.b16 %v4012
    %v4858 = vunpack.c.l.b16 %v4013
    %v4859 = vunpack.c.l.b16 %v4014
    %v4860 = vunpack.c.l.b16 %v4015
    %v4861 = vunpack.c.l.b16 %v4016
    %v4862 = vunpack.c.l.b16 %v4017
    %v4863 = vunpack.c.l.b16 %v4018
    %v4864 = vunpack.c.l.b16 %v4019
    %v4865 = vunpack.c.l.b16 %v4020
    %v4866 = vunpack.c.l.b16 %v4021
    %v4867 = vunpack.c.l.b16 %v4022
    %v4868 = vunpack.c.l.b16 %v4023
    %v4869 = vunpack.c.l.b16 %v4024
    %v4870 = vunpack.c.l.b16 %v4025
    %v4871 = vunpack.c.l.b16 %v4026
    %v4872 = vunpack.c.l.b16 %v4027
    %v4873 = vunpack.c.l.b16 %v4028
    %v4874 = vunpack.c.l.b16 %v4029
    %v4875 = vunpack.c.l.b16 %v4030
    %v4876 = vunpack.c.l.b16 %v4031
    %v4877 = vunpack.c.l.b16 %v4032
    %v4878 = vunpack.c.l.b16 %v4033
    %v4879 = vunpack.c.l.b16 %v4034
    %v4880 = vunpack.c.l.b16 %v4035
    %v4881 = vunpack.c.l.b16 %v4036
    %v4882 = vunpack.c.l.b16 %v4037
    %v4883 = vunpack.c.l.b16 %v4038
    %v4884 = vunpack.c.l.b16 %v4039
    %v4885 = vunpack.c.l.b16 %v4040
    %v4886 = vunpack.c.l.b16 %v4041
    %v4887 = vunpack.c.l.b16 %v4042
    %v4888 = vunpack.c.l.b16 %v4043
    %v4889 = vunpack.c.l.b16 %v4044
    %v4890 = vunpack.c.l.b16 %v4045
    %v4891 = vunpack.c.l.b16 %v4046
    %v4892 = vunpack.c.l.b16 %v4047
    %v4893 = vunpack.c.l.b16 %v4048
    %v4894 = vunpack.c.l.b16 %v4049
    %v4895 = vunpack.c.l.b16 %v4050
    %v4896 = vunpack.c.l.b16 %v4051
    %v4897 = vunpack.c.l.b16 %v4052
    %v4898 = vunpack.c.l.b16 %v4053
    %v4899 = vunpack.c.l.b16 %v4054
    %v4900 = vunpack.c.l.b16 %v4055
    %v4901 = vunpack.c.l.b16 %v4056
    %v4902 = vunpack.c.l.b16 %v4057
    %v4903 = vunpack.c.l.b16 %v4058
    %v4904 = vunpack.c.l.b16 %v4059
    %v4905 = vunpack.c.l.b16 %v4060
    %v4906 = vunpack.c.l.b16 %v4061
    %v4907 = vunpack.c.l.b16 %v4062
    %v4908 = vunpack.c.l.b16 %v4063
    %v4909 = vunpack.c.l.b16 %v4064
    %v4910 = vunpack.c.l.b16 %v4065
    %v4911 = vunpack.c.l.b16 %v4066
    %v4912 = vunpack.c.l.b16 %v4067
    %v4913 = vunpack.c.l.b16 %v4068
    %v4914 = vunpack.c.l.b16 %v4069
    %v4915 = vunpack.c.l.b16 %v4070
    %v4916 = vunpack.c.l.b16 %v4071
    %v4917 = vunpack.c.l.b16 %v4072
    %v4918 = vunpack.c.l.b16 %v4073
    %v4919 = vunpack.c.l.b16 %v4074
    %v4920 = vunpack.c.l.b16 %v4075
    %v4921 = vunpack.c.l.b16 %v4076
    %v4922 = vunpack.c.l.b16 %v4077
    %v4923 = vunpack.c.l.b16 %v4078
    %v4924 = vunpack.c.l.b16 %v4079
    %v4925 = vunpack.c.l.b16 %v4080
    %v4926 = vunpack.c.l.b16 %v4081
    %v4927 = vunpack.c.l.b16 %v4082
    %v4928 = vunpack.c.l.b16 %v4083
    %v4929 = vunpack.c.l.b16 %v4084
    %v4930 = vunpack.c.l.b16 %v4085
    %v4931 = vunpack.c.l.b16 %v4086
    %v4932 = vunpack.c.l.b16 %v4087
    %v4933 = vunpack.c.l.b16 %v4088
    %v4934 = vunpack.c.l.b16 %v4089
    %v4935 = vunpack.c.l.b16 %v4090
    %v4936 = vunpack.c.l.b16 %v4091
    %v4937 = vunpack.c.l.b16 %v4092
    %v4938 = vunpack.c.l.b16 %v4093
    %v4939 = vunpack.c.l.b16 %v4094
    %v4940 = vunpack.c.l.b16 %v4095
    %v4941 = vunpack.c.l.b16 %v4096
    %v4942 = vunpack.c.l.b16 %v4097
    %v4943 = vunpack.c.l.b16 %v4098
    %v4944 = vunpack.c.l.b16 %v4099
    %v4945 = vunpack.c.l.b16 %v4100
    %v4946 = vunpack.c.l.b16 %v4101
    %v4947 = vunpack.c.l.b16 %v4102
    %v4948 = vunpack.c.l.b16 %v4103
    %v4949 = vunpack.c.l.b16 %v4104
    %v4950 = vunpack.c.l.b16 %v4105
    %v4951 = vunpack.c.l.b16 %v4106
    %v4952 = vunpack.c.l.b16 %v4107
    %v4953 = vunpack.c.l.b16 %v4108
    %v4954 = vunpack.c.l.b16 %v4109
    %v4955 = vunpack.c.l.b16 %v4110
    %v4956 = vunpack.c.l.b16 %v4111
    %v4957 = vunpack.c.l.b16 %v4112
    %v4958 = vunpack.c.l.b16 %v4113
    %v4959 = vunpack.c.l.b16 %v4114
    %v4960 = vunpack.c.l.b16 %v4115
    %v4961 = vunpack.c.l.b16 %v4116
    %v4962 = vunpack.c.l.b16 %v4117
    %v4963 = vunpack.c.l.b16 %v4118
    %v4964 = vunpack.c.l.b16 %v4119
    %v4965 = vunpack.c.l.b16 %v4120
    %v4966 = vunpack.c.l.b16 %v4121
    %v4967 = vunpack.c.l.b16 %v4122
    %v4968 = vunpack.c.l.b16 %v4123
    %v4969 = vunpack.c.l.b16 %v4124
    %v4970 = vunpack.c.l.b16 %v4125
    %v4971 = vunpack.c.l.b16 %v4126
    %v4972 = vunpack.c.l.b16 %v4127
    %v4973 = vunpack.c.l.b16 %v4128
    %v4974 = vunpack.c.l.b16 %v4129
    %v4975 = vunpack.c.l.b16 %v4130
    %v4976 = vunpack.c.l.b16 %v4131
    %v4977 = vunpack.c.l.b16 %v4132
    %v4978 = vunpack.c.l.b16 %v4133
    %v4979 = vunpack.c.l.b16 %v4134
    %v4980 = vunpack.c.l.b16 %v4135
    %v4981 = vunpack.c.l.b16 %v4136
    %v4982 = vunpack.c.l.b16 %v4137
    %v4983 = vunpack.c.l.b16 %v4138
    %v4984 = vunpack.c.l.b16 %v4139
    %v4985 = vunpack.c.l.b16 %v4140
    %v4986 = vunpack.c.l.b16 %v4141
    %v4987 = vunpack.c.l.b16 %v4142
    %v4988 = vunpack.c.l.b16 %v4143
    %v4989 = vunpack.c.l.b16 %v4144
    %v4990 = vunpack.c.l.b16 %v4145
    %v4991 = vunpack.c.l.b16 %v4146
    %v4992 = vunpack.c.l.b16 %v4147
    %v4993 = vunpack.c.l.b16 %v4148
    %v4994 = vunpack.c.l.b16 %v4149
    %v4995 = vunpack.c.l.b16 %v4150
    %v4996 = vunpack.c.l.b16 %v4151
    %v4997 = vunpack.c.l.b16 %v4152
    %v4998 = vunpack.c.l.b16 %v4153
    %v4999 = vunpack.c.l.b16 %v4154
    %v5000 = vunpack.c.l.b16 %v4155
    %v5001 = vunpack.c.l.b16 %v4156
    %v5002 = vunpack.c.l.b16 %v4157
    %v5003 = vunpack.c.l.b16 %v4158
    %v5004 = vunpack.c.l.b16 %v4159
    %v5005 = vunpack.c.l.b16 %v4160
    %v5006 = vunpack.c.l.b16 %v4161
    %v5007 = vunpack.c.l.b16 %v4162
    %v5008 = vunpack.c.l.b16 %v4163
    %v5009 = vunpack.c.l.b16 %v4164
    %v5010 = vpack.c.b16 %v4619, %v4618
    %v5011 = vpack.c.b16 %v4621, %v4620
    %v5012 = vpack.c.b16 %v4623, %v4622
    %v5013 = vpack.c.b16 %v4625, %v4624
    %v5014 = vpack.c.b16 %v4627, %v4626
    %v5015 = vpack.c.b16 %v4629, %v4628
    %v5016 = vpack.c.b16 %v4631, %v4630
    %v5017 = vpack.c.b16 %v4633, %v4632
    %v5018 = vpack.c.b16 %v4635, %v4634
    %v5019 = vpack.c.b16 %v4637, %v4636
    %v5020 = vpack.c.b16 %v4639, %v4638
    %v5021 = vpack.c.b16 %v4641, %v4640
    %v5022 = vpack.c.b16 %v4643, %v4642
    %v5023 = vpack.c.b16 %v4645, %v4644
    %v5024 = vpack.c.b16 %v4647, %v4646
    %v5025 = vpack.c.b16 %v4649, %v4648
    %v5026 = vpack.c.b16 %v4651, %v4650
    %v5027 = vpack.c.b16 %v4653, %v4652
    %v5028 = vpack.c.b16 %v4655, %v4654
    %v5029 = vpack.c.b16 %v4657, %v4656
    %v5030 = vpack.c.b16 %v4659, %v4658
    %v5031 = vpack.c.b16 %v4661, %v4660
    %v5032 = vpack.c.b16 %v4663, %v4662
    %v5033 = vpack.c.b16 %v4665, %v4664
    %v5034 = vpack.c.b16 %v4667, %v4666
    %v5035 = vpack.c.b16 %v4669, %v4668
    %v5036 = vpack.c.b16 %v4671, %v4670
    %v5037 = vpack.c.b16 %v4673, %v4672
    %v5038 = vpack.c.b16 %v4675, %v4674
    %v5039 = vpack.c.b16 %v4677, %v4676
    %v5040 = vpack.c.b16 %v4679, %v4678
    %v5041 = vpack.c.b16 %v4681, %v4680
    %v5042 = vpack.c.b16 %v4683, %v4682
    %v5043 = vpack.c.b16 %v4685, %v4684
    %v5044 = vpack.c.b16 %v4687, %v4686
    %v5045 = vpack.c.b16 %v4689, %v4688
    %v5046 = vpack.c.b16 %v4691, %v4690
    %v5047 = vpack.c.b16 %v4693, %v4692
    %v5048 = vpack.c.b16 %v4695, %v4694
    %v5049 = vpack.c.b16 %v4697, %v4696
    %v5050 = vpack.c.b16 %v4699, %v4698
    %v5051 = vpack.c.b16 %v4701, %v4700
    %v5052 = vpack.c.b16 %v4703, %v4702
    %v5053 = vpack.c.b16 %v4705, %v4704
    %v5054 = vpack.c.b16 %v4707, %v4706
    %v5055 = vpack.c.b16 %v4709, %v4708
    %v5056 = vpack.c.b16 %v4711, %v4710
    %v5057 = vpack.c.b16 %v4713, %v4712
    %v5058 = vpack.c.b16 %v4715, %v4714
    %v5059 = vpack.c.b16 %v4717, %v4716
    %v5060 = vpack.c.b16 %v4719, %v4718
    %v5061 = vpack.c.b16 %v4721, %v4720
    %v5062 = vpack.c.b16 %v4723, %v4722
    %v5063 = vpack.c.b16 %v4725, %v4724
    %v5064 = vpack.c.b16 %v4727, %v4726
    %v5065 = vpack.c.b16 %v4729, %v4728
    %v5066 = vpack.c.b16 %v4731, %v4730
    %v5067 = vpack.c.b16 %v4733, %v4732
    %v5068 = vpack.c.b16 %v4735, %v4734
    %v5069 = vpack.c.b16 %v4737, %v4736
    %v5070 = vpack.c.b16 %v4739, %v4738
    %v5071 = vpack.c.b16 %v4741, %v4740
    %v5072 = vpack.c.b16 %v4743, %v4742
    %v5073 = vpack.c.b16 %v4745, %v4744
    %v5074 = vpack.c.b16 %v4747, %v4746
    %v5075 = vpack.c.b16 %v4749, %v4748
    %v5076 = vpack.c.b16 %v4751, %v4750
    %v5077 = vpack.c.b16 %v4753, %v4752
    %v5078 = vpack.c.b16 %v4755, %v4754
    %v5079 = vpack.c.b16 %v4757, %v4756
    %v5080 = vpack.c.b16 %v4759, %v4758
    %v5081 = vpack.c.b16 %v4761, %v4760
    %v5082 = vpack.c.b16 %v4763, %v4762
    %v5083 = vpack.c.b16 %v4765, %v4764
    %v5084 = vpack.c.b16 %v4767, %v4766
    %v5085 = vpack.c.b16 %v4769, %v4768
    %v5086 = vpack.c.b16 %v4771, %v4770
    %v5087 = vpack.c.b16 %v4773, %v4772
    %v5088 = vpack.c.b16 %v4775, %v4774
    %v5089 = vpack.c.b16 %v4777, %v4776
    %v5090 = vpack.c.b16 %v4779, %v4778
    %v5091 = vpack.c.b16 %v4781, %v4780
    %v5092 = vpack.c.b16 %v4783, %v4782
    %v5093 = vpack.c.b16 %v4785, %v4784
    %v5094 = vpack.c.b16 %v4787, %v4786
    %v5095 = vpack.c.b16 %v4789, %v4788
    %v5096 = vpack.c.b16 %v4791, %v4790
    %v5097 = vpack.c.b16 %v4793, %v4792
    %v5098 = vpack.c.b16 %v4795, %v4794
    %v5099 = vpack.c.b16 %v4797, %v4796
    %v5100 = vpack.c.b16 %v4799, %v4798
    %v5101 = vpack.c.b16 %v4801, %v4800
    %v5102 = vpack.c.b16 %v4803, %v4802
    %v5103 = vpack.c.b16 %v4805, %v4804
    %v5104 = vpack.c.b16 %v4807, %v4806
    %v5105 = vpack.c.b16 %v4809, %v4808
    %v5106 = vpack.c.b16 %v4811, %v4810
    %v5107 = vpack.c.b16 %v4813, %v4812
    %v5108 = vpack.c.b16 %v4815, %v4814
    %v5109 = vpack.c.b16 %v4817, %v4816
    %v5110 = vpack.c.b16 %v4819, %v4818
    %v5111 = vpack.c.b16 %v4821, %v4820
    %v5112 = vpack.c.b16 %v4823, %v4822
    %v5113 = vpack.c.b16 %v4825, %v4824
    %v5114 = vpack.c.b16 %v4827, %v4826
    %v5115 = vpack.c.b16 %v4829, %v4828
    %v5116 = vpack.c.b16 %v4831, %v4830
    %v5117 = vpack.c.b16 %v4833, %v4832
    %v5118 = vpack.c.b16 %v4835, %v4834
    %v5119 = vpack.c.b16 %v4837, %v4836
    %v5120 = vpack.c.b16 %v4839, %v4838
    %v5121 = vpack.c.b16 %v4841, %v4840
    %v5122 = vpack.c.b16 %v4843, %v4842
    %v5123 = vpack.c.b16 %v4845, %v4844
    %v5124 = vpack.c.b16 %v4847, %v4846
    %v5125 = vpack.c.b16 %v4849, %v4848
    %v5126 = vpack.c.b16 %v4851, %v4850
    %v5127 = vpack.c.b16 %v4853, %v4852
    %v5128 = vpack.c.b16 %v4855, %v4854
    %v5129 = vpack.c.b16 %v4857, %v4856
    %v5130 = vpack.c.b16 %v4859, %v4858
    %v5131 = vpack.c.b16 %v4861, %v4860
    %v5132 = vpack.c.b16 %v4863, %v4862
    %v5133 = vpack.c.b16 %v4865, %v4864
    %v5134 = vpack.c.b16 %v4867, %v4866
    %v5135 = vpack.c.b16 %v4869, %v4868
    %v5136 = vpack.c.b16 %v4871, %v4870
    %v5137 = vpack.c.b16 %v4873, %v4872
    %v5138 = vpack.c.b16 %v4875, %v4874
    %v5139 = vpack.c.b16 %v4877, %v4876
    %v5140 = vpack.c.b16 %v4879, %v4878
    %v5141 = vpack.c.b16 %v4881, %v4880
    %v5142 = vpack.c.b16 %v4883, %v4882
    %v5143 = vpack.c.b16 %v4885, %v4884
    %v5144 = vpack.c.b16 %v4887, %v4886
    %v5145 = vpack.c.b16 %v4889, %v4888
    %v5146 = vpack.c.b16 %v4891, %v4890
    %v5147 = vpack.c.b16 %v4893, %v4892
    %v5148 = vpack.c.b16 %v4895, %v4894
    %v5149 = vpack.c.b16 %v4897, %v4896
    %v5150 = vpack.c.b16 %v4899, %v4898
    %v5151 = vpack.c.b16 %v4901, %v4900
    %v5152 = vpack.c.b16 %v4903, %v4902
    %v5153 = vpack.c.b16 %v4905, %v4904
    %v5154 = vpack.c.b16 %v4907, %v4906
    %v5155 = vpack.c.b16 %v4909, %v4908
    %v5156 = vpack.c.b16 %v4911, %v4910
    %v5157 = vpack.c.b16 %v4913, %v4912
    %v5158 = vpack.c.b16 %v4915, %v4914
    %v5159 = vpack.c.b16 %v4917, %v4916
    %v5160 = vpack.c.b16 %v4919, %v4918
    %v5161 = vpack.c.b16 %v4921, %v4920
    %v5162 = vpack.c.b16 %v4923, %v4922
    %v5163 = vpack.c.b16 %v4925, %v4924
    %v5164 = vpack.c.b16 %v4927, %v4926
    %v5165 = vpack.c.b16 %v4929, %v4928
    %v5166 = vpack.c.b16 %v4931, %v4930
    %v5167 = vpack.c.b16 %v4933, %v4932
    %v5168 = vpack.c.b16 %v4935, %v4934
    %v5169 = vpack.c.b16 %v4937, %v4936
    %v5170 = vpack.c.b16 %v4939, %v4938
    %v5171 = vpack.c.b16 %v4941, %v4940
    %v5172 = vpack.c.b16 %v4943, %v4942
    %v5173 = vpack.c.b16 %v4945, %v4944
    %v5174 = vpack.c.b16 %v4947, %v4946
    %v5175 = vpack.c.b16 %v4949, %v4948
    %v5176 = vpack.c.b16 %v4951, %v4950
    %v5177 = vpack.c.b16 %v4953, %v4952
    %v5178 = vpack.c.b16 %v4955, %v4954
    %v5179 = vpack.c.b16 %v4957, %v4956
    %v5180 = vpack.c.b16 %v4959, %v4958
    %v5181 = vpack.c.b16 %v4961, %v4960
    %v5182 = vpack.c.b16 %v4963, %v4962
    %v5183 = vpack.c.b16 %v4965, %v4964
    %v5184 = vpack.c.b16 %v4967, %v4966
    %v5185 = vpack.c.b16 %v4969, %v4968
    %v5186 = vpack.c.b16 %v4971, %v4970
    %v5187 = vpack.c.b16 %v4973, %v4972
    %v5188 = vpack.c.b16 %v4975, %v4974
    %v5189 = vpack.c.b16 %v4977, %v4976
    %v5190 = vpack.c.b16 %v4979, %v4978
    %v5191 = vpack.c.b16 %v4981, %v4980
    %v5192 = vpack.c.b16 %v4983, %v4982
    %v5193 = vpack.c.b16 %v4985, %v4984
    %v5194 = vpack.c.b16 %v4987, %v4986
    %v5195 = vpack.c.b16 %v4989, %v4988
    %v5196 = vpack.c.b16 %v4991, %v4990
    %v5197 = vpack.c.b16 %v4993, %v4992
    %v5198 = vpack.c.b16 %v4995, %v4994
    %v5199 = vpack.c.b16 %v4997, %v4996
    %v5200 = vpack.c.b16 %v4999, %v4998
    %v5201 = vpack.c.b16 %v5001, %v5000
    %v5202 = vpack.c.b16 %v5003, %v5002
    %v5203 = vpack.c.b16 %v5005, %v5004
    %v5204 = vpack.c.b16 %v5007, %v5006
    %v5205 = vpack.c.b16 %v5009, %v5008
    %v5402 = vsel %vm3328, %v4201, 0
    %5404 = vmatpush.bf16.msra.mxu0 %v5017
    %5405 = vmatpush.bf16.msra.mxu0 %v5016
    %5406 = vmatpush.bf16.msra.mxu0 %v5015
    %5407 = vmatpush.bf16.msra.mxu0 %v5014
    %5408 = vmatpush.bf16.msra.mxu0 %v5013
    %5409 = vmatpush.bf16.msra.mxu0 %v5012
    %5410 = vmatpush.bf16.msra.mxu0 %v5011
    %5411 = vmatpush.bf16.msra.mxu0 %v5010
    %5412 = vmatmul.bf16.gmra.mxu0 %v4171
    %v5413 = vpop.f32.mrf.mxu0
    %v5414 = vadd.f32 %v4167, %v5413
    %v5415 = vpop.f32.mrf.mxu0
    %5416 = vdwg.mxu0
    %5417 = vmatpush.bf16.msra.mxu0 %v5025
    %5418 = vmatpush.bf16.msra.mxu0 %v5024
    %5419 = vmatpush.bf16.msra.mxu0 %v5023
    %5420 = vmatpush.bf16.msra.mxu0 %v5022
    %5421 = vmatpush.bf16.msra.mxu0 %v5021
    %5422 = vmatpush.bf16.msra.mxu0 %v5020
    %5423 = vmatpush.bf16.msra.mxu0 %v5019
    %5424 = vmatpush.bf16.msra.mxu0 %v5018
    %5425 = vmatmul.bf16.gmra.mxu0 %v4172
    %v5426 = vpop.f32.mrf.mxu0
    %v5427 = vadd.f32 %v5414, %v5426
    %v5428 = vpop.f32.mrf.mxu0
    %5429 = vdwg.mxu0
    %5430 = vmatpush.bf16.msra.mxu0 %v5033
    %5431 = vmatpush.bf16.msra.mxu0 %v5032
    %5432 = vmatpush.bf16.msra.mxu0 %v5031
    %5433 = vmatpush.bf16.msra.mxu0 %v5030
    %5434 = vmatpush.bf16.msra.mxu0 %v5029
    %5435 = vmatpush.bf16.msra.mxu0 %v5028
    %5436 = vmatpush.bf16.msra.mxu0 %v5027
    %5437 = vmatpush.bf16.msra.mxu0 %v5026
    %5438 = vmatmul.bf16.gmra.mxu0 %v4173
    %v5439 = vpop.f32.mrf.mxu0
    %v5440 = vadd.f32 %v5427, %v5439
    %v5441 = vpop.f32.mrf.mxu0
    %5442 = vdwg.mxu0
    %5443 = vmatpush.bf16.msra.mxu0 %v5041
    %5444 = vmatpush.bf16.msra.mxu0 %v5040
    %5445 = vmatpush.bf16.msra.mxu0 %v5039
    %5446 = vmatpush.bf16.msra.mxu0 %v5038
    %5447 = vmatpush.bf16.msra.mxu0 %v5037
    %5448 = vmatpush.bf16.msra.mxu0 %v5036
    %5449 = vmatpush.bf16.msra.mxu0 %v5035
    %5450 = vmatpush.bf16.msra.mxu0 %v5034
    %5451 = vmatmul.bf16.gmra.mxu0 %v4174
    %v5452 = vpop.f32.mrf.mxu0
    %v5453 = vadd.f32 %v5440, %v5452
    %v5454 = vpop.f32.mrf.mxu0
    %5455 = vdwg.mxu0
    %5456 = vmatpush.bf16.msra.mxu0 %v5049
    %5457 = vmatpush.bf16.msra.mxu0 %v5048
    %5458 = vmatpush.bf16.msra.mxu0 %v5047
    %5459 = vmatpush.bf16.msra.mxu0 %v5046
    %5460 = vmatpush.bf16.msra.mxu0 %v5045
    %5461 = vmatpush.bf16.msra.mxu0 %v5044
    %5462 = vmatpush.bf16.msra.mxu0 %v5043
    %5463 = vmatpush.bf16.msra.mxu0 %v5042
    %5464 = vmatmul.bf16.gmra.mxu0 %v4175
    %v5465 = vpop.f32.mrf.mxu0
    %v5466 = vadd.f32 %v5453, %v5465
    %v5467 = vpop.f32.mrf.mxu0
    %5468 = vdwg.mxu0
    %5469 = vmatpush.bf16.msra.mxu0 %v5057
    %5470 = vmatpush.bf16.msra.mxu0 %v5056
    %5471 = vmatpush.bf16.msra.mxu0 %v5055
    %5472 = vmatpush.bf16.msra.mxu0 %v5054
    %5473 = vmatpush.bf16.msra.mxu0 %v5053
    %5474 = vmatpush.bf16.msra.mxu0 %v5052
    %5475 = vmatpush.bf16.msra.mxu0 %v5051
    %5476 = vmatpush.bf16.msra.mxu0 %v5050
    %5477 = vmatmul.bf16.gmra.mxu0 %v4176
    %v5478 = vpop.f32.mrf.mxu0
    %v5479 = vadd.f32 %v5466, %v5478
    %v5480 = vpop.f32.mrf.mxu0
    %5481 = vdwg.mxu0
    %5482 = vmatpush.bf16.msra.mxu0 %v5065
    %5483 = vmatpush.bf16.msra.mxu0 %v5064
    %5484 = vmatpush.bf16.msra.mxu0 %v5063
    %5485 = vmatpush.bf16.msra.mxu0 %v5062
    %5486 = vmatpush.bf16.msra.mxu0 %v5061
    %5487 = vmatpush.bf16.msra.mxu0 %v5060
    %5488 = vmatpush.bf16.msra.mxu0 %v5059
    %5489 = vmatpush.bf16.msra.mxu0 %v5058
    %5490 = vmatmul.bf16.gmra.mxu0 %v4177
    %v5491 = vpop.f32.mrf.mxu0
    %v5492 = vadd.f32 %v5479, %v5491
    %v5493 = vpop.f32.mrf.mxu0
    %5494 = vdwg.mxu0
    %5495 = vmatpush.bf16.msra.mxu0 %v5073
    %5496 = vmatpush.bf16.msra.mxu0 %v5072
    %5497 = vmatpush.bf16.msra.mxu0 %v5071
    %5498 = vmatpush.bf16.msra.mxu0 %v5070
    %5499 = vmatpush.bf16.msra.mxu0 %v5069
    %5500 = vmatpush.bf16.msra.mxu0 %v5068
    %5501 = vmatpush.bf16.msra.mxu0 %v5067
    %5502 = vmatpush.bf16.msra.mxu0 %v5066
    %5503 = vmatmul.bf16.gmra.mxu0 %v4178
    %v5504 = vpop.f32.mrf.mxu0
    %v5505 = vadd.f32 %v5492, %v5504
    %v5506 = vpop.f32.mrf.mxu0
    %5507 = vdwg.mxu0
    %5508 = vmatpush.bf16.msra.mxu0 %v5081
    %5509 = vmatpush.bf16.msra.mxu0 %v5080
    %5510 = vmatpush.bf16.msra.mxu0 %v5079
    %5511 = vmatpush.bf16.msra.mxu0 %v5078
    %5512 = vmatpush.bf16.msra.mxu0 %v5077
    %5513 = vmatpush.bf16.msra.mxu0 %v5076
    %5514 = vmatpush.bf16.msra.mxu0 %v5075
    %5515 = vmatpush.bf16.msra.mxu0 %v5074
    %5516 = vmatmul.bf16.gmra.mxu0 %v4181
    %v5517 = vpop.f32.mrf.mxu0
    %v5518 = vadd.f32 %v5505, %v5517
    %v5519 = vpop.f32.mrf.mxu0
    %5520 = vdwg.mxu0
    %5521 = vmatpush.bf16.msra.mxu0 %v5089
    %5522 = vmatpush.bf16.msra.mxu0 %v5088
    %5523 = vmatpush.bf16.msra.mxu0 %v5087
    %5524 = vmatpush.bf16.msra.mxu0 %v5086
    %5525 = vmatpush.bf16.msra.mxu0 %v5085
    %5526 = vmatpush.bf16.msra.mxu0 %v5084
    %5527 = vmatpush.bf16.msra.mxu0 %v5083
    %5528 = vmatpush.bf16.msra.mxu0 %v5082
    %5529 = vmatmul.bf16.gmra.mxu0 %v4182
    %v5530 = vpop.f32.mrf.mxu0
    %v5531 = vadd.f32 %v5518, %v5530
    %v5532 = vpop.f32.mrf.mxu0
    %5533 = vdwg.mxu0
    %5534 = vmatpush.bf16.msra.mxu0 %v5097
    %5535 = vmatpush.bf16.msra.mxu0 %v5096
    %5536 = vmatpush.bf16.msra.mxu0 %v5095
    %5537 = vmatpush.bf16.msra.mxu0 %v5094
    %5538 = vmatpush.bf16.msra.mxu0 %v5093
    %5539 = vmatpush.bf16.msra.mxu0 %v5092
    %5540 = vmatpush.bf16.msra.mxu0 %v5091
    %5541 = vmatpush.bf16.msra.mxu0 %v5090
    %5542 = vmatmul.bf16.gmra.mxu0 %v4183
    %v5543 = vpop.f32.mrf.mxu0
    %v5544 = vadd.f32 %v5531, %v5543
    %v5545 = vpop.f32.mrf.mxu0
    %5546 = vdwg.mxu0
    %5547 = vmatpush.bf16.msra.mxu0 %v5105
    %5548 = vmatpush.bf16.msra.mxu0 %v5104
    %5549 = vmatpush.bf16.msra.mxu0 %v5103
    %5550 = vmatpush.bf16.msra.mxu0 %v5102
    %5551 = vmatpush.bf16.msra.mxu0 %v5101
    %5552 = vmatpush.bf16.msra.mxu0 %v5100
    %5553 = vmatpush.bf16.msra.mxu0 %v5099
    %5554 = vmatpush.bf16.msra.mxu0 %v5098
    %5555 = vmatmul.bf16.gmra.mxu0 %v4184
    %v5556 = vpop.f32.mrf.mxu0
    %v5557 = vadd.f32 %v5544, %v5556
    %v5558 = vpop.f32.mrf.mxu0
    %5559 = vdwg.mxu0
    %5560 = vmatpush.bf16.msra.mxu0 %v5113
    %5561 = vmatpush.bf16.msra.mxu0 %v5112
    %5562 = vmatpush.bf16.msra.mxu0 %v5111
    %5563 = vmatpush.bf16.msra.mxu0 %v5110
    %5564 = vmatpush.bf16.msra.mxu0 %v5109
    %5565 = vmatpush.bf16.msra.mxu0 %v5108
    %5566 = vmatpush.bf16.msra.mxu0 %v5107
    %5567 = vmatpush.bf16.msra.mxu0 %v5106
    %5568 = vmatmul.bf16.gmra.mxu0 %v4185
    %v5569 = vpop.f32.mrf.mxu0
    %v5570 = vadd.f32 %v5557, %v5569
    %v5571 = vpop.f32.mrf.mxu0
    %5572 = vdwg.mxu0
    %5573 = vmatpush.bf16.msra.mxu0 %v5121
    %5574 = vmatpush.bf16.msra.mxu0 %v5120
    %5575 = vmatpush.bf16.msra.mxu0 %v5119
    %5576 = vmatpush.bf16.msra.mxu0 %v5118
    %5577 = vmatpush.bf16.msra.mxu0 %v5117
    %5578 = vmatpush.bf16.msra.mxu0 %v5116
    %5579 = vmatpush.bf16.msra.mxu0 %v5115
    %5580 = vmatpush.bf16.msra.mxu0 %v5114
    %5581 = vmatmul.bf16.gmra.mxu0 %v4186
    %v5582 = vpop.f32.mrf.mxu0
    %v5583 = vadd.f32 %v5570, %v5582
    %v5584 = vpop.f32.mrf.mxu0
    %5585 = vdwg.mxu0
    %5586 = vmatpush.bf16.msra.mxu0 %v5129
    %5587 = vmatpush.bf16.msra.mxu0 %v5128
    %5588 = vmatpush.bf16.msra.mxu0 %v5127
    %5589 = vmatpush.bf16.msra.mxu0 %v5126
    %5590 = vmatpush.bf16.msra.mxu0 %v5125
    %5591 = vmatpush.bf16.msra.mxu0 %v5124
    %5592 = vmatpush.bf16.msra.mxu0 %v5123
    %5593 = vmatpush.bf16.msra.mxu0 %v5122
    %5594 = vmatmul.bf16.gmra.mxu0 %v4187
    %v5595 = vpop.f32.mrf.mxu0
    %v5596 = vadd.f32 %v5583, %v5595
    %v5597 = vpop.f32.mrf.mxu0
    %5598 = vdwg.mxu0
    %5599 = vmatpush.bf16.msra.mxu0 %v5137
    %5600 = vmatpush.bf16.msra.mxu0 %v5136
    %5601 = vmatpush.bf16.msra.mxu0 %v5135
    %5602 = vmatpush.bf16.msra.mxu0 %v5134
    %5603 = vmatpush.bf16.msra.mxu0 %v5133
    %5604 = vmatpush.bf16.msra.mxu0 %v5132
    %5605 = vmatpush.bf16.msra.mxu0 %v5131
    %5606 = vmatpush.bf16.msra.mxu0 %v5130
    %5607 = vmatmul.bf16.gmra.mxu0 %v4188
    %v5608 = vpop.f32.mrf.mxu0
    %v5609 = vadd.f32 %v5596, %v5608
    %v5610 = vpop.f32.mrf.mxu0
    %5611 = vdwg.mxu0
    %5612 = vmatpush.bf16.msra.mxu0 %v5145
    %5613 = vmatpush.bf16.msra.mxu0 %v5144
    %5614 = vmatpush.bf16.msra.mxu0 %v5143
    %5615 = vmatpush.bf16.msra.mxu0 %v5142
    %5616 = vmatpush.bf16.msra.mxu0 %v5141
    %5617 = vmatpush.bf16.msra.mxu0 %v5140
    %5618 = vmatpush.bf16.msra.mxu0 %v5139
    %5619 = vmatpush.bf16.msra.mxu0 %v5138
    %5620 = vmatmul.bf16.gmra.mxu0 %v4191
    %v5621 = vpop.f32.mrf.mxu0
    %v5622 = vadd.f32 %v5609, %v5621
    %v5623 = vpop.f32.mrf.mxu0
    %5624 = vdwg.mxu0
    %5625 = vmatpush.bf16.msra.mxu0 %v5153
    %5626 = vmatpush.bf16.msra.mxu0 %v5152
    %5627 = vmatpush.bf16.msra.mxu0 %v5151
    %5628 = vmatpush.bf16.msra.mxu0 %v5150
    %5629 = vmatpush.bf16.msra.mxu0 %v5149
    %5630 = vmatpush.bf16.msra.mxu0 %v5148
    %5631 = vmatpush.bf16.msra.mxu0 %v5147
    %5632 = vmatpush.bf16.msra.mxu0 %v5146
    %5633 = vmatmul.bf16.gmra.mxu0 %v4192
    %v5634 = vpop.f32.mrf.mxu0
    %v5635 = vadd.f32 %v5622, %v5634
    %v5636 = vpop.f32.mrf.mxu0
    %5637 = vdwg.mxu0
    %5638 = vmatpush.bf16.msra.mxu0 %v5161
    %5639 = vmatpush.bf16.msra.mxu0 %v5160
    %5640 = vmatpush.bf16.msra.mxu0 %v5159
    %5641 = vmatpush.bf16.msra.mxu0 %v5158
    %5642 = vmatpush.bf16.msra.mxu0 %v5157
    %5643 = vmatpush.bf16.msra.mxu0 %v5156
    %5644 = vmatpush.bf16.msra.mxu0 %v5155
    %5645 = vmatpush.bf16.msra.mxu0 %v5154
    %5646 = vmatmul.bf16.gmra.mxu0 %v4193
    %v5647 = vpop.f32.mrf.mxu0
    %v5648 = vadd.f32 %v5635, %v5647
    %v5649 = vpop.f32.mrf.mxu0
    %5650 = vdwg.mxu0
    %5651 = vmatpush.bf16.msra.mxu0 %v5169
    %5652 = vmatpush.bf16.msra.mxu0 %v5168
    %5653 = vmatpush.bf16.msra.mxu0 %v5167
    %5654 = vmatpush.bf16.msra.mxu0 %v5166
    %5655 = vmatpush.bf16.msra.mxu0 %v5165
    %5656 = vmatpush.bf16.msra.mxu0 %v5164
    %5657 = vmatpush.bf16.msra.mxu0 %v5163
    %5658 = vmatpush.bf16.msra.mxu0 %v5162
    %5659 = vmatmul.bf16.gmra.mxu0 %v4194
    %v5660 = vpop.f32.mrf.mxu0
    %v5661 = vadd.f32 %v5648, %v5660
    %v5662 = vpop.f32.mrf.mxu0
    %5663 = vdwg.mxu0
    %5664 = vmatpush.bf16.msra.mxu0 %v5177
    %5665 = vmatpush.bf16.msra.mxu0 %v5176
    %5666 = vmatpush.bf16.msra.mxu0 %v5175
    %5667 = vmatpush.bf16.msra.mxu0 %v5174
    %5668 = vmatpush.bf16.msra.mxu0 %v5173
    %5669 = vmatpush.bf16.msra.mxu0 %v5172
    %5670 = vmatpush.bf16.msra.mxu0 %v5171
    %5671 = vmatpush.bf16.msra.mxu0 %v5170
    %5672 = vmatmul.bf16.gmra.mxu0 %v4195
    %v5673 = vpop.f32.mrf.mxu0
    %v5674 = vadd.f32 %v5661, %v5673
    %v5675 = vpop.f32.mrf.mxu0
    %5676 = vdwg.mxu0
    %5677 = vmatpush.bf16.msra.mxu0 %v5185
    %5678 = vmatpush.bf16.msra.mxu0 %v5184
    %5679 = vmatpush.bf16.msra.mxu0 %v5183
    %5680 = vmatpush.bf16.msra.mxu0 %v5182
    %5681 = vmatpush.bf16.msra.mxu0 %v5181
    %5682 = vmatpush.bf16.msra.mxu0 %v5180
    %5683 = vmatpush.bf16.msra.mxu0 %v5179
    %5684 = vmatpush.bf16.msra.mxu0 %v5178
    %5685 = vmatmul.bf16.gmra.mxu0 %v4196
    %v5686 = vpop.f32.mrf.mxu0
    %v5687 = vadd.f32 %v5674, %v5686
    %v5688 = vpop.f32.mrf.mxu0
    %5689 = vdwg.mxu0
    %5690 = vmatpush.bf16.msra.mxu0 %v5193
    %5691 = vmatpush.bf16.msra.mxu0 %v5192
    %5692 = vmatpush.bf16.msra.mxu0 %v5191
    %5693 = vmatpush.bf16.msra.mxu0 %v5190
    %5694 = vmatpush.bf16.msra.mxu0 %v5189
    %5695 = vmatpush.bf16.msra.mxu0 %v5188
    %5696 = vmatpush.bf16.msra.mxu0 %v5187
    %5697 = vmatpush.bf16.msra.mxu0 %v5186
    %5698 = vmatmul.bf16.gmra.mxu0 %v4197
    %v5699 = vpop.f32.mrf.mxu0
    %v5700 = vadd.f32 %v5687, %v5699
    %v5701 = vpop.f32.mrf.mxu0
    %5702 = vdwg.mxu0
    %5703 = vmatpush.bf16.msra.mxu0 %v5201
    %5704 = vmatpush.bf16.msra.mxu0 %v5200
    %5705 = vmatpush.bf16.msra.mxu0 %v5199
    %5706 = vmatpush.bf16.msra.mxu0 %v5198
    %5707 = vmatpush.bf16.msra.mxu0 %v5197
    %5708 = vmatpush.bf16.msra.mxu0 %v5196
    %5709 = vmatpush.bf16.msra.mxu0 %v5195
    %5710 = vmatpush.bf16.msra.mxu0 %v5194
    %5711 = vmatmul.bf16.gmra.mxu0 %v4198
    %v5712 = vpop.f32.mrf.mxu0
    %v5713 = vadd.f32 %v5700, %v5712
    %v5714 = vpop.f32.mrf.mxu0
    %5715 = vdwg.mxu0
    %5716 = vmatpush.bf16.msra.mxu0 0
    %5717 = vmatpush.bf16.msra.mxu0 0
    %5718 = vmatpush.bf16.msra.mxu0 0
    %5719 = vmatpush.bf16.msra.mxu0 0
    %5720 = vmatpush.bf16.msra.mxu0 %v5205
    %5721 = vmatpush.bf16.msra.mxu0 %v5204
    %5722 = vmatpush.bf16.msra.mxu0 %v5203
    %5723 = vmatpush.bf16.msra.mxu0 %v5202
    %5724 = vmatmul.bf16.gmra.mxu0 %v5402
    %v5725 = vpop.f32.mrf.mxu0
    %v5726 = vadd.f32 %v5713, %v5725
    %v5727 = vpop.f32.mrf.mxu0
    %5728 = vdwg.mxu0
    %5729 = vst [vmem:[#allocation5] sm:$0x3] %v5726
    // Predicated region
    $region38: #{encoder_forward.1} parent=1 // pred_check
      _
    $region39: #{encoder_forward.1} parent=1 // pred_check_branch
      %5731 = sbr.rel (0) target = $region41
    $region40: #{encoder_forward.1} parent=1 // pred_region
      %5733 = vsyncadd [#allocation6], 0
      %s5735 = sshll.u32 [#allocation5], 4
      %s5736 = int_to_ptr.vmem [resolvable:$true] %s5735
      %s5737 = sshll.u32 %s9, 4
      %s5738 = int_to_ptr.hbm [resolvable:$true] %s5737
      %5740 = dma.vmem_to_hbm [thread:$0]  %s5736, 32, %s5738, [#allocation6]
    $region41: #{encoder_forward.1} parent=1 // pred_fallthru
      _
    // Predicated region
    $region42: #{encoder_forward.1} parent=1 // pred_check
      _
    $region43: #{encoder_forward.1} parent=1 // pred_check_branch
      %5742 = sbr.rel (0) target = $region45
    $region44: #{encoder_forward.1} parent=1 // pred_region
      %5744 = dma.done [#allocation6], 32
    $region45: #{encoder_forward.1} parent=1 // pred_fallthru
      _
    %5745 = vsyncpa [#allocation6], 1

</llo_original>
